<compile_context>
chip_gen: v7x
topology: tpu7x:2x2x1
jax: 0.10.0
libtpu: 0.0.40
codegen_flags: <defaults>
</compile_context>

<pallas_src>
import jax
import jax.numpy as jnp
from jax import lax
from jax.experimental import pallas as pl
from jax.experimental.pallas import tpu as pltpu


def _silu_exact(x):
    return x * (1.0 / (1.0 + jnp.exp(-x)))


def _silu_fast(x):
    # sigmoid via EUP exp + approx reciprocal; only used on the low-impact
    # compress path (its output feeds a softmax of relative weights).
    return x * pl.reciprocal(1.0 + jnp.exp(-x), approx=True)


def _asff3_kernel(x1a_ref, x1b_ref, x2a_ref, x2b_ref, x3a_ref, x3b_ref,
                  wlev_ref, slev_ref, blev_ref, wl_ref, bl_ref,
                  wc_ref, sc_ref, bc_ref, o_ref):
    """Fused ASFF_3 forward for one (batch, row-tile) grid cell.

    x?a_ref : (1, TILE_H*Wp, C) bf16  body rows of zero-padded input ? (flat r*Wp+c)
    x?b_ref : (1, 2*Wp, C)      bf16  two bottom-halo rows of padded input ?
    wlev_ref: (3, C, 8)  bf16  1x1 compress-conv weights (levels 1..3)
    slev_ref: (3, 1, 8)  f32   folded BN scale  gamma/sqrt(var+eps)
    blev_ref: (3, 1, 8)  f32   folded BN bias   beta - mean*scale
    wl_ref  : (24, 3)    f32   weight_levels 1x1 conv weight (cat-channel, out)
    bl_ref  : (1, 3)     f32   weight_levels bias
    wc_ref  : (9*C, C)   bf16  3x3 conv weight, rows ordered (kh, kw, cin)
    sc_ref  : (1, C)     f32   folded BN scale of the output conv
    bc_ref  : (1, C)     f32   folded BN bias of the output conv
    o_ref   : (1, TILE_H, W, C) f32  output tile (NHWC)
    """
    f32 = jnp.float32
    tile_h, w_out, c = o_ref.shape[1], o_ref.shape[2], o_ref.shape[3]
    bb = x1b_ref.shape[1]          # 2 * Wp
    wp = bb // 2                   # padded row width
    pq = x1a_ref.shape[1]          # tile_h * Wp  (conv "query" rows)
    wl = wl_ref[...]               # (24, 3)

    def fuse(xs):
        """Per-pixel ASFF attention. xs = 3 x (R, C) bf16 -> fused (R, C) bf16."""
        # 1x1 compress conv + folded BN + SiLU per level -> (R, 8) f32.
        vs = [_silu_fast(jnp.dot(x, wlev_ref[i], preferred_element_type=f32)
                         * slev_ref[i] + blev_ref[i])
              for i, x in enumerate(xs)]
        # weight_levels: 1x1 conv (24 -> 3, with bias), then softmax over levels.
        logits = (jnp.dot(vs[0], wl[0:8], preferred_element_type=f32)
                  + jnp.dot(vs[1], wl[8:16], preferred_element_type=f32)
                  + jnp.dot(vs[2], wl[16:24], preferred_element_type=f32)
                  + bl_ref[...])                                    # (R, 3)
        e = jnp.exp(logits - jnp.max(logits, axis=-1, keepdims=True))
        a = e * pl.reciprocal(jnp.sum(e, axis=-1, keepdims=True), approx=True)
        fused = (a[:, 0:1] * xs[0].astype(f32)
                 + a[:, 1:2] * xs[1].astype(f32)
                 + a[:, 2:3] * xs[2].astype(f32))                   # (R, C) f32
        return fused.astype(jnp.bfloat16)

    fused_body = fuse([x1a_ref[0], x2a_ref[0], x3a_ref[0]])         # (pq, C)
    fused_halo = fuse([x1b_ref[0], x2b_ref[0], x3b_ref[0]])         # (bb, C)
    # Two zero guard rows so every im2col tap below is a full-length slice.
    fused = jnp.concatenate(
        [fused_body, fused_halo, jnp.zeros((2, c), jnp.bfloat16)], axis=0)

    # 3x3 conv (pad already in the data) as a SINGLE im2col matmul.
    # Flat row p maps to padded pixel (r, col) with p = r*Wp + col, so tap
    # (kh, kw) is simply the contiguous row-slice starting at kh*Wp + kw.
    taps = [fused[kh * wp + kw: kh * wp + kw + pq]
            for kh in range(3) for kw in range(3)]
    patch = jnp.concatenate(taps, axis=-1)                          # (pq, 9C)
    acc = jnp.dot(patch, wc_ref[...], preferred_element_type=f32)   # (pq, C)
    y = _silu_exact(acc * sc_ref[...] + bc_ref[...])                # BN + SiLU
    # Columns >= W of each row are W-padding -> drop them before the store.
    o_ref[0] = y.reshape(tile_h, wp, c)[:, :w_out, :]


def _fold_bn(gamma, beta, mean, var, eps=1e-3):
    scale = gamma / jnp.sqrt(var + eps)
    return scale.astype(jnp.float32), (beta - mean * scale).astype(jnp.float32)


def _pick_tile_h(h, wp, c, budget_bytes=8 << 20):
    """Largest even divisor of H whose per-step working set fits the budget."""
    per_row = wp * c * (3 * 2 * 2      # 3 bf16 inputs, double-buffered
                        + 4            # fused tile (f32 before cast)
                        + 2 * 9 * 2    # im2col taps + patch (bf16)
                        + 4            # f32 matmul accumulator
                        + 2 * 4)       # f32 output tile, double-buffered
    best = None
    for d in range(2, h + 1, 2):
        if h % d == 0 and d * per_row <= budget_bytes:
            best = d
    return best if best is not None else 2


def asff3_forward(x1, x2, x3, params, *, tile_h=None):
    """ASFF_3 forward (eval-mode BN). Inputs/outputs are NCHW float32."""
    n, c, h, w = x1.shape
    assert x2.shape == x1.shape and x3.shape == x1.shape
    assert c % 128 == 0, "keep the channel (lane) axis 128-dense"
    assert h % 2 == 0, "even H required for the 2-row halo block"  # TODO(synk): odd H

    # Pad W so the 2-row halo block (2*Wp flat rows) stays sublane-aligned.
    wp = ((w + 2 + 7) // 8) * 8
    if tile_h is None:
        tile_h = _pick_tile_h(h, wp, c)
    if h % tile_h != 0 or tile_h % 2 != 0:
        tile_h = h
    assert h % tile_h == 0 and tile_h % 2 == 0

    nh = h // tile_h
    ba = tile_h * wp                  # flat rows in a body block
    bb = 2 * wp                       # flat rows in a bottom-halo block

    def prep(x):
        # NCHW -> NHWC, bf16, zero-pad (1 row top/bottom, 1 col left, rest right),
        # flatten (H+2, Wp) -> rows so every kernel block is a simple 2-D slab.
        xt = jnp.transpose(x, (0, 2, 3, 1)).astype(jnp.bfloat16)
        xt = jnp.pad(xt, ((0, 0), (1, 1), (1, wp - w - 1), (0, 0)))
        return xt.reshape(n, (h + 2) * wp, c)

    x1f, x2f, x3f = prep(x1), prep(x2), prep(x3)

    # ---- fold parameters ----------------------------------------------------
    wlev = jnp.stack([jnp.transpose(params[f"lvl{i}_w"][:, :, 0, 0], (1, 0))
                      for i in (1, 2, 3)]).astype(jnp.bfloat16)      # (3, C, 8)
    slev, blev = [], []
    for i in (1, 2, 3):
        s, b = _fold_bn(params[f"lvl{i}_gamma"], params[f"lvl{i}_beta"],
                        params[f"lvl{i}_mean"], params[f"lvl{i}_var"])
        slev.append(s.reshape(1, -1))
        blev.append(b.reshape(1, -1))
    slev = jnp.stack(slev)                                           # (3, 1, 8)
    blev = jnp.stack(blev)

    wl = jnp.transpose(params["wlv_w"][:, :, 0, 0], (1, 0)).astype(jnp.float32)
    bl = params["wlv_b"].reshape(1, 3).astype(jnp.float32)

    # 3x3 conv weight OIHW -> (kh, kw, cin, cout) -> (9*C, C) for the im2col dot.
    wc = jnp.transpose(params["conv_w"], (2, 3, 1, 0)).reshape(9 * c, c)
    wc = wc.astype(jnp.bfloat16)
    sc, bc = _fold_bn(params["conv_gamma"], params["conv_beta"],
                      params["conv_mean"], params["conv_var"])
    sc, bc = sc.reshape(1, c), bc.reshape(1, c)

    # ---- BlockSpecs ----------------------------------------------------------
    body_spec = pl.BlockSpec((1, ba, c), lambda b_, t: (b_, t, 0))
    halo_spec = pl.BlockSpec((1, bb, c),
                             lambda b_, t: (b_, (t + 1) * (tile_h // 2), 0))
    const2 = lambda b_, t: (0, 0)
    const3 = lambda b_, t: (0, 0, 0)

    out_nhwc = pl.pallas_call(
        _asff3_kernel,
        out_shape=jax.ShapeDtypeStruct((n, h, w, c), jnp.float32),
        grid=(n, nh),
        in_specs=[
            body_spec, halo_spec,                 # input1 (two views of x1f)
            body_spec, halo_spec,                 # input2
            body_spec, halo_spec,                 # input3
            pl.BlockSpec((3, c, 8), const3),      # wlev
            pl.BlockSpec((3, 1, 8), const3),      # slev
            pl.BlockSpec((3, 1, 8), const3),      # blev
            pl.BlockSpec((24, 3), const2),        # wl
            pl.BlockSpec((1, 3), const2),         # bl
            pl.BlockSpec((9 * c, c), const2),     # wc
            pl.BlockSpec((1, c), const2),         # sc
            pl.BlockSpec((1, c), const2),         # bc
        ],
        out_specs=pl.BlockSpec((1, tile_h, w, c), lambda b_, t: (b_, t, 0, 0)),
        compiler_params=pltpu.CompilerParams(
            dimension_semantics=("parallel", "parallel")),
    )(x1f, x1f, x2f, x2f, x3f, x3f, wlev, slev, blev, wl, bl, wc, sc, bc)

    return jnp.transpose(out_nhwc, (0, 3, 1, 2))   # NHWC -> NCHW


# ------------------------------ reference -----------------------------------
def asff3_reference(x1, x2, x3, params, eps=1e-3):
    dn = ("NCHW", "OIHW", "NCHW")

    def bn(y, g, b, m, v):
        return (g[None, :, None, None] * (y - m[None, :, None, None])
                / jnp.sqrt(v[None, :, None, None] + eps) + b[None, :, None, None])

    def silu(y):
        return y * jax.nn.sigmoid(y)

    def level(x, i):
        y = lax.conv_general_dilated(x, params[f"lvl{i}_w"], (1, 1), "VALID",
                                     dimension_numbers=dn)
        return silu(bn(y, params[f"lvl{i}_gamma"], params[f"lvl{i}_beta"],
                       params[f"lvl{i}_mean"], params[f"lvl{i}_var"]))

    v = jnp.concatenate([level(x1, 1), level(x2, 2), level(x3, 3)], axis=1)
    logits = lax.conv_general_dilated(v, params["wlv_w"], (1, 1), "VALID",
                                      dimension_numbers=dn)
    logits = logits + params["wlv_b"][None, :, None, None]
    a = jax.nn.softmax(logits, axis=1)
    fused = x1 * a[:, 0:1] + x2 * a[:, 1:2] + x3 * a[:, 2:3]
    y = lax.conv_general_dilated(fused, params["conv_w"], (1, 1), "SAME",
                                 dimension_numbers=dn)
    y = bn(y, params["conv_gamma"], params["conv_beta"],
           params["conv_mean"], params["conv_var"])
    return silu(y)


def make_params(key, c, compress=8):
    ks = iter(jax.random.split(key, 32))

    def nrm(shape, scale=0.1):
        return scale * jax.random.normal(next(ks), shape, jnp.float32)

    p = {}
    for i in (1, 2, 3):
        p[f"lvl{i}_w"] = nrm((compress, c, 1, 1), c ** -0.5)
        p[f"lvl{i}_gamma"] = 1.0 + nrm((compress,))
        p[f"lvl{i}_beta"] = nrm((compress,))
        p[f"lvl{i}_mean"] = nrm((compress,))
        p[f"lvl{i}_var"] = 1.0 + jnp.abs(nrm((compress,)))
    p["wlv_w"] = nrm((3, 3 * compress, 1, 1), 0.2)
    p["wlv_b"] = nrm((3,))
    p["conv_w"] = nrm((c, c, 3, 3), (9.0 * c) ** -0.5)
    p["conv_gamma"] = 1.0 + nrm((c,))
    p["conv_beta"] = nrm((c,))
    p["conv_mean"] = nrm((c,))
    p["conv_var"] = 1.0 + jnp.abs(nrm((c,)))
    return p


if __name__ == "__main__":
    key = jax.random.PRNGKey(0)
    kx1, kx2, kx3, kp = jax.random.split(key, 4)

    # inter_dim = 128 keeps the channel/lane axis dense while staying small.
    N, C, H, W = 2, 128, 16, 16
    x1 = jax.random.normal(kx1, (N, C, H, W), jnp.float32)
    x2 = jax.random.normal(kx2, (N, C, H, W), jnp.float32)
    x3 = jax.random.normal(kx3, (N, C, H, W), jnp.float32)
    params = make_params(kp, C)

    fwd = jax.jit(asff3_forward)
    out = jax.block_until_ready(fwd(x1, x2, x3, params))
    ref = jax.block_until_ready(asff3_reference(x1, x2, x3, params))

    assert out.shape == (N, C, H, W)
    err = float(jnp.max(jnp.abs(out - ref)))
    # bf16 matmuls (f32 accumulation) vs. the pure-f32 reference.
    assert err < 7.5e-2, f"max abs err {err}"
    print("KERNEL_OK")
</pallas_src>

<mosaic_0001>
module attributes {stable_mosaic.version = 11 : i64} {
  func.func @_asff3_kernel(%arg0: i32, %arg1: i32, %arg2: memref<1x384x128xbf16, #tpu.memory_space<vmem>>, %arg3: memref<1x48x128xbf16, #tpu.memory_space<vmem>>, %arg4: memref<1x384x128xbf16, #tpu.memory_space<vmem>>, %arg5: memref<1x48x128xbf16, #tpu.memory_space<vmem>>, %arg6: memref<1x384x128xbf16, #tpu.memory_space<vmem>>, %arg7: memref<1x48x128xbf16, #tpu.memory_space<vmem>>, %arg8: memref<3x128x8xbf16, #tpu.memory_space<vmem>>, %arg9: memref<3x1x8xf32, #tpu.memory_space<vmem>>, %arg10: memref<3x1x8xf32, #tpu.memory_space<vmem>>, %arg11: memref<24x3xf32, #tpu.memory_space<vmem>>, %arg12: memref<1x3xf32, #tpu.memory_space<vmem>>, %arg13: memref<1152x128xbf16, #tpu.memory_space<vmem>>, %arg14: memref<1x128xf32, #tpu.memory_space<vmem>>, %arg15: memref<1x128xf32, #tpu.memory_space<vmem>>, %arg16: memref<1x16x16x128xf32, #tpu.memory_space<vmem>>) attributes {dimension_semantics = [#tpu.dimension_semantics<parallel>, #tpu.dimension_semantics<parallel>], iteration_bounds = array<i64: 2, 1>, scalar_prefetch = 0 : i64, scratch_operands = 0 : i64, tpu.core_type = #tpu.core_type<tc>, window_params = [{transform_indices = @transform_0, window_bounds = array<i64: 1, 384, 128>}, {transform_indices = @transform_1, window_bounds = array<i64: 1, 48, 128>}, {transform_indices = @transform_2, window_bounds = array<i64: 1, 384, 128>}, {transform_indices = @transform_3, window_bounds = array<i64: 1, 48, 128>}, {transform_indices = @transform_4, window_bounds = array<i64: 1, 384, 128>}, {transform_indices = @transform_5, window_bounds = array<i64: 1, 48, 128>}, {pipeline_mode = #tpu.pipeline_mode<synchronous>, transform_indices = @transform_6, window_bounds = array<i64: 3, 128, 8>}, {pipeline_mode = #tpu.pipeline_mode<synchronous>, transform_indices = @transform_7, window_bounds = array<i64: 3, 1, 8>}, {pipeline_mode = #tpu.pipeline_mode<synchronous>, transform_indices = @transform_8, window_bounds = array<i64: 3, 1, 8>}, {pipeline_mode = #tpu.pipeline_mode<synchronous>, transform_indices = @transform_9, window_bounds = array<i64: 24, 3>}, {pipeline_mode = #tpu.pipeline_mode<synchronous>, transform_indices = @transform_10, window_bounds = array<i64: 1, 3>}, {pipeline_mode = #tpu.pipeline_mode<synchronous>, transform_indices = @transform_11, window_bounds = array<i64: 1152, 128>}, {pipeline_mode = #tpu.pipeline_mode<synchronous>, transform_indices = @transform_12, window_bounds = array<i64: 1, 128>}, {pipeline_mode = #tpu.pipeline_mode<synchronous>, transform_indices = @transform_13, window_bounds = array<i64: 1, 128>}, {transform_indices = @transform_14, window_bounds = array<i64: 1, 16, 16, 128>}]} {
    %c0 = arith.constant 0 : index
    %c0_0 = arith.constant 0 : index
    %0 = vector.load %arg11[%c0, %c0_0] : memref<24x3xf32, #tpu.memory_space<vmem>>, vector<24x3xf32>
    %c0_1 = arith.constant 0 : index
    %c0_2 = arith.constant 0 : index
    %c0_3 = arith.constant 0 : index
    %1 = vector.load %arg2[%c0_1, %c0_2, %c0_3] : memref<1x384x128xbf16, #tpu.memory_space<vmem>>, vector<1x384x128xbf16>
    %2 = vector.shape_cast %1 : vector<1x384x128xbf16> to vector<384x128xbf16>
    %c0_4 = arith.constant 0 : index
    %c0_5 = arith.constant 0 : index
    %c0_6 = arith.constant 0 : index
    %3 = vector.load %arg4[%c0_4, %c0_5, %c0_6] : memref<1x384x128xbf16, #tpu.memory_space<vmem>>, vector<1x384x128xbf16>
    %4 = vector.shape_cast %3 : vector<1x384x128xbf16> to vector<384x128xbf16>
    %c0_7 = arith.constant 0 : index
    %c0_8 = arith.constant 0 : index
    %c0_9 = arith.constant 0 : index
    %5 = vector.load %arg6[%c0_7, %c0_8, %c0_9] : memref<1x384x128xbf16, #tpu.memory_space<vmem>>, vector<1x384x128xbf16>
    %6 = vector.shape_cast %5 : vector<1x384x128xbf16> to vector<384x128xbf16>
    %c0_10 = arith.constant 0 : index
    %c0_11 = arith.constant 0 : index
    %c0_12 = arith.constant 0 : index
    %7 = vector.load %arg8[%c0_10, %c0_11, %c0_12] : memref<3x128x8xbf16, #tpu.memory_space<vmem>>, vector<1x128x8xbf16>
    %8 = vector.shape_cast %7 : vector<1x128x8xbf16> to vector<128x8xbf16>
    %cst = arith.constant dense<0.000000e+00> : vector<384x8xf32>
    %9 = tpu.matmul %2, %8, %cst {dimension_numbers = #tpu.dot_dimension_numbers<[1], [0], [0], [1], [0, 0, 1, 1], [], []>} : vector<384x128xbf16>, vector<128x8xbf16>, vector<384x8xf32> -> vector<384x8xf32>
    %c0_13 = arith.constant 0 : index
    %c0_14 = arith.constant 0 : index
    %c0_15 = arith.constant 0 : index
    %10 = vector.load %arg9[%c0_13, %c0_14, %c0_15] : memref<3x1x8xf32, #tpu.memory_space<vmem>>, vector<1x1x8xf32>
    %11 = vector.shape_cast %10 : vector<1x1x8xf32> to vector<1x8xf32>
    %12 = vector.broadcast %11 : vector<1x8xf32> to vector<384x8xf32>
    %13 = arith.mulf %9, %12 : vector<384x8xf32>
    %c0_16 = arith.constant 0 : index
    %c0_17 = arith.constant 0 : index
    %c0_18 = arith.constant 0 : index
    %14 = vector.load %arg10[%c0_16, %c0_17, %c0_18] : memref<3x1x8xf32, #tpu.memory_space<vmem>>, vector<1x1x8xf32>
    %15 = vector.shape_cast %14 : vector<1x1x8xf32> to vector<1x8xf32>
    %16 = vector.broadcast %15 : vector<1x8xf32> to vector<384x8xf32>
    %17 = arith.addf %13, %16 : vector<384x8xf32>
    %cst_19 = arith.constant 0.000000e+00 : f32
    %18 = vector.broadcast %cst_19 : f32 to vector<384x8xf32>
    %19 = arith.subf %18, %17 : vector<384x8xf32>
    %20 = math.exp %19 : vector<384x8xf32>
    %cst_20 = arith.constant 1.000000e+00 : f32
    %21 = vector.broadcast %cst_20 : f32 to vector<384x8xf32>
    %22 = arith.addf %21, %20 : vector<384x8xf32>
    %23 = tpu.reciprocal %22 {approx = true} : vector<384x8xf32> -> vector<384x8xf32>
    %24 = arith.mulf %17, %23 : vector<384x8xf32>
    %c1 = arith.constant 1 : index
    %c0_21 = arith.constant 0 : index
    %c0_22 = arith.constant 0 : index
    %25 = vector.load %arg8[%c1, %c0_21, %c0_22] : memref<3x128x8xbf16, #tpu.memory_space<vmem>>, vector<1x128x8xbf16>
    %26 = vector.shape_cast %25 : vector<1x128x8xbf16> to vector<128x8xbf16>
    %cst_23 = arith.constant dense<0.000000e+00> : vector<384x8xf32>
    %27 = tpu.matmul %4, %26, %cst_23 {dimension_numbers = #tpu.dot_dimension_numbers<[1], [0], [0], [1], [0, 0, 1, 1], [], []>} : vector<384x128xbf16>, vector<128x8xbf16>, vector<384x8xf32> -> vector<384x8xf32>
    %c1_24 = arith.constant 1 : index
    %c0_25 = arith.constant 0 : index
    %c0_26 = arith.constant 0 : index
    %28 = vector.load %arg9[%c1_24, %c0_25, %c0_26] : memref<3x1x8xf32, #tpu.memory_space<vmem>>, vector<1x1x8xf32>
    %29 = vector.shape_cast %28 : vector<1x1x8xf32> to vector<1x8xf32>
    %30 = vector.broadcast %29 : vector<1x8xf32> to vector<384x8xf32>
    %31 = arith.mulf %27, %30 : vector<384x8xf32>
    %c1_27 = arith.constant 1 : index
    %c0_28 = arith.constant 0 : index
    %c0_29 = arith.constant 0 : index
    %32 = vector.load %arg10[%c1_27, %c0_28, %c0_29] : memref<3x1x8xf32, #tpu.memory_space<vmem>>, vector<1x1x8xf32>
    %33 = vector.shape_cast %32 : vector<1x1x8xf32> to vector<1x8xf32>
    %34 = vector.broadcast %33 : vector<1x8xf32> to vector<384x8xf32>
    %35 = arith.addf %31, %34 : vector<384x8xf32>
    %cst_30 = arith.constant 0.000000e+00 : f32
    %36 = vector.broadcast %cst_30 : f32 to vector<384x8xf32>
    %37 = arith.subf %36, %35 : vector<384x8xf32>
    %38 = math.exp %37 : vector<384x8xf32>
    %cst_31 = arith.constant 1.000000e+00 : f32
    %39 = vector.broadcast %cst_31 : f32 to vector<384x8xf32>
    %40 = arith.addf %39, %38 : vector<384x8xf32>
    %41 = tpu.reciprocal %40 {approx = true} : vector<384x8xf32> -> vector<384x8xf32>
    %42 = arith.mulf %35, %41 : vector<384x8xf32>
    %c2 = arith.constant 2 : index
    %c0_32 = arith.constant 0 : index
    %c0_33 = arith.constant 0 : index
    %43 = vector.load %arg8[%c2, %c0_32, %c0_33] : memref<3x128x8xbf16, #tpu.memory_space<vmem>>, vector<1x128x8xbf16>
    %44 = vector.shape_cast %43 : vector<1x128x8xbf16> to vector<128x8xbf16>
    %cst_34 = arith.constant dense<0.000000e+00> : vector<384x8xf32>
    %45 = tpu.matmul %6, %44, %cst_34 {dimension_numbers = #tpu.dot_dimension_numbers<[1], [0], [0], [1], [0, 0, 1, 1], [], []>} : vector<384x128xbf16>, vector<128x8xbf16>, vector<384x8xf32> -> vector<384x8xf32>
    %c2_35 = arith.constant 2 : index
    %c0_36 = arith.constant 0 : index
    %c0_37 = arith.constant 0 : index
    %46 = vector.load %arg9[%c2_35, %c0_36, %c0_37] : memref<3x1x8xf32, #tpu.memory_space<vmem>>, vector<1x1x8xf32>
    %47 = vector.shape_cast %46 : vector<1x1x8xf32> to vector<1x8xf32>
    %48 = vector.broadcast %47 : vector<1x8xf32> to vector<384x8xf32>
    %49 = arith.mulf %45, %48 : vector<384x8xf32>
    %c2_38 = arith.constant 2 : index
    %c0_39 = arith.constant 0 : index
    %c0_40 = arith.constant 0 : index
    %50 = vector.load %arg10[%c2_38, %c0_39, %c0_40] : memref<3x1x8xf32, #tpu.memory_space<vmem>>, vector<1x1x8xf32>
    %51 = vector.shape_cast %50 : vector<1x1x8xf32> to vector<1x8xf32>
    %52 = vector.broadcast %51 : vector<1x8xf32> to vector<384x8xf32>
    %53 = arith.addf %49, %52 : vector<384x8xf32>
    %cst_41 = arith.constant 0.000000e+00 : f32
    %54 = vector.broadcast %cst_41 : f32 to vector<384x8xf32>
    %55 = arith.subf %54, %53 : vector<384x8xf32>
    %56 = math.exp %55 : vector<384x8xf32>
    %cst_42 = arith.constant 1.000000e+00 : f32
    %57 = vector.broadcast %cst_42 : f32 to vector<384x8xf32>
    %58 = arith.addf %57, %56 : vector<384x8xf32>
    %59 = tpu.reciprocal %58 {approx = true} : vector<384x8xf32> -> vector<384x8xf32>
    %60 = arith.mulf %53, %59 : vector<384x8xf32>
    %61 = vector.extract_strided_slice %0 {offsets = [0, 0], sizes = [8, 3], strides = [1, 1]} : vector<24x3xf32> to vector<8x3xf32>
    %cst_43 = arith.constant dense<0.000000e+00> : vector<384x3xf32>
    %62 = tpu.matmul %24, %61, %cst_43 {dimension_numbers = #tpu.dot_dimension_numbers<[1], [0], [0], [1], [0, 0, 1, 1], [], []>} : vector<384x8xf32>, vector<8x3xf32>, vector<384x3xf32> -> vector<384x3xf32>
    %63 = vector.extract_strided_slice %0 {offsets = [8, 0], sizes = [8, 3], strides = [1, 1]} : vector<24x3xf32> to vector<8x3xf32>
    %cst_44 = arith.constant dense<0.000000e+00> : vector<384x3xf32>
    %64 = tpu.matmul %42, %63, %cst_44 {dimension_numbers = #tpu.dot_dimension_numbers<[1], [0], [0], [1], [0, 0, 1, 1], [], []>} : vector<384x8xf32>, vector<8x3xf32>, vector<384x3xf32> -> vector<384x3xf32>
    %65 = arith.addf %62, %64 : vector<384x3xf32>
    %66 = vector.extract_strided_slice %0 {offsets = [16, 0], sizes = [8, 3], strides = [1, 1]} : vector<24x3xf32> to vector<8x3xf32>
    %cst_45 = arith.constant dense<0.000000e+00> : vector<384x3xf32>
    %67 = tpu.matmul %60, %66, %cst_45 {dimension_numbers = #tpu.dot_dimension_numbers<[1], [0], [0], [1], [0, 0, 1, 1], [], []>} : vector<384x8xf32>, vector<8x3xf32>, vector<384x3xf32> -> vector<384x3xf32>
    %68 = arith.addf %65, %67 : vector<384x3xf32>
    %c0_46 = arith.constant 0 : index
    %c0_47 = arith.constant 0 : index
    %69 = vector.load %arg12[%c0_46, %c0_47] : memref<1x3xf32, #tpu.memory_space<vmem>>, vector<1x3xf32>
    %70 = vector.broadcast %69 : vector<1x3xf32> to vector<384x3xf32>
    %71 = arith.addf %68, %70 : vector<384x3xf32>
    %cst_48 = arith.constant dense<0xFF800000> : vector<384xf32>
    %72 = vector.multi_reduction <maximumf>, %71, %cst_48 [1] : vector<384x3xf32> to vector<384xf32>
    %73 = vector.shape_cast %72 : vector<384xf32> to vector<384x1xf32>
    %74 = vector.broadcast %73 : vector<384x1xf32> to vector<384x3xf32>
    %75 = arith.subf %71, %74 : vector<384x3xf32>
    %76 = math.exp %75 : vector<384x3xf32>
    %cst_49 = arith.constant dense<0.000000e+00> : vector<384xf32>
    %77 = vector.multi_reduction <add>, %76, %cst_49 [1] : vector<384x3xf32> to vector<384xf32>
    %78 = vector.shape_cast %77 : vector<384xf32> to vector<384x1xf32>
    %79 = tpu.reciprocal %78 {approx = true} : vector<384x1xf32> -> vector<384x1xf32>
    %80 = vector.broadcast %79 : vector<384x1xf32> to vector<384x3xf32>
    %81 = arith.mulf %76, %80 : vector<384x3xf32>
    %82 = vector.extract_strided_slice %81 {offsets = [0, 0], sizes = [384, 1], strides = [1, 1]} : vector<384x3xf32> to vector<384x1xf32>
    %83 = arith.extf %2 : vector<384x128xbf16> to vector<384x128xf32>
    %84 = vector.broadcast %82 : vector<384x1xf32> to vector<384x128xf32>
    %85 = arith.mulf %84, %83 : vector<384x128xf32>
    %86 = vector.extract_strided_slice %81 {offsets = [0, 1], sizes = [384, 1], strides = [1, 1]} : vector<384x3xf32> to vector<384x1xf32>
    %87 = arith.extf %4 : vector<384x128xbf16> to vector<384x128xf32>
    %88 = vector.broadcast %86 : vector<384x1xf32> to vector<384x128xf32>
    %89 = arith.mulf %88, %87 : vector<384x128xf32>
    %90 = arith.addf %85, %89 : vector<384x128xf32>
    %91 = vector.extract_strided_slice %81 {offsets = [0, 2], sizes = [384, 1], strides = [1, 1]} : vector<384x3xf32> to vector<384x1xf32>
    %92 = arith.extf %6 : vector<384x128xbf16> to vector<384x128xf32>
    %93 = vector.broadcast %91 : vector<384x1xf32> to vector<384x128xf32>
    %94 = arith.mulf %93, %92 : vector<384x128xf32>
    %95 = arith.addf %90, %94 : vector<384x128xf32>
    %96 = arith.truncf %95 : vector<384x128xf32> to vector<384x128xbf16>
    %c0_50 = arith.constant 0 : index
    %c0_51 = arith.constant 0 : index
    %c0_52 = arith.constant 0 : index
    %97 = vector.load %arg3[%c0_50, %c0_51, %c0_52] : memref<1x48x128xbf16, #tpu.memory_space<vmem>>, vector<1x48x128xbf16>
    %98 = vector.shape_cast %97 : vector<1x48x128xbf16> to vector<48x128xbf16>
    %c0_53 = arith.constant 0 : index
    %c0_54 = arith.constant 0 : index
    %c0_55 = arith.constant 0 : index
    %99 = vector.load %arg5[%c0_53, %c0_54, %c0_55] : memref<1x48x128xbf16, #tpu.memory_space<vmem>>, vector<1x48x128xbf16>
    %100 = vector.shape_cast %99 : vector<1x48x128xbf16> to vector<48x128xbf16>
    %c0_56 = arith.constant 0 : index
    %c0_57 = arith.constant 0 : index
    %c0_58 = arith.constant 0 : index
    %101 = vector.load %arg7[%c0_56, %c0_57, %c0_58] : memref<1x48x128xbf16, #tpu.memory_space<vmem>>, vector<1x48x128xbf16>
    %102 = vector.shape_cast %101 : vector<1x48x128xbf16> to vector<48x128xbf16>
    %c0_59 = arith.constant 0 : index
    %c0_60 = arith.constant 0 : index
    %c0_61 = arith.constant 0 : index
    %103 = vector.load %arg8[%c0_59, %c0_60, %c0_61] : memref<3x128x8xbf16, #tpu.memory_space<vmem>>, vector<1x128x8xbf16>
    %104 = vector.shape_cast %103 : vector<1x128x8xbf16> to vector<128x8xbf16>
    %cst_62 = arith.constant dense<0.000000e+00> : vector<48x8xf32>
    %105 = tpu.matmul %98, %104, %cst_62 {dimension_numbers = #tpu.dot_dimension_numbers<[1], [0], [0], [1], [0, 0, 1, 1], [], []>} : vector<48x128xbf16>, vector<128x8xbf16>, vector<48x8xf32> -> vector<48x8xf32>
    %c0_63 = arith.constant 0 : index
    %c0_64 = arith.constant 0 : index
    %c0_65 = arith.constant 0 : index
    %106 = vector.load %arg9[%c0_63, %c0_64, %c0_65] : memref<3x1x8xf32, #tpu.memory_space<vmem>>, vector<1x1x8xf32>
    %107 = vector.shape_cast %106 : vector<1x1x8xf32> to vector<1x8xf32>
    %108 = vector.broadcast %107 : vector<1x8xf32> to vector<48x8xf32>
    %109 = arith.mulf %105, %108 : vector<48x8xf32>
    %c0_66 = arith.constant 0 : index
    %c0_67 = arith.constant 0 : index
    %c0_68 = arith.constant 0 : index
    %110 = vector.load %arg10[%c0_66, %c0_67, %c0_68] : memref<3x1x8xf32, #tpu.memory_space<vmem>>, vector<1x1x8xf32>
    %111 = vector.shape_cast %110 : vector<1x1x8xf32> to vector<1x8xf32>
    %112 = vector.broadcast %111 : vector<1x8xf32> to vector<48x8xf32>
    %113 = arith.addf %109, %112 : vector<48x8xf32>
    %cst_69 = arith.constant 0.000000e+00 : f32
    %114 = vector.broadcast %cst_69 : f32 to vector<48x8xf32>
    %115 = arith.subf %114, %113 : vector<48x8xf32>
    %116 = math.exp %115 : vector<48x8xf32>
    %cst_70 = arith.constant 1.000000e+00 : f32
    %117 = vector.broadcast %cst_70 : f32 to vector<48x8xf32>
    %118 = arith.addf %117, %116 : vector<48x8xf32>
    %119 = tpu.reciprocal %118 {approx = true} : vector<48x8xf32> -> vector<48x8xf32>
    %120 = arith.mulf %113, %119 : vector<48x8xf32>
    %c1_71 = arith.constant 1 : index
    %c0_72 = arith.constant 0 : index
    %c0_73 = arith.constant 0 : index
    %121 = vector.load %arg8[%c1_71, %c0_72, %c0_73] : memref<3x128x8xbf16, #tpu.memory_space<vmem>>, vector<1x128x8xbf16>
    %122 = vector.shape_cast %121 : vector<1x128x8xbf16> to vector<128x8xbf16>
    %cst_74 = arith.constant dense<0.000000e+00> : vector<48x8xf32>
    %123 = tpu.matmul %100, %122, %cst_74 {dimension_numbers = #tpu.dot_dimension_numbers<[1], [0], [0], [1], [0, 0, 1, 1], [], []>} : vector<48x128xbf16>, vector<128x8xbf16>, vector<48x8xf32> -> vector<48x8xf32>
    %c1_75 = arith.constant 1 : index
    %c0_76 = arith.constant 0 : index
    %c0_77 = arith.constant 0 : index
    %124 = vector.load %arg9[%c1_75, %c0_76, %c0_77] : memref<3x1x8xf32, #tpu.memory_space<vmem>>, vector<1x1x8xf32>
    %125 = vector.shape_cast %124 : vector<1x1x8xf32> to vector<1x8xf32>
    %126 = vector.broadcast %125 : vector<1x8xf32> to vector<48x8xf32>
    %127 = arith.mulf %123, %126 : vector<48x8xf32>
    %c1_78 = arith.constant 1 : index
    %c0_79 = arith.constant 0 : index
    %c0_80 = arith.constant 0 : index
    %128 = vector.load %arg10[%c1_78, %c0_79, %c0_80] : memref<3x1x8xf32, #tpu.memory_space<vmem>>, vector<1x1x8xf32>
    %129 = vector.shape_cast %128 : vector<1x1x8xf32> to vector<1x8xf32>
    %130 = vector.broadcast %129 : vector<1x8xf32> to vector<48x8xf32>
    %131 = arith.addf %127, %130 : vector<48x8xf32>
    %cst_81 = arith.constant 0.000000e+00 : f32
    %132 = vector.broadcast %cst_81 : f32 to vector<48x8xf32>
    %133 = arith.subf %132, %131 : vector<48x8xf32>
    %134 = math.exp %133 : vector<48x8xf32>
    %cst_82 = arith.constant 1.000000e+00 : f32
    %135 = vector.broadcast %cst_82 : f32 to vector<48x8xf32>
    %136 = arith.addf %135, %134 : vector<48x8xf32>
    %137 = tpu.reciprocal %136 {approx = true} : vector<48x8xf32> -> vector<48x8xf32>
    %138 = arith.mulf %131, %137 : vector<48x8xf32>
    %c2_83 = arith.constant 2 : index
    %c0_84 = arith.constant 0 : index
    %c0_85 = arith.constant 0 : index
    %139 = vector.load %arg8[%c2_83, %c0_84, %c0_85] : memref<3x128x8xbf16, #tpu.memory_space<vmem>>, vector<1x128x8xbf16>
    %140 = vector.shape_cast %139 : vector<1x128x8xbf16> to vector<128x8xbf16>
    %cst_86 = arith.constant dense<0.000000e+00> : vector<48x8xf32>
    %141 = tpu.matmul %102, %140, %cst_86 {dimension_numbers = #tpu.dot_dimension_numbers<[1], [0], [0], [1], [0, 0, 1, 1], [], []>} : vector<48x128xbf16>, vector<128x8xbf16>, vector<48x8xf32> -> vector<48x8xf32>
    %c2_87 = arith.constant 2 : index
    %c0_88 = arith.constant 0 : index
    %c0_89 = arith.constant 0 : index
    %142 = vector.load %arg9[%c2_87, %c0_88, %c0_89] : memref<3x1x8xf32, #tpu.memory_space<vmem>>, vector<1x1x8xf32>
    %143 = vector.shape_cast %142 : vector<1x1x8xf32> to vector<1x8xf32>
    %144 = vector.broadcast %143 : vector<1x8xf32> to vector<48x8xf32>
    %145 = arith.mulf %141, %144 : vector<48x8xf32>
    %c2_90 = arith.constant 2 : index
    %c0_91 = arith.constant 0 : index
    %c0_92 = arith.constant 0 : index
    %146 = vector.load %arg10[%c2_90, %c0_91, %c0_92] : memref<3x1x8xf32, #tpu.memory_space<vmem>>, vector<1x1x8xf32>
    %147 = vector.shape_cast %146 : vector<1x1x8xf32> to vector<1x8xf32>
    %148 = vector.broadcast %147 : vector<1x8xf32> to vector<48x8xf32>
    %149 = arith.addf %145, %148 : vector<48x8xf32>
    %cst_93 = arith.constant 0.000000e+00 : f32
    %150 = vector.broadcast %cst_93 : f32 to vector<48x8xf32>
    %151 = arith.subf %150, %149 : vector<48x8xf32>
    %152 = math.exp %151 : vector<48x8xf32>
    %cst_94 = arith.constant 1.000000e+00 : f32
    %153 = vector.broadcast %cst_94 : f32 to vector<48x8xf32>
    %154 = arith.addf %153, %152 : vector<48x8xf32>
    %155 = tpu.reciprocal %154 {approx = true} : vector<48x8xf32> -> vector<48x8xf32>
    %156 = arith.mulf %149, %155 : vector<48x8xf32>
    %157 = vector.extract_strided_slice %0 {offsets = [0, 0], sizes = [8, 3], strides = [1, 1]} : vector<24x3xf32> to vector<8x3xf32>
    %cst_95 = arith.constant dense<0.000000e+00> : vector<48x3xf32>
    %158 = tpu.matmul %120, %157, %cst_95 {dimension_numbers = #tpu.dot_dimension_numbers<[1], [0], [0], [1], [0, 0, 1, 1], [], []>} : vector<48x8xf32>, vector<8x3xf32>, vector<48x3xf32> -> vector<48x3xf32>
    %159 = vector.extract_strided_slice %0 {offsets = [8, 0], sizes = [8, 3], strides = [1, 1]} : vector<24x3xf32> to vector<8x3xf32>
    %cst_96 = arith.constant dense<0.000000e+00> : vector<48x3xf32>
    %160 = tpu.matmul %138, %159, %cst_96 {dimension_numbers = #tpu.dot_dimension_numbers<[1], [0], [0], [1], [0, 0, 1, 1], [], []>} : vector<48x8xf32>, vector<8x3xf32>, vector<48x3xf32> -> vector<48x3xf32>
    %161 = arith.addf %158, %160 : vector<48x3xf32>
    %162 = vector.extract_strided_slice %0 {offsets = [16, 0], sizes = [8, 3], strides = [1, 1]} : vector<24x3xf32> to vector<8x3xf32>
    %cst_97 = arith.constant dense<0.000000e+00> : vector<48x3xf32>
    %163 = tpu.matmul %156, %162, %cst_97 {dimension_numbers = #tpu.dot_dimension_numbers<[1], [0], [0], [1], [0, 0, 1, 1], [], []>} : vector<48x8xf32>, vector<8x3xf32>, vector<48x3xf32> -> vector<48x3xf32>
    %164 = arith.addf %161, %163 : vector<48x3xf32>
    %c0_98 = arith.constant 0 : index
    %c0_99 = arith.constant 0 : index
    %165 = vector.load %arg12[%c0_98, %c0_99] : memref<1x3xf32, #tpu.memory_space<vmem>>, vector<1x3xf32>
    %166 = vector.broadcast %165 : vector<1x3xf32> to vector<48x3xf32>
    %167 = arith.addf %164, %166 : vector<48x3xf32>
    %cst_100 = arith.constant dense<0xFF800000> : vector<48xf32>
    %168 = vector.multi_reduction <maximumf>, %167, %cst_100 [1] : vector<48x3xf32> to vector<48xf32>
    %169 = vector.shape_cast %168 : vector<48xf32> to vector<48x1xf32>
    %170 = vector.broadcast %169 : vector<48x1xf32> to vector<48x3xf32>
    %171 = arith.subf %167, %170 : vector<48x3xf32>
    %172 = math.exp %171 : vector<48x3xf32>
    %cst_101 = arith.constant dense<0.000000e+00> : vector<48xf32>
    %173 = vector.multi_reduction <add>, %172, %cst_101 [1] : vector<48x3xf32> to vector<48xf32>
    %174 = vector.shape_cast %173 : vector<48xf32> to vector<48x1xf32>
    %175 = tpu.reciprocal %174 {approx = true} : vector<48x1xf32> -> vector<48x1xf32>
    %176 = vector.broadcast %175 : vector<48x1xf32> to vector<48x3xf32>
    %177 = arith.mulf %172, %176 : vector<48x3xf32>
    %178 = vector.extract_strided_slice %177 {offsets = [0, 0], sizes = [48, 1], strides = [1, 1]} : vector<48x3xf32> to vector<48x1xf32>
    %179 = arith.extf %98 : vector<48x128xbf16> to vector<48x128xf32>
    %180 = vector.broadcast %178 : vector<48x1xf32> to vector<48x128xf32>
    %181 = arith.mulf %180, %179 : vector<48x128xf32>
    %182 = vector.extract_strided_slice %177 {offsets = [0, 1], sizes = [48, 1], strides = [1, 1]} : vector<48x3xf32> to vector<48x1xf32>
    %183 = arith.extf %100 : vector<48x128xbf16> to vector<48x128xf32>
    %184 = vector.broadcast %182 : vector<48x1xf32> to vector<48x128xf32>
    %185 = arith.mulf %184, %183 : vector<48x128xf32>
    %186 = arith.addf %181, %185 : vector<48x128xf32>
    %187 = vector.extract_strided_slice %177 {offsets = [0, 2], sizes = [48, 1], strides = [1, 1]} : vector<48x3xf32> to vector<48x1xf32>
    %188 = arith.extf %102 : vector<48x128xbf16> to vector<48x128xf32>
    %189 = vector.broadcast %187 : vector<48x1xf32> to vector<48x128xf32>
    %190 = arith.mulf %189, %188 : vector<48x128xf32>
    %191 = arith.addf %186, %190 : vector<48x128xf32>
    %192 = arith.truncf %191 : vector<48x128xf32> to vector<48x128xbf16>
    %cst_102 = arith.constant 0.000000e+00 : bf16
    %193 = vector.broadcast %cst_102 : bf16 to vector<2x128xbf16>
    %194 = tpu.concatenate %96, %192, %193 in 0 : vector<384x128xbf16>, vector<48x128xbf16>, vector<2x128xbf16> -> vector<434x128xbf16>
    %195 = vector.extract_strided_slice %194 {offsets = [0, 0], sizes = [384, 128], strides = [1, 1]} : vector<434x128xbf16> to vector<384x128xbf16>
    %196 = vector.extract_strided_slice %194 {offsets = [1, 0], sizes = [384, 128], strides = [1, 1]} : vector<434x128xbf16> to vector<384x128xbf16>
    %197 = vector.extract_strided_slice %194 {offsets = [2, 0], sizes = [384, 128], strides = [1, 1]} : vector<434x128xbf16> to vector<384x128xbf16>
    %198 = vector.extract_strided_slice %194 {offsets = [24, 0], sizes = [384, 128], strides = [1, 1]} : vector<434x128xbf16> to vector<384x128xbf16>
    %199 = vector.extract_strided_slice %194 {offsets = [25, 0], sizes = [384, 128], strides = [1, 1]} : vector<434x128xbf16> to vector<384x128xbf16>
    %200 = vector.extract_strided_slice %194 {offsets = [26, 0], sizes = [384, 128], strides = [1, 1]} : vector<434x128xbf16> to vector<384x128xbf16>
    %201 = vector.extract_strided_slice %194 {offsets = [48, 0], sizes = [384, 128], strides = [1, 1]} : vector<434x128xbf16> to vector<384x128xbf16>
    %202 = vector.extract_strided_slice %194 {offsets = [49, 0], sizes = [384, 128], strides = [1, 1]} : vector<434x128xbf16> to vector<384x128xbf16>
    %203 = vector.extract_strided_slice %194 {offsets = [50, 0], sizes = [384, 128], strides = [1, 1]} : vector<434x128xbf16> to vector<384x128xbf16>
    %204 = tpu.concatenate %195, %196, %197, %198, %199, %200, %201, %202, %203 in 1 : vector<384x128xbf16>, vector<384x128xbf16>, vector<384x128xbf16>, vector<384x128xbf16>, vector<384x128xbf16>, vector<384x128xbf16>, vector<384x128xbf16>, vector<384x128xbf16>, vector<384x128xbf16> -> vector<384x1152xbf16>
    %c0_103 = arith.constant 0 : index
    %c0_104 = arith.constant 0 : index
    %205 = vector.load %arg13[%c0_103, %c0_104] : memref<1152x128xbf16, #tpu.memory_space<vmem>>, vector<1152x128xbf16>
    %cst_105 = arith.constant dense<0.000000e+00> : vector<384x128xf32>
    %206 = tpu.matmul %204, %205, %cst_105 {dimension_numbers = #tpu.dot_dimension_numbers<[1], [0], [0], [1], [0, 0, 1, 1], [], []>} : vector<384x1152xbf16>, vector<1152x128xbf16>, vector<384x128xf32> -> vector<384x128xf32>
    %c0_106 = arith.constant 0 : index
    %c0_107 = arith.constant 0 : index
    %207 = vector.load %arg14[%c0_106, %c0_107] : memref<1x128xf32, #tpu.memory_space<vmem>>, vector<1x128xf32>
    %208 = vector.broadcast %207 : vector<1x128xf32> to vector<384x128xf32>
    %209 = arith.mulf %206, %208 : vector<384x128xf32>
    %c0_108 = arith.constant 0 : index
    %c0_109 = arith.constant 0 : index
    %210 = vector.load %arg15[%c0_108, %c0_109] : memref<1x128xf32, #tpu.memory_space<vmem>>, vector<1x128xf32>
    %211 = vector.broadcast %210 : vector<1x128xf32> to vector<384x128xf32>
    %212 = arith.addf %209, %211 : vector<384x128xf32>
    %cst_110 = arith.constant 0.000000e+00 : f32
    %213 = vector.broadcast %cst_110 : f32 to vector<384x128xf32>
    %214 = arith.subf %213, %212 : vector<384x128xf32>
    %215 = math.exp %214 : vector<384x128xf32>
    %cst_111 = arith.constant 1.000000e+00 : f32
    %216 = vector.broadcast %cst_111 : f32 to vector<384x128xf32>
    %217 = arith.addf %216, %215 : vector<384x128xf32>
    %cst_112 = arith.constant 1.000000e+00 : f32
    %218 = vector.broadcast %cst_112 : f32 to vector<384x128xf32>
    %219 = arith.divf %218, %217 : vector<384x128xf32>
    %220 = arith.mulf %212, %219 : vector<384x128xf32>
    %221 = vector.shape_cast %220 : vector<384x128xf32> to vector<16x24x128xf32>
    %222 = vector.extract_strided_slice %221 {offsets = [0, 0, 0], sizes = [16, 16, 128], strides = [1, 1, 1]} : vector<16x24x128xf32> to vector<16x16x128xf32>
    %c0_113 = arith.constant 0 : index
    %c0_114 = arith.constant 0 : index
    %c0_115 = arith.constant 0 : index
    %c0_116 = arith.constant 0 : index
    %223 = vector.load %arg16[%c0_113, %c0_114, %c0_115, %c0_116] : memref<1x16x16x128xf32, #tpu.memory_space<vmem>>, vector<1x16x16x128xf32>
    %224 = vector.shape_cast %223 : vector<1x16x16x128xf32> to vector<16x16x128xf32>
    %225 = vector.shape_cast %222 : vector<16x16x128xf32> to vector<1x16x16x128xf32>
    tpu.vector_store %arg16[%c0_113, %c0_114, %c0_115, %c0_116], %225 {strides = array<i32>} : memref<1x16x16x128xf32, #tpu.memory_space<vmem>>, vector<1x16x16x128xf32>,
    return
  }
  func.func @transform_0(%arg0: i32, %arg1: i32) -> (i32, i32, i32) {
    %c0_i32 = arith.constant 0 : i32
    %c0_i32_0 = arith.constant 0 : i32
    return %arg0, %arg1, %c0_i32 : i32, i32, i32
  }
  func.func @transform_1(%arg0: i32, %arg1: i32) -> (i32, i32, i32) {
    %c1_i32 = arith.constant 1 : i32
    %0 = arith.addi %arg1, %c1_i32 : i32
    %c8_i32 = arith.constant 8 : i32
    %1 = arith.muli %0, %c8_i32 : i32
    %c0_i32 = arith.constant 0 : i32
    %c0_i32_0 = arith.constant 0 : i32
    return %arg0, %1, %c0_i32 : i32, i32, i32
  }
  func.func @transform_2(%arg0: i32, %arg1: i32) -> (i32, i32, i32) {
    %c0_i32 = arith.constant 0 : i32
    %c0_i32_0 = arith.constant 0 : i32
    return %arg0, %arg1, %c0_i32 : i32, i32, i32
  }
  func.func @transform_3(%arg0: i32, %arg1: i32) -> (i32, i32, i32) {
    %c1_i32 = arith.constant 1 : i32
    %0 = arith.addi %arg1, %c1_i32 : i32
    %c8_i32 = arith.constant 8 : i32
    %1 = arith.muli %0, %c8_i32 : i32
    %c0_i32 = arith.constant 0 : i32
    %c0_i32_0 = arith.constant 0 : i32
    return %arg0, %1, %c0_i32 : i32, i32, i32
  }
  func.func @transform_4(%arg0: i32, %arg1: i32) -> (i32, i32, i32) {
    %c0_i32 = arith.constant 0 : i32
    %c0_i32_0 = arith.constant 0 : i32
    return %arg0, %arg1, %c0_i32 : i32, i32, i32
  }
  func.func @transform_5(%arg0: i32, %arg1: i32) -> (i32, i32, i32) {
    %c1_i32 = arith.constant 1 : i32
    %0 = arith.addi %arg1, %c1_i32 : i32
    %c8_i32 = arith.constant 8 : i32
    %1 = arith.muli %0, %c8_i32 : i32
    %c0_i32 = arith.constant 0 : i32
    %c0_i32_0 = arith.constant 0 : i32
    return %arg0, %1, %c0_i32 : i32, i32, i32
  }
  func.func @transform_6(%arg0: i32, %arg1: i32) -> (i32, i32, i32) {
    %c0_i32 = arith.constant 0 : i32
    %c0_i32_0 = arith.constant 0 : i32
    %c0_i32_1 = arith.constant 0 : i32
    %c0_i32_2 = arith.constant 0 : i32
    return %c0_i32, %c0_i32_0, %c0_i32_1 : i32, i32, i32
  }
  func.func @transform_7(%arg0: i32, %arg1: i32) -> (i32, i32, i32) {
    %c0_i32 = arith.constant 0 : i32
    %c0_i32_0 = arith.constant 0 : i32
    %c0_i32_1 = arith.constant 0 : i32
    %c0_i32_2 = arith.constant 0 : i32
    return %c0_i32, %c0_i32_0, %c0_i32_1 : i32, i32, i32
  }
  func.func @transform_8(%arg0: i32, %arg1: i32) -> (i32, i32, i32) {
    %c0_i32 = arith.constant 0 : i32
    %c0_i32_0 = arith.constant 0 : i32
    %c0_i32_1 = arith.constant 0 : i32
    %c0_i32_2 = arith.constant 0 : i32
    return %c0_i32, %c0_i32_0, %c0_i32_1 : i32, i32, i32
  }
  func.func @transform_9(%arg0: i32, %arg1: i32) -> (i32, i32) {
    %c0_i32 = arith.constant 0 : i32
    %c0_i32_0 = arith.constant 0 : i32
    %c0_i32_1 = arith.constant 0 : i32
    return %c0_i32, %c0_i32_0 : i32, i32
  }
  func.func @transform_10(%arg0: i32, %arg1: i32) -> (i32, i32) {
    %c0_i32 = arith.constant 0 : i32
    %c0_i32_0 = arith.constant 0 : i32
    %c0_i32_1 = arith.constant 0 : i32
    return %c0_i32, %c0_i32_0 : i32, i32
  }
  func.func @transform_11(%arg0: i32, %arg1: i32) -> (i32, i32) {
    %c0_i32 = arith.constant 0 : i32
    %c0_i32_0 = arith.constant 0 : i32
    %c0_i32_1 = arith.constant 0 : i32
    return %c0_i32, %c0_i32_0 : i32, i32
  }
  func.func @transform_12(%arg0: i32, %arg1: i32) -> (i32, i32) {
    %c0_i32 = arith.constant 0 : i32
    %c0_i32_0 = arith.constant 0 : i32
    %c0_i32_1 = arith.constant 0 : i32
    return %c0_i32, %c0_i32_0 : i32, i32
  }
  func.func @transform_13(%arg0: i32, %arg1: i32) -> (i32, i32) {
    %c0_i32 = arith.constant 0 : i32
    %c0_i32_0 = arith.constant 0 : i32
    %c0_i32_1 = arith.constant 0 : i32
    return %c0_i32, %c0_i32_0 : i32, i32
  }
  func.func @transform_14(%arg0: i32, %arg1: i32) -> (i32, i32, i32, i32) {
    %c0_i32 = arith.constant 0 : i32
    %c0_i32_0 = arith.constant 0 : i32
    %c0_i32_1 = arith.constant 0 : i32
    return %arg0, %arg1, %c0_i32, %c0_i32_0 : i32, i32, i32, i32
  }
}

</mosaic_0001>

<llo_original>
// kernel: asff3_forward.1
$region0: #{asff3_forward.1}
  #allocation0 [shape = 'u32[]', space=smem, size = 0x4, offset = 0x4, fixed_abs, tag = 'smem constant byte address 0x4 - core index']
  #allocation1 [shape = 'u32[144,128]{1,0:T(1,128)}', space=vmem, size = 0x12000, scoped, tag = 'internal scratch']
  %s0 = inlined_call_operand.vmem [shape: bf16[2,432,128], index: 0, kind: input, shape index: {}, may-alias: {0,1}]
  %s1 = inlined_call_operand.vmem [shape: bf16[2,432,128], index: 1, kind: input, shape index: {}, may-alias: {0,1}]
  %s2 = inlined_call_operand.vmem [shape: bf16[2,432,128], index: 2, kind: input, shape index: {}, may-alias: {2,3}]
  %s3 = inlined_call_operand.vmem [shape: bf16[2,432,128], index: 3, kind: input, shape index: {}, may-alias: {2,3}]
  %s4 = inlined_call_operand.vmem [shape: bf16[2,432,128], index: 4, kind: input, shape index: {}, may-alias: {4,5}]
  %s5 = inlined_call_operand.vmem [shape: bf16[2,432,128], index: 5, kind: input, shape index: {}, may-alias: {4,5}]
  %s6 = inlined_call_operand.vmem [shape: bf16[3,128,8], index: 6, kind: input, shape index: {}]
  %s7 = inlined_call_operand.vmem [shape: f32[3,1,8], index: 7, kind: input, shape index: {}]
  %s8 = inlined_call_operand.vmem [shape: f32[3,1,8], index: 8, kind: input, shape index: {}]
  %s9 = inlined_call_operand.vmem [shape: f32[24,3], index: 9, kind: input, shape index: {}]
  %s10 = inlined_call_operand.vmem [shape: f32[1,3], index: 10, kind: input, shape index: {}]
  %s11 = inlined_call_operand.vmem [shape: bf16[1152,128], index: 11, kind: input, shape index: {}]
  %s12 = inlined_call_operand.vmem [shape: f32[1,128], index: 12, kind: input, shape index: {}]
  %s13 = inlined_call_operand.vmem [shape: f32[1,128], index: 13, kind: input, shape index: {}]
  %s14 = inlined_call_operand.hbm [shape: f32[2,16,16,128], index: 14, kind: output, shape index: {}]
  %s15 = sld [smem:[#allocation0]]
  $region89: #{asff3_forward.1} parent=0
    _
  %s17 = ssub.s32 1, %s15
  %s18 = scalar_select 0, %s17, %s15
  $region1: #{asff3_forward.1} parent=0
    #allocation2 [shape = 'u8[262144]{0}', space=vmem, size = 0x40000, scoped, tag = 'output window, operand 0']
    #allocation3 [shape = 's32[2]{0}', space=sflag, size = 0x8, scoped, tag = 'scoped memory for asff3_forward.1']
    %19 = vsyncpa [#allocation3], 0
    %s20 = scalar_lea.sflag [#allocation3], 1
    %21 = vsyncpa %s20, 0
    loop: start=0, step=1, limit=4
    $region2: #{asff3_forward.1} parent=1 // loop_pre_header
      _
    $region3: #{asff3_forward.1} parent=1 // loop_header
      %s23 = sphi 0, %s27
      %p24 = scmp.ge.s32.totalorder %s23, 4
      %s30 = sphi 0, %s42
      %s31 = sphi 0, %s38
      %s32 = sphi 0, %s30
      %s33 = sphi 0, %s31
      %s34 = sphi 0, %s32
      %s35 = sphi 0, %s33
      %s47 = sphi 0, %s49
      %s50 = sphi 0, %s47
      %s51 = sphi 0, %s50
      %s67 = sphi 0, %s51
      %s79 = sphi 0, %s81
      %s82 = sphi 0, %s79
      %s83 = sphi 0, %s82
      %s99 = sphi 0, %s83
      %s107 = sphi 0, %s109
      %s110 = sphi 0, %s107
      %s111 = sphi 0, %s110
      %s127 = sphi 0, %s111
      %s139 = sphi 0, %s141
      %s142 = sphi 0, %s139
      %s143 = sphi 0, %s142
      %s159 = sphi 0, %s143
      %s167 = sphi 0, %s169
      %s170 = sphi 0, %s167
      %s171 = sphi 0, %s170
      %s187 = sphi 0, %s171
      %s199 = sphi 0, %s201
      %s202 = sphi 0, %s199
      %s203 = sphi 0, %s202
      %s219 = sphi 0, %s203
      %s223 = sphi 0, %s223
      %s225 = sphi 0, %s223
      %s226 = sphi 0, %s225
      %s240 = sphi 0, %s226
      %s244 = sphi 0, %s244
      %s246 = sphi 0, %s244
      %s247 = sphi 0, %s246
      %s261 = sphi 0, %s247
      %s265 = sphi 0, %s265
      %s267 = sphi 0, %s265
      %s268 = sphi 0, %s267
      %s282 = sphi 0, %s268
      %s286 = sphi 0, %s286
      %s288 = sphi 0, %s286
      %s289 = sphi 0, %s288
      %s303 = sphi 0, %s289
      %s307 = sphi 0, %s307
      %s309 = sphi 0, %s307
      %s310 = sphi 0, %s309
      %s324 = sphi 0, %s310
      %s328 = sphi 0, %s328
      %s330 = sphi 0, %s328
      %s331 = sphi 0, %s330
      %s345 = sphi 0, %s331
      %s349 = sphi 0, %s349
      %s351 = sphi 0, %s349
      %s352 = sphi 0, %s351
      %s366 = sphi 0, %s352
      %s370 = sphi 0, %s370
      %s372 = sphi 0, %s370
      %s373 = sphi 0, %s372
      %s387 = sphi 0, %s373
      %s395 = sphi 0, %s397
      %s398 = sphi 0, %s395
      %s399 = sphi 0, %s398
      %s415 = sphi 0, %s399
    $region4: #{asff3_forward.1} parent=1 // loop_header_branch
      %26 = sbr.rel (%p24) target = $region8
    $region5: #{asff3_forward.1} parent=1 // loop_body
      %s28 = ssub.s32 %s23, 1
      %s29 = ssub.s32 %s23, 2
      %s36 = sadd.s32 1, %s31
      %p37 = scmp.ge.s32.totalorder %s36, 1
      %s38 = scalar_select %p37, 0, %s36
      %s39 = sadd.s32 1, %s30
      %s40 = scalar_select %p37, %s39, %s30
      %p41 = scmp.ge.s32.totalorder %s40, 2
      %s42 = scalar_select %p41, 0, %s40
      %s43 = ssub.s32 %s30, %s42
      %s44 = ssub.s32 %s31, %s38
      %s45 = sor.u32 %s43, %s44
      %p46 = scmp.eq.s32.totalorder %s45, 0
      %s48 = sadd.s32 %s47, 1
      %s49 = scalar_select %p46, %s47, %s48
      %p52 = pneg %p46
      %p53 = scmp.eq.s32.totalorder %s23, 1
      %p54 = por %p52, %p53
      %p55 = scmp.ne.s32.totalorder %s47, %s50
      %p56 = scmp.eq.s32.totalorder %s23, 0
      %p57 = por %p55, %p56
      %p58 = scmp.ne.s32.totalorder %s47, %s50
      %p59 = scmp.eq.s32.totalorder %s28, 1
      %p60 = por %p58, %p59
      %p61 = scmp.ne.s32.totalorder %s50, %s51
      %p62 = scmp.eq.s32.totalorder %s28, 0
      %p63 = por %p61, %p62
      %p64 = scmp.ne.s32.totalorder %s50, %s51
      %p65 = scmp.eq.s32.totalorder %s29, 1
      %p66 = por %p64, %p65
      %p68 = scmp.ne.s32.totalorder %s51, %s67
      %p69 = scmp.eq.s32.totalorder %s29, 0
      %p70 = por %p68, %p69
      %s71 = sadd.s32 %s31, 1
      %s72 = smul.u32 %s71, 8
      %s73 = sadd.s32 %s38, 1
      %s74 = smul.u32 %s73, 8
      %s75 = ssub.s32 %s30, %s42
      %s76 = ssub.s32 %s72, %s74
      %s77 = sor.u32 %s75, %s76
      %p78 = scmp.eq.s32.totalorder %s77, 0
      %s80 = sadd.s32 %s79, 1
      %s81 = scalar_select %p78, %s79, %s80
      %p84 = pneg %p78
      %p85 = scmp.eq.s32.totalorder %s23, 1
      %p86 = por %p84, %p85
      %p87 = scmp.ne.s32.totalorder %s79, %s82
      %p88 = scmp.eq.s32.totalorder %s23, 0
      %p89 = por %p87, %p88
      %p90 = scmp.ne.s32.totalorder %s79, %s82
      %p91 = scmp.eq.s32.totalorder %s28, 1
      %p92 = por %p90, %p91
      %p93 = scmp.ne.s32.totalorder %s82, %s83
      %p94 = scmp.eq.s32.totalorder %s28, 0
      %p95 = por %p93, %p94
      %p96 = scmp.ne.s32.totalorder %s82, %s83
      %p97 = scmp.eq.s32.totalorder %s29, 1
      %p98 = por %p96, %p97
      %p100 = scmp.ne.s32.totalorder %s83, %s99
      %p101 = scmp.eq.s32.totalorder %s29, 0
      %p102 = por %p100, %p101
      %s103 = ssub.s32 %s30, %s42
      %s104 = ssub.s32 %s31, %s38
      %s105 = sor.u32 %s103, %s104
      %p106 = scmp.eq.s32.totalorder %s105, 0
      %s108 = sadd.s32 %s107, 1
      %s109 = scalar_select %p106, %s107, %s108
      %p112 = pneg %p106
      %p113 = scmp.eq.s32.totalorder %s23, 1
      %p114 = por %p112, %p113
      %p115 = scmp.ne.s32.totalorder %s107, %s110
      %p116 = scmp.eq.s32.totalorder %s23, 0
      %p117 = por %p115, %p116
      %p118 = scmp.ne.s32.totalorder %s107, %s110
      %p119 = scmp.eq.s32.totalorder %s28, 1
      %p120 = por %p118, %p119
      %p121 = scmp.ne.s32.totalorder %s110, %s111
      %p122 = scmp.eq.s32.totalorder %s28, 0
      %p123 = por %p121, %p122
      %p124 = scmp.ne.s32.totalorder %s110, %s111
      %p125 = scmp.eq.s32.totalorder %s29, 1
      %p126 = por %p124, %p125
      %p128 = scmp.ne.s32.totalorder %s111, %s127
      %p129 = scmp.eq.s32.totalorder %s29, 0
      %p130 = por %p128, %p129
      %s131 = sadd.s32 %s31, 1
      %s132 = smul.u32 %s131, 8
      %s133 = sadd.s32 %s38, 1
      %s134 = smul.u32 %s133, 8
      %s135 = ssub.s32 %s30, %s42
      %s136 = ssub.s32 %s132, %s134
      %s137 = sor.u32 %s135, %s136
      %p138 = scmp.eq.s32.totalorder %s137, 0
      %s140 = sadd.s32 %s139, 1
      %s141 = scalar_select %p138, %s139, %s140
      %p144 = pneg %p138
      %p145 = scmp.eq.s32.totalorder %s23, 1
      %p146 = por %p144, %p145
      %p147 = scmp.ne.s32.totalorder %s139, %s142
      %p148 = scmp.eq.s32.totalorder %s23, 0
      %p149 = por %p147, %p148
      %p150 = scmp.ne.s32.totalorder %s139, %s142
      %p151 = scmp.eq.s32.totalorder %s28, 1
      %p152 = por %p150, %p151
      %p153 = scmp.ne.s32.totalorder %s142, %s143
      %p154 = scmp.eq.s32.totalorder %s28, 0
      %p155 = por %p153, %p154
      %p156 = scmp.ne.s32.totalorder %s142, %s143
      %p157 = scmp.eq.s32.totalorder %s29, 1
      %p158 = por %p156, %p157
      %p160 = scmp.ne.s32.totalorder %s143, %s159
      %p161 = scmp.eq.s32.totalorder %s29, 0
      %p162 = por %p160, %p161
      %s163 = ssub.s32 %s30, %s42
      %s164 = ssub.s32 %s31, %s38
      %s165 = sor.u32 %s163, %s164
      %p166 = scmp.eq.s32.totalorder %s165, 0
      %s168 = sadd.s32 %s167, 1
      %s169 = scalar_select %p166, %s167, %s168
      %p172 = pneg %p166
      %p173 = scmp.eq.s32.totalorder %s23, 1
      %p174 = por %p172, %p173
      %p175 = scmp.ne.s32.totalorder %s167, %s170
      %p176 = scmp.eq.s32.totalorder %s23, 0
      %p177 = por %p175, %p176
      %p178 = scmp.ne.s32.totalorder %s167, %s170
      %p179 = scmp.eq.s32.totalorder %s28, 1
      %p180 = por %p178, %p179
      %p181 = scmp.ne.s32.totalorder %s170, %s171
      %p182 = scmp.eq.s32.totalorder %s28, 0
      %p183 = por %p181, %p182
      %p184 = scmp.ne.s32.totalorder %s170, %s171
      %p185 = scmp.eq.s32.totalorder %s29, 1
      %p186 = por %p184, %p185
      %p188 = scmp.ne.s32.totalorder %s171, %s187
      %p189 = scmp.eq.s32.totalorder %s29, 0
      %p190 = por %p188, %p189
      %s191 = sadd.s32 %s31, 1
      %s192 = smul.u32 %s191, 8
      %s193 = sadd.s32 %s38, 1
      %s194 = smul.u32 %s193, 8
      %s195 = ssub.s32 %s30, %s42
      %s196 = ssub.s32 %s192, %s194
      %s197 = sor.u32 %s195, %s196
      %p198 = scmp.eq.s32.totalorder %s197, 0
      %s200 = sadd.s32 %s199, 1
      %s201 = scalar_select %p198, %s199, %s200
      %p204 = pneg %p198
      %p205 = scmp.eq.s32.totalorder %s23, 1
      %p206 = por %p204, %p205
      %p207 = scmp.ne.s32.totalorder %s199, %s202
      %p208 = scmp.eq.s32.totalorder %s23, 0
      %p209 = por %p207, %p208
      %p210 = scmp.ne.s32.totalorder %s199, %s202
      %p211 = scmp.eq.s32.totalorder %s28, 1
      %p212 = por %p210, %p211
      %p213 = scmp.ne.s32.totalorder %s202, %s203
      %p214 = scmp.eq.s32.totalorder %s28, 0
      %p215 = por %p213, %p214
      %p216 = scmp.ne.s32.totalorder %s202, %s203
      %p217 = scmp.eq.s32.totalorder %s29, 1
      %p218 = por %p216, %p217
      %p220 = scmp.ne.s32.totalorder %s203, %s219
      %p221 = scmp.eq.s32.totalorder %s29, 0
      %p222 = por %p220, %p221
      %s224 = sadd.s32 %s223, 1
      %p227 = scmp.eq.s32.totalorder %s23, 1
      %p228 = scmp.ne.s32.totalorder %s223, %s225
      %p229 = scmp.eq.s32.totalorder %s23, 0
      %p230 = por %p228, %p229
      %p231 = scmp.ne.s32.totalorder %s223, %s225
      %p232 = scmp.eq.s32.totalorder %s28, 1
      %p233 = por %p231, %p232
      %p234 = scmp.ne.s32.totalorder %s225, %s226
      %p235 = scmp.eq.s32.totalorder %s28, 0
      %p236 = por %p234, %p235
      %p237 = scmp.ne.s32.totalorder %s225, %s226
      %p238 = scmp.eq.s32.totalorder %s29, 1
      %p239 = por %p237, %p238
      %p241 = scmp.ne.s32.totalorder %s226, %s240
      %p242 = scmp.eq.s32.totalorder %s29, 0
      %p243 = por %p241, %p242
      %s245 = sadd.s32 %s244, 1
      %p248 = scmp.eq.s32.totalorder %s23, 1
      %p249 = scmp.ne.s32.totalorder %s244, %s246
      %p250 = scmp.eq.s32.totalorder %s23, 0
      %p251 = por %p249, %p250
      %p252 = scmp.ne.s32.totalorder %s244, %s246
      %p253 = scmp.eq.s32.totalorder %s28, 1
      %p254 = por %p252, %p253
      %p255 = scmp.ne.s32.totalorder %s246, %s247
      %p256 = scmp.eq.s32.totalorder %s28, 0
      %p257 = por %p255, %p256
      %p258 = scmp.ne.s32.totalorder %s246, %s247
      %p259 = scmp.eq.s32.totalorder %s29, 1
      %p260 = por %p258, %p259
      %p262 = scmp.ne.s32.totalorder %s247, %s261
      %p263 = scmp.eq.s32.totalorder %s29, 0
      %p264 = por %p262, %p263
      %s266 = sadd.s32 %s265, 1
      %p269 = scmp.eq.s32.totalorder %s23, 1
      %p270 = scmp.ne.s32.totalorder %s265, %s267
      %p271 = scmp.eq.s32.totalorder %s23, 0
      %p272 = por %p270, %p271
      %p273 = scmp.ne.s32.totalorder %s265, %s267
      %p274 = scmp.eq.s32.totalorder %s28, 1
      %p275 = por %p273, %p274
      %p276 = scmp.ne.s32.totalorder %s267, %s268
      %p277 = scmp.eq.s32.totalorder %s28, 0
      %p278 = por %p276, %p277
      %p279 = scmp.ne.s32.totalorder %s267, %s268
      %p280 = scmp.eq.s32.totalorder %s29, 1
      %p281 = por %p279, %p280
      %p283 = scmp.ne.s32.totalorder %s268, %s282
      %p284 = scmp.eq.s32.totalorder %s29, 0
      %p285 = por %p283, %p284
      %s287 = sadd.s32 %s286, 1
      %p290 = scmp.eq.s32.totalorder %s23, 1
      %p291 = scmp.ne.s32.totalorder %s286, %s288
      %p292 = scmp.eq.s32.totalorder %s23, 0
      %p293 = por %p291, %p292
      %p294 = scmp.ne.s32.totalorder %s286, %s288
      %p295 = scmp.eq.s32.totalorder %s28, 1
      %p296 = por %p294, %p295
      %p297 = scmp.ne.s32.totalorder %s288, %s289
      %p298 = scmp.eq.s32.totalorder %s28, 0
      %p299 = por %p297, %p298
      %p300 = scmp.ne.s32.totalorder %s288, %s289
      %p301 = scmp.eq.s32.totalorder %s29, 1
      %p302 = por %p300, %p301
      %p304 = scmp.ne.s32.totalorder %s289, %s303
      %p305 = scmp.eq.s32.totalorder %s29, 0
      %p306 = por %p304, %p305
      %s308 = sadd.s32 %s307, 1
      %p311 = scmp.eq.s32.totalorder %s23, 1
      %p312 = scmp.ne.s32.totalorder %s307, %s309
      %p313 = scmp.eq.s32.totalorder %s23, 0
      %p314 = por %p312, %p313
      %p315 = scmp.ne.s32.totalorder %s307, %s309
      %p316 = scmp.eq.s32.totalorder %s28, 1
      %p317 = por %p315, %p316
      %p318 = scmp.ne.s32.totalorder %s309, %s310
      %p319 = scmp.eq.s32.totalorder %s28, 0
      %p320 = por %p318, %p319
      %p321 = scmp.ne.s32.totalorder %s309, %s310
      %p322 = scmp.eq.s32.totalorder %s29, 1
      %p323 = por %p321, %p322
      %p325 = scmp.ne.s32.totalorder %s310, %s324
      %p326 = scmp.eq.s32.totalorder %s29, 0
      %p327 = por %p325, %p326
      %s329 = sadd.s32 %s328, 1
      %p332 = scmp.eq.s32.totalorder %s23, 1
      %p333 = scmp.ne.s32.totalorder %s328, %s330
      %p334 = scmp.eq.s32.totalorder %s23, 0
      %p335 = por %p333, %p334
      %p336 = scmp.ne.s32.totalorder %s328, %s330
      %p337 = scmp.eq.s32.totalorder %s28, 1
      %p338 = por %p336, %p337
      %p339 = scmp.ne.s32.totalorder %s330, %s331
      %p340 = scmp.eq.s32.totalorder %s28, 0
      %p341 = por %p339, %p340
      %p342 = scmp.ne.s32.totalorder %s330, %s331
      %p343 = scmp.eq.s32.totalorder %s29, 1
      %p344 = por %p342, %p343
      %p346 = scmp.ne.s32.totalorder %s331, %s345
      %p347 = scmp.eq.s32.totalorder %s29, 0
      %p348 = por %p346, %p347
      %s350 = sadd.s32 %s349, 1
      %p353 = scmp.eq.s32.totalorder %s23, 1
      %p354 = scmp.ne.s32.totalorder %s349, %s351
      %p355 = scmp.eq.s32.totalorder %s23, 0
      %p356 = por %p354, %p355
      %p357 = scmp.ne.s32.totalorder %s349, %s351
      %p358 = scmp.eq.s32.totalorder %s28, 1
      %p359 = por %p357, %p358
      %p360 = scmp.ne.s32.totalorder %s351, %s352
      %p361 = scmp.eq.s32.totalorder %s28, 0
      %p362 = por %p360, %p361
      %p363 = scmp.ne.s32.totalorder %s351, %s352
      %p364 = scmp.eq.s32.totalorder %s29, 1
      %p365 = por %p363, %p364
      %p367 = scmp.ne.s32.totalorder %s352, %s366
      %p368 = scmp.eq.s32.totalorder %s29, 0
      %p369 = por %p367, %p368
      %s371 = sadd.s32 %s370, 1
      %p374 = scmp.eq.s32.totalorder %s23, 1
      %p375 = scmp.ne.s32.totalorder %s370, %s372
      %p376 = scmp.eq.s32.totalorder %s23, 0
      %p377 = por %p375, %p376
      %p378 = scmp.ne.s32.totalorder %s370, %s372
      %p379 = scmp.eq.s32.totalorder %s28, 1
      %p380 = por %p378, %p379
      %p381 = scmp.ne.s32.totalorder %s372, %s373
      %p382 = scmp.eq.s32.totalorder %s28, 0
      %p383 = por %p381, %p382
      %p384 = scmp.ne.s32.totalorder %s372, %s373
      %p385 = scmp.eq.s32.totalorder %s29, 1
      %p386 = por %p384, %p385
      %p388 = scmp.ne.s32.totalorder %s373, %s387
      %p389 = scmp.eq.s32.totalorder %s29, 0
      %p390 = por %p388, %p389
      %s391 = ssub.s32 %s30, %s42
      %s392 = ssub.s32 %s31, %s38
      %s393 = sor.u32 %s391, %s392
      %p394 = scmp.eq.s32.totalorder %s393, 0
      %s396 = sadd.s32 %s395, 1
      %s397 = scalar_select %p394, %s395, %s396
      %p400 = pneg %p394
      %p401 = scmp.eq.s32.totalorder %s23, 1
      %p402 = por %p400, %p401
      %p403 = scmp.ne.s32.totalorder %s395, %s398
      %p404 = scmp.eq.s32.totalorder %s23, 0
      %p405 = por %p403, %p404
      %p406 = scmp.ne.s32.totalorder %s395, %s398
      %p407 = scmp.eq.s32.totalorder %s28, 1
      %p408 = por %p406, %p407
      %p409 = scmp.ne.s32.totalorder %s398, %s399
      %p410 = scmp.eq.s32.totalorder %s28, 0
      %p411 = por %p409, %p410
      %p412 = scmp.ne.s32.totalorder %s398, %s399
      %p413 = scmp.eq.s32.totalorder %s29, 1
      %p414 = por %p412, %p413
      %p416 = scmp.ne.s32.totalorder %s399, %s415
      %p417 = scmp.eq.s32.totalorder %s29, 0
      %p418 = por %p416, %p417
      %p419 = scmp.le.s32.totalorder 1, %s23
      %p420 = scmp.lt.s32.totalorder %s23, 3
      %p421 = pnand %p419, %p420
      %p422 = pneg %p421
      // Predicated region
      $region9: #{asff3_forward.1} parent=5 // pred_check
        _
      $region10: #{asff3_forward.1} parent=5 // pred_check_branch
        %424 = sbr.rel (%p421) target = $region12
      $region11: #{asff3_forward.1} parent=5 // pred_region
        %s425 = ssub.s32 %s23, 1
        // Predicated region
        $region13: #{asff3_forward.1} parent=11 // pred_check
          %p426 = pneg %p236
        $region14: #{asff3_forward.1} parent=11 // pred_check_branch
          %428 = sbr.rel (%p426) target = $region16
        $region15: #{asff3_forward.1} parent=11 // pred_region
          _
        $region16: #{asff3_forward.1} parent=11 // pred_fallthru
          _
        // Predicated region
        $region17: #{asff3_forward.1} parent=11 // pred_check
          %p429 = pneg %p257
        $region18: #{asff3_forward.1} parent=11 // pred_check_branch
          %431 = sbr.rel (%p429) target = $region20
        $region19: #{asff3_forward.1} parent=11 // pred_region
          _
        $region20: #{asff3_forward.1} parent=11 // pred_fallthru
          _
        // Predicated region
        $region21: #{asff3_forward.1} parent=11 // pred_check
          %p432 = pneg %p278
        $region22: #{asff3_forward.1} parent=11 // pred_check_branch
          %434 = sbr.rel (%p432) target = $region24
        $region23: #{asff3_forward.1} parent=11 // pred_region
          _
        $region24: #{asff3_forward.1} parent=11 // pred_fallthru
          _
        // Predicated region
        $region25: #{asff3_forward.1} parent=11 // pred_check
          %p435 = pneg %p299
        $region26: #{asff3_forward.1} parent=11 // pred_check_branch
          %437 = sbr.rel (%p435) target = $region28
        $region27: #{asff3_forward.1} parent=11 // pred_region
          _
        $region28: #{asff3_forward.1} parent=11 // pred_fallthru
          _
        // Predicated region
        $region29: #{asff3_forward.1} parent=11 // pred_check
          %p438 = pneg %p320
        $region30: #{asff3_forward.1} parent=11 // pred_check_branch
          %440 = sbr.rel (%p438) target = $region32
        $region31: #{asff3_forward.1} parent=11 // pred_region
          _
        $region32: #{asff3_forward.1} parent=11 // pred_fallthru
          _
        // Predicated region
        $region33: #{asff3_forward.1} parent=11 // pred_check
          %p441 = pneg %p341
        $region34: #{asff3_forward.1} parent=11 // pred_check_branch
          %443 = sbr.rel (%p441) target = $region36
        $region35: #{asff3_forward.1} parent=11 // pred_region
          _
        $region36: #{asff3_forward.1} parent=11 // pred_fallthru
          _
        // Predicated region
        $region37: #{asff3_forward.1} parent=11 // pred_check
          %p444 = pneg %p362
        $region38: #{asff3_forward.1} parent=11 // pred_check_branch
          %446 = sbr.rel (%p444) target = $region40
        $region39: #{asff3_forward.1} parent=11 // pred_region
          _
        $region40: #{asff3_forward.1} parent=11 // pred_fallthru
          _
        // Predicated region
        $region41: #{asff3_forward.1} parent=11 // pred_check
          %p447 = pneg %p383
        $region42: #{asff3_forward.1} parent=11 // pred_check_branch
          %449 = sbr.rel (%p447) target = $region44
        $region43: #{asff3_forward.1} parent=11 // pred_region
          _
        $region44: #{asff3_forward.1} parent=11 // pred_fallthru
          _
      $region12: #{asff3_forward.1} parent=5 // pred_fallthru
        _
      %p450 = scmp.lt.s32.totalorder %s23, 2
      // Predicated region
      $region45: #{asff3_forward.1} parent=5 // pred_check
        %p451 = pneg %p450
      $region46: #{asff3_forward.1} parent=5 // pred_check_branch
        %453 = sbr.rel (%p451) target = $region48
      $region47: #{asff3_forward.1} parent=5 // pred_region
        // Predicated region
        $region49: #{asff3_forward.1} parent=47 // pred_check
          %p454 = pneg %p57
        $region50: #{asff3_forward.1} parent=47 // pred_check_branch
          %456 = sbr.rel (%p454) target = $region52
        $region51: #{asff3_forward.1} parent=47 // pred_region
          %s457 = smul.u32 48, %s31
          %s458 = ssub.s32 54, %s457
          %p459 = scmp.lt.s32.totalorder %s458, 48
          %s460 = scalar_select %p459, %s458, 48
          %s461 = smul.u32 64, %s460
          %p462 = scmp.lt.s32.totalorder %s30, 1
          %s463 = scalar_select %p462, %s30, 1
          %p464 = scmp.lt.s32.totalorder %s457, 53
          %s465 = scalar_select %p464, %s457, 53
          %s466 = smul.addr %s463, 54
          %s467 = sadd.s32 %s465, %s466
          %s468 = smul.addr %s467, 4
          %s469 = scalar_lea.vmem %s0, %s468
          %s470 = smul.u32 48, %s31
          %s471 = ssub.s32 54, %s470
          %p472 = scmp.lt.s32.totalorder %s471, 48
          %s473 = scalar_select %p472, %s471, 48
          %s474 = smul.u32 64, %s473
        $region52: #{asff3_forward.1} parent=47 // pred_fallthru
          _
        // Predicated region
        $region53: #{asff3_forward.1} parent=47 // pred_check
          %p475 = pneg %p89
        $region54: #{asff3_forward.1} parent=47 // pred_check_branch
          %477 = sbr.rel (%p475) target = $region56
        $region55: #{asff3_forward.1} parent=47 // pred_region
          %s478 = sadd.s32 %s31, 1
          %s479 = smul.u32 %s478, 8
          %s480 = smul.u32 6, %s479
          %p481 = scmp.lt.s32.totalorder %s30, 1
          %s482 = scalar_select %p481, %s30, 1
          %p483 = scmp.lt.s32.totalorder %s480, 53
          %s484 = scalar_select %p483, %s480, 53
          %s485 = smul.addr %s482, 54
          %s486 = sadd.s32 %s484, %s485
          %s487 = smul.addr %s486, 4
          %s488 = scalar_lea.vmem %s1, %s487
          %s489 = sadd.s32 %s31, 1
          %s490 = smul.u32 %s489, 8
          %s491 = smul.u32 6, %s490
        $region56: #{asff3_forward.1} parent=47 // pred_fallthru
          _
        // Predicated region
        $region57: #{asff3_forward.1} parent=47 // pred_check
          %p492 = pneg %p117
        $region58: #{asff3_forward.1} parent=47 // pred_check_branch
          %494 = sbr.rel (%p492) target = $region60
        $region59: #{asff3_forward.1} parent=47 // pred_region
          %s495 = smul.u32 48, %s31
          %s496 = ssub.s32 54, %s495
          %p497 = scmp.lt.s32.totalorder %s496, 48
          %s498 = scalar_select %p497, %s496, 48
          %s499 = smul.u32 64, %s498
          %p500 = scmp.lt.s32.totalorder %s30, 1
          %s501 = scalar_select %p500, %s30, 1
          %p502 = scmp.lt.s32.totalorder %s495, 53
          %s503 = scalar_select %p502, %s495, 53
          %s504 = smul.addr %s501, 54
          %s505 = sadd.s32 %s503, %s504
          %s506 = smul.addr %s505, 4
          %s507 = scalar_lea.vmem %s2, %s506
          %s508 = smul.u32 48, %s31
          %s509 = ssub.s32 54, %s508
          %p510 = scmp.lt.s32.totalorder %s509, 48
          %s511 = scalar_select %p510, %s509, 48
          %s512 = smul.u32 64, %s511
        $region60: #{asff3_forward.1} parent=47 // pred_fallthru
          _
        // Predicated region
        $region61: #{asff3_forward.1} parent=47 // pred_check
          %p513 = pneg %p149
        $region62: #{asff3_forward.1} parent=47 // pred_check_branch
          %515 = sbr.rel (%p513) target = $region64
        $region63: #{asff3_forward.1} parent=47 // pred_region
          %s516 = sadd.s32 %s31, 1
          %s517 = smul.u32 %s516, 8
          %s518 = smul.u32 6, %s517
          %p519 = scmp.lt.s32.totalorder %s30, 1
          %s520 = scalar_select %p519, %s30, 1
          %p521 = scmp.lt.s32.totalorder %s518, 53
          %s522 = scalar_select %p521, %s518, 53
          %s523 = smul.addr %s520, 54
          %s524 = sadd.s32 %s522, %s523
          %s525 = smul.addr %s524, 4
          %s526 = scalar_lea.vmem %s3, %s525
          %s527 = sadd.s32 %s31, 1
          %s528 = smul.u32 %s527, 8
          %s529 = smul.u32 6, %s528
        $region64: #{asff3_forward.1} parent=47 // pred_fallthru
          _
        // Predicated region
        $region65: #{asff3_forward.1} parent=47 // pred_check
          %p530 = pneg %p177
        $region66: #{asff3_forward.1} parent=47 // pred_check_branch
          %532 = sbr.rel (%p530) target = $region68
        $region67: #{asff3_forward.1} parent=47 // pred_region
          %s533 = smul.u32 48, %s31
          %s534 = ssub.s32 54, %s533
          %p535 = scmp.lt.s32.totalorder %s534, 48
          %s536 = scalar_select %p535, %s534, 48
          %s537 = smul.u32 64, %s536
          %p538 = scmp.lt.s32.totalorder %s30, 1
          %s539 = scalar_select %p538, %s30, 1
          %p540 = scmp.lt.s32.totalorder %s533, 53
          %s541 = scalar_select %p540, %s533, 53
          %s542 = smul.addr %s539, 54
          %s543 = sadd.s32 %s541, %s542
          %s544 = smul.addr %s543, 4
          %s545 = scalar_lea.vmem %s4, %s544
          %s546 = smul.u32 48, %s31
          %s547 = ssub.s32 54, %s546
          %p548 = scmp.lt.s32.totalorder %s547, 48
          %s549 = scalar_select %p548, %s547, 48
          %s550 = smul.u32 64, %s549
        $region68: #{asff3_forward.1} parent=47 // pred_fallthru
          _
        // Predicated region
        $region69: #{asff3_forward.1} parent=47 // pred_check
          %p551 = pneg %p209
        $region70: #{asff3_forward.1} parent=47 // pred_check_branch
          %553 = sbr.rel (%p551) target = $region72
        $region71: #{asff3_forward.1} parent=47 // pred_region
          %s554 = sadd.s32 %s31, 1
          %s555 = smul.u32 %s554, 8
          %s556 = smul.u32 6, %s555
          %p557 = scmp.lt.s32.totalorder %s30, 1
          %s558 = scalar_select %p557, %s30, 1
          %p559 = scmp.lt.s32.totalorder %s556, 53
          %s560 = scalar_select %p559, %s556, 53
          %s561 = smul.addr %s558, 54
          %s562 = sadd.s32 %s560, %s561
          %s563 = smul.addr %s562, 4
          %s564 = scalar_lea.vmem %s5, %s563
          %s565 = sadd.s32 %s31, 1
          %s566 = smul.u32 %s565, 8
          %s567 = smul.u32 6, %s566
        $region72: #{asff3_forward.1} parent=47 // pred_fallthru
          _
      $region48: #{asff3_forward.1} parent=5 // pred_fallthru
        _
      %p568 = scmp.le.s32.totalorder 1, %s23
      %p569 = scmp.lt.s32.totalorder %s23, 3
      %p570 = pnand %p568, %p569
      %p571 = pneg %p570
      // Predicated region
      $region73: #{asff3_forward.1} parent=5 // pred_check
        _
      $region74: #{asff3_forward.1} parent=5 // pred_check_branch
        %573 = sbr.rel (%p570) target = $region76
      $region75: #{asff3_forward.1} parent=5 // pred_region
        %s574 = ssub.s32 %s23, 1
        %s575 = smul.u32 48, %s33
        %s576 = ssub.s32 54, %s575
        %p577 = scmp.lt.s32.totalorder %s576, 48
        %s578 = scalar_select %p577, %s576, 48
        %s579 = smul.u32 64, %s578
        %p580 = scmp.lt.s32.totalorder %s32, 1
        %s581 = scalar_select %p580, %s32, 1
        %p582 = scmp.lt.s32.totalorder %s575, 53
        %s583 = scalar_select %p582, %s575, 53
        %s584 = smul.addr %s581, 54
        %s585 = sadd.s32 %s583, %s584
        %s586 = smul.addr %s585, 4
        %s587 = scalar_lea.vmem %s0, %s586
        %p588 = pneg %p63
        %p589 = pneg %p60
        %s590 = sadd.s32 %s33, 1
        %s591 = smul.u32 %s590, 8
        %s592 = smul.u32 6, %s591
        %p593 = scmp.lt.s32.totalorder %s32, 1
        %s594 = scalar_select %p593, %s32, 1
        %p595 = scmp.lt.s32.totalorder %s592, 53
        %s596 = scalar_select %p595, %s592, 53
        %s597 = smul.addr %s594, 54
        %s598 = sadd.s32 %s596, %s597
        %s599 = smul.addr %s598, 4
        %s600 = scalar_lea.vmem %s1, %s599
        %p601 = pneg %p95
        %p602 = pneg %p92
        %s603 = smul.u32 48, %s33
        %s604 = ssub.s32 54, %s603
        %p605 = scmp.lt.s32.totalorder %s604, 48
        %s606 = scalar_select %p605, %s604, 48
        %s607 = smul.u32 64, %s606
        %p608 = scmp.lt.s32.totalorder %s32, 1
        %s609 = scalar_select %p608, %s32, 1
        %p610 = scmp.lt.s32.totalorder %s603, 53
        %s611 = scalar_select %p610, %s603, 53
        %s612 = smul.addr %s609, 54
        %s613 = sadd.s32 %s611, %s612
        %s614 = smul.addr %s613, 4
        %s615 = scalar_lea.vmem %s2, %s614
        %p616 = pneg %p123
        %p617 = pneg %p120
        %s618 = sadd.s32 %s33, 1
        %s619 = smul.u32 %s618, 8
        %s620 = smul.u32 6, %s619
        %p621 = scmp.lt.s32.totalorder %s32, 1
        %s622 = scalar_select %p621, %s32, 1
        %p623 = scmp.lt.s32.totalorder %s620, 53
        %s624 = scalar_select %p623, %s620, 53
        %s625 = smul.addr %s622, 54
        %s626 = sadd.s32 %s624, %s625
        %s627 = smul.addr %s626, 4
        %s628 = scalar_lea.vmem %s3, %s627
        %p629 = pneg %p155
        %p630 = pneg %p152
        %s631 = smul.u32 48, %s33
        %s632 = ssub.s32 54, %s631
        %p633 = scmp.lt.s32.totalorder %s632, 48
        %s634 = scalar_select %p633, %s632, 48
        %s635 = smul.u32 64, %s634
        %p636 = scmp.lt.s32.totalorder %s32, 1
        %s637 = scalar_select %p636, %s32, 1
        %p638 = scmp.lt.s32.totalorder %s631, 53
        %s639 = scalar_select %p638, %s631, 53
        %s640 = smul.addr %s637, 54
        %s641 = sadd.s32 %s639, %s640
        %s642 = smul.addr %s641, 4
        %s643 = scalar_lea.vmem %s4, %s642
        %p644 = pneg %p183
        %p645 = pneg %p180
        %s646 = sadd.s32 %s33, 1
        %s647 = smul.u32 %s646, 8
        %s648 = smul.u32 6, %s647
        %p649 = scmp.lt.s32.totalorder %s32, 1
        %s650 = scalar_select %p649, %s32, 1
        %p651 = scmp.lt.s32.totalorder %s648, 53
        %s652 = scalar_select %p651, %s648, 53
        %s653 = smul.addr %s650, 54
        %s654 = sadd.s32 %s652, %s653
        %s655 = smul.addr %s654, 4
        %s656 = scalar_lea.vmem %s5, %s655
        %p657 = pneg %p215
        %p658 = pneg %p212
        %p659 = pneg %p236
        %p660 = pneg %p233
        %p661 = pneg %p257
        %p662 = pneg %p254
        %p663 = pneg %p278
        %p664 = pneg %p275
        %p665 = pneg %p299
        %p666 = pneg %p296
        %p667 = pneg %p320
        %p668 = pneg %p317
        %p669 = pneg %p341
        %p670 = pneg %p338
        %p671 = pneg %p362
        %p672 = pneg %p359
        %p673 = pneg %p383
        %p674 = pneg %p380
        %p675 = pneg %p411
        %p676 = pneg %p408
        %s677 = sand.u32 %s398, 1
        %s678 = scalar_lea.sflag [#allocation3], %s677
        %s679 = sand.u32 %s398, 1
        %s680 = smul.addr %s679, 256
        %s681 = scalar_lea.vmem [#allocation2], %s680
        %s682 = smul.u32 48, %s33
        %s683 = ssub.s32 54, %s682
        %p684 = scmp.lt.s32.totalorder %s683, 48
        %s685 = scalar_select %p684, %s683, 48
        %s686 = smul.u32 64, %s685
        %p687 = scmp.lt.s32.totalorder %s32, 1
        %s688 = scalar_select %p687, %s32, 1
        %p689 = scmp.lt.s32.totalorder %s682, 53
        %s690 = scalar_select %p689, %s682, 53
        %s691 = smul.addr %s688, 54
        %s692 = sadd.s32 %s690, %s691
        %s693 = smul.addr %s692, 4
        %s694 = scalar_lea.vmem %s0, %s693
        %s695 = smul.u32 48, %s33
        %s696 = ssub.s32 54, %s695
        %p697 = scmp.lt.s32.totalorder %s696, 48
        %s698 = scalar_select %p697, %s696, 48
        %s699 = smul.u32 64, %s698
        %s700 = sadd.s32 %s33, 1
        %s701 = smul.u32 %s700, 8
        %s702 = smul.u32 6, %s701
        %p703 = scmp.lt.s32.totalorder %s32, 1
        %s704 = scalar_select %p703, %s32, 1
        %p705 = scmp.lt.s32.totalorder %s702, 53
        %s706 = scalar_select %p705, %s702, 53
        %s707 = smul.addr %s704, 54
        %s708 = sadd.s32 %s706, %s707
        %s709 = smul.addr %s708, 4
        %s710 = scalar_lea.vmem %s1, %s709
        %s711 = sadd.s32 %s33, 1
        %s712 = smul.u32 %s711, 8
        %s713 = smul.u32 6, %s712
        %s714 = smul.u32 48, %s33
        %s715 = ssub.s32 54, %s714
        %p716 = scmp.lt.s32.totalorder %s715, 48
        %s717 = scalar_select %p716, %s715, 48
        %s718 = smul.u32 64, %s717
        %p719 = scmp.lt.s32.totalorder %s32, 1
        %s720 = scalar_select %p719, %s32, 1
        %p721 = scmp.lt.s32.totalorder %s714, 53
        %s722 = scalar_select %p721, %s714, 53
        %s723 = smul.addr %s720, 54
        %s724 = sadd.s32 %s722, %s723
        %s725 = smul.addr %s724, 4
        %s726 = scalar_lea.vmem %s2, %s725
        %s727 = smul.u32 48, %s33
        %s728 = ssub.s32 54, %s727
        %p729 = scmp.lt.s32.totalorder %s728, 48
        %s730 = scalar_select %p729, %s728, 48
        %s731 = smul.u32 64, %s730
        %s732 = sadd.s32 %s33, 1
        %s733 = smul.u32 %s732, 8
        %s734 = smul.u32 6, %s733
        %p735 = scmp.lt.s32.totalorder %s32, 1
        %s736 = scalar_select %p735, %s32, 1
        %p737 = scmp.lt.s32.totalorder %s734, 53
        %s738 = scalar_select %p737, %s734, 53
        %s739 = smul.addr %s736, 54
        %s740 = sadd.s32 %s738, %s739
        %s741 = smul.addr %s740, 4
        %s742 = scalar_lea.vmem %s3, %s741
        %s743 = sadd.s32 %s33, 1
        %s744 = smul.u32 %s743, 8
        %s745 = smul.u32 6, %s744
        %s746 = smul.u32 48, %s33
        %s747 = ssub.s32 54, %s746
        %p748 = scmp.lt.s32.totalorder %s747, 48
        %s749 = scalar_select %p748, %s747, 48
        %s750 = smul.u32 64, %s749
        %p751 = scmp.lt.s32.totalorder %s32, 1
        %s752 = scalar_select %p751, %s32, 1
        %p753 = scmp.lt.s32.totalorder %s746, 53
        %s754 = scalar_select %p753, %s746, 53
        %s755 = smul.addr %s752, 54
        %s756 = sadd.s32 %s754, %s755
        %s757 = smul.addr %s756, 4
        %s758 = scalar_lea.vmem %s4, %s757
        %s759 = smul.u32 48, %s33
        %s760 = ssub.s32 54, %s759
        %p761 = scmp.lt.s32.totalorder %s760, 48
        %s762 = scalar_select %p761, %s760, 48
        %s763 = smul.u32 64, %s762
        %s764 = sadd.s32 %s33, 1
        %s765 = smul.u32 %s764, 8
        %s766 = smul.u32 6, %s765
        %p767 = scmp.lt.s32.totalorder %s32, 1
        %s768 = scalar_select %p767, %s32, 1
        %p769 = scmp.lt.s32.totalorder %s766, 53
        %s770 = scalar_select %p769, %s766, 53
        %s771 = smul.addr %s768, 54
        %s772 = sadd.s32 %s770, %s771
        %s773 = smul.addr %s772, 4
        %s774 = scalar_lea.vmem %s5, %s773
        %s775 = sadd.s32 %s33, 1
        %s776 = smul.u32 %s775, 8
        %s777 = smul.u32 6, %s776
        %s778 = smul.u32 16, %s33
        %v780 = vld [vmem:[%s9] sm:$0xff]
        %v781 = vld [vmem:[%s9 + $0x8] sm:$0xff]
        %v782 = vld [vmem:[%s9 + $0x10] sm:$0xff]
        %v783 = vld [vmem:[%s694] sm:$0xf]
        %v784 = vld [vmem:[%s694 + $0x4] sm:$0xf]
        %v785 = vld [vmem:[%s694 + $0x8] sm:$0xf]
        %v786 = vld [vmem:[%s694 + $0xc] sm:$0xf]
        %v787 = vld [vmem:[%s694 + $0x10] sm:$0xf]
        %v788 = vld [vmem:[%s694 + $0x14] sm:$0xf]
        %v789 = vld [vmem:[%s694 + $0x18] sm:$0xf]
        %v790 = vld [vmem:[%s694 + $0x1c] sm:$0xf]
        %v791 = vld [vmem:[%s694 + $0x20] sm:$0xf]
        %v792 = vld [vmem:[%s694 + $0x24] sm:$0xf]
        %v793 = vld [vmem:[%s694 + $0x28] sm:$0xf]
        %v794 = vld [vmem:[%s694 + $0x2c] sm:$0xf]
        %v795 = vld [vmem:[%s694 + $0x30] sm:$0xf]
        %v796 = vld [vmem:[%s694 + $0x34] sm:$0xf]
        %v797 = vld [vmem:[%s694 + $0x38] sm:$0xf]
        %v798 = vld [vmem:[%s694 + $0x3c] sm:$0xf]
        %v799 = vld [vmem:[%s694 + $0x40] sm:$0xf]
        %v800 = vld [vmem:[%s694 + $0x44] sm:$0xf]
        %v801 = vld [vmem:[%s694 + $0x48] sm:$0xf]
        %v802 = vld [vmem:[%s694 + $0x4c] sm:$0xf]
        %v803 = vld [vmem:[%s694 + $0x50] sm:$0xf]
        %v804 = vld [vmem:[%s694 + $0x54] sm:$0xf]
        %v805 = vld [vmem:[%s694 + $0x58] sm:$0xf]
        %v806 = vld [vmem:[%s694 + $0x5c] sm:$0xf]
        %v807 = vld [vmem:[%s694 + $0x60] sm:$0xf]
        %v808 = vld [vmem:[%s694 + $0x64] sm:$0xf]
        %v809 = vld [vmem:[%s694 + $0x68] sm:$0xf]
        %v810 = vld [vmem:[%s694 + $0x6c] sm:$0xf]
        %v811 = vld [vmem:[%s694 + $0x70] sm:$0xf]
        %v812 = vld [vmem:[%s694 + $0x74] sm:$0xf]
        %v813 = vld [vmem:[%s694 + $0x78] sm:$0xf]
        %v814 = vld [vmem:[%s694 + $0x7c] sm:$0xf]
        %v815 = vld [vmem:[%s694 + $0x80] sm:$0xf]
        %v816 = vld [vmem:[%s694 + $0x84] sm:$0xf]
        %v817 = vld [vmem:[%s694 + $0x88] sm:$0xf]
        %v818 = vld [vmem:[%s694 + $0x8c] sm:$0xf]
        %v819 = vld [vmem:[%s694 + $0x90] sm:$0xf]
        %v820 = vld [vmem:[%s694 + $0x94] sm:$0xf]
        %v821 = vld [vmem:[%s694 + $0x98] sm:$0xf]
        %v822 = vld [vmem:[%s694 + $0x9c] sm:$0xf]
        %v823 = vld [vmem:[%s694 + $0xa0] sm:$0xf]
        %v824 = vld [vmem:[%s694 + $0xa4] sm:$0xf]
        %v825 = vld [vmem:[%s694 + $0xa8] sm:$0xf]
        %v826 = vld [vmem:[%s694 + $0xac] sm:$0xf]
        %v827 = vld [vmem:[%s694 + $0xb0] sm:$0xf]
        %v828 = vld [vmem:[%s694 + $0xb4] sm:$0xf]
        %v829 = vld [vmem:[%s694 + $0xb8] sm:$0xf]
        %v830 = vld [vmem:[%s694 + $0xbc] sm:$0xf]
        %v831 = vld [vmem:[%s726] sm:$0xf]
        %v832 = vld [vmem:[%s726 + $0x4] sm:$0xf]
        %v833 = vld [vmem:[%s726 + $0x8] sm:$0xf]
        %v834 = vld [vmem:[%s726 + $0xc] sm:$0xf]
        %v835 = vld [vmem:[%s726 + $0x10] sm:$0xf]
        %v836 = vld [vmem:[%s726 + $0x14] sm:$0xf]
        %v837 = vld [vmem:[%s726 + $0x18] sm:$0xf]
        %v838 = vld [vmem:[%s726 + $0x1c] sm:$0xf]
        %v839 = vld [vmem:[%s726 + $0x20] sm:$0xf]
        %v840 = vld [vmem:[%s726 + $0x24] sm:$0xf]
        %v841 = vld [vmem:[%s726 + $0x28] sm:$0xf]
        %v842 = vld [vmem:[%s726 + $0x2c] sm:$0xf]
        %v843 = vld [vmem:[%s726 + $0x30] sm:$0xf]
        %v844 = vld [vmem:[%s726 + $0x34] sm:$0xf]
        %v845 = vld [vmem:[%s726 + $0x38] sm:$0xf]
        %v846 = vld [vmem:[%s726 + $0x3c] sm:$0xf]
        %v847 = vld [vmem:[%s726 + $0x40] sm:$0xf]
        %v848 = vld [vmem:[%s726 + $0x44] sm:$0xf]
        %v849 = vld [vmem:[%s726 + $0x48] sm:$0xf]
        %v850 = vld [vmem:[%s726 + $0x4c] sm:$0xf]
        %v851 = vld [vmem:[%s726 + $0x50] sm:$0xf]
        %v852 = vld [vmem:[%s726 + $0x54] sm:$0xf]
        %v853 = vld [vmem:[%s726 + $0x58] sm:$0xf]
        %v854 = vld [vmem:[%s726 + $0x5c] sm:$0xf]
        %v855 = vld [vmem:[%s726 + $0x60] sm:$0xf]
        %v856 = vld [vmem:[%s726 + $0x64] sm:$0xf]
        %v857 = vld [vmem:[%s726 + $0x68] sm:$0xf]
        %v858 = vld [vmem:[%s726 + $0x6c] sm:$0xf]
        %v859 = vld [vmem:[%s726 + $0x70] sm:$0xf]
        %v860 = vld [vmem:[%s726 + $0x74] sm:$0xf]
        %v861 = vld [vmem:[%s726 + $0x78] sm:$0xf]
        %v862 = vld [vmem:[%s726 + $0x7c] sm:$0xf]
        %v863 = vld [vmem:[%s726 + $0x80] sm:$0xf]
        %v864 = vld [vmem:[%s726 + $0x84] sm:$0xf]
        %v865 = vld [vmem:[%s726 + $0x88] sm:$0xf]
        %v866 = vld [vmem:[%s726 + $0x8c] sm:$0xf]
        %v867 = vld [vmem:[%s726 + $0x90] sm:$0xf]
        %v868 = vld [vmem:[%s726 + $0x94] sm:$0xf]
        %v869 = vld [vmem:[%s726 + $0x98] sm:$0xf]
        %v870 = vld [vmem:[%s726 + $0x9c] sm:$0xf]
        %v871 = vld [vmem:[%s726 + $0xa0] sm:$0xf]
        %v872 = vld [vmem:[%s726 + $0xa4] sm:$0xf]
        %v873 = vld [vmem:[%s726 + $0xa8] sm:$0xf]
        %v874 = vld [vmem:[%s726 + $0xac] sm:$0xf]
        %v875 = vld [vmem:[%s726 + $0xb0] sm:$0xf]
        %v876 = vld [vmem:[%s726 + $0xb4] sm:$0xf]
        %v877 = vld [vmem:[%s726 + $0xb8] sm:$0xf]
        %v878 = vld [vmem:[%s726 + $0xbc] sm:$0xf]
        %v879 = vld [vmem:[%s758] sm:$0xf]
        %v880 = vld [vmem:[%s758 + $0x4] sm:$0xf]
        %v881 = vld [vmem:[%s758 + $0x8] sm:$0xf]
        %v882 = vld [vmem:[%s758 + $0xc] sm:$0xf]
        %v883 = vld [vmem:[%s758 + $0x10] sm:$0xf]
        %v884 = vld [vmem:[%s758 + $0x14] sm:$0xf]
        %v885 = vld [vmem:[%s758 + $0x18] sm:$0xf]
        %v886 = vld [vmem:[%s758 + $0x1c] sm:$0xf]
        %v887 = vld [vmem:[%s758 + $0x20] sm:$0xf]
        %v888 = vld [vmem:[%s758 + $0x24] sm:$0xf]
        %v889 = vld [vmem:[%s758 + $0x28] sm:$0xf]
        %v890 = vld [vmem:[%s758 + $0x2c] sm:$0xf]
        %v891 = vld [vmem:[%s758 + $0x30] sm:$0xf]
        %v892 = vld [vmem:[%s758 + $0x34] sm:$0xf]
        %v893 = vld [vmem:[%s758 + $0x38] sm:$0xf]
        %v894 = vld [vmem:[%s758 + $0x3c] sm:$0xf]
        %v895 = vld [vmem:[%s758 + $0x40] sm:$0xf]
        %v896 = vld [vmem:[%s758 + $0x44] sm:$0xf]
        %v897 = vld [vmem:[%s758 + $0x48] sm:$0xf]
        %v898 = vld [vmem:[%s758 + $0x4c] sm:$0xf]
        %v899 = vld [vmem:[%s758 + $0x50] sm:$0xf]
        %v900 = vld [vmem:[%s758 + $0x54] sm:$0xf]
        %v901 = vld [vmem:[%s758 + $0x58] sm:$0xf]
        %v902 = vld [vmem:[%s758 + $0x5c] sm:$0xf]
        %v903 = vld [vmem:[%s758 + $0x60] sm:$0xf]
        %v904 = vld [vmem:[%s758 + $0x64] sm:$0xf]
        %v905 = vld [vmem:[%s758 + $0x68] sm:$0xf]
        %v906 = vld [vmem:[%s758 + $0x6c] sm:$0xf]
        %v907 = vld [vmem:[%s758 + $0x70] sm:$0xf]
        %v908 = vld [vmem:[%s758 + $0x74] sm:$0xf]
        %v909 = vld [vmem:[%s758 + $0x78] sm:$0xf]
        %v910 = vld [vmem:[%s758 + $0x7c] sm:$0xf]
        %v911 = vld [vmem:[%s758 + $0x80] sm:$0xf]
        %v912 = vld [vmem:[%s758 + $0x84] sm:$0xf]
        %v913 = vld [vmem:[%s758 + $0x88] sm:$0xf]
        %v914 = vld [vmem:[%s758 + $0x8c] sm:$0xf]
        %v915 = vld [vmem:[%s758 + $0x90] sm:$0xf]
        %v916 = vld [vmem:[%s758 + $0x94] sm:$0xf]
        %v917 = vld [vmem:[%s758 + $0x98] sm:$0xf]
        %v918 = vld [vmem:[%s758 + $0x9c] sm:$0xf]
        %v919 = vld [vmem:[%s758 + $0xa0] sm:$0xf]
        %v920 = vld [vmem:[%s758 + $0xa4] sm:$0xf]
        %v921 = vld [vmem:[%s758 + $0xa8] sm:$0xf]
        %v922 = vld [vmem:[%s758 + $0xac] sm:$0xf]
        %v923 = vld [vmem:[%s758 + $0xb0] sm:$0xf]
        %v924 = vld [vmem:[%s758 + $0xb4] sm:$0xf]
        %v925 = vld [vmem:[%s758 + $0xb8] sm:$0xf]
        %v926 = vld [vmem:[%s758 + $0xbc] sm:$0xf]
        %v927 = vld [vmem:[%s6] sm:$0xf]
        %v928 = vld [vmem:[%s6 + $0x4] sm:$0xf]
        %v929 = vld [vmem:[%s6 + $0x8] sm:$0xf]
        %v930 = vld [vmem:[%s6 + $0xc] sm:$0xf]
        %v931 = vld [vmem:[%s6 + $0x10] sm:$0xf]
        %v932 = vld [vmem:[%s6 + $0x14] sm:$0xf]
        %v933 = vld [vmem:[%s6 + $0x18] sm:$0xf]
        %v934 = vld [vmem:[%s6 + $0x1c] sm:$0xf]
        %v935 = vld [vmem:[%s6 + $0x20] sm:$0xf]
        %v936 = vld [vmem:[%s6 + $0x24] sm:$0xf]
        %v937 = vld [vmem:[%s6 + $0x28] sm:$0xf]
        %v938 = vld [vmem:[%s6 + $0x2c] sm:$0xf]
        %v939 = vld [vmem:[%s6 + $0x30] sm:$0xf]
        %v940 = vld [vmem:[%s6 + $0x34] sm:$0xf]
        %v941 = vld [vmem:[%s6 + $0x38] sm:$0xf]
        %v942 = vld [vmem:[%s6 + $0x3c] sm:$0xf]
        %v991 = vunpack.c.l.b16 %v783
        %v992 = vunpack.c.l.b16 %v784
        %v993 = vunpack.c.l.b16 %v785
        %v994 = vunpack.c.l.b16 %v786
        %v995 = vunpack.c.l.b16 %v787
        %v996 = vunpack.c.l.b16 %v788
        %v997 = vunpack.c.l.b16 %v789
        %v998 = vunpack.c.l.b16 %v790
        %v999 = vunpack.c.l.b16 %v791
        %v1000 = vunpack.c.l.b16 %v792
        %v1001 = vunpack.c.l.b16 %v793
        %v1002 = vunpack.c.l.b16 %v794
        %v1003 = vunpack.c.l.b16 %v795
        %v1004 = vunpack.c.l.b16 %v796
        %v1005 = vunpack.c.l.b16 %v797
        %v1006 = vunpack.c.l.b16 %v798
        %v1007 = vunpack.c.l.b16 %v799
        %v1008 = vunpack.c.l.b16 %v800
        %v1009 = vunpack.c.l.b16 %v801
        %v1010 = vunpack.c.l.b16 %v802
        %v1011 = vunpack.c.l.b16 %v803
        %v1012 = vunpack.c.l.b16 %v804
        %v1013 = vunpack.c.l.b16 %v805
        %v1014 = vunpack.c.l.b16 %v806
        %v1015 = vunpack.c.l.b16 %v807
        %v1016 = vunpack.c.l.b16 %v808
        %v1017 = vunpack.c.l.b16 %v809
        %v1018 = vunpack.c.l.b16 %v810
        %v1019 = vunpack.c.l.b16 %v811
        %v1020 = vunpack.c.l.b16 %v812
        %v1021 = vunpack.c.l.b16 %v813
        %v1022 = vunpack.c.l.b16 %v814
        %v1023 = vunpack.c.l.b16 %v815
        %v1024 = vunpack.c.l.b16 %v816
        %v1025 = vunpack.c.l.b16 %v817
        %v1026 = vunpack.c.l.b16 %v818
        %v1027 = vunpack.c.l.b16 %v819
        %v1028 = vunpack.c.l.b16 %v820
        %v1029 = vunpack.c.l.b16 %v821
        %v1030 = vunpack.c.l.b16 %v822
        %v1031 = vunpack.c.l.b16 %v823
        %v1032 = vunpack.c.l.b16 %v824
        %v1033 = vunpack.c.l.b16 %v825
        %v1034 = vunpack.c.l.b16 %v826
        %v1035 = vunpack.c.l.b16 %v827
        %v1036 = vunpack.c.l.b16 %v828
        %v1037 = vunpack.c.l.b16 %v829
        %v1038 = vunpack.c.l.b16 %v830
        %v1039 = vpack.c.b16 %v992, %v991
        %v1040 = vpack.c.b16 %v994, %v993
        %v1041 = vpack.c.b16 %v996, %v995
        %v1042 = vpack.c.b16 %v998, %v997
        %v1043 = vpack.c.b16 %v1000, %v999
        %v1044 = vpack.c.b16 %v1002, %v1001
        %v1045 = vpack.c.b16 %v1004, %v1003
        %v1046 = vpack.c.b16 %v1006, %v1005
        %v1047 = vpack.c.b16 %v1008, %v1007
        %v1048 = vpack.c.b16 %v1010, %v1009
        %v1049 = vpack.c.b16 %v1012, %v1011
        %v1050 = vpack.c.b16 %v1014, %v1013
        %v1051 = vpack.c.b16 %v1016, %v1015
        %v1052 = vpack.c.b16 %v1018, %v1017
        %v1053 = vpack.c.b16 %v1020, %v1019
        %v1054 = vpack.c.b16 %v1022, %v1021
        %v1055 = vpack.c.b16 %v1024, %v1023
        %v1056 = vpack.c.b16 %v1026, %v1025
        %v1057 = vpack.c.b16 %v1028, %v1027
        %v1058 = vpack.c.b16 %v1030, %v1029
        %v1059 = vpack.c.b16 %v1032, %v1031
        %v1060 = vpack.c.b16 %v1034, %v1033
        %v1061 = vpack.c.b16 %v1036, %v1035
        %v1062 = vpack.c.b16 %v1038, %v1037
        %v1103 = vunpack.c.l.b16 %v927
        %v1104 = vunpack.c.l.b16 %v928
        %v1105 = vunpack.c.l.b16 %v929
        %v1106 = vunpack.c.l.b16 %v930
        %v1107 = vunpack.c.l.b16 %v931
        %v1108 = vunpack.c.l.b16 %v932
        %v1109 = vunpack.c.l.b16 %v933
        %v1110 = vunpack.c.l.b16 %v934
        %v1111 = vunpack.c.l.b16 %v935
        %v1112 = vunpack.c.l.b16 %v936
        %v1113 = vunpack.c.l.b16 %v937
        %v1114 = vunpack.c.l.b16 %v938
        %v1115 = vunpack.c.l.b16 %v939
        %v1116 = vunpack.c.l.b16 %v940
        %v1117 = vunpack.c.l.b16 %v941
        %v1118 = vunpack.c.l.b16 %v942
        %v1119 = vpack.c.b16 %v1104, %v1103
        %v1120 = vpack.c.b16 %v1106, %v1105
        %v1121 = vpack.c.b16 %v1108, %v1107
        %v1122 = vpack.c.b16 %v1110, %v1109
        %v1123 = vpack.c.b16 %v1112, %v1111
        %v1124 = vpack.c.b16 %v1114, %v1113
        %v1125 = vpack.c.b16 %v1116, %v1115
        %v1126 = vpack.c.b16 %v1118, %v1117
        %1135 = vmatprep.subr.bf16.mxu0 0
        %1136 = vmatpush1.bf16.msra.mxu0 %v1119
        %1137 = vmatprep.subr.bf16.mxu0 0
        %1138 = vmatpush1.bf16.msra.mxu0 %v1120
        %1139 = vmatprep.subr.bf16.mxu0 0
        %1140 = vmatpush1.bf16.msra.mxu0 %v1121
        %1141 = vmatprep.subr.bf16.mxu0 0
        %1142 = vmatpush1.bf16.msra.mxu0 %v1122
        %1143 = vmatprep.subr.bf16.mxu0 0
        %1144 = vmatpush1.bf16.msra.mxu0 %v1123
        %1145 = vmatprep.subr.bf16.mxu0 0
        %1146 = vmatpush1.bf16.msra.mxu0 %v1124
        %1147 = vmatprep.subr.bf16.mxu0 0
        %1148 = vmatpush1.bf16.msra.mxu0 %v1125
        %1149 = vmatprep.subr.bf16.mxu0 0
        %1150 = vmatpush1.bf16.msra.mxu0 %v1126
        %1151 = vmatprep.subr.bf16.mxu0 0
        %1152 = vmatpush1.bf16.msra.mxu0 0
        %1153 = vmatprep.subr.bf16.mxu0 0
        %1154 = vmatpush1.bf16.msra.mxu0 0
        %1155 = vmatprep.subr.bf16.mxu0 0
        %1156 = vmatpush1.bf16.msra.mxu0 0
        %1157 = vmatprep.subr.bf16.mxu0 0
        %1158 = vmatpush1.bf16.msra.mxu0 0
        %1159 = vmatprep.subr.bf16.mxu0 0
        %1160 = vmatpush1.bf16.msra.mxu0 0
        %1161 = vmatprep.subr.bf16.mxu0 0
        %1162 = vmatpush1.bf16.msra.mxu0 0
        %1163 = vmatprep.subr.bf16.mxu0 0
        %1164 = vmatpush1.bf16.msra.mxu0 0
        %1165 = vmatprep.subr.bf16.mxu0 0
        %1166 = vmatpush1.bf16.msra.mxu0 0
        %1167 = vmatprep.mubr.bf16.mxu0 0
        %1168 = vmatmul.mubr.bf16.gmra.mrb[0].mxu0 %v1039
        %v1169 = vpop.f32.mrb[0].mxu0
        %v1170 = vadd.f32 0.0, %v1169
        %v1171 = vpop.f32.mrb[0].mxu0
        %v1172 = vpop.f32.mrb[0].mxu0
        %v1173 = vadd.f32 0.0, %v1172
        %v1174 = vpop.f32.mrb[0].mxu0
        %1175 = vmatprep.mubr.bf16.mxu0 0
        %1176 = vmatmul.mubr.bf16.gmra.mrb[0].mxu0 %v1040
        %v1177 = vpop.f32.mrb[0].mxu0
        %v1178 = vadd.f32 0.0, %v1177
        %v1179 = vpop.f32.mrb[0].mxu0
        %v1180 = vpop.f32.mrb[0].mxu0
        %v1181 = vadd.f32 0.0, %v1180
        %v1182 = vpop.f32.mrb[0].mxu0
        %1183 = vmatprep.mubr.bf16.mxu0 0
        %1184 = vmatmul.mubr.bf16.gmra.mrb[0].mxu0 %v1041
        %v1185 = vpop.f32.mrb[0].mxu0
        %v1186 = vadd.f32 0.0, %v1185
        %v1187 = vpop.f32.mrb[0].mxu0
        %v1188 = vpop.f32.mrb[0].mxu0
        %v1189 = vadd.f32 0.0, %v1188
        %v1190 = vpop.f32.mrb[0].mxu0
        %1191 = vmatprep.mubr.bf16.mxu0 0
        %1192 = vmatmul.mubr.bf16.gmra.mrb[0].mxu0 %v1042
        %v1193 = vpop.f32.mrb[0].mxu0
        %v1194 = vadd.f32 0.0, %v1193
        %v1195 = vpop.f32.mrb[0].mxu0
        %v1196 = vpop.f32.mrb[0].mxu0
        %v1197 = vadd.f32 0.0, %v1196
        %v1198 = vpop.f32.mrb[0].mxu0
        %1199 = vmatprep.mubr.bf16.mxu0 0
        %1200 = vmatmul.mubr.bf16.gmra.mrb[0].mxu0 %v1043
        %v1201 = vpop.f32.mrb[0].mxu0
        %v1202 = vadd.f32 0.0, %v1201
        %v1203 = vpop.f32.mrb[0].mxu0
        %v1204 = vpop.f32.mrb[0].mxu0
        %v1205 = vadd.f32 0.0, %v1204
        %v1206 = vpop.f32.mrb[0].mxu0
        %1207 = vmatprep.mubr.bf16.mxu0 0
        %1208 = vmatmul.mubr.bf16.gmra.mrb[0].mxu0 %v1044
        %v1209 = vpop.f32.mrb[0].mxu0
        %v1210 = vadd.f32 0.0, %v1209
        %v1211 = vpop.f32.mrb[0].mxu0
        %v1212 = vpop.f32.mrb[0].mxu0
        %v1213 = vadd.f32 0.0, %v1212
        %v1214 = vpop.f32.mrb[0].mxu0
        %1215 = vmatprep.mubr.bf16.mxu0 0
        %1216 = vmatmul.mubr.bf16.gmra.mrb[0].mxu0 %v1045
        %v1217 = vpop.f32.mrb[0].mxu0
        %v1218 = vadd.f32 0.0, %v1217
        %v1219 = vpop.f32.mrb[0].mxu0
        %v1220 = vpop.f32.mrb[0].mxu0
        %v1221 = vadd.f32 0.0, %v1220
        %v1222 = vpop.f32.mrb[0].mxu0
        %1223 = vmatprep.mubr.bf16.mxu0 0
        %1224 = vmatmul.mubr.bf16.gmra.mrb[0].mxu0 %v1046
        %v1225 = vpop.f32.mrb[0].mxu0
        %v1226 = vadd.f32 0.0, %v1225
        %v1227 = vpop.f32.mrb[0].mxu0
        %v1228 = vpop.f32.mrb[0].mxu0
        %v1229 = vadd.f32 0.0, %v1228
        %v1230 = vpop.f32.mrb[0].mxu0
        %1231 = vmatprep.mubr.bf16.mxu0 0
        %1232 = vmatmul.mubr.bf16.gmra.mrb[0].mxu0 %v1047
        %v1233 = vpop.f32.mrb[0].mxu0
        %v1234 = vadd.f32 0.0, %v1233
        %v1235 = vpop.f32.mrb[0].mxu0
        %v1236 = vpop.f32.mrb[0].mxu0
        %v1237 = vadd.f32 0.0, %v1236
        %v1238 = vpop.f32.mrb[0].mxu0
        %1239 = vmatprep.mubr.bf16.mxu0 0
        %1240 = vmatmul.mubr.bf16.gmra.mrb[0].mxu0 %v1048
        %v1241 = vpop.f32.mrb[0].mxu0
        %v1242 = vadd.f32 0.0, %v1241
        %v1243 = vpop.f32.mrb[0].mxu0
        %v1244 = vpop.f32.mrb[0].mxu0
        %v1245 = vadd.f32 0.0, %v1244
        %v1246 = vpop.f32.mrb[0].mxu0
        %1247 = vmatprep.mubr.bf16.mxu0 0
        %1248 = vmatmul.mubr.bf16.gmra.mrb[0].mxu0 %v1049
        %v1249 = vpop.f32.mrb[0].mxu0
        %v1250 = vadd.f32 0.0, %v1249
        %v1251 = vpop.f32.mrb[0].mxu0
        %v1252 = vpop.f32.mrb[0].mxu0
        %v1253 = vadd.f32 0.0, %v1252
        %v1254 = vpop.f32.mrb[0].mxu0
        %1255 = vmatprep.mubr.bf16.mxu0 0
        %1256 = vmatmul.mubr.bf16.gmra.mrb[0].mxu0 %v1050
        %v1257 = vpop.f32.mrb[0].mxu0
        %v1258 = vadd.f32 0.0, %v1257
        %v1259 = vpop.f32.mrb[0].mxu0
        %v1260 = vpop.f32.mrb[0].mxu0
        %v1261 = vadd.f32 0.0, %v1260
        %v1262 = vpop.f32.mrb[0].mxu0
        %1263 = vmatprep.mubr.bf16.mxu0 0
        %1264 = vmatmul.mubr.bf16.gmra.mrb[0].mxu0 %v1051
        %v1265 = vpop.f32.mrb[0].mxu0
        %v1266 = vadd.f32 0.0, %v1265
        %v1267 = vpop.f32.mrb[0].mxu0
        %v1268 = vpop.f32.mrb[0].mxu0
        %v1269 = vadd.f32 0.0, %v1268
        %v1270 = vpop.f32.mrb[0].mxu0
        %1271 = vmatprep.mubr.bf16.mxu0 0
        %1272 = vmatmul.mubr.bf16.gmra.mrb[0].mxu0 %v1052
        %v1273 = vpop.f32.mrb[0].mxu0
        %v1274 = vadd.f32 0.0, %v1273
        %v1275 = vpop.f32.mrb[0].mxu0
        %v1276 = vpop.f32.mrb[0].mxu0
        %v1277 = vadd.f32 0.0, %v1276
        %v1278 = vpop.f32.mrb[0].mxu0
        %1279 = vmatprep.mubr.bf16.mxu0 0
        %1280 = vmatmul.mubr.bf16.gmra.mrb[0].mxu0 %v1053
        %v1281 = vpop.f32.mrb[0].mxu0
        %v1282 = vadd.f32 0.0, %v1281
        %v1283 = vpop.f32.mrb[0].mxu0
        %v1284 = vpop.f32.mrb[0].mxu0
        %v1285 = vadd.f32 0.0, %v1284
        %v1286 = vpop.f32.mrb[0].mxu0
        %1287 = vmatprep.mubr.bf16.mxu0 0
        %1288 = vmatmul.mubr.bf16.gmra.mrb[0].mxu0 %v1054
        %v1289 = vpop.f32.mrb[0].mxu0
        %v1290 = vadd.f32 0.0, %v1289
        %v1291 = vpop.f32.mrb[0].mxu0
        %v1292 = vpop.f32.mrb[0].mxu0
        %v1293 = vadd.f32 0.0, %v1292
        %v1294 = vpop.f32.mrb[0].mxu0
        %1295 = vmatprep.mubr.bf16.mxu0 0
        %1296 = vmatmul.mubr.bf16.gmra.mrb[0].mxu0 %v1055
        %v1297 = vpop.f32.mrb[0].mxu0
        %v1298 = vadd.f32 0.0, %v1297
        %v1299 = vpop.f32.mrb[0].mxu0
        %v1300 = vpop.f32.mrb[0].mxu0
        %v1301 = vadd.f32 0.0, %v1300
        %v1302 = vpop.f32.mrb[0].mxu0
        %1303 = vmatprep.mubr.bf16.mxu0 0
        %1304 = vmatmul.mubr.bf16.gmra.mrb[0].mxu0 %v1056
        %v1305 = vpop.f32.mrb[0].mxu0
        %v1306 = vadd.f32 0.0, %v1305
        %v1307 = vpop.f32.mrb[0].mxu0
        %v1308 = vpop.f32.mrb[0].mxu0
        %v1309 = vadd.f32 0.0, %v1308
        %v1310 = vpop.f32.mrb[0].mxu0
        %1311 = vmatprep.mubr.bf16.mxu0 0
        %1312 = vmatmul.mubr.bf16.gmra.mrb[0].mxu0 %v1057
        %v1313 = vpop.f32.mrb[0].mxu0
        %v1314 = vadd.f32 0.0, %v1313
        %v1315 = vpop.f32.mrb[0].mxu0
        %v1316 = vpop.f32.mrb[0].mxu0
        %v1317 = vadd.f32 0.0, %v1316
        %v1318 = vpop.f32.mrb[0].mxu0
        %1319 = vmatprep.mubr.bf16.mxu0 0
        %1320 = vmatmul.mubr.bf16.gmra.mrb[0].mxu0 %v1058
        %v1321 = vpop.f32.mrb[0].mxu0
        %v1322 = vadd.f32 0.0, %v1321
        %v1323 = vpop.f32.mrb[0].mxu0
        %v1324 = vpop.f32.mrb[0].mxu0
        %v1325 = vadd.f32 0.0, %v1324
        %v1326 = vpop.f32.mrb[0].mxu0
        %1327 = vmatprep.mubr.bf16.mxu0 0
        %1328 = vmatmul.mubr.bf16.gmra.mrb[0].mxu0 %v1059
        %v1329 = vpop.f32.mrb[0].mxu0
        %v1330 = vadd.f32 0.0, %v1329
        %v1331 = vpop.f32.mrb[0].mxu0
        %v1332 = vpop.f32.mrb[0].mxu0
        %v1333 = vadd.f32 0.0, %v1332
        %v1334 = vpop.f32.mrb[0].mxu0
        %1335 = vmatprep.mubr.bf16.mxu0 0
        %1336 = vmatmul.mubr.bf16.gmra.mrb[0].mxu0 %v1060
        %v1337 = vpop.f32.mrb[0].mxu0
        %v1338 = vadd.f32 0.0, %v1337
        %v1339 = vpop.f32.mrb[0].mxu0
        %v1340 = vpop.f32.mrb[0].mxu0
        %v1341 = vadd.f32 0.0, %v1340
        %v1342 = vpop.f32.mrb[0].mxu0
        %1343 = vmatprep.mubr.bf16.mxu0 0
        %1344 = vmatmul.mubr.bf16.gmra.mrb[0].mxu0 %v1061
        %v1345 = vpop.f32.mrb[0].mxu0
        %v1346 = vadd.f32 0.0, %v1345
        %v1347 = vpop.f32.mrb[0].mxu0
        %v1348 = vpop.f32.mrb[0].mxu0
        %v1349 = vadd.f32 0.0, %v1348
        %v1350 = vpop.f32.mrb[0].mxu0
        %1351 = vmatprep.mubr.bf16.mxu0 0
        %1352 = vmatmul.mubr.bf16.gmra.mrb[0].mxu0 %v1062
        %v1353 = vpop.f32.mrb[0].mxu0
        %v1354 = vadd.f32 0.0, %v1353
        %v1355 = vpop.f32.mrb[0].mxu0
        %v1356 = vpop.f32.mrb[0].mxu0
        %v1357 = vadd.f32 0.0, %v1356
        %v1358 = vpop.f32.mrb[0].mxu0
        %1359 = vdwg.mxu0
        %v1360 = vld [vmem:[%s7] sm:$0x1]
        %v1362 = vlaneseq
        %v1363 = vshrl.u32 %v1362, 7
        %v1364 = vsub.s32 0, %v1363
        %v1365 = vrot.slane %v1360, %v1364
        %v1367 = vmul.f32 %v1170, %v1365
        %v1368 = vmul.f32 %v1173, %v1365
        %v1369 = vmul.f32 %v1178, %v1365
        %v1370 = vmul.f32 %v1181, %v1365
        %v1371 = vmul.f32 %v1186, %v1365
        %v1372 = vmul.f32 %v1189, %v1365
        %v1373 = vmul.f32 %v1194, %v1365
        %v1374 = vmul.f32 %v1197, %v1365
        %v1375 = vmul.f32 %v1202, %v1365
        %v1376 = vmul.f32 %v1205, %v1365
        %v1377 = vmul.f32 %v1210, %v1365
        %v1378 = vmul.f32 %v1213, %v1365
        %v1379 = vmul.f32 %v1218, %v1365
        %v1380 = vmul.f32 %v1221, %v1365
        %v1381 = vmul.f32 %v1226, %v1365
        %v1382 = vmul.f32 %v1229, %v1365
        %v1383 = vmul.f32 %v1234, %v1365
        %v1384 = vmul.f32 %v1237, %v1365
        %v1385 = vmul.f32 %v1242, %v1365
        %v1386 = vmul.f32 %v1245, %v1365
        %v1387 = vmul.f32 %v1250, %v1365
        %v1388 = vmul.f32 %v1253, %v1365
        %v1389 = vmul.f32 %v1258, %v1365
        %v1390 = vmul.f32 %v1261, %v1365
        %v1391 = vmul.f32 %v1266, %v1365
        %v1392 = vmul.f32 %v1269, %v1365
        %v1393 = vmul.f32 %v1274, %v1365
        %v1394 = vmul.f32 %v1277, %v1365
        %v1395 = vmul.f32 %v1282, %v1365
        %v1396 = vmul.f32 %v1285, %v1365
        %v1397 = vmul.f32 %v1290, %v1365
        %v1398 = vmul.f32 %v1293, %v1365
        %v1399 = vmul.f32 %v1298, %v1365
        %v1400 = vmul.f32 %v1301, %v1365
        %v1401 = vmul.f32 %v1306, %v1365
        %v1402 = vmul.f32 %v1309, %v1365
        %v1403 = vmul.f32 %v1314, %v1365
        %v1404 = vmul.f32 %v1317, %v1365
        %v1405 = vmul.f32 %v1322, %v1365
        %v1406 = vmul.f32 %v1325, %v1365
        %v1407 = vmul.f32 %v1330, %v1365
        %v1408 = vmul.f32 %v1333, %v1365
        %v1409 = vmul.f32 %v1338, %v1365
        %v1410 = vmul.f32 %v1341, %v1365
        %v1411 = vmul.f32 %v1346, %v1365
        %v1412 = vmul.f32 %v1349, %v1365
        %v1413 = vmul.f32 %v1354, %v1365
        %v1414 = vmul.f32 %v1357, %v1365
        %v1415 = vld [vmem:[%s8] sm:$0x1]
        %v1417 = vlaneseq
        %v1418 = vshrl.u32 %v1417, 7
        %v1419 = vsub.s32 0, %v1418
        %v1420 = vrot.slane %v1415, %v1419
        %v1422 = vadd.f32 %v1367, %v1420
        %v1423 = vadd.f32 %v1368, %v1420
        %v1424 = vadd.f32 %v1369, %v1420
        %v1425 = vadd.f32 %v1370, %v1420
        %v1426 = vadd.f32 %v1371, %v1420
        %v1427 = vadd.f32 %v1372, %v1420
        %v1428 = vadd.f32 %v1373, %v1420
        %v1429 = vadd.f32 %v1374, %v1420
        %v1430 = vadd.f32 %v1375, %v1420
        %v1431 = vadd.f32 %v1376, %v1420
        %v1432 = vadd.f32 %v1377, %v1420
        %v1433 = vadd.f32 %v1378, %v1420
        %v1434 = vadd.f32 %v1379, %v1420
        %v1435 = vadd.f32 %v1380, %v1420
        %v1436 = vadd.f32 %v1381, %v1420
        %v1437 = vadd.f32 %v1382, %v1420
        %v1438 = vadd.f32 %v1383, %v1420
        %v1439 = vadd.f32 %v1384, %v1420
        %v1440 = vadd.f32 %v1385, %v1420
        %v1441 = vadd.f32 %v1386, %v1420
        %v1442 = vadd.f32 %v1387, %v1420
        %v1443 = vadd.f32 %v1388, %v1420
        %v1444 = vadd.f32 %v1389, %v1420
        %v1445 = vadd.f32 %v1390, %v1420
        %v1446 = vadd.f32 %v1391, %v1420
        %v1447 = vadd.f32 %v1392, %v1420
        %v1448 = vadd.f32 %v1393, %v1420
        %v1449 = vadd.f32 %v1394, %v1420
        %v1450 = vadd.f32 %v1395, %v1420
        %v1451 = vadd.f32 %v1396, %v1420
        %v1452 = vadd.f32 %v1397, %v1420
        %v1453 = vadd.f32 %v1398, %v1420
        %v1454 = vadd.f32 %v1399, %v1420
        %v1455 = vadd.f32 %v1400, %v1420
        %v1456 = vadd.f32 %v1401, %v1420
        %v1457 = vadd.f32 %v1402, %v1420
        %v1458 = vadd.f32 %v1403, %v1420
        %v1459 = vadd.f32 %v1404, %v1420
        %v1460 = vadd.f32 %v1405, %v1420
        %v1461 = vadd.f32 %v1406, %v1420
        %v1462 = vadd.f32 %v1407, %v1420
        %v1463 = vadd.f32 %v1408, %v1420
        %v1464 = vadd.f32 %v1409, %v1420
        %v1465 = vadd.f32 %v1410, %v1420
        %v1466 = vadd.f32 %v1411, %v1420
        %v1467 = vadd.f32 %v1412, %v1420
        %v1468 = vadd.f32 %v1413, %v1420
        %v1469 = vadd.f32 %v1414, %v1420
        %v1470 = vsub.f32 0.0, %v1422
        %v1471 = vsub.f32 0.0, %v1423
        %v1472 = vsub.f32 0.0, %v1424
        %v1473 = vsub.f32 0.0, %v1425
        %v1474 = vsub.f32 0.0, %v1426
        %v1475 = vsub.f32 0.0, %v1427
        %v1476 = vsub.f32 0.0, %v1428
        %v1477 = vsub.f32 0.0, %v1429
        %v1478 = vsub.f32 0.0, %v1430
        %v1479 = vsub.f32 0.0, %v1431
        %v1480 = vsub.f32 0.0, %v1432
        %v1481 = vsub.f32 0.0, %v1433
        %v1482 = vsub.f32 0.0, %v1434
        %v1483 = vsub.f32 0.0, %v1435
        %v1484 = vsub.f32 0.0, %v1436
        %v1485 = vsub.f32 0.0, %v1437
        %v1486 = vsub.f32 0.0, %v1438
        %v1487 = vsub.f32 0.0, %v1439
        %v1488 = vsub.f32 0.0, %v1440
        %v1489 = vsub.f32 0.0, %v1441
        %v1490 = vsub.f32 0.0, %v1442
        %v1491 = vsub.f32 0.0, %v1443
        %v1492 = vsub.f32 0.0, %v1444
        %v1493 = vsub.f32 0.0, %v1445
        %v1494 = vsub.f32 0.0, %v1446
        %v1495 = vsub.f32 0.0, %v1447
        %v1496 = vsub.f32 0.0, %v1448
        %v1497 = vsub.f32 0.0, %v1449
        %v1498 = vsub.f32 0.0, %v1450
        %v1499 = vsub.f32 0.0, %v1451
        %v1500 = vsub.f32 0.0, %v1452
        %v1501 = vsub.f32 0.0, %v1453
        %v1502 = vsub.f32 0.0, %v1454
        %v1503 = vsub.f32 0.0, %v1455
        %v1504 = vsub.f32 0.0, %v1456
        %v1505 = vsub.f32 0.0, %v1457
        %v1506 = vsub.f32 0.0, %v1458
        %v1507 = vsub.f32 0.0, %v1459
        %v1508 = vsub.f32 0.0, %v1460
        %v1509 = vsub.f32 0.0, %v1461
        %v1510 = vsub.f32 0.0, %v1462
        %v1511 = vsub.f32 0.0, %v1463
        %v1512 = vsub.f32 0.0, %v1464
        %v1513 = vsub.f32 0.0, %v1465
        %v1514 = vsub.f32 0.0, %v1466
        %v1515 = vsub.f32 0.0, %v1467
        %v1516 = vsub.f32 0.0, %v1468
        %v1517 = vsub.f32 0.0, %v1469
        %v1518 = vmul.f32 %v1470, 1.442695
        %v1519 = vpow.pop %v1518
        %v1520 = vmul.f32 %v1471, 1.442695
        %v1521 = vpow.pop %v1520
        %v1522 = vmul.f32 %v1472, 1.442695
        %v1523 = vpow.pop %v1522
        %v1524 = vmul.f32 %v1473, 1.442695
        %v1525 = vpow.pop %v1524
        %v1526 = vmul.f32 %v1474, 1.442695
        %v1527 = vpow.pop %v1526
        %v1528 = vmul.f32 %v1475, 1.442695
        %v1529 = vpow.pop %v1528
        %v1530 = vmul.f32 %v1476, 1.442695
        %v1531 = vpow.pop %v1530
        %v1532 = vmul.f32 %v1477, 1.442695
        %v1533 = vpow.pop %v1532
        %v1534 = vmul.f32 %v1478, 1.442695
        %v1535 = vpow.pop %v1534
        %v1536 = vmul.f32 %v1479, 1.442695
        %v1537 = vpow.pop %v1536
        %v1538 = vmul.f32 %v1480, 1.442695
        %v1539 = vpow.pop %v1538
        %v1540 = vmul.f32 %v1481, 1.442695
        %v1541 = vpow.pop %v1540
        %v1542 = vmul.f32 %v1482, 1.442695
        %v1543 = vpow.pop %v1542
        %v1544 = vmul.f32 %v1483, 1.442695
        %v1545 = vpow.pop %v1544
        %v1546 = vmul.f32 %v1484, 1.442695
        %v1547 = vpow.pop %v1546
        %v1548 = vmul.f32 %v1485, 1.442695
        %v1549 = vpow.pop %v1548
        %v1550 = vmul.f32 %v1486, 1.442695
        %v1551 = vpow.pop %v1550
        %v1552 = vmul.f32 %v1487, 1.442695
        %v1553 = vpow.pop %v1552
        %v1554 = vmul.f32 %v1488, 1.442695
        %v1555 = vpow.pop %v1554
        %v1556 = vmul.f32 %v1489, 1.442695
        %v1557 = vpow.pop %v1556
        %v1558 = vmul.f32 %v1490, 1.442695
        %v1559 = vpow.pop %v1558
        %v1560 = vmul.f32 %v1491, 1.442695
        %v1561 = vpow.pop %v1560
        %v1562 = vmul.f32 %v1492, 1.442695
        %v1563 = vpow.pop %v1562
        %v1564 = vmul.f32 %v1493, 1.442695
        %v1565 = vpow.pop %v1564
        %v1566 = vmul.f32 %v1494, 1.442695
        %v1567 = vpow.pop %v1566
        %v1568 = vmul.f32 %v1495, 1.442695
        %v1569 = vpow.pop %v1568
        %v1570 = vmul.f32 %v1496, 1.442695
        %v1571 = vpow.pop %v1570
        %v1572 = vmul.f32 %v1497, 1.442695
        %v1573 = vpow.pop %v1572
        %v1574 = vmul.f32 %v1498, 1.442695
        %v1575 = vpow.pop %v1574
        %v1576 = vmul.f32 %v1499, 1.442695
        %v1577 = vpow.pop %v1576
        %v1578 = vmul.f32 %v1500, 1.442695
        %v1579 = vpow.pop %v1578
        %v1580 = vmul.f32 %v1501, 1.442695
        %v1581 = vpow.pop %v1580
        %v1582 = vmul.f32 %v1502, 1.442695
        %v1583 = vpow.pop %v1582
        %v1584 = vmul.f32 %v1503, 1.442695
        %v1585 = vpow.pop %v1584
        %v1586 = vmul.f32 %v1504, 1.442695
        %v1587 = vpow.pop %v1586
        %v1588 = vmul.f32 %v1505, 1.442695
        %v1589 = vpow.pop %v1588
        %v1590 = vmul.f32 %v1506, 1.442695
        %v1591 = vpow.pop %v1590
        %v1592 = vmul.f32 %v1507, 1.442695
        %v1593 = vpow.pop %v1592
        %v1594 = vmul.f32 %v1508, 1.442695
        %v1595 = vpow.pop %v1594
        %v1596 = vmul.f32 %v1509, 1.442695
        %v1597 = vpow.pop %v1596
        %v1598 = vmul.f32 %v1510, 1.442695
        %v1599 = vpow.pop %v1598
        %v1600 = vmul.f32 %v1511, 1.442695
        %v1601 = vpow.pop %v1600
        %v1602 = vmul.f32 %v1512, 1.442695
        %v1603 = vpow.pop %v1602
        %v1604 = vmul.f32 %v1513, 1.442695
        %v1605 = vpow.pop %v1604
        %v1606 = vmul.f32 %v1514, 1.442695
        %v1607 = vpow.pop %v1606
        %v1608 = vmul.f32 %v1515, 1.442695
        %v1609 = vpow.pop %v1608
        %v1610 = vmul.f32 %v1516, 1.442695
        %v1611 = vpow.pop %v1610
        %v1612 = vmul.f32 %v1517, 1.442695
        %v1613 = vpow.pop %v1612
        %v1614 = vadd.f32 %v1519, 1.0
        %v1615 = vadd.f32 %v1521, 1.0
        %v1616 = vadd.f32 %v1523, 1.0
        %v1617 = vadd.f32 %v1525, 1.0
        %v1618 = vadd.f32 %v1527, 1.0
        %v1619 = vadd.f32 %v1529, 1.0
        %v1620 = vadd.f32 %v1531, 1.0
        %v1621 = vadd.f32 %v1533, 1.0
        %v1622 = vadd.f32 %v1535, 1.0
        %v1623 = vadd.f32 %v1537, 1.0
        %v1624 = vadd.f32 %v1539, 1.0
        %v1625 = vadd.f32 %v1541, 1.0
        %v1626 = vadd.f32 %v1543, 1.0
        %v1627 = vadd.f32 %v1545, 1.0
        %v1628 = vadd.f32 %v1547, 1.0
        %v1629 = vadd.f32 %v1549, 1.0
        %v1630 = vadd.f32 %v1551, 1.0
        %v1631 = vadd.f32 %v1553, 1.0
        %v1632 = vadd.f32 %v1555, 1.0
        %v1633 = vadd.f32 %v1557, 1.0
        %v1634 = vadd.f32 %v1559, 1.0
        %v1635 = vadd.f32 %v1561, 1.0
        %v1636 = vadd.f32 %v1563, 1.0
        %v1637 = vadd.f32 %v1565, 1.0
        %v1638 = vadd.f32 %v1567, 1.0
        %v1639 = vadd.f32 %v1569, 1.0
        %v1640 = vadd.f32 %v1571, 1.0
        %v1641 = vadd.f32 %v1573, 1.0
        %v1642 = vadd.f32 %v1575, 1.0
        %v1643 = vadd.f32 %v1577, 1.0
        %v1644 = vadd.f32 %v1579, 1.0
        %v1645 = vadd.f32 %v1581, 1.0
        %v1646 = vadd.f32 %v1583, 1.0
        %v1647 = vadd.f32 %v1585, 1.0
        %v1648 = vadd.f32 %v1587, 1.0
        %v1649 = vadd.f32 %v1589, 1.0
        %v1650 = vadd.f32 %v1591, 1.0
        %v1651 = vadd.f32 %v1593, 1.0
        %v1652 = vadd.f32 %v1595, 1.0
        %v1653 = vadd.f32 %v1597, 1.0
        %v1654 = vadd.f32 %v1599, 1.0
        %v1655 = vadd.f32 %v1601, 1.0
        %v1656 = vadd.f32 %v1603, 1.0
        %v1657 = vadd.f32 %v1605, 1.0
        %v1658 = vadd.f32 %v1607, 1.0
        %v1659 = vadd.f32 %v1609, 1.0
        %v1660 = vadd.f32 %v1611, 1.0
        %v1661 = vadd.f32 %v1613, 1.0
        %v1662 = vrcp.pop %v1614
        %v1663 = vrcp.pop %v1615
        %v1664 = vrcp.pop %v1616
        %v1665 = vrcp.pop %v1617
        %v1666 = vrcp.pop %v1618
        %v1667 = vrcp.pop %v1619
        %v1668 = vrcp.pop %v1620
        %v1669 = vrcp.pop %v1621
        %v1670 = vrcp.pop %v1622
        %v1671 = vrcp.pop %v1623
        %v1672 = vrcp.pop %v1624
        %v1673 = vrcp.pop %v1625
        %v1674 = vrcp.pop %v1626
        %v1675 = vrcp.pop %v1627
        %v1676 = vrcp.pop %v1628
        %v1677 = vrcp.pop %v1629
        %v1678 = vrcp.pop %v1630
        %v1679 = vrcp.pop %v1631
        %v1680 = vrcp.pop %v1632
        %v1681 = vrcp.pop %v1633
        %v1682 = vrcp.pop %v1634
        %v1683 = vrcp.pop %v1635
        %v1684 = vrcp.pop %v1636
        %v1685 = vrcp.pop %v1637
        %v1686 = vrcp.pop %v1638
        %v1687 = vrcp.pop %v1639
        %v1688 = vrcp.pop %v1640
        %v1689 = vrcp.pop %v1641
        %v1690 = vrcp.pop %v1642
        %v1691 = vrcp.pop %v1643
        %v1692 = vrcp.pop %v1644
        %v1693 = vrcp.pop %v1645
        %v1694 = vrcp.pop %v1646
        %v1695 = vrcp.pop %v1647
        %v1696 = vrcp.pop %v1648
        %v1697 = vrcp.pop %v1649
        %v1698 = vrcp.pop %v1650
        %v1699 = vrcp.pop %v1651
        %v1700 = vrcp.pop %v1652
        %v1701 = vrcp.pop %v1653
        %v1702 = vrcp.pop %v1654
        %v1703 = vrcp.pop %v1655
        %v1704 = vrcp.pop %v1656
        %v1705 = vrcp.pop %v1657
        %v1706 = vrcp.pop %v1658
        %v1707 = vrcp.pop %v1659
        %v1708 = vrcp.pop %v1660
        %v1709 = vrcp.pop %v1661
        %v1710 = vmul.f32 %v1422, %v1662
        %v1711 = vmul.f32 %v1423, %v1663
        %v1712 = vmul.f32 %v1424, %v1664
        %v1713 = vmul.f32 %v1425, %v1665
        %v1714 = vmul.f32 %v1426, %v1666
        %v1715 = vmul.f32 %v1427, %v1667
        %v1716 = vmul.f32 %v1428, %v1668
        %v1717 = vmul.f32 %v1429, %v1669
        %v1718 = vmul.f32 %v1430, %v1670
        %v1719 = vmul.f32 %v1431, %v1671
        %v1720 = vmul.f32 %v1432, %v1672
        %v1721 = vmul.f32 %v1433, %v1673
        %v1722 = vmul.f32 %v1434, %v1674
        %v1723 = vmul.f32 %v1435, %v1675
        %v1724 = vmul.f32 %v1436, %v1676
        %v1725 = vmul.f32 %v1437, %v1677
        %v1726 = vmul.f32 %v1438, %v1678
        %v1727 = vmul.f32 %v1439, %v1679
        %v1728 = vmul.f32 %v1440, %v1680
        %v1729 = vmul.f32 %v1441, %v1681
        %v1730 = vmul.f32 %v1442, %v1682
        %v1731 = vmul.f32 %v1443, %v1683
        %v1732 = vmul.f32 %v1444, %v1684
        %v1733 = vmul.f32 %v1445, %v1685
        %v1734 = vmul.f32 %v1446, %v1686
        %v1735 = vmul.f32 %v1447, %v1687
        %v1736 = vmul.f32 %v1448, %v1688
        %v1737 = vmul.f32 %v1449, %v1689
        %v1738 = vmul.f32 %v1450, %v1690
        %v1739 = vmul.f32 %v1451, %v1691
        %v1740 = vmul.f32 %v1452, %v1692
        %v1741 = vmul.f32 %v1453, %v1693
        %v1742 = vmul.f32 %v1454, %v1694
        %v1743 = vmul.f32 %v1455, %v1695
        %v1744 = vmul.f32 %v1456, %v1696
        %v1745 = vmul.f32 %v1457, %v1697
        %v1746 = vmul.f32 %v1458, %v1698
        %v1747 = vmul.f32 %v1459, %v1699
        %v1748 = vmul.f32 %v1460, %v1700
        %v1749 = vmul.f32 %v1461, %v1701
        %v1750 = vmul.f32 %v1462, %v1702
        %v1751 = vmul.f32 %v1463, %v1703
        %v1752 = vmul.f32 %v1464, %v1704
        %v1753 = vmul.f32 %v1465, %v1705
        %v1754 = vmul.f32 %v1466, %v1706
        %v1755 = vmul.f32 %v1467, %v1707
        %v1756 = vmul.f32 %v1468, %v1708
        %v1757 = vmul.f32 %v1469, %v1709
        %s1758 = scalar_lea.vmem %s6, 64
        %v1759 = vld [vmem:[%s1758] sm:$0xf]
        %v1760 = vld [vmem:[%s1758 + $0x4] sm:$0xf]
        %v1761 = vld [vmem:[%s1758 + $0x8] sm:$0xf]
        %v1762 = vld [vmem:[%s1758 + $0xc] sm:$0xf]
        %v1763 = vld [vmem:[%s1758 + $0x10] sm:$0xf]
        %v1764 = vld [vmem:[%s1758 + $0x14] sm:$0xf]
        %v1765 = vld [vmem:[%s1758 + $0x18] sm:$0xf]
        %v1766 = vld [vmem:[%s1758 + $0x1c] sm:$0xf]
        %v1767 = vld [vmem:[%s1758 + $0x20] sm:$0xf]
        %v1768 = vld [vmem:[%s1758 + $0x24] sm:$0xf]
        %v1769 = vld [vmem:[%s1758 + $0x28] sm:$0xf]
        %v1770 = vld [vmem:[%s1758 + $0x2c] sm:$0xf]
        %v1771 = vld [vmem:[%s1758 + $0x30] sm:$0xf]
        %v1772 = vld [vmem:[%s1758 + $0x34] sm:$0xf]
        %v1773 = vld [vmem:[%s1758 + $0x38] sm:$0xf]
        %v1774 = vld [vmem:[%s1758 + $0x3c] sm:$0xf]
        %v1823 = vunpack.c.l.b16 %v831
        %v1824 = vunpack.c.l.b16 %v832
        %v1825 = vunpack.c.l.b16 %v833
        %v1826 = vunpack.c.l.b16 %v834
        %v1827 = vunpack.c.l.b16 %v835
        %v1828 = vunpack.c.l.b16 %v836
        %v1829 = vunpack.c.l.b16 %v837
        %v1830 = vunpack.c.l.b16 %v838
        %v1831 = vunpack.c.l.b16 %v839
        %v1832 = vunpack.c.l.b16 %v840
        %v1833 = vunpack.c.l.b16 %v841
        %v1834 = vunpack.c.l.b16 %v842
        %v1835 = vunpack.c.l.b16 %v843
        %v1836 = vunpack.c.l.b16 %v844
        %v1837 = vunpack.c.l.b16 %v845
        %v1838 = vunpack.c.l.b16 %v846
        %v1839 = vunpack.c.l.b16 %v847
        %v1840 = vunpack.c.l.b16 %v848
        %v1841 = vunpack.c.l.b16 %v849
        %v1842 = vunpack.c.l.b16 %v850
        %v1843 = vunpack.c.l.b16 %v851
        %v1844 = vunpack.c.l.b16 %v852
        %v1845 = vunpack.c.l.b16 %v853
        %v1846 = vunpack.c.l.b16 %v854
        %v1847 = vunpack.c.l.b16 %v855
        %v1848 = vunpack.c.l.b16 %v856
        %v1849 = vunpack.c.l.b16 %v857
        %v1850 = vunpack.c.l.b16 %v858
        %v1851 = vunpack.c.l.b16 %v859
        %v1852 = vunpack.c.l.b16 %v860
        %v1853 = vunpack.c.l.b16 %v861
        %v1854 = vunpack.c.l.b16 %v862
        %v1855 = vunpack.c.l.b16 %v863
        %v1856 = vunpack.c.l.b16 %v864
        %v1857 = vunpack.c.l.b16 %v865
        %v1858 = vunpack.c.l.b16 %v866
        %v1859 = vunpack.c.l.b16 %v867
        %v1860 = vunpack.c.l.b16 %v868
        %v1861 = vunpack.c.l.b16 %v869
        %v1862 = vunpack.c.l.b16 %v870
        %v1863 = vunpack.c.l.b16 %v871
        %v1864 = vunpack.c.l.b16 %v872
        %v1865 = vunpack.c.l.b16 %v873
        %v1866 = vunpack.c.l.b16 %v874
        %v1867 = vunpack.c.l.b16 %v875
        %v1868 = vunpack.c.l.b16 %v876
        %v1869 = vunpack.c.l.b16 %v877
        %v1870 = vunpack.c.l.b16 %v878
        %v1871 = vpack.c.b16 %v1824, %v1823
        %v1872 = vpack.c.b16 %v1826, %v1825
        %v1873 = vpack.c.b16 %v1828, %v1827
        %v1874 = vpack.c.b16 %v1830, %v1829
        %v1875 = vpack.c.b16 %v1832, %v1831
        %v1876 = vpack.c.b16 %v1834, %v1833
        %v1877 = vpack.c.b16 %v1836, %v1835
        %v1878 = vpack.c.b16 %v1838, %v1837
        %v1879 = vpack.c.b16 %v1840, %v1839
        %v1880 = vpack.c.b16 %v1842, %v1841
        %v1881 = vpack.c.b16 %v1844, %v1843
        %v1882 = vpack.c.b16 %v1846, %v1845
        %v1883 = vpack.c.b16 %v1848, %v1847
        %v1884 = vpack.c.b16 %v1850, %v1849
        %v1885 = vpack.c.b16 %v1852, %v1851
        %v1886 = vpack.c.b16 %v1854, %v1853
        %v1887 = vpack.c.b16 %v1856, %v1855
        %v1888 = vpack.c.b16 %v1858, %v1857
        %v1889 = vpack.c.b16 %v1860, %v1859
        %v1890 = vpack.c.b16 %v1862, %v1861
        %v1891 = vpack.c.b16 %v1864, %v1863
        %v1892 = vpack.c.b16 %v1866, %v1865
        %v1893 = vpack.c.b16 %v1868, %v1867
        %v1894 = vpack.c.b16 %v1870, %v1869
        %v1935 = vunpack.c.l.b16 %v1759
        %v1936 = vunpack.c.l.b16 %v1760
        %v1937 = vunpack.c.l.b16 %v1761
        %v1938 = vunpack.c.l.b16 %v1762
        %v1939 = vunpack.c.l.b16 %v1763
        %v1940 = vunpack.c.l.b16 %v1764
        %v1941 = vunpack.c.l.b16 %v1765
        %v1942 = vunpack.c.l.b16 %v1766
        %v1943 = vunpack.c.l.b16 %v1767
        %v1944 = vunpack.c.l.b16 %v1768
        %v1945 = vunpack.c.l.b16 %v1769
        %v1946 = vunpack.c.l.b16 %v1770
        %v1947 = vunpack.c.l.b16 %v1771
        %v1948 = vunpack.c.l.b16 %v1772
        %v1949 = vunpack.c.l.b16 %v1773
        %v1950 = vunpack.c.l.b16 %v1774
        %v1951 = vpack.c.b16 %v1936, %v1935
        %v1952 = vpack.c.b16 %v1938, %v1937
        %v1953 = vpack.c.b16 %v1940, %v1939
        %v1954 = vpack.c.b16 %v1942, %v1941
        %v1955 = vpack.c.b16 %v1944, %v1943
        %v1956 = vpack.c.b16 %v1946, %v1945
        %v1957 = vpack.c.b16 %v1948, %v1947
        %v1958 = vpack.c.b16 %v1950, %v1949
        %1967 = vmatprep.subr.bf16.mxu0 0
        %1968 = vmatpush1.bf16.msra.mxu0 %v1951
        %1969 = vmatprep.subr.bf16.mxu0 0
        %1970 = vmatpush1.bf16.msra.mxu0 %v1952
        %1971 = vmatprep.subr.bf16.mxu0 0
        %1972 = vmatpush1.bf16.msra.mxu0 %v1953
        %1973 = vmatprep.subr.bf16.mxu0 0
        %1974 = vmatpush1.bf16.msra.mxu0 %v1954
        %1975 = vmatprep.subr.bf16.mxu0 0
        %1976 = vmatpush1.bf16.msra.mxu0 %v1955
        %1977 = vmatprep.subr.bf16.mxu0 0
        %1978 = vmatpush1.bf16.msra.mxu0 %v1956
        %1979 = vmatprep.subr.bf16.mxu0 0
        %1980 = vmatpush1.bf16.msra.mxu0 %v1957
        %1981 = vmatprep.subr.bf16.mxu0 0
        %1982 = vmatpush1.bf16.msra.mxu0 %v1958
        %1983 = vmatprep.subr.bf16.mxu0 0
        %1984 = vmatpush1.bf16.msra.mxu0 0
        %1985 = vmatprep.subr.bf16.mxu0 0
        %1986 = vmatpush1.bf16.msra.mxu0 0
        %1987 = vmatprep.subr.bf16.mxu0 0
        %1988 = vmatpush1.bf16.msra.mxu0 0
        %1989 = vmatprep.subr.bf16.mxu0 0
        %1990 = vmatpush1.bf16.msra.mxu0 0
        %1991 = vmatprep.subr.bf16.mxu0 0
        %1992 = vmatpush1.bf16.msra.mxu0 0
        %1993 = vmatprep.subr.bf16.mxu0 0
        %1994 = vmatpush1.bf16.msra.mxu0 0
        %1995 = vmatprep.subr.bf16.mxu0 0
        %1996 = vmatpush1.bf16.msra.mxu0 0
        %1997 = vmatprep.subr.bf16.mxu0 0
        %1998 = vmatpush1.bf16.msra.mxu0 0
        %1999 = vmatprep.mubr.bf16.mxu0 0
        %2000 = vmatmul.mubr.bf16.gmra.mrb[0].mxu0 %v1871
        %v2001 = vpop.f32.mrb[0].mxu0
        %v2002 = vadd.f32 0.0, %v2001
        %v2003 = vpop.f32.mrb[0].mxu0
        %v2004 = vpop.f32.mrb[0].mxu0
        %v2005 = vadd.f32 0.0, %v2004
        %v2006 = vpop.f32.mrb[0].mxu0
        %2007 = vmatprep.mubr.bf16.mxu0 0
        %2008 = vmatmul.mubr.bf16.gmra.mrb[0].mxu0 %v1872
        %v2009 = vpop.f32.mrb[0].mxu0
        %v2010 = vadd.f32 0.0, %v2009
        %v2011 = vpop.f32.mrb[0].mxu0
        %v2012 = vpop.f32.mrb[0].mxu0
        %v2013 = vadd.f32 0.0, %v2012
        %v2014 = vpop.f32.mrb[0].mxu0
        %2015 = vmatprep.mubr.bf16.mxu0 0
        %2016 = vmatmul.mubr.bf16.gmra.mrb[0].mxu0 %v1873
        %v2017 = vpop.f32.mrb[0].mxu0
        %v2018 = vadd.f32 0.0, %v2017
        %v2019 = vpop.f32.mrb[0].mxu0
        %v2020 = vpop.f32.mrb[0].mxu0
        %v2021 = vadd.f32 0.0, %v2020
        %v2022 = vpop.f32.mrb[0].mxu0
        %2023 = vmatprep.mubr.bf16.mxu0 0
        %2024 = vmatmul.mubr.bf16.gmra.mrb[0].mxu0 %v1874
        %v2025 = vpop.f32.mrb[0].mxu0
        %v2026 = vadd.f32 0.0, %v2025
        %v2027 = vpop.f32.mrb[0].mxu0
        %v2028 = vpop.f32.mrb[0].mxu0
        %v2029 = vadd.f32 0.0, %v2028
        %v2030 = vpop.f32.mrb[0].mxu0
        %2031 = vmatprep.mubr.bf16.mxu0 0
        %2032 = vmatmul.mubr.bf16.gmra.mrb[0].mxu0 %v1875
        %v2033 = vpop.f32.mrb[0].mxu0
        %v2034 = vadd.f32 0.0, %v2033
        %v2035 = vpop.f32.mrb[0].mxu0
        %v2036 = vpop.f32.mrb[0].mxu0
        %v2037 = vadd.f32 0.0, %v2036
        %v2038 = vpop.f32.mrb[0].mxu0
        %2039 = vmatprep.mubr.bf16.mxu0 0
        %2040 = vmatmul.mubr.bf16.gmra.mrb[0].mxu0 %v1876
        %v2041 = vpop.f32.mrb[0].mxu0
        %v2042 = vadd.f32 0.0, %v2041
        %v2043 = vpop.f32.mrb[0].mxu0
        %v2044 = vpop.f32.mrb[0].mxu0
        %v2045 = vadd.f32 0.0, %v2044
        %v2046 = vpop.f32.mrb[0].mxu0
        %2047 = vmatprep.mubr.bf16.mxu0 0
        %2048 = vmatmul.mubr.bf16.gmra.mrb[0].mxu0 %v1877
        %v2049 = vpop.f32.mrb[0].mxu0
        %v2050 = vadd.f32 0.0, %v2049
        %v2051 = vpop.f32.mrb[0].mxu0
        %v2052 = vpop.f32.mrb[0].mxu0
        %v2053 = vadd.f32 0.0, %v2052
        %v2054 = vpop.f32.mrb[0].mxu0
        %2055 = vmatprep.mubr.bf16.mxu0 0
        %2056 = vmatmul.mubr.bf16.gmra.mrb[0].mxu0 %v1878
        %v2057 = vpop.f32.mrb[0].mxu0
        %v2058 = vadd.f32 0.0, %v2057
        %v2059 = vpop.f32.mrb[0].mxu0
        %v2060 = vpop.f32.mrb[0].mxu0
        %v2061 = vadd.f32 0.0, %v2060
        %v2062 = vpop.f32.mrb[0].mxu0
        %2063 = vmatprep.mubr.bf16.mxu0 0
        %2064 = vmatmul.mubr.bf16.gmra.mrb[0].mxu0 %v1879
        %v2065 = vpop.f32.mrb[0].mxu0
        %v2066 = vadd.f32 0.0, %v2065
        %v2067 = vpop.f32.mrb[0].mxu0
        %v2068 = vpop.f32.mrb[0].mxu0
        %v2069 = vadd.f32 0.0, %v2068
        %v2070 = vpop.f32.mrb[0].mxu0
        %2071 = vmatprep.mubr.bf16.mxu0 0
        %2072 = vmatmul.mubr.bf16.gmra.mrb[0].mxu0 %v1880
        %v2073 = vpop.f32.mrb[0].mxu0
        %v2074 = vadd.f32 0.0, %v2073
        %v2075 = vpop.f32.mrb[0].mxu0
        %v2076 = vpop.f32.mrb[0].mxu0
        %v2077 = vadd.f32 0.0, %v2076
        %v2078 = vpop.f32.mrb[0].mxu0
        %2079 = vmatprep.mubr.bf16.mxu0 0
        %2080 = vmatmul.mubr.bf16.gmra.mrb[0].mxu0 %v1881
        %v2081 = vpop.f32.mrb[0].mxu0
        %v2082 = vadd.f32 0.0, %v2081
        %v2083 = vpop.f32.mrb[0].mxu0
        %v2084 = vpop.f32.mrb[0].mxu0
        %v2085 = vadd.f32 0.0, %v2084
        %v2086 = vpop.f32.mrb[0].mxu0
        %2087 = vmatprep.mubr.bf16.mxu0 0
        %2088 = vmatmul.mubr.bf16.gmra.mrb[0].mxu0 %v1882
        %v2089 = vpop.f32.mrb[0].mxu0
        %v2090 = vadd.f32 0.0, %v2089
        %v2091 = vpop.f32.mrb[0].mxu0
        %v2092 = vpop.f32.mrb[0].mxu0
        %v2093 = vadd.f32 0.0, %v2092
        %v2094 = vpop.f32.mrb[0].mxu0
        %2095 = vmatprep.mubr.bf16.mxu0 0
        %2096 = vmatmul.mubr.bf16.gmra.mrb[0].mxu0 %v1883
        %v2097 = vpop.f32.mrb[0].mxu0
        %v2098 = vadd.f32 0.0, %v2097
        %v2099 = vpop.f32.mrb[0].mxu0
        %v2100 = vpop.f32.mrb[0].mxu0
        %v2101 = vadd.f32 0.0, %v2100
        %v2102 = vpop.f32.mrb[0].mxu0
        %2103 = vmatprep.mubr.bf16.mxu0 0
        %2104 = vmatmul.mubr.bf16.gmra.mrb[0].mxu0 %v1884
        %v2105 = vpop.f32.mrb[0].mxu0
        %v2106 = vadd.f32 0.0, %v2105
        %v2107 = vpop.f32.mrb[0].mxu0
        %v2108 = vpop.f32.mrb[0].mxu0
        %v2109 = vadd.f32 0.0, %v2108
        %v2110 = vpop.f32.mrb[0].mxu0
        %2111 = vmatprep.mubr.bf16.mxu0 0
        %2112 = vmatmul.mubr.bf16.gmra.mrb[0].mxu0 %v1885
        %v2113 = vpop.f32.mrb[0].mxu0
        %v2114 = vadd.f32 0.0, %v2113
        %v2115 = vpop.f32.mrb[0].mxu0
        %v2116 = vpop.f32.mrb[0].mxu0
        %v2117 = vadd.f32 0.0, %v2116
        %v2118 = vpop.f32.mrb[0].mxu0
        %2119 = vmatprep.mubr.bf16.mxu0 0
        %2120 = vmatmul.mubr.bf16.gmra.mrb[0].mxu0 %v1886
        %v2121 = vpop.f32.mrb[0].mxu0
        %v2122 = vadd.f32 0.0, %v2121
        %v2123 = vpop.f32.mrb[0].mxu0
        %v2124 = vpop.f32.mrb[0].mxu0
        %v2125 = vadd.f32 0.0, %v2124
        %v2126 = vpop.f32.mrb[0].mxu0
        %2127 = vmatprep.mubr.bf16.mxu0 0
        %2128 = vmatmul.mubr.bf16.gmra.mrb[0].mxu0 %v1887
        %v2129 = vpop.f32.mrb[0].mxu0
        %v2130 = vadd.f32 0.0, %v2129
        %v2131 = vpop.f32.mrb[0].mxu0
        %v2132 = vpop.f32.mrb[0].mxu0
        %v2133 = vadd.f32 0.0, %v2132
        %v2134 = vpop.f32.mrb[0].mxu0
        %2135 = vmatprep.mubr.bf16.mxu0 0
        %2136 = vmatmul.mubr.bf16.gmra.mrb[0].mxu0 %v1888
        %v2137 = vpop.f32.mrb[0].mxu0
        %v2138 = vadd.f32 0.0, %v2137
        %v2139 = vpop.f32.mrb[0].mxu0
        %v2140 = vpop.f32.mrb[0].mxu0
        %v2141 = vadd.f32 0.0, %v2140
        %v2142 = vpop.f32.mrb[0].mxu0
        %2143 = vmatprep.mubr.bf16.mxu0 0
        %2144 = vmatmul.mubr.bf16.gmra.mrb[0].mxu0 %v1889
        %v2145 = vpop.f32.mrb[0].mxu0
        %v2146 = vadd.f32 0.0, %v2145
        %v2147 = vpop.f32.mrb[0].mxu0
        %v2148 = vpop.f32.mrb[0].mxu0
        %v2149 = vadd.f32 0.0, %v2148
        %v2150 = vpop.f32.mrb[0].mxu0
        %2151 = vmatprep.mubr.bf16.mxu0 0
        %2152 = vmatmul.mubr.bf16.gmra.mrb[0].mxu0 %v1890
        %v2153 = vpop.f32.mrb[0].mxu0
        %v2154 = vadd.f32 0.0, %v2153
        %v2155 = vpop.f32.mrb[0].mxu0
        %v2156 = vpop.f32.mrb[0].mxu0
        %v2157 = vadd.f32 0.0, %v2156
        %v2158 = vpop.f32.mrb[0].mxu0
        %2159 = vmatprep.mubr.bf16.mxu0 0
        %2160 = vmatmul.mubr.bf16.gmra.mrb[0].mxu0 %v1891
        %v2161 = vpop.f32.mrb[0].mxu0
        %v2162 = vadd.f32 0.0, %v2161
        %v2163 = vpop.f32.mrb[0].mxu0
        %v2164 = vpop.f32.mrb[0].mxu0
        %v2165 = vadd.f32 0.0, %v2164
        %v2166 = vpop.f32.mrb[0].mxu0
        %2167 = vmatprep.mubr.bf16.mxu0 0
        %2168 = vmatmul.mubr.bf16.gmra.mrb[0].mxu0 %v1892
        %v2169 = vpop.f32.mrb[0].mxu0
        %v2170 = vadd.f32 0.0, %v2169
        %v2171 = vpop.f32.mrb[0].mxu0
        %v2172 = vpop.f32.mrb[0].mxu0
        %v2173 = vadd.f32 0.0, %v2172
        %v2174 = vpop.f32.mrb[0].mxu0
        %2175 = vmatprep.mubr.bf16.mxu0 0
        %2176 = vmatmul.mubr.bf16.gmra.mrb[0].mxu0 %v1893
        %v2177 = vpop.f32.mrb[0].mxu0
        %v2178 = vadd.f32 0.0, %v2177
        %v2179 = vpop.f32.mrb[0].mxu0
        %v2180 = vpop.f32.mrb[0].mxu0
        %v2181 = vadd.f32 0.0, %v2180
        %v2182 = vpop.f32.mrb[0].mxu0
        %2183 = vmatprep.mubr.bf16.mxu0 0
        %2184 = vmatmul.mubr.bf16.gmra.mrb[0].mxu0 %v1894
        %v2185 = vpop.f32.mrb[0].mxu0
        %v2186 = vadd.f32 0.0, %v2185
        %v2187 = vpop.f32.mrb[0].mxu0
        %v2188 = vpop.f32.mrb[0].mxu0
        %v2189 = vadd.f32 0.0, %v2188
        %v2190 = vpop.f32.mrb[0].mxu0
        %2191 = vdwg.mxu0
        %s2192 = scalar_lea.vmem %s7, 1
        %v2193 = vld [vmem:[%s2192] sm:$0x1]
        %v2195 = vlaneseq
        %v2196 = vshrl.u32 %v2195, 7
        %v2197 = vsub.s32 0, %v2196
        %v2198 = vrot.slane %v2193, %v2197
        %v2200 = vmul.f32 %v2002, %v2198
        %v2201 = vmul.f32 %v2005, %v2198
        %v2202 = vmul.f32 %v2010, %v2198
        %v2203 = vmul.f32 %v2013, %v2198
        %v2204 = vmul.f32 %v2018, %v2198
        %v2205 = vmul.f32 %v2021, %v2198
        %v2206 = vmul.f32 %v2026, %v2198
        %v2207 = vmul.f32 %v2029, %v2198
        %v2208 = vmul.f32 %v2034, %v2198
        %v2209 = vmul.f32 %v2037, %v2198
        %v2210 = vmul.f32 %v2042, %v2198
        %v2211 = vmul.f32 %v2045, %v2198
        %v2212 = vmul.f32 %v2050, %v2198
        %v2213 = vmul.f32 %v2053, %v2198
        %v2214 = vmul.f32 %v2058, %v2198
        %v2215 = vmul.f32 %v2061, %v2198
        %v2216 = vmul.f32 %v2066, %v2198
        %v2217 = vmul.f32 %v2069, %v2198
        %v2218 = vmul.f32 %v2074, %v2198
        %v2219 = vmul.f32 %v2077, %v2198
        %v2220 = vmul.f32 %v2082, %v2198
        %v2221 = vmul.f32 %v2085, %v2198
        %v2222 = vmul.f32 %v2090, %v2198
        %v2223 = vmul.f32 %v2093, %v2198
        %v2224 = vmul.f32 %v2098, %v2198
        %v2225 = vmul.f32 %v2101, %v2198
        %v2226 = vmul.f32 %v2106, %v2198
        %v2227 = vmul.f32 %v2109, %v2198
        %v2228 = vmul.f32 %v2114, %v2198
        %v2229 = vmul.f32 %v2117, %v2198
        %v2230 = vmul.f32 %v2122, %v2198
        %v2231 = vmul.f32 %v2125, %v2198
        %v2232 = vmul.f32 %v2130, %v2198
        %v2233 = vmul.f32 %v2133, %v2198
        %v2234 = vmul.f32 %v2138, %v2198
        %v2235 = vmul.f32 %v2141, %v2198
        %v2236 = vmul.f32 %v2146, %v2198
        %v2237 = vmul.f32 %v2149, %v2198
        %v2238 = vmul.f32 %v2154, %v2198
        %v2239 = vmul.f32 %v2157, %v2198
        %v2240 = vmul.f32 %v2162, %v2198
        %v2241 = vmul.f32 %v2165, %v2198
        %v2242 = vmul.f32 %v2170, %v2198
        %v2243 = vmul.f32 %v2173, %v2198
        %v2244 = vmul.f32 %v2178, %v2198
        %v2245 = vmul.f32 %v2181, %v2198
        %v2246 = vmul.f32 %v2186, %v2198
        %v2247 = vmul.f32 %v2189, %v2198
        %s2248 = scalar_lea.vmem %s8, 1
        %v2249 = vld [vmem:[%s2248] sm:$0x1]
        %v2251 = vlaneseq
        %v2252 = vshrl.u32 %v2251, 7
        %v2253 = vsub.s32 0, %v2252
        %v2254 = vrot.slane %v2249, %v2253
        %v2256 = vadd.f32 %v2200, %v2254
        %v2257 = vadd.f32 %v2201, %v2254
        %v2258 = vadd.f32 %v2202, %v2254
        %v2259 = vadd.f32 %v2203, %v2254
        %v2260 = vadd.f32 %v2204, %v2254
        %v2261 = vadd.f32 %v2205, %v2254
        %v2262 = vadd.f32 %v2206, %v2254
        %v2263 = vadd.f32 %v2207, %v2254
        %v2264 = vadd.f32 %v2208, %v2254
        %v2265 = vadd.f32 %v2209, %v2254
        %v2266 = vadd.f32 %v2210, %v2254
        %v2267 = vadd.f32 %v2211, %v2254
        %v2268 = vadd.f32 %v2212, %v2254
        %v2269 = vadd.f32 %v2213, %v2254
        %v2270 = vadd.f32 %v2214, %v2254
        %v2271 = vadd.f32 %v2215, %v2254
        %v2272 = vadd.f32 %v2216, %v2254
        %v2273 = vadd.f32 %v2217, %v2254
        %v2274 = vadd.f32 %v2218, %v2254
        %v2275 = vadd.f32 %v2219, %v2254
        %v2276 = vadd.f32 %v2220, %v2254
        %v2277 = vadd.f32 %v2221, %v2254
        %v2278 = vadd.f32 %v2222, %v2254
        %v2279 = vadd.f32 %v2223, %v2254
        %v2280 = vadd.f32 %v2224, %v2254
        %v2281 = vadd.f32 %v2225, %v2254
        %v2282 = vadd.f32 %v2226, %v2254
        %v2283 = vadd.f32 %v2227, %v2254
        %v2284 = vadd.f32 %v2228, %v2254
        %v2285 = vadd.f32 %v2229, %v2254
        %v2286 = vadd.f32 %v2230, %v2254
        %v2287 = vadd.f32 %v2231, %v2254
        %v2288 = vadd.f32 %v2232, %v2254
        %v2289 = vadd.f32 %v2233, %v2254
        %v2290 = vadd.f32 %v2234, %v2254
        %v2291 = vadd.f32 %v2235, %v2254
        %v2292 = vadd.f32 %v2236, %v2254
        %v2293 = vadd.f32 %v2237, %v2254
        %v2294 = vadd.f32 %v2238, %v2254
        %v2295 = vadd.f32 %v2239, %v2254
        %v2296 = vadd.f32 %v2240, %v2254
        %v2297 = vadd.f32 %v2241, %v2254
        %v2298 = vadd.f32 %v2242, %v2254
        %v2299 = vadd.f32 %v2243, %v2254
        %v2300 = vadd.f32 %v2244, %v2254
        %v2301 = vadd.f32 %v2245, %v2254
        %v2302 = vadd.f32 %v2246, %v2254
        %v2303 = vadd.f32 %v2247, %v2254
        %v2304 = vsub.f32 0.0, %v2256
        %v2305 = vsub.f32 0.0, %v2257
        %v2306 = vsub.f32 0.0, %v2258
        %v2307 = vsub.f32 0.0, %v2259
        %v2308 = vsub.f32 0.0, %v2260
        %v2309 = vsub.f32 0.0, %v2261
        %v2310 = vsub.f32 0.0, %v2262
        %v2311 = vsub.f32 0.0, %v2263
        %v2312 = vsub.f32 0.0, %v2264
        %v2313 = vsub.f32 0.0, %v2265
        %v2314 = vsub.f32 0.0, %v2266
        %v2315 = vsub.f32 0.0, %v2267
        %v2316 = vsub.f32 0.0, %v2268
        %v2317 = vsub.f32 0.0, %v2269
        %v2318 = vsub.f32 0.0, %v2270
        %v2319 = vsub.f32 0.0, %v2271
        %v2320 = vsub.f32 0.0, %v2272
        %v2321 = vsub.f32 0.0, %v2273
        %v2322 = vsub.f32 0.0, %v2274
        %v2323 = vsub.f32 0.0, %v2275
        %v2324 = vsub.f32 0.0, %v2276
        %v2325 = vsub.f32 0.0, %v2277
        %v2326 = vsub.f32 0.0, %v2278
        %v2327 = vsub.f32 0.0, %v2279
        %v2328 = vsub.f32 0.0, %v2280
        %v2329 = vsub.f32 0.0, %v2281
        %v2330 = vsub.f32 0.0, %v2282
        %v2331 = vsub.f32 0.0, %v2283
        %v2332 = vsub.f32 0.0, %v2284
        %v2333 = vsub.f32 0.0, %v2285
        %v2334 = vsub.f32 0.0, %v2286
        %v2335 = vsub.f32 0.0, %v2287
        %v2336 = vsub.f32 0.0, %v2288
        %v2337 = vsub.f32 0.0, %v2289
        %v2338 = vsub.f32 0.0, %v2290
        %v2339 = vsub.f32 0.0, %v2291
        %v2340 = vsub.f32 0.0, %v2292
        %v2341 = vsub.f32 0.0, %v2293
        %v2342 = vsub.f32 0.0, %v2294
        %v2343 = vsub.f32 0.0, %v2295
        %v2344 = vsub.f32 0.0, %v2296
        %v2345 = vsub.f32 0.0, %v2297
        %v2346 = vsub.f32 0.0, %v2298
        %v2347 = vsub.f32 0.0, %v2299
        %v2348 = vsub.f32 0.0, %v2300
        %v2349 = vsub.f32 0.0, %v2301
        %v2350 = vsub.f32 0.0, %v2302
        %v2351 = vsub.f32 0.0, %v2303
        %v2352 = vmul.f32 %v2304, 1.442695
        %v2353 = vpow.pop %v2352
        %v2354 = vmul.f32 %v2305, 1.442695
        %v2355 = vpow.pop %v2354
        %v2356 = vmul.f32 %v2306, 1.442695
        %v2357 = vpow.pop %v2356
        %v2358 = vmul.f32 %v2307, 1.442695
        %v2359 = vpow.pop %v2358
        %v2360 = vmul.f32 %v2308, 1.442695
        %v2361 = vpow.pop %v2360
        %v2362 = vmul.f32 %v2309, 1.442695
        %v2363 = vpow.pop %v2362
        %v2364 = vmul.f32 %v2310, 1.442695
        %v2365 = vpow.pop %v2364
        %v2366 = vmul.f32 %v2311, 1.442695
        %v2367 = vpow.pop %v2366
        %v2368 = vmul.f32 %v2312, 1.442695
        %v2369 = vpow.pop %v2368
        %v2370 = vmul.f32 %v2313, 1.442695
        %v2371 = vpow.pop %v2370
        %v2372 = vmul.f32 %v2314, 1.442695
        %v2373 = vpow.pop %v2372
        %v2374 = vmul.f32 %v2315, 1.442695
        %v2375 = vpow.pop %v2374
        %v2376 = vmul.f32 %v2316, 1.442695
        %v2377 = vpow.pop %v2376
        %v2378 = vmul.f32 %v2317, 1.442695
        %v2379 = vpow.pop %v2378
        %v2380 = vmul.f32 %v2318, 1.442695
        %v2381 = vpow.pop %v2380
        %v2382 = vmul.f32 %v2319, 1.442695
        %v2383 = vpow.pop %v2382
        %v2384 = vmul.f32 %v2320, 1.442695
        %v2385 = vpow.pop %v2384
        %v2386 = vmul.f32 %v2321, 1.442695
        %v2387 = vpow.pop %v2386
        %v2388 = vmul.f32 %v2322, 1.442695
        %v2389 = vpow.pop %v2388
        %v2390 = vmul.f32 %v2323, 1.442695
        %v2391 = vpow.pop %v2390
        %v2392 = vmul.f32 %v2324, 1.442695
        %v2393 = vpow.pop %v2392
        %v2394 = vmul.f32 %v2325, 1.442695
        %v2395 = vpow.pop %v2394
        %v2396 = vmul.f32 %v2326, 1.442695
        %v2397 = vpow.pop %v2396
        %v2398 = vmul.f32 %v2327, 1.442695
        %v2399 = vpow.pop %v2398
        %v2400 = vmul.f32 %v2328, 1.442695
        %v2401 = vpow.pop %v2400
        %v2402 = vmul.f32 %v2329, 1.442695
        %v2403 = vpow.pop %v2402
        %v2404 = vmul.f32 %v2330, 1.442695
        %v2405 = vpow.pop %v2404
        %v2406 = vmul.f32 %v2331, 1.442695
        %v2407 = vpow.pop %v2406
        %v2408 = vmul.f32 %v2332, 1.442695
        %v2409 = vpow.pop %v2408
        %v2410 = vmul.f32 %v2333, 1.442695
        %v2411 = vpow.pop %v2410
        %v2412 = vmul.f32 %v2334, 1.442695
        %v2413 = vpow.pop %v2412
        %v2414 = vmul.f32 %v2335, 1.442695
        %v2415 = vpow.pop %v2414
        %v2416 = vmul.f32 %v2336, 1.442695
        %v2417 = vpow.pop %v2416
        %v2418 = vmul.f32 %v2337, 1.442695
        %v2419 = vpow.pop %v2418
        %v2420 = vmul.f32 %v2338, 1.442695
        %v2421 = vpow.pop %v2420
        %v2422 = vmul.f32 %v2339, 1.442695
        %v2423 = vpow.pop %v2422
        %v2424 = vmul.f32 %v2340, 1.442695
        %v2425 = vpow.pop %v2424
        %v2426 = vmul.f32 %v2341, 1.442695
        %v2427 = vpow.pop %v2426
        %v2428 = vmul.f32 %v2342, 1.442695
        %v2429 = vpow.pop %v2428
        %v2430 = vmul.f32 %v2343, 1.442695
        %v2431 = vpow.pop %v2430
        %v2432 = vmul.f32 %v2344, 1.442695
        %v2433 = vpow.pop %v2432
        %v2434 = vmul.f32 %v2345, 1.442695
        %v2435 = vpow.pop %v2434
        %v2436 = vmul.f32 %v2346, 1.442695
        %v2437 = vpow.pop %v2436
        %v2438 = vmul.f32 %v2347, 1.442695
        %v2439 = vpow.pop %v2438
        %v2440 = vmul.f32 %v2348, 1.442695
        %v2441 = vpow.pop %v2440
        %v2442 = vmul.f32 %v2349, 1.442695
        %v2443 = vpow.pop %v2442
        %v2444 = vmul.f32 %v2350, 1.442695
        %v2445 = vpow.pop %v2444
        %v2446 = vmul.f32 %v2351, 1.442695
        %v2447 = vpow.pop %v2446
        %v2448 = vadd.f32 %v2353, 1.0
        %v2449 = vadd.f32 %v2355, 1.0
        %v2450 = vadd.f32 %v2357, 1.0
        %v2451 = vadd.f32 %v2359, 1.0
        %v2452 = vadd.f32 %v2361, 1.0
        %v2453 = vadd.f32 %v2363, 1.0
        %v2454 = vadd.f32 %v2365, 1.0
        %v2455 = vadd.f32 %v2367, 1.0
        %v2456 = vadd.f32 %v2369, 1.0
        %v2457 = vadd.f32 %v2371, 1.0
        %v2458 = vadd.f32 %v2373, 1.0
        %v2459 = vadd.f32 %v2375, 1.0
        %v2460 = vadd.f32 %v2377, 1.0
        %v2461 = vadd.f32 %v2379, 1.0
        %v2462 = vadd.f32 %v2381, 1.0
        %v2463 = vadd.f32 %v2383, 1.0
        %v2464 = vadd.f32 %v2385, 1.0
        %v2465 = vadd.f32 %v2387, 1.0
        %v2466 = vadd.f32 %v2389, 1.0
        %v2467 = vadd.f32 %v2391, 1.0
        %v2468 = vadd.f32 %v2393, 1.0
        %v2469 = vadd.f32 %v2395, 1.0
        %v2470 = vadd.f32 %v2397, 1.0
        %v2471 = vadd.f32 %v2399, 1.0
        %v2472 = vadd.f32 %v2401, 1.0
        %v2473 = vadd.f32 %v2403, 1.0
        %v2474 = vadd.f32 %v2405, 1.0
        %v2475 = vadd.f32 %v2407, 1.0
        %v2476 = vadd.f32 %v2409, 1.0
        %v2477 = vadd.f32 %v2411, 1.0
        %v2478 = vadd.f32 %v2413, 1.0
        %v2479 = vadd.f32 %v2415, 1.0
        %v2480 = vadd.f32 %v2417, 1.0
        %v2481 = vadd.f32 %v2419, 1.0
        %v2482 = vadd.f32 %v2421, 1.0
        %v2483 = vadd.f32 %v2423, 1.0
        %v2484 = vadd.f32 %v2425, 1.0
        %v2485 = vadd.f32 %v2427, 1.0
        %v2486 = vadd.f32 %v2429, 1.0
        %v2487 = vadd.f32 %v2431, 1.0
        %v2488 = vadd.f32 %v2433, 1.0
        %v2489 = vadd.f32 %v2435, 1.0
        %v2490 = vadd.f32 %v2437, 1.0
        %v2491 = vadd.f32 %v2439, 1.0
        %v2492 = vadd.f32 %v2441, 1.0
        %v2493 = vadd.f32 %v2443, 1.0
        %v2494 = vadd.f32 %v2445, 1.0
        %v2495 = vadd.f32 %v2447, 1.0
        %v2496 = vrcp.pop %v2448
        %v2497 = vrcp.pop %v2449
        %v2498 = vrcp.pop %v2450
        %v2499 = vrcp.pop %v2451
        %v2500 = vrcp.pop %v2452
        %v2501 = vrcp.pop %v2453
        %v2502 = vrcp.pop %v2454
        %v2503 = vrcp.pop %v2455
        %v2504 = vrcp.pop %v2456
        %v2505 = vrcp.pop %v2457
        %v2506 = vrcp.pop %v2458
        %v2507 = vrcp.pop %v2459
        %v2508 = vrcp.pop %v2460
        %v2509 = vrcp.pop %v2461
        %v2510 = vrcp.pop %v2462
        %v2511 = vrcp.pop %v2463
        %v2512 = vrcp.pop %v2464
        %v2513 = vrcp.pop %v2465
        %v2514 = vrcp.pop %v2466
        %v2515 = vrcp.pop %v2467
        %v2516 = vrcp.pop %v2468
        %v2517 = vrcp.pop %v2469
        %v2518 = vrcp.pop %v2470
        %v2519 = vrcp.pop %v2471
        %v2520 = vrcp.pop %v2472
        %v2521 = vrcp.pop %v2473
        %v2522 = vrcp.pop %v2474
        %v2523 = vrcp.pop %v2475
        %v2524 = vrcp.pop %v2476
        %v2525 = vrcp.pop %v2477
        %v2526 = vrcp.pop %v2478
        %v2527 = vrcp.pop %v2479
        %v2528 = vrcp.pop %v2480
        %v2529 = vrcp.pop %v2481
        %v2530 = vrcp.pop %v2482
        %v2531 = vrcp.pop %v2483
        %v2532 = vrcp.pop %v2484
        %v2533 = vrcp.pop %v2485
        %v2534 = vrcp.pop %v2486
        %v2535 = vrcp.pop %v2487
        %v2536 = vrcp.pop %v2488
        %v2537 = vrcp.pop %v2489
        %v2538 = vrcp.pop %v2490
        %v2539 = vrcp.pop %v2491
        %v2540 = vrcp.pop %v2492
        %v2541 = vrcp.pop %v2493
        %v2542 = vrcp.pop %v2494
        %v2543 = vrcp.pop %v2495
        %v2544 = vmul.f32 %v2256, %v2496
        %v2545 = vmul.f32 %v2257, %v2497
        %v2546 = vmul.f32 %v2258, %v2498
        %v2547 = vmul.f32 %v2259, %v2499
        %v2548 = vmul.f32 %v2260, %v2500
        %v2549 = vmul.f32 %v2261, %v2501
        %v2550 = vmul.f32 %v2262, %v2502
        %v2551 = vmul.f32 %v2263, %v2503
        %v2552 = vmul.f32 %v2264, %v2504
        %v2553 = vmul.f32 %v2265, %v2505
        %v2554 = vmul.f32 %v2266, %v2506
        %v2555 = vmul.f32 %v2267, %v2507
        %v2556 = vmul.f32 %v2268, %v2508
        %v2557 = vmul.f32 %v2269, %v2509
        %v2558 = vmul.f32 %v2270, %v2510
        %v2559 = vmul.f32 %v2271, %v2511
        %v2560 = vmul.f32 %v2272, %v2512
        %v2561 = vmul.f32 %v2273, %v2513
        %v2562 = vmul.f32 %v2274, %v2514
        %v2563 = vmul.f32 %v2275, %v2515
        %v2564 = vmul.f32 %v2276, %v2516
        %v2565 = vmul.f32 %v2277, %v2517
        %v2566 = vmul.f32 %v2278, %v2518
        %v2567 = vmul.f32 %v2279, %v2519
        %v2568 = vmul.f32 %v2280, %v2520
        %v2569 = vmul.f32 %v2281, %v2521
        %v2570 = vmul.f32 %v2282, %v2522
        %v2571 = vmul.f32 %v2283, %v2523
        %v2572 = vmul.f32 %v2284, %v2524
        %v2573 = vmul.f32 %v2285, %v2525
        %v2574 = vmul.f32 %v2286, %v2526
        %v2575 = vmul.f32 %v2287, %v2527
        %v2576 = vmul.f32 %v2288, %v2528
        %v2577 = vmul.f32 %v2289, %v2529
        %v2578 = vmul.f32 %v2290, %v2530
        %v2579 = vmul.f32 %v2291, %v2531
        %v2580 = vmul.f32 %v2292, %v2532
        %v2581 = vmul.f32 %v2293, %v2533
        %v2582 = vmul.f32 %v2294, %v2534
        %v2583 = vmul.f32 %v2295, %v2535
        %v2584 = vmul.f32 %v2296, %v2536
        %v2585 = vmul.f32 %v2297, %v2537
        %v2586 = vmul.f32 %v2298, %v2538
        %v2587 = vmul.f32 %v2299, %v2539
        %v2588 = vmul.f32 %v2300, %v2540
        %v2589 = vmul.f32 %v2301, %v2541
        %v2590 = vmul.f32 %v2302, %v2542
        %v2591 = vmul.f32 %v2303, %v2543
        %s2592 = scalar_lea.vmem %s6, 128
        %v2593 = vld [vmem:[%s2592] sm:$0xf]
        %v2594 = vld [vmem:[%s2592 + $0x4] sm:$0xf]
        %v2595 = vld [vmem:[%s2592 + $0x8] sm:$0xf]
        %v2596 = vld [vmem:[%s2592 + $0xc] sm:$0xf]
        %v2597 = vld [vmem:[%s2592 + $0x10] sm:$0xf]
        %v2598 = vld [vmem:[%s2592 + $0x14] sm:$0xf]
        %v2599 = vld [vmem:[%s2592 + $0x18] sm:$0xf]
        %v2600 = vld [vmem:[%s2592 + $0x1c] sm:$0xf]
        %v2601 = vld [vmem:[%s2592 + $0x20] sm:$0xf]
        %v2602 = vld [vmem:[%s2592 + $0x24] sm:$0xf]
        %v2603 = vld [vmem:[%s2592 + $0x28] sm:$0xf]
        %v2604 = vld [vmem:[%s2592 + $0x2c] sm:$0xf]
        %v2605 = vld [vmem:[%s2592 + $0x30] sm:$0xf]
        %v2606 = vld [vmem:[%s2592 + $0x34] sm:$0xf]
        %v2607 = vld [vmem:[%s2592 + $0x38] sm:$0xf]
        %v2608 = vld [vmem:[%s2592 + $0x3c] sm:$0xf]
        %v2657 = vunpack.c.l.b16 %v879
        %v2658 = vunpack.c.l.b16 %v880
        %v2659 = vunpack.c.l.b16 %v881
        %v2660 = vunpack.c.l.b16 %v882
        %v2661 = vunpack.c.l.b16 %v883
        %v2662 = vunpack.c.l.b16 %v884
        %v2663 = vunpack.c.l.b16 %v885
        %v2664 = vunpack.c.l.b16 %v886
        %v2665 = vunpack.c.l.b16 %v887
        %v2666 = vunpack.c.l.b16 %v888
        %v2667 = vunpack.c.l.b16 %v889
        %v2668 = vunpack.c.l.b16 %v890
        %v2669 = vunpack.c.l.b16 %v891
        %v2670 = vunpack.c.l.b16 %v892
        %v2671 = vunpack.c.l.b16 %v893
        %v2672 = vunpack.c.l.b16 %v894
        %v2673 = vunpack.c.l.b16 %v895
        %v2674 = vunpack.c.l.b16 %v896
        %v2675 = vunpack.c.l.b16 %v897
        %v2676 = vunpack.c.l.b16 %v898
        %v2677 = vunpack.c.l.b16 %v899
        %v2678 = vunpack.c.l.b16 %v900
        %v2679 = vunpack.c.l.b16 %v901
        %v2680 = vunpack.c.l.b16 %v902
        %v2681 = vunpack.c.l.b16 %v903
        %v2682 = vunpack.c.l.b16 %v904
        %v2683 = vunpack.c.l.b16 %v905
        %v2684 = vunpack.c.l.b16 %v906
        %v2685 = vunpack.c.l.b16 %v907
        %v2686 = vunpack.c.l.b16 %v908
        %v2687 = vunpack.c.l.b16 %v909
        %v2688 = vunpack.c.l.b16 %v910
        %v2689 = vunpack.c.l.b16 %v911
        %v2690 = vunpack.c.l.b16 %v912
        %v2691 = vunpack.c.l.b16 %v913
        %v2692 = vunpack.c.l.b16 %v914
        %v2693 = vunpack.c.l.b16 %v915
        %v2694 = vunpack.c.l.b16 %v916
        %v2695 = vunpack.c.l.b16 %v917
        %v2696 = vunpack.c.l.b16 %v918
        %v2697 = vunpack.c.l.b16 %v919
        %v2698 = vunpack.c.l.b16 %v920
        %v2699 = vunpack.c.l.b16 %v921
        %v2700 = vunpack.c.l.b16 %v922
        %v2701 = vunpack.c.l.b16 %v923
        %v2702 = vunpack.c.l.b16 %v924
        %v2703 = vunpack.c.l.b16 %v925
        %v2704 = vunpack.c.l.b16 %v926
        %v2705 = vpack.c.b16 %v2658, %v2657
        %v2706 = vpack.c.b16 %v2660, %v2659
        %v2707 = vpack.c.b16 %v2662, %v2661
        %v2708 = vpack.c.b16 %v2664, %v2663
        %v2709 = vpack.c.b16 %v2666, %v2665
        %v2710 = vpack.c.b16 %v2668, %v2667
        %v2711 = vpack.c.b16 %v2670, %v2669
        %v2712 = vpack.c.b16 %v2672, %v2671
        %v2713 = vpack.c.b16 %v2674, %v2673
        %v2714 = vpack.c.b16 %v2676, %v2675
        %v2715 = vpack.c.b16 %v2678, %v2677
        %v2716 = vpack.c.b16 %v2680, %v2679
        %v2717 = vpack.c.b16 %v2682, %v2681
        %v2718 = vpack.c.b16 %v2684, %v2683
        %v2719 = vpack.c.b16 %v2686, %v2685
        %v2720 = vpack.c.b16 %v2688, %v2687
        %v2721 = vpack.c.b16 %v2690, %v2689
        %v2722 = vpack.c.b16 %v2692, %v2691
        %v2723 = vpack.c.b16 %v2694, %v2693
        %v2724 = vpack.c.b16 %v2696, %v2695
        %v2725 = vpack.c.b16 %v2698, %v2697
        %v2726 = vpack.c.b16 %v2700, %v2699
        %v2727 = vpack.c.b16 %v2702, %v2701
        %v2728 = vpack.c.b16 %v2704, %v2703
        %v2769 = vunpack.c.l.b16 %v2593
        %v2770 = vunpack.c.l.b16 %v2594
        %v2771 = vunpack.c.l.b16 %v2595
        %v2772 = vunpack.c.l.b16 %v2596
        %v2773 = vunpack.c.l.b16 %v2597
        %v2774 = vunpack.c.l.b16 %v2598
        %v2775 = vunpack.c.l.b16 %v2599
        %v2776 = vunpack.c.l.b16 %v2600
        %v2777 = vunpack.c.l.b16 %v2601
        %v2778 = vunpack.c.l.b16 %v2602
        %v2779 = vunpack.c.l.b16 %v2603
        %v2780 = vunpack.c.l.b16 %v2604
        %v2781 = vunpack.c.l.b16 %v2605
        %v2782 = vunpack.c.l.b16 %v2606
        %v2783 = vunpack.c.l.b16 %v2607
        %v2784 = vunpack.c.l.b16 %v2608
        %v2785 = vpack.c.b16 %v2770, %v2769
        %v2786 = vpack.c.b16 %v2772, %v2771
        %v2787 = vpack.c.b16 %v2774, %v2773
        %v2788 = vpack.c.b16 %v2776, %v2775
        %v2789 = vpack.c.b16 %v2778, %v2777
        %v2790 = vpack.c.b16 %v2780, %v2779
        %v2791 = vpack.c.b16 %v2782, %v2781
        %v2792 = vpack.c.b16 %v2784, %v2783
        %2801 = vmatprep.subr.bf16.mxu0 0
        %2802 = vmatpush1.bf16.msra.mxu0 %v2785
        %2803 = vmatprep.subr.bf16.mxu0 0
        %2804 = vmatpush1.bf16.msra.mxu0 %v2786
        %2805 = vmatprep.subr.bf16.mxu0 0
        %2806 = vmatpush1.bf16.msra.mxu0 %v2787
        %2807 = vmatprep.subr.bf16.mxu0 0
        %2808 = vmatpush1.bf16.msra.mxu0 %v2788
        %2809 = vmatprep.subr.bf16.mxu0 0
        %2810 = vmatpush1.bf16.msra.mxu0 %v2789
        %2811 = vmatprep.subr.bf16.mxu0 0
        %2812 = vmatpush1.bf16.msra.mxu0 %v2790
        %2813 = vmatprep.subr.bf16.mxu0 0
        %2814 = vmatpush1.bf16.msra.mxu0 %v2791
        %2815 = vmatprep.subr.bf16.mxu0 0
        %2816 = vmatpush1.bf16.msra.mxu0 %v2792
        %2817 = vmatprep.subr.bf16.mxu0 0
        %2818 = vmatpush1.bf16.msra.mxu0 0
        %2819 = vmatprep.subr.bf16.mxu0 0
        %2820 = vmatpush1.bf16.msra.mxu0 0
        %2821 = vmatprep.subr.bf16.mxu0 0
        %2822 = vmatpush1.bf16.msra.mxu0 0
        %2823 = vmatprep.subr.bf16.mxu0 0
        %2824 = vmatpush1.bf16.msra.mxu0 0
        %2825 = vmatprep.subr.bf16.mxu0 0
        %2826 = vmatpush1.bf16.msra.mxu0 0
        %2827 = vmatprep.subr.bf16.mxu0 0
        %2828 = vmatpush1.bf16.msra.mxu0 0
        %2829 = vmatprep.subr.bf16.mxu0 0
        %2830 = vmatpush1.bf16.msra.mxu0 0
        %2831 = vmatprep.subr.bf16.mxu0 0
        %2832 = vmatpush1.bf16.msra.mxu0 0
        %2833 = vmatprep.mubr.bf16.mxu0 0
        %2834 = vmatmul.mubr.bf16.gmra.mrb[0].mxu0 %v2705
        %v2835 = vpop.f32.mrb[0].mxu0
        %v2836 = vadd.f32 0.0, %v2835
        %v2837 = vpop.f32.mrb[0].mxu0
        %v2838 = vpop.f32.mrb[0].mxu0
        %v2839 = vadd.f32 0.0, %v2838
        %v2840 = vpop.f32.mrb[0].mxu0
        %2841 = vmatprep.mubr.bf16.mxu0 0
        %2842 = vmatmul.mubr.bf16.gmra.mrb[0].mxu0 %v2706
        %v2843 = vpop.f32.mrb[0].mxu0
        %v2844 = vadd.f32 0.0, %v2843
        %v2845 = vpop.f32.mrb[0].mxu0
        %v2846 = vpop.f32.mrb[0].mxu0
        %v2847 = vadd.f32 0.0, %v2846
        %v2848 = vpop.f32.mrb[0].mxu0
        %2849 = vmatprep.mubr.bf16.mxu0 0
        %2850 = vmatmul.mubr.bf16.gmra.mrb[0].mxu0 %v2707
        %v2851 = vpop.f32.mrb[0].mxu0
        %v2852 = vadd.f32 0.0, %v2851
        %v2853 = vpop.f32.mrb[0].mxu0
        %v2854 = vpop.f32.mrb[0].mxu0
        %v2855 = vadd.f32 0.0, %v2854
        %v2856 = vpop.f32.mrb[0].mxu0
        %2857 = vmatprep.mubr.bf16.mxu0 0
        %2858 = vmatmul.mubr.bf16.gmra.mrb[0].mxu0 %v2708
        %v2859 = vpop.f32.mrb[0].mxu0
        %v2860 = vadd.f32 0.0, %v2859
        %v2861 = vpop.f32.mrb[0].mxu0
        %v2862 = vpop.f32.mrb[0].mxu0
        %v2863 = vadd.f32 0.0, %v2862
        %v2864 = vpop.f32.mrb[0].mxu0
        %2865 = vmatprep.mubr.bf16.mxu0 0
        %2866 = vmatmul.mubr.bf16.gmra.mrb[0].mxu0 %v2709
        %v2867 = vpop.f32.mrb[0].mxu0
        %v2868 = vadd.f32 0.0, %v2867
        %v2869 = vpop.f32.mrb[0].mxu0
        %v2870 = vpop.f32.mrb[0].mxu0
        %v2871 = vadd.f32 0.0, %v2870
        %v2872 = vpop.f32.mrb[0].mxu0
        %2873 = vmatprep.mubr.bf16.mxu0 0
        %2874 = vmatmul.mubr.bf16.gmra.mrb[0].mxu0 %v2710
        %v2875 = vpop.f32.mrb[0].mxu0
        %v2876 = vadd.f32 0.0, %v2875
        %v2877 = vpop.f32.mrb[0].mxu0
        %v2878 = vpop.f32.mrb[0].mxu0
        %v2879 = vadd.f32 0.0, %v2878
        %v2880 = vpop.f32.mrb[0].mxu0
        %2881 = vmatprep.mubr.bf16.mxu0 0
        %2882 = vmatmul.mubr.bf16.gmra.mrb[0].mxu0 %v2711
        %v2883 = vpop.f32.mrb[0].mxu0
        %v2884 = vadd.f32 0.0, %v2883
        %v2885 = vpop.f32.mrb[0].mxu0
        %v2886 = vpop.f32.mrb[0].mxu0
        %v2887 = vadd.f32 0.0, %v2886
        %v2888 = vpop.f32.mrb[0].mxu0
        %2889 = vmatprep.mubr.bf16.mxu0 0
        %2890 = vmatmul.mubr.bf16.gmra.mrb[0].mxu0 %v2712
        %v2891 = vpop.f32.mrb[0].mxu0
        %v2892 = vadd.f32 0.0, %v2891
        %v2893 = vpop.f32.mrb[0].mxu0
        %v2894 = vpop.f32.mrb[0].mxu0
        %v2895 = vadd.f32 0.0, %v2894
        %v2896 = vpop.f32.mrb[0].mxu0
        %2897 = vmatprep.mubr.bf16.mxu0 0
        %2898 = vmatmul.mubr.bf16.gmra.mrb[0].mxu0 %v2713
        %v2899 = vpop.f32.mrb[0].mxu0
        %v2900 = vadd.f32 0.0, %v2899
        %v2901 = vpop.f32.mrb[0].mxu0
        %v2902 = vpop.f32.mrb[0].mxu0
        %v2903 = vadd.f32 0.0, %v2902
        %v2904 = vpop.f32.mrb[0].mxu0
        %2905 = vmatprep.mubr.bf16.mxu0 0
        %2906 = vmatmul.mubr.bf16.gmra.mrb[0].mxu0 %v2714
        %v2907 = vpop.f32.mrb[0].mxu0
        %v2908 = vadd.f32 0.0, %v2907
        %v2909 = vpop.f32.mrb[0].mxu0
        %v2910 = vpop.f32.mrb[0].mxu0
        %v2911 = vadd.f32 0.0, %v2910
        %v2912 = vpop.f32.mrb[0].mxu0
        %2913 = vmatprep.mubr.bf16.mxu0 0
        %2914 = vmatmul.mubr.bf16.gmra.mrb[0].mxu0 %v2715
        %v2915 = vpop.f32.mrb[0].mxu0
        %v2916 = vadd.f32 0.0, %v2915
        %v2917 = vpop.f32.mrb[0].mxu0
        %v2918 = vpop.f32.mrb[0].mxu0
        %v2919 = vadd.f32 0.0, %v2918
        %v2920 = vpop.f32.mrb[0].mxu0
        %2921 = vmatprep.mubr.bf16.mxu0 0
        %2922 = vmatmul.mubr.bf16.gmra.mrb[0].mxu0 %v2716
        %v2923 = vpop.f32.mrb[0].mxu0
        %v2924 = vadd.f32 0.0, %v2923
        %v2925 = vpop.f32.mrb[0].mxu0
        %v2926 = vpop.f32.mrb[0].mxu0
        %v2927 = vadd.f32 0.0, %v2926
        %v2928 = vpop.f32.mrb[0].mxu0
        %2929 = vmatprep.mubr.bf16.mxu0 0
        %2930 = vmatmul.mubr.bf16.gmra.mrb[0].mxu0 %v2717
        %v2931 = vpop.f32.mrb[0].mxu0
        %v2932 = vadd.f32 0.0, %v2931
        %v2933 = vpop.f32.mrb[0].mxu0
        %v2934 = vpop.f32.mrb[0].mxu0
        %v2935 = vadd.f32 0.0, %v2934
        %v2936 = vpop.f32.mrb[0].mxu0
        %2937 = vmatprep.mubr.bf16.mxu0 0
        %2938 = vmatmul.mubr.bf16.gmra.mrb[0].mxu0 %v2718
        %v2939 = vpop.f32.mrb[0].mxu0
        %v2940 = vadd.f32 0.0, %v2939
        %v2941 = vpop.f32.mrb[0].mxu0
        %v2942 = vpop.f32.mrb[0].mxu0
        %v2943 = vadd.f32 0.0, %v2942
        %v2944 = vpop.f32.mrb[0].mxu0
        %2945 = vmatprep.mubr.bf16.mxu0 0
        %2946 = vmatmul.mubr.bf16.gmra.mrb[0].mxu0 %v2719
        %v2947 = vpop.f32.mrb[0].mxu0
        %v2948 = vadd.f32 0.0, %v2947
        %v2949 = vpop.f32.mrb[0].mxu0
        %v2950 = vpop.f32.mrb[0].mxu0
        %v2951 = vadd.f32 0.0, %v2950
        %v2952 = vpop.f32.mrb[0].mxu0
        %2953 = vmatprep.mubr.bf16.mxu0 0
        %2954 = vmatmul.mubr.bf16.gmra.mrb[0].mxu0 %v2720
        %v2955 = vpop.f32.mrb[0].mxu0
        %v2956 = vadd.f32 0.0, %v2955
        %v2957 = vpop.f32.mrb[0].mxu0
        %v2958 = vpop.f32.mrb[0].mxu0
        %v2959 = vadd.f32 0.0, %v2958
        %v2960 = vpop.f32.mrb[0].mxu0
        %2961 = vmatprep.mubr.bf16.mxu0 0
        %2962 = vmatmul.mubr.bf16.gmra.mrb[0].mxu0 %v2721
        %v2963 = vpop.f32.mrb[0].mxu0
        %v2964 = vadd.f32 0.0, %v2963
        %v2965 = vpop.f32.mrb[0].mxu0
        %v2966 = vpop.f32.mrb[0].mxu0
        %v2967 = vadd.f32 0.0, %v2966
        %v2968 = vpop.f32.mrb[0].mxu0
        %2969 = vmatprep.mubr.bf16.mxu0 0
        %2970 = vmatmul.mubr.bf16.gmra.mrb[0].mxu0 %v2722
        %v2971 = vpop.f32.mrb[0].mxu0
        %v2972 = vadd.f32 0.0, %v2971
        %v2973 = vpop.f32.mrb[0].mxu0
        %v2974 = vpop.f32.mrb[0].mxu0
        %v2975 = vadd.f32 0.0, %v2974
        %v2976 = vpop.f32.mrb[0].mxu0
        %2977 = vmatprep.mubr.bf16.mxu0 0
        %2978 = vmatmul.mubr.bf16.gmra.mrb[0].mxu0 %v2723
        %v2979 = vpop.f32.mrb[0].mxu0
        %v2980 = vadd.f32 0.0, %v2979
        %v2981 = vpop.f32.mrb[0].mxu0
        %v2982 = vpop.f32.mrb[0].mxu0
        %v2983 = vadd.f32 0.0, %v2982
        %v2984 = vpop.f32.mrb[0].mxu0
        %2985 = vmatprep.mubr.bf16.mxu0 0
        %2986 = vmatmul.mubr.bf16.gmra.mrb[0].mxu0 %v2724
        %v2987 = vpop.f32.mrb[0].mxu0
        %v2988 = vadd.f32 0.0, %v2987
        %v2989 = vpop.f32.mrb[0].mxu0
        %v2990 = vpop.f32.mrb[0].mxu0
        %v2991 = vadd.f32 0.0, %v2990
        %v2992 = vpop.f32.mrb[0].mxu0
        %2993 = vmatprep.mubr.bf16.mxu0 0
        %2994 = vmatmul.mubr.bf16.gmra.mrb[0].mxu0 %v2725
        %v2995 = vpop.f32.mrb[0].mxu0
        %v2996 = vadd.f32 0.0, %v2995
        %v2997 = vpop.f32.mrb[0].mxu0
        %v2998 = vpop.f32.mrb[0].mxu0
        %v2999 = vadd.f32 0.0, %v2998
        %v3000 = vpop.f32.mrb[0].mxu0
        %3001 = vmatprep.mubr.bf16.mxu0 0
        %3002 = vmatmul.mubr.bf16.gmra.mrb[0].mxu0 %v2726
        %v3003 = vpop.f32.mrb[0].mxu0
        %v3004 = vadd.f32 0.0, %v3003
        %v3005 = vpop.f32.mrb[0].mxu0
        %v3006 = vpop.f32.mrb[0].mxu0
        %v3007 = vadd.f32 0.0, %v3006
        %v3008 = vpop.f32.mrb[0].mxu0
        %3009 = vmatprep.mubr.bf16.mxu0 0
        %3010 = vmatmul.mubr.bf16.gmra.mrb[0].mxu0 %v2727
        %v3011 = vpop.f32.mrb[0].mxu0
        %v3012 = vadd.f32 0.0, %v3011
        %v3013 = vpop.f32.mrb[0].mxu0
        %v3014 = vpop.f32.mrb[0].mxu0
        %v3015 = vadd.f32 0.0, %v3014
        %v3016 = vpop.f32.mrb[0].mxu0
        %3017 = vmatprep.mubr.bf16.mxu0 0
        %3018 = vmatmul.mubr.bf16.gmra.mrb[0].mxu0 %v2728
        %v3019 = vpop.f32.mrb[0].mxu0
        %v3020 = vadd.f32 0.0, %v3019
        %v3021 = vpop.f32.mrb[0].mxu0
        %v3022 = vpop.f32.mrb[0].mxu0
        %v3023 = vadd.f32 0.0, %v3022
        %v3024 = vpop.f32.mrb[0].mxu0
        %3025 = vdwg.mxu0
        %s3026 = scalar_lea.vmem %s7, 2
        %v3027 = vld [vmem:[%s3026] sm:$0x1]
        %v3029 = vlaneseq
        %v3030 = vshrl.u32 %v3029, 7
        %v3031 = vsub.s32 0, %v3030
        %v3032 = vrot.slane %v3027, %v3031
        %v3034 = vmul.f32 %v2836, %v3032
        %v3035 = vmul.f32 %v2839, %v3032
        %v3036 = vmul.f32 %v2844, %v3032
        %v3037 = vmul.f32 %v2847, %v3032
        %v3038 = vmul.f32 %v2852, %v3032
        %v3039 = vmul.f32 %v2855, %v3032
        %v3040 = vmul.f32 %v2860, %v3032
        %v3041 = vmul.f32 %v2863, %v3032
        %v3042 = vmul.f32 %v2868, %v3032
        %v3043 = vmul.f32 %v2871, %v3032
        %v3044 = vmul.f32 %v2876, %v3032
        %v3045 = vmul.f32 %v2879, %v3032
        %v3046 = vmul.f32 %v2884, %v3032
        %v3047 = vmul.f32 %v2887, %v3032
        %v3048 = vmul.f32 %v2892, %v3032
        %v3049 = vmul.f32 %v2895, %v3032
        %v3050 = vmul.f32 %v2900, %v3032
        %v3051 = vmul.f32 %v2903, %v3032
        %v3052 = vmul.f32 %v2908, %v3032
        %v3053 = vmul.f32 %v2911, %v3032
        %v3054 = vmul.f32 %v2916, %v3032
        %v3055 = vmul.f32 %v2919, %v3032
        %v3056 = vmul.f32 %v2924, %v3032
        %v3057 = vmul.f32 %v2927, %v3032
        %v3058 = vmul.f32 %v2932, %v3032
        %v3059 = vmul.f32 %v2935, %v3032
        %v3060 = vmul.f32 %v2940, %v3032
        %v3061 = vmul.f32 %v2943, %v3032
        %v3062 = vmul.f32 %v2948, %v3032
        %v3063 = vmul.f32 %v2951, %v3032
        %v3064 = vmul.f32 %v2956, %v3032
        %v3065 = vmul.f32 %v2959, %v3032
        %v3066 = vmul.f32 %v2964, %v3032
        %v3067 = vmul.f32 %v2967, %v3032
        %v3068 = vmul.f32 %v2972, %v3032
        %v3069 = vmul.f32 %v2975, %v3032
        %v3070 = vmul.f32 %v2980, %v3032
        %v3071 = vmul.f32 %v2983, %v3032
        %v3072 = vmul.f32 %v2988, %v3032
        %v3073 = vmul.f32 %v2991, %v3032
        %v3074 = vmul.f32 %v2996, %v3032
        %v3075 = vmul.f32 %v2999, %v3032
        %v3076 = vmul.f32 %v3004, %v3032
        %v3077 = vmul.f32 %v3007, %v3032
        %v3078 = vmul.f32 %v3012, %v3032
        %v3079 = vmul.f32 %v3015, %v3032
        %v3080 = vmul.f32 %v3020, %v3032
        %v3081 = vmul.f32 %v3023, %v3032
        %s3082 = scalar_lea.vmem %s8, 2
        %v3083 = vld [vmem:[%s3082] sm:$0x1]
        %v3085 = vlaneseq
        %v3086 = vshrl.u32 %v3085, 7
        %v3087 = vsub.s32 0, %v3086
        %v3088 = vrot.slane %v3083, %v3087
        %v3090 = vadd.f32 %v3034, %v3088
        %v3091 = vadd.f32 %v3035, %v3088
        %v3092 = vadd.f32 %v3036, %v3088
        %v3093 = vadd.f32 %v3037, %v3088
        %v3094 = vadd.f32 %v3038, %v3088
        %v3095 = vadd.f32 %v3039, %v3088
        %v3096 = vadd.f32 %v3040, %v3088
        %v3097 = vadd.f32 %v3041, %v3088
        %v3098 = vadd.f32 %v3042, %v3088
        %v3099 = vadd.f32 %v3043, %v3088
        %v3100 = vadd.f32 %v3044, %v3088
        %v3101 = vadd.f32 %v3045, %v3088
        %v3102 = vadd.f32 %v3046, %v3088
        %v3103 = vadd.f32 %v3047, %v3088
        %v3104 = vadd.f32 %v3048, %v3088
        %v3105 = vadd.f32 %v3049, %v3088
        %v3106 = vadd.f32 %v3050, %v3088
        %v3107 = vadd.f32 %v3051, %v3088
        %v3108 = vadd.f32 %v3052, %v3088
        %v3109 = vadd.f32 %v3053, %v3088
        %v3110 = vadd.f32 %v3054, %v3088
        %v3111 = vadd.f32 %v3055, %v3088
        %v3112 = vadd.f32 %v3056, %v3088
        %v3113 = vadd.f32 %v3057, %v3088
        %v3114 = vadd.f32 %v3058, %v3088
        %v3115 = vadd.f32 %v3059, %v3088
        %v3116 = vadd.f32 %v3060, %v3088
        %v3117 = vadd.f32 %v3061, %v3088
        %v3118 = vadd.f32 %v3062, %v3088
        %v3119 = vadd.f32 %v3063, %v3088
        %v3120 = vadd.f32 %v3064, %v3088
        %v3121 = vadd.f32 %v3065, %v3088
        %v3122 = vadd.f32 %v3066, %v3088
        %v3123 = vadd.f32 %v3067, %v3088
        %v3124 = vadd.f32 %v3068, %v3088
        %v3125 = vadd.f32 %v3069, %v3088
        %v3126 = vadd.f32 %v3070, %v3088
        %v3127 = vadd.f32 %v3071, %v3088
        %v3128 = vadd.f32 %v3072, %v3088
        %v3129 = vadd.f32 %v3073, %v3088
        %v3130 = vadd.f32 %v3074, %v3088
        %v3131 = vadd.f32 %v3075, %v3088
        %v3132 = vadd.f32 %v3076, %v3088
        %v3133 = vadd.f32 %v3077, %v3088
        %v3134 = vadd.f32 %v3078, %v3088
        %v3135 = vadd.f32 %v3079, %v3088
        %v3136 = vadd.f32 %v3080, %v3088
        %v3137 = vadd.f32 %v3081, %v3088
        %v3138 = vsub.f32 0.0, %v3090
        %v3139 = vsub.f32 0.0, %v3091
        %v3140 = vsub.f32 0.0, %v3092
        %v3141 = vsub.f32 0.0, %v3093
        %v3142 = vsub.f32 0.0, %v3094
        %v3143 = vsub.f32 0.0, %v3095
        %v3144 = vsub.f32 0.0, %v3096
        %v3145 = vsub.f32 0.0, %v3097
        %v3146 = vsub.f32 0.0, %v3098
        %v3147 = vsub.f32 0.0, %v3099
        %v3148 = vsub.f32 0.0, %v3100
        %v3149 = vsub.f32 0.0, %v3101
        %v3150 = vsub.f32 0.0, %v3102
        %v3151 = vsub.f32 0.0, %v3103
        %v3152 = vsub.f32 0.0, %v3104
        %v3153 = vsub.f32 0.0, %v3105
        %v3154 = vsub.f32 0.0, %v3106
        %v3155 = vsub.f32 0.0, %v3107
        %v3156 = vsub.f32 0.0, %v3108
        %v3157 = vsub.f32 0.0, %v3109
        %v3158 = vsub.f32 0.0, %v3110
        %v3159 = vsub.f32 0.0, %v3111
        %v3160 = vsub.f32 0.0, %v3112
        %v3161 = vsub.f32 0.0, %v3113
        %v3162 = vsub.f32 0.0, %v3114
        %v3163 = vsub.f32 0.0, %v3115
        %v3164 = vsub.f32 0.0, %v3116
        %v3165 = vsub.f32 0.0, %v3117
        %v3166 = vsub.f32 0.0, %v3118
        %v3167 = vsub.f32 0.0, %v3119
        %v3168 = vsub.f32 0.0, %v3120
        %v3169 = vsub.f32 0.0, %v3121
        %v3170 = vsub.f32 0.0, %v3122
        %v3171 = vsub.f32 0.0, %v3123
        %v3172 = vsub.f32 0.0, %v3124
        %v3173 = vsub.f32 0.0, %v3125
        %v3174 = vsub.f32 0.0, %v3126
        %v3175 = vsub.f32 0.0, %v3127
        %v3176 = vsub.f32 0.0, %v3128
        %v3177 = vsub.f32 0.0, %v3129
        %v3178 = vsub.f32 0.0, %v3130
        %v3179 = vsub.f32 0.0, %v3131
        %v3180 = vsub.f32 0.0, %v3132
        %v3181 = vsub.f32 0.0, %v3133
        %v3182 = vsub.f32 0.0, %v3134
        %v3183 = vsub.f32 0.0, %v3135
        %v3184 = vsub.f32 0.0, %v3136
        %v3185 = vsub.f32 0.0, %v3137
        %v3186 = vmul.f32 %v3138, 1.442695
        %v3187 = vpow.pop %v3186
        %v3188 = vmul.f32 %v3139, 1.442695
        %v3189 = vpow.pop %v3188
        %v3190 = vmul.f32 %v3140, 1.442695
        %v3191 = vpow.pop %v3190
        %v3192 = vmul.f32 %v3141, 1.442695
        %v3193 = vpow.pop %v3192
        %v3194 = vmul.f32 %v3142, 1.442695
        %v3195 = vpow.pop %v3194
        %v3196 = vmul.f32 %v3143, 1.442695
        %v3197 = vpow.pop %v3196
        %v3198 = vmul.f32 %v3144, 1.442695
        %v3199 = vpow.pop %v3198
        %v3200 = vmul.f32 %v3145, 1.442695
        %v3201 = vpow.pop %v3200
        %v3202 = vmul.f32 %v3146, 1.442695
        %v3203 = vpow.pop %v3202
        %v3204 = vmul.f32 %v3147, 1.442695
        %v3205 = vpow.pop %v3204
        %v3206 = vmul.f32 %v3148, 1.442695
        %v3207 = vpow.pop %v3206
        %v3208 = vmul.f32 %v3149, 1.442695
        %v3209 = vpow.pop %v3208
        %v3210 = vmul.f32 %v3150, 1.442695
        %v3211 = vpow.pop %v3210
        %v3212 = vmul.f32 %v3151, 1.442695
        %v3213 = vpow.pop %v3212
        %v3214 = vmul.f32 %v3152, 1.442695
        %v3215 = vpow.pop %v3214
        %v3216 = vmul.f32 %v3153, 1.442695
        %v3217 = vpow.pop %v3216
        %v3218 = vmul.f32 %v3154, 1.442695
        %v3219 = vpow.pop %v3218
        %v3220 = vmul.f32 %v3155, 1.442695
        %v3221 = vpow.pop %v3220
        %v3222 = vmul.f32 %v3156, 1.442695
        %v3223 = vpow.pop %v3222
        %v3224 = vmul.f32 %v3157, 1.442695
        %v3225 = vpow.pop %v3224
        %v3226 = vmul.f32 %v3158, 1.442695
        %v3227 = vpow.pop %v3226
        %v3228 = vmul.f32 %v3159, 1.442695
        %v3229 = vpow.pop %v3228
        %v3230 = vmul.f32 %v3160, 1.442695
        %v3231 = vpow.pop %v3230
        %v3232 = vmul.f32 %v3161, 1.442695
        %v3233 = vpow.pop %v3232
        %v3234 = vmul.f32 %v3162, 1.442695
        %v3235 = vpow.pop %v3234
        %v3236 = vmul.f32 %v3163, 1.442695
        %v3237 = vpow.pop %v3236
        %v3238 = vmul.f32 %v3164, 1.442695
        %v3239 = vpow.pop %v3238
        %v3240 = vmul.f32 %v3165, 1.442695
        %v3241 = vpow.pop %v3240
        %v3242 = vmul.f32 %v3166, 1.442695
        %v3243 = vpow.pop %v3242
        %v3244 = vmul.f32 %v3167, 1.442695
        %v3245 = vpow.pop %v3244
        %v3246 = vmul.f32 %v3168, 1.442695
        %v3247 = vpow.pop %v3246
        %v3248 = vmul.f32 %v3169, 1.442695
        %v3249 = vpow.pop %v3248
        %v3250 = vmul.f32 %v3170, 1.442695
        %v3251 = vpow.pop %v3250
        %v3252 = vmul.f32 %v3171, 1.442695
        %v3253 = vpow.pop %v3252
        %v3254 = vmul.f32 %v3172, 1.442695
        %v3255 = vpow.pop %v3254
        %v3256 = vmul.f32 %v3173, 1.442695
        %v3257 = vpow.pop %v3256
        %v3258 = vmul.f32 %v3174, 1.442695
        %v3259 = vpow.pop %v3258
        %v3260 = vmul.f32 %v3175, 1.442695
        %v3261 = vpow.pop %v3260
        %v3262 = vmul.f32 %v3176, 1.442695
        %v3263 = vpow.pop %v3262
        %v3264 = vmul.f32 %v3177, 1.442695
        %v3265 = vpow.pop %v3264
        %v3266 = vmul.f32 %v3178, 1.442695
        %v3267 = vpow.pop %v3266
        %v3268 = vmul.f32 %v3179, 1.442695
        %v3269 = vpow.pop %v3268
        %v3270 = vmul.f32 %v3180, 1.442695
        %v3271 = vpow.pop %v3270
        %v3272 = vmul.f32 %v3181, 1.442695
        %v3273 = vpow.pop %v3272
        %v3274 = vmul.f32 %v3182, 1.442695
        %v3275 = vpow.pop %v3274
        %v3276 = vmul.f32 %v3183, 1.442695
        %v3277 = vpow.pop %v3276
        %v3278 = vmul.f32 %v3184, 1.442695
        %v3279 = vpow.pop %v3278
        %v3280 = vmul.f32 %v3185, 1.442695
        %v3281 = vpow.pop %v3280
        %v3282 = vadd.f32 %v3187, 1.0
        %v3283 = vadd.f32 %v3189, 1.0
        %v3284 = vadd.f32 %v3191, 1.0
        %v3285 = vadd.f32 %v3193, 1.0
        %v3286 = vadd.f32 %v3195, 1.0
        %v3287 = vadd.f32 %v3197, 1.0
        %v3288 = vadd.f32 %v3199, 1.0
        %v3289 = vadd.f32 %v3201, 1.0
        %v3290 = vadd.f32 %v3203, 1.0
        %v3291 = vadd.f32 %v3205, 1.0
        %v3292 = vadd.f32 %v3207, 1.0
        %v3293 = vadd.f32 %v3209, 1.0
        %v3294 = vadd.f32 %v3211, 1.0
        %v3295 = vadd.f32 %v3213, 1.0
        %v3296 = vadd.f32 %v3215, 1.0
        %v3297 = vadd.f32 %v3217, 1.0
        %v3298 = vadd.f32 %v3219, 1.0
        %v3299 = vadd.f32 %v3221, 1.0
        %v3300 = vadd.f32 %v3223, 1.0
        %v3301 = vadd.f32 %v3225, 1.0
        %v3302 = vadd.f32 %v3227, 1.0
        %v3303 = vadd.f32 %v3229, 1.0
        %v3304 = vadd.f32 %v3231, 1.0
        %v3305 = vadd.f32 %v3233, 1.0
        %v3306 = vadd.f32 %v3235, 1.0
        %v3307 = vadd.f32 %v3237, 1.0
        %v3308 = vadd.f32 %v3239, 1.0
        %v3309 = vadd.f32 %v3241, 1.0
        %v3310 = vadd.f32 %v3243, 1.0
        %v3311 = vadd.f32 %v3245, 1.0
        %v3312 = vadd.f32 %v3247, 1.0
        %v3313 = vadd.f32 %v3249, 1.0
        %v3314 = vadd.f32 %v3251, 1.0
        %v3315 = vadd.f32 %v3253, 1.0
        %v3316 = vadd.f32 %v3255, 1.0
        %v3317 = vadd.f32 %v3257, 1.0
        %v3318 = vadd.f32 %v3259, 1.0
        %v3319 = vadd.f32 %v3261, 1.0
        %v3320 = vadd.f32 %v3263, 1.0
        %v3321 = vadd.f32 %v3265, 1.0
        %v3322 = vadd.f32 %v3267, 1.0
        %v3323 = vadd.f32 %v3269, 1.0
        %v3324 = vadd.f32 %v3271, 1.0
        %v3325 = vadd.f32 %v3273, 1.0
        %v3326 = vadd.f32 %v3275, 1.0
        %v3327 = vadd.f32 %v3277, 1.0
        %v3328 = vadd.f32 %v3279, 1.0
        %v3329 = vadd.f32 %v3281, 1.0
        %v3330 = vrcp.pop %v3282
        %v3331 = vrcp.pop %v3283
        %v3332 = vrcp.pop %v3284
        %v3333 = vrcp.pop %v3285
        %v3334 = vrcp.pop %v3286
        %v3335 = vrcp.pop %v3287
        %v3336 = vrcp.pop %v3288
        %v3337 = vrcp.pop %v3289
        %v3338 = vrcp.pop %v3290
        %v3339 = vrcp.pop %v3291
        %v3340 = vrcp.pop %v3292
        %v3341 = vrcp.pop %v3293
        %v3342 = vrcp.pop %v3294
        %v3343 = vrcp.pop %v3295
        %v3344 = vrcp.pop %v3296
        %v3345 = vrcp.pop %v3297
        %v3346 = vrcp.pop %v3298
        %v3347 = vrcp.pop %v3299
        %v3348 = vrcp.pop %v3300
        %v3349 = vrcp.pop %v3301
        %v3350 = vrcp.pop %v3302
        %v3351 = vrcp.pop %v3303
        %v3352 = vrcp.pop %v3304
        %v3353 = vrcp.pop %v3305
        %v3354 = vrcp.pop %v3306
        %v3355 = vrcp.pop %v3307
        %v3356 = vrcp.pop %v3308
        %v3357 = vrcp.pop %v3309
        %v3358 = vrcp.pop %v3310
        %v3359 = vrcp.pop %v3311
        %v3360 = vrcp.pop %v3312
        %v3361 = vrcp.pop %v3313
        %v3362 = vrcp.pop %v3314
        %v3363 = vrcp.pop %v3315
        %v3364 = vrcp.pop %v3316
        %v3365 = vrcp.pop %v3317
        %v3366 = vrcp.pop %v3318
        %v3367 = vrcp.pop %v3319
        %v3368 = vrcp.pop %v3320
        %v3369 = vrcp.pop %v3321
        %v3370 = vrcp.pop %v3322
        %v3371 = vrcp.pop %v3323
        %v3372 = vrcp.pop %v3324
        %v3373 = vrcp.pop %v3325
        %v3374 = vrcp.pop %v3326
        %v3375 = vrcp.pop %v3327
        %v3376 = vrcp.pop %v3328
        %v3377 = vrcp.pop %v3329
        %v3378 = vmul.f32 %v3090, %v3330
        %v3379 = vmul.f32 %v3091, %v3331
        %v3380 = vmul.f32 %v3092, %v3332
        %v3381 = vmul.f32 %v3093, %v3333
        %v3382 = vmul.f32 %v3094, %v3334
        %v3383 = vmul.f32 %v3095, %v3335
        %v3384 = vmul.f32 %v3096, %v3336
        %v3385 = vmul.f32 %v3097, %v3337
        %v3386 = vmul.f32 %v3098, %v3338
        %v3387 = vmul.f32 %v3099, %v3339
        %v3388 = vmul.f32 %v3100, %v3340
        %v3389 = vmul.f32 %v3101, %v3341
        %v3390 = vmul.f32 %v3102, %v3342
        %v3391 = vmul.f32 %v3103, %v3343
        %v3392 = vmul.f32 %v3104, %v3344
        %v3393 = vmul.f32 %v3105, %v3345
        %v3394 = vmul.f32 %v3106, %v3346
        %v3395 = vmul.f32 %v3107, %v3347
        %v3396 = vmul.f32 %v3108, %v3348
        %v3397 = vmul.f32 %v3109, %v3349
        %v3398 = vmul.f32 %v3110, %v3350
        %v3399 = vmul.f32 %v3111, %v3351
        %v3400 = vmul.f32 %v3112, %v3352
        %v3401 = vmul.f32 %v3113, %v3353
        %v3402 = vmul.f32 %v3114, %v3354
        %v3403 = vmul.f32 %v3115, %v3355
        %v3404 = vmul.f32 %v3116, %v3356
        %v3405 = vmul.f32 %v3117, %v3357
        %v3406 = vmul.f32 %v3118, %v3358
        %v3407 = vmul.f32 %v3119, %v3359
        %v3408 = vmul.f32 %v3120, %v3360
        %v3409 = vmul.f32 %v3121, %v3361
        %v3410 = vmul.f32 %v3122, %v3362
        %v3411 = vmul.f32 %v3123, %v3363
        %v3412 = vmul.f32 %v3124, %v3364
        %v3413 = vmul.f32 %v3125, %v3365
        %v3414 = vmul.f32 %v3126, %v3366
        %v3415 = vmul.f32 %v3127, %v3367
        %v3416 = vmul.f32 %v3128, %v3368
        %v3417 = vmul.f32 %v3129, %v3369
        %v3418 = vmul.f32 %v3130, %v3370
        %v3419 = vmul.f32 %v3131, %v3371
        %v3420 = vmul.f32 %v3132, %v3372
        %v3421 = vmul.f32 %v3133, %v3373
        %v3422 = vmul.f32 %v3134, %v3374
        %v3423 = vmul.f32 %v3135, %v3375
        %v3424 = vmul.f32 %v3136, %v3376
        %v3425 = vmul.f32 %v3137, %v3377
        %vm3426 = vcmask 64512
        %v3428 = vsel %vm3426, %v2544, 0
        %v3431 = vsel %vm3426, %v2545, 0
        %v3434 = vsel %vm3426, %v2546, 0
        %v3437 = vsel %vm3426, %v2547, 0
        %v3440 = vsel %vm3426, %v2548, 0
        %v3443 = vsel %vm3426, %v2549, 0
        %v3446 = vsel %vm3426, %v2550, 0
        %v3449 = vsel %vm3426, %v2551, 0
        %v3452 = vsel %vm3426, %v2552, 0
        %v3455 = vsel %vm3426, %v2553, 0
        %v3458 = vsel %vm3426, %v2554, 0
        %v3461 = vsel %vm3426, %v2555, 0
        %v3464 = vsel %vm3426, %v2556, 0
        %v3467 = vsel %vm3426, %v2557, 0
        %v3470 = vsel %vm3426, %v2558, 0
        %v3473 = vsel %vm3426, %v2559, 0
        %v3476 = vsel %vm3426, %v2560, 0
        %v3479 = vsel %vm3426, %v2561, 0
        %v3482 = vsel %vm3426, %v2562, 0
        %v3485 = vsel %vm3426, %v2563, 0
        %v3488 = vsel %vm3426, %v2564, 0
        %v3491 = vsel %vm3426, %v2565, 0
        %v3494 = vsel %vm3426, %v2566, 0
        %v3497 = vsel %vm3426, %v2567, 0
        %v3500 = vsel %vm3426, %v2568, 0
        %v3503 = vsel %vm3426, %v2569, 0
        %v3506 = vsel %vm3426, %v2570, 0
        %v3509 = vsel %vm3426, %v2571, 0
        %v3512 = vsel %vm3426, %v2572, 0
        %v3515 = vsel %vm3426, %v2573, 0
        %v3518 = vsel %vm3426, %v2574, 0
        %v3521 = vsel %vm3426, %v2575, 0
        %v3524 = vsel %vm3426, %v2576, 0
        %v3527 = vsel %vm3426, %v2577, 0
        %v3530 = vsel %vm3426, %v2578, 0
        %v3533 = vsel %vm3426, %v2579, 0
        %v3536 = vsel %vm3426, %v2580, 0
        %v3539 = vsel %vm3426, %v2581, 0
        %v3542 = vsel %vm3426, %v2582, 0
        %v3545 = vsel %vm3426, %v2583, 0
        %v3548 = vsel %vm3426, %v2584, 0
        %v3551 = vsel %vm3426, %v2585, 0
        %v3554 = vsel %vm3426, %v2586, 0
        %v3557 = vsel %vm3426, %v2587, 0
        %v3560 = vsel %vm3426, %v2588, 0
        %v3563 = vsel %vm3426, %v2589, 0
        %v3566 = vsel %vm3426, %v2590, 0
        %v3569 = vsel %vm3426, %v2591, 0
        %3571 = vmatprep.subr.mxu0 0.0
        %3572 = vmatpush1.msra.mxu0 %v781
        %3573 = vmatprep.subr.mxu0 0.0
        %3574 = vmatpush1.msra.mxu0 0.0
        %3575 = vmatprep.subr.mxu0 0.0
        %3576 = vmatpush1.msra.mxu0 0.0
        %3577 = vmatprep.subr.mxu0 0.0
        %3578 = vmatpush1.msra.mxu0 0.0
        %3579 = vmatprep.subr.mxu0 0.0
        %3580 = vmatpush1.msra.mxu0 0.0
        %3581 = vmatprep.subr.mxu0 0.0
        %3582 = vmatpush1.msra.mxu0 0.0
        %3583 = vmatprep.subr.mxu0 0.0
        %3584 = vmatpush1.msra.mxu0 0.0
        %3585 = vmatprep.subr.mxu0 0.0
        %3586 = vmatpush1.msra.mxu0 0.0
        %3587 = vmatprep.subr.mxu0 0.0
        %3588 = vmatpush1.msra.mxu0 0.0
        %3589 = vmatprep.subr.mxu0 0.0
        %3590 = vmatpush1.msra.mxu0 0.0
        %3591 = vmatprep.subr.mxu0 0.0
        %3592 = vmatpush1.msra.mxu0 0.0
        %3593 = vmatprep.subr.mxu0 0.0
        %3594 = vmatpush1.msra.mxu0 0.0
        %3595 = vmatprep.subr.mxu0 0.0
        %3596 = vmatpush1.msra.mxu0 0.0
        %3597 = vmatprep.subr.mxu0 0.0
        %3598 = vmatpush1.msra.mxu0 0.0
        %3599 = vmatprep.subr.mxu0 0.0
        %3600 = vmatpush1.msra.mxu0 0.0
        %3601 = vmatprep.subr.mxu0 0.0
        %3602 = vmatpush1.msra.mxu0 0.0
        %3603 = vmatprep.subr.mxu0 0.0
        %3604 = vmatpush1.msra.mxu0 0.0
        %3605 = vmatprep.subr.mxu0 0.0
        %3606 = vmatpush1.msra.mxu0 0.0
        %3607 = vmatprep.subr.mxu0 0.0
        %3608 = vmatpush1.msra.mxu0 0.0
        %3609 = vmatprep.subr.mxu0 0.0
        %3610 = vmatpush1.msra.mxu0 0.0
        %3611 = vmatprep.subr.mxu0 0.0
        %3612 = vmatpush1.msra.mxu0 0.0
        %3613 = vmatprep.subr.mxu0 0.0
        %3614 = vmatpush1.msra.mxu0 0.0
        %3615 = vmatprep.subr.mxu0 0.0
        %3616 = vmatpush1.msra.mxu0 0.0
        %3617 = vmatprep.subr.mxu0 0.0
        %3618 = vmatpush1.msra.mxu0 0.0
        %3619 = vmatprep.subr.mxu0 0.0
        %3620 = vmatpush1.msra.mxu0 0.0
        %3621 = vmatprep.subr.mxu0 0.0
        %3622 = vmatpush1.msra.mxu0 0.0
        %3623 = vmatprep.subr.mxu0 0.0
        %3624 = vmatpush1.msra.mxu0 0.0
        %3625 = vmatprep.subr.mxu0 0.0
        %3626 = vmatpush1.msra.mxu0 0.0
        %3627 = vmatprep.subr.mxu0 0.0
        %3628 = vmatpush1.msra.mxu0 0.0
        %3629 = vmatprep.subr.mxu0 0.0
        %3630 = vmatpush1.msra.mxu0 0.0
        %3631 = vmatprep.subr.mxu0 0.0
        %3632 = vmatpush1.msra.mxu0 0.0
        %3633 = vmatprep.subr.mxu0 0.0
        %3634 = vmatpush1.msra.mxu0 0.0
        %3635 = vmatprep.mubr.f32.mxu0 0.0
        %3636 = vmatmul.mubr.f32.gmra.mrb[0].mxu0 %v3428
        %v3637 = vpop.f32.mrb[0].mxu0
        %v3638 = vadd.f32 0.0, %v3637
        %v3639 = vpop.f32.mrb[0].mxu0
        %3640 = vmatprep.mubr.f32.mxu0 0.0
        %3641 = vmatmul.mubr.f32.gmra.mrb[0].mxu0 %v3431
        %v3642 = vpop.f32.mrb[0].mxu0
        %v3643 = vadd.f32 0.0, %v3642
        %v3644 = vpop.f32.mrb[0].mxu0
        %3645 = vmatprep.mubr.f32.mxu0 0.0
        %3646 = vmatmul.mubr.f32.gmra.mrb[0].mxu0 %v3434
        %v3647 = vpop.f32.mrb[0].mxu0
        %v3648 = vadd.f32 0.0, %v3647
        %v3649 = vpop.f32.mrb[0].mxu0
        %3650 = vmatprep.mubr.f32.mxu0 0.0
        %3651 = vmatmul.mubr.f32.gmra.mrb[0].mxu0 %v3437
        %v3652 = vpop.f32.mrb[0].mxu0
        %v3653 = vadd.f32 0.0, %v3652
        %v3654 = vpop.f32.mrb[0].mxu0
        %3655 = vmatprep.mubr.f32.mxu0 0.0
        %3656 = vmatmul.mubr.f32.gmra.mrb[0].mxu0 %v3440
        %v3657 = vpop.f32.mrb[0].mxu0
        %v3658 = vadd.f32 0.0, %v3657
        %v3659 = vpop.f32.mrb[0].mxu0
        %3660 = vmatprep.mubr.f32.mxu0 0.0
        %3661 = vmatmul.mubr.f32.gmra.mrb[0].mxu0 %v3443
        %v3662 = vpop.f32.mrb[0].mxu0
        %v3663 = vadd.f32 0.0, %v3662
        %v3664 = vpop.f32.mrb[0].mxu0
        %3665 = vmatprep.mubr.f32.mxu0 0.0
        %3666 = vmatmul.mubr.f32.gmra.mrb[0].mxu0 %v3446
        %v3667 = vpop.f32.mrb[0].mxu0
        %v3668 = vadd.f32 0.0, %v3667
        %v3669 = vpop.f32.mrb[0].mxu0
        %3670 = vmatprep.mubr.f32.mxu0 0.0
        %3671 = vmatmul.mubr.f32.gmra.mrb[0].mxu0 %v3449
        %v3672 = vpop.f32.mrb[0].mxu0
        %v3673 = vadd.f32 0.0, %v3672
        %v3674 = vpop.f32.mrb[0].mxu0
        %3675 = vmatprep.mubr.f32.mxu0 0.0
        %3676 = vmatmul.mubr.f32.gmra.mrb[0].mxu0 %v3452
        %v3677 = vpop.f32.mrb[0].mxu0
        %v3678 = vadd.f32 0.0, %v3677
        %v3679 = vpop.f32.mrb[0].mxu0
        %3680 = vmatprep.mubr.f32.mxu0 0.0
        %3681 = vmatmul.mubr.f32.gmra.mrb[0].mxu0 %v3455
        %v3682 = vpop.f32.mrb[0].mxu0
        %v3683 = vadd.f32 0.0, %v3682
        %v3684 = vpop.f32.mrb[0].mxu0
        %3685 = vmatprep.mubr.f32.mxu0 0.0
        %3686 = vmatmul.mubr.f32.gmra.mrb[0].mxu0 %v3458
        %v3687 = vpop.f32.mrb[0].mxu0
        %v3688 = vadd.f32 0.0, %v3687
        %v3689 = vpop.f32.mrb[0].mxu0
        %3690 = vmatprep.mubr.f32.mxu0 0.0
        %3691 = vmatmul.mubr.f32.gmra.mrb[0].mxu0 %v3461
        %v3692 = vpop.f32.mrb[0].mxu0
        %v3693 = vadd.f32 0.0, %v3692
        %v3694 = vpop.f32.mrb[0].mxu0
        %3695 = vmatprep.mubr.f32.mxu0 0.0
        %3696 = vmatmul.mubr.f32.gmra.mrb[0].mxu0 %v3464
        %v3697 = vpop.f32.mrb[0].mxu0
        %v3698 = vadd.f32 0.0, %v3697
        %v3699 = vpop.f32.mrb[0].mxu0
        %3700 = vmatprep.mubr.f32.mxu0 0.0
        %3701 = vmatmul.mubr.f32.gmra.mrb[0].mxu0 %v3467
        %v3702 = vpop.f32.mrb[0].mxu0
        %v3703 = vadd.f32 0.0, %v3702
        %v3704 = vpop.f32.mrb[0].mxu0
        %3705 = vmatprep.mubr.f32.mxu0 0.0
        %3706 = vmatmul.mubr.f32.gmra.mrb[0].mxu0 %v3470
        %v3707 = vpop.f32.mrb[0].mxu0
        %v3708 = vadd.f32 0.0, %v3707
        %v3709 = vpop.f32.mrb[0].mxu0
        %3710 = vmatprep.mubr.f32.mxu0 0.0
        %3711 = vmatmul.mubr.f32.gmra.mrb[0].mxu0 %v3473
        %v3712 = vpop.f32.mrb[0].mxu0
        %v3713 = vadd.f32 0.0, %v3712
        %v3714 = vpop.f32.mrb[0].mxu0
        %3715 = vmatprep.mubr.f32.mxu0 0.0
        %3716 = vmatmul.mubr.f32.gmra.mrb[0].mxu0 %v3476
        %v3717 = vpop.f32.mrb[0].mxu0
        %v3718 = vadd.f32 0.0, %v3717
        %v3719 = vpop.f32.mrb[0].mxu0
        %3720 = vmatprep.mubr.f32.mxu0 0.0
        %3721 = vmatmul.mubr.f32.gmra.mrb[0].mxu0 %v3479
        %v3722 = vpop.f32.mrb[0].mxu0
        %v3723 = vadd.f32 0.0, %v3722
        %v3724 = vpop.f32.mrb[0].mxu0
        %3725 = vmatprep.mubr.f32.mxu0 0.0
        %3726 = vmatmul.mubr.f32.gmra.mrb[0].mxu0 %v3482
        %v3727 = vpop.f32.mrb[0].mxu0
        %v3728 = vadd.f32 0.0, %v3727
        %v3729 = vpop.f32.mrb[0].mxu0
        %3730 = vmatprep.mubr.f32.mxu0 0.0
        %3731 = vmatmul.mubr.f32.gmra.mrb[0].mxu0 %v3485
        %v3732 = vpop.f32.mrb[0].mxu0
        %v3733 = vadd.f32 0.0, %v3732
        %v3734 = vpop.f32.mrb[0].mxu0
        %3735 = vmatprep.mubr.f32.mxu0 0.0
        %3736 = vmatmul.mubr.f32.gmra.mrb[0].mxu0 %v3488
        %v3737 = vpop.f32.mrb[0].mxu0
        %v3738 = vadd.f32 0.0, %v3737
        %v3739 = vpop.f32.mrb[0].mxu0
        %3740 = vmatprep.mubr.f32.mxu0 0.0
        %3741 = vmatmul.mubr.f32.gmra.mrb[0].mxu0 %v3491
        %v3742 = vpop.f32.mrb[0].mxu0
        %v3743 = vadd.f32 0.0, %v3742
        %v3744 = vpop.f32.mrb[0].mxu0
        %3745 = vmatprep.mubr.f32.mxu0 0.0
        %3746 = vmatmul.mubr.f32.gmra.mrb[0].mxu0 %v3494
        %v3747 = vpop.f32.mrb[0].mxu0
        %v3748 = vadd.f32 0.0, %v3747
        %v3749 = vpop.f32.mrb[0].mxu0
        %3750 = vmatprep.mubr.f32.mxu0 0.0
        %3751 = vmatmul.mubr.f32.gmra.mrb[0].mxu0 %v3497
        %v3752 = vpop.f32.mrb[0].mxu0
        %v3753 = vadd.f32 0.0, %v3752
        %v3754 = vpop.f32.mrb[0].mxu0
        %3755 = vmatprep.mubr.f32.mxu0 0.0
        %3756 = vmatmul.mubr.f32.gmra.mrb[0].mxu0 %v3500
        %v3757 = vpop.f32.mrb[0].mxu0
        %v3758 = vadd.f32 0.0, %v3757
        %v3759 = vpop.f32.mrb[0].mxu0
        %3760 = vmatprep.mubr.f32.mxu0 0.0
        %3761 = vmatmul.mubr.f32.gmra.mrb[0].mxu0 %v3503
        %v3762 = vpop.f32.mrb[0].mxu0
        %v3763 = vadd.f32 0.0, %v3762
        %v3764 = vpop.f32.mrb[0].mxu0
        %3765 = vmatprep.mubr.f32.mxu0 0.0
        %3766 = vmatmul.mubr.f32.gmra.mrb[0].mxu0 %v3506
        %v3767 = vpop.f32.mrb[0].mxu0
        %v3768 = vadd.f32 0.0, %v3767
        %v3769 = vpop.f32.mrb[0].mxu0
        %3770 = vmatprep.mubr.f32.mxu0 0.0
        %3771 = vmatmul.mubr.f32.gmra.mrb[0].mxu0 %v3509
        %v3772 = vpop.f32.mrb[0].mxu0
        %v3773 = vadd.f32 0.0, %v3772
        %v3774 = vpop.f32.mrb[0].mxu0
        %3775 = vmatprep.mubr.f32.mxu0 0.0
        %3776 = vmatmul.mubr.f32.gmra.mrb[0].mxu0 %v3512
        %v3777 = vpop.f32.mrb[0].mxu0
        %v3778 = vadd.f32 0.0, %v3777
        %v3779 = vpop.f32.mrb[0].mxu0
        %3780 = vmatprep.mubr.f32.mxu0 0.0
        %3781 = vmatmul.mubr.f32.gmra.mrb[0].mxu0 %v3515
        %v3782 = vpop.f32.mrb[0].mxu0
        %v3783 = vadd.f32 0.0, %v3782
        %v3784 = vpop.f32.mrb[0].mxu0
        %3785 = vmatprep.mubr.f32.mxu0 0.0
        %3786 = vmatmul.mubr.f32.gmra.mrb[0].mxu0 %v3518
        %v3787 = vpop.f32.mrb[0].mxu0
        %v3788 = vadd.f32 0.0, %v3787
        %v3789 = vpop.f32.mrb[0].mxu0
        %3790 = vmatprep.mubr.f32.mxu0 0.0
        %3791 = vmatmul.mubr.f32.gmra.mrb[0].mxu0 %v3521
        %v3792 = vpop.f32.mrb[0].mxu0
        %v3793 = vadd.f32 0.0, %v3792
        %v3794 = vpop.f32.mrb[0].mxu0
        %3795 = vmatprep.mubr.f32.mxu0 0.0
        %3796 = vmatmul.mubr.f32.gmra.mrb[0].mxu0 %v3524
        %v3797 = vpop.f32.mrb[0].mxu0
        %v3798 = vadd.f32 0.0, %v3797
        %v3799 = vpop.f32.mrb[0].mxu0
        %3800 = vmatprep.mubr.f32.mxu0 0.0
        %3801 = vmatmul.mubr.f32.gmra.mrb[0].mxu0 %v3527
        %v3802 = vpop.f32.mrb[0].mxu0
        %v3803 = vadd.f32 0.0, %v3802
        %v3804 = vpop.f32.mrb[0].mxu0
        %3805 = vmatprep.mubr.f32.mxu0 0.0
        %3806 = vmatmul.mubr.f32.gmra.mrb[0].mxu0 %v3530
        %v3807 = vpop.f32.mrb[0].mxu0
        %v3808 = vadd.f32 0.0, %v3807
        %v3809 = vpop.f32.mrb[0].mxu0
        %3810 = vmatprep.mubr.f32.mxu0 0.0
        %3811 = vmatmul.mubr.f32.gmra.mrb[0].mxu0 %v3533
        %v3812 = vpop.f32.mrb[0].mxu0
        %v3813 = vadd.f32 0.0, %v3812
        %v3814 = vpop.f32.mrb[0].mxu0
        %3815 = vmatprep.mubr.f32.mxu0 0.0
        %3816 = vmatmul.mubr.f32.gmra.mrb[0].mxu0 %v3536
        %v3817 = vpop.f32.mrb[0].mxu0
        %v3818 = vadd.f32 0.0, %v3817
        %v3819 = vpop.f32.mrb[0].mxu0
        %3820 = vmatprep.mubr.f32.mxu0 0.0
        %3821 = vmatmul.mubr.f32.gmra.mrb[0].mxu0 %v3539
        %v3822 = vpop.f32.mrb[0].mxu0
        %v3823 = vadd.f32 0.0, %v3822
        %v3824 = vpop.f32.mrb[0].mxu0
        %3825 = vmatprep.mubr.f32.mxu0 0.0
        %3826 = vmatmul.mubr.f32.gmra.mrb[0].mxu0 %v3542
        %v3827 = vpop.f32.mrb[0].mxu0
        %v3828 = vadd.f32 0.0, %v3827
        %v3829 = vpop.f32.mrb[0].mxu0
        %3830 = vmatprep.mubr.f32.mxu0 0.0
        %3831 = vmatmul.mubr.f32.gmra.mrb[0].mxu0 %v3545
        %v3832 = vpop.f32.mrb[0].mxu0
        %v3833 = vadd.f32 0.0, %v3832
        %v3834 = vpop.f32.mrb[0].mxu0
        %3835 = vmatprep.mubr.f32.mxu0 0.0
        %3836 = vmatmul.mubr.f32.gmra.mrb[0].mxu0 %v3548
        %v3837 = vpop.f32.mrb[0].mxu0
        %v3838 = vadd.f32 0.0, %v3837
        %v3839 = vpop.f32.mrb[0].mxu0
        %3840 = vmatprep.mubr.f32.mxu0 0.0
        %3841 = vmatmul.mubr.f32.gmra.mrb[0].mxu0 %v3551
        %v3842 = vpop.f32.mrb[0].mxu0
        %v3843 = vadd.f32 0.0, %v3842
        %v3844 = vpop.f32.mrb[0].mxu0
        %3845 = vmatprep.mubr.f32.mxu0 0.0
        %3846 = vmatmul.mubr.f32.gmra.mrb[0].mxu0 %v3554
        %v3847 = vpop.f32.mrb[0].mxu0
        %v3848 = vadd.f32 0.0, %v3847
        %v3849 = vpop.f32.mrb[0].mxu0
        %3850 = vmatprep.mubr.f32.mxu0 0.0
        %3851 = vmatmul.mubr.f32.gmra.mrb[0].mxu0 %v3557
        %v3852 = vpop.f32.mrb[0].mxu0
        %v3853 = vadd.f32 0.0, %v3852
        %v3854 = vpop.f32.mrb[0].mxu0
        %3855 = vmatprep.mubr.f32.mxu0 0.0
        %3856 = vmatmul.mubr.f32.gmra.mrb[0].mxu0 %v3560
        %v3857 = vpop.f32.mrb[0].mxu0
        %v3858 = vadd.f32 0.0, %v3857
        %v3859 = vpop.f32.mrb[0].mxu0
        %3860 = vmatprep.mubr.f32.mxu0 0.0
        %3861 = vmatmul.mubr.f32.gmra.mrb[0].mxu0 %v3563
        %v3862 = vpop.f32.mrb[0].mxu0
        %v3863 = vadd.f32 0.0, %v3862
        %v3864 = vpop.f32.mrb[0].mxu0
        %3865 = vmatprep.mubr.f32.mxu0 0.0
        %3866 = vmatmul.mubr.f32.gmra.mrb[0].mxu0 %v3566
        %v3867 = vpop.f32.mrb[0].mxu0
        %v3868 = vadd.f32 0.0, %v3867
        %v3869 = vpop.f32.mrb[0].mxu0
        %3870 = vmatprep.mubr.f32.mxu0 0.0
        %3871 = vmatmul.mubr.f32.gmra.mrb[0].mxu0 %v3569
        %v3872 = vpop.f32.mrb[0].mxu0
        %v3873 = vadd.f32 0.0, %v3872
        %v3874 = vpop.f32.mrb[0].mxu0
        %3875 = vdwg.mxu0
        %v3877 = vsel %vm3426, %v1710, 0
        %v3880 = vsel %vm3426, %v1711, 0
        %v3883 = vsel %vm3426, %v1712, 0
        %v3886 = vsel %vm3426, %v1713, 0
        %v3889 = vsel %vm3426, %v1714, 0
        %v3892 = vsel %vm3426, %v1715, 0
        %v3895 = vsel %vm3426, %v1716, 0
        %v3898 = vsel %vm3426, %v1717, 0
        %v3901 = vsel %vm3426, %v1718, 0
        %v3904 = vsel %vm3426, %v1719, 0
        %v3907 = vsel %vm3426, %v1720, 0
        %v3910 = vsel %vm3426, %v1721, 0
        %v3913 = vsel %vm3426, %v1722, 0
        %v3916 = vsel %vm3426, %v1723, 0
        %v3919 = vsel %vm3426, %v1724, 0
        %v3922 = vsel %vm3426, %v1725, 0
        %v3925 = vsel %vm3426, %v1726, 0
        %v3928 = vsel %vm3426, %v1727, 0
        %v3931 = vsel %vm3426, %v1728, 0
        %v3934 = vsel %vm3426, %v1729, 0
        %v3937 = vsel %vm3426, %v1730, 0
        %v3940 = vsel %vm3426, %v1731, 0
        %v3943 = vsel %vm3426, %v1732, 0
        %v3946 = vsel %vm3426, %v1733, 0
        %v3949 = vsel %vm3426, %v1734, 0
        %v3952 = vsel %vm3426, %v1735, 0
        %v3955 = vsel %vm3426, %v1736, 0
        %v3958 = vsel %vm3426, %v1737, 0
        %v3961 = vsel %vm3426, %v1738, 0
        %v3964 = vsel %vm3426, %v1739, 0
        %v3967 = vsel %vm3426, %v1740, 0
        %v3970 = vsel %vm3426, %v1741, 0
        %v3973 = vsel %vm3426, %v1742, 0
        %v3976 = vsel %vm3426, %v1743, 0
        %v3979 = vsel %vm3426, %v1744, 0
        %v3982 = vsel %vm3426, %v1745, 0
        %v3985 = vsel %vm3426, %v1746, 0
        %v3988 = vsel %vm3426, %v1747, 0
        %v3991 = vsel %vm3426, %v1748, 0
        %v3994 = vsel %vm3426, %v1749, 0
        %v3997 = vsel %vm3426, %v1750, 0
        %v4000 = vsel %vm3426, %v1751, 0
        %v4003 = vsel %vm3426, %v1752, 0
        %v4006 = vsel %vm3426, %v1753, 0
        %v4009 = vsel %vm3426, %v1754, 0
        %v4012 = vsel %vm3426, %v1755, 0
        %v4015 = vsel %vm3426, %v1756, 0
        %v4018 = vsel %vm3426, %v1757, 0
        %4020 = vmatprep.subr.mxu0 0.0
        %4021 = vmatpush1.msra.mxu0 %v780
        %4022 = vmatprep.subr.mxu0 0.0
        %4023 = vmatpush1.msra.mxu0 0.0
        %4024 = vmatprep.subr.mxu0 0.0
        %4025 = vmatpush1.msra.mxu0 0.0
        %4026 = vmatprep.subr.mxu0 0.0
        %4027 = vmatpush1.msra.mxu0 0.0
        %4028 = vmatprep.subr.mxu0 0.0
        %4029 = vmatpush1.msra.mxu0 0.0
        %4030 = vmatprep.subr.mxu0 0.0
        %4031 = vmatpush1.msra.mxu0 0.0
        %4032 = vmatprep.subr.mxu0 0.0
        %4033 = vmatpush1.msra.mxu0 0.0
        %4034 = vmatprep.subr.mxu0 0.0
        %4035 = vmatpush1.msra.mxu0 0.0
        %4036 = vmatprep.subr.mxu0 0.0
        %4037 = vmatpush1.msra.mxu0 0.0
        %4038 = vmatprep.subr.mxu0 0.0
        %4039 = vmatpush1.msra.mxu0 0.0
        %4040 = vmatprep.subr.mxu0 0.0
        %4041 = vmatpush1.msra.mxu0 0.0
        %4042 = vmatprep.subr.mxu0 0.0
        %4043 = vmatpush1.msra.mxu0 0.0
        %4044 = vmatprep.subr.mxu0 0.0
        %4045 = vmatpush1.msra.mxu0 0.0
        %4046 = vmatprep.subr.mxu0 0.0
        %4047 = vmatpush1.msra.mxu0 0.0
        %4048 = vmatprep.subr.mxu0 0.0
        %4049 = vmatpush1.msra.mxu0 0.0
        %4050 = vmatprep.subr.mxu0 0.0
        %4051 = vmatpush1.msra.mxu0 0.0
        %4052 = vmatprep.subr.mxu0 0.0
        %4053 = vmatpush1.msra.mxu0 0.0
        %4054 = vmatprep.subr.mxu0 0.0
        %4055 = vmatpush1.msra.mxu0 0.0
        %4056 = vmatprep.subr.mxu0 0.0
        %4057 = vmatpush1.msra.mxu0 0.0
        %4058 = vmatprep.subr.mxu0 0.0
        %4059 = vmatpush1.msra.mxu0 0.0
        %4060 = vmatprep.subr.mxu0 0.0
        %4061 = vmatpush1.msra.mxu0 0.0
        %4062 = vmatprep.subr.mxu0 0.0
        %4063 = vmatpush1.msra.mxu0 0.0
        %4064 = vmatprep.subr.mxu0 0.0
        %4065 = vmatpush1.msra.mxu0 0.0
        %4066 = vmatprep.subr.mxu0 0.0
        %4067 = vmatpush1.msra.mxu0 0.0
        %4068 = vmatprep.subr.mxu0 0.0
        %4069 = vmatpush1.msra.mxu0 0.0
        %4070 = vmatprep.subr.mxu0 0.0
        %4071 = vmatpush1.msra.mxu0 0.0
        %4072 = vmatprep.subr.mxu0 0.0
        %4073 = vmatpush1.msra.mxu0 0.0
        %4074 = vmatprep.subr.mxu0 0.0
        %4075 = vmatpush1.msra.mxu0 0.0
        %4076 = vmatprep.subr.mxu0 0.0
        %4077 = vmatpush1.msra.mxu0 0.0
        %4078 = vmatprep.subr.mxu0 0.0
        %4079 = vmatpush1.msra.mxu0 0.0
        %4080 = vmatprep.subr.mxu0 0.0
        %4081 = vmatpush1.msra.mxu0 0.0
        %4082 = vmatprep.subr.mxu0 0.0
        %4083 = vmatpush1.msra.mxu0 0.0
        %4084 = vmatprep.mubr.f32.mxu0 0.0
        %4085 = vmatmul.mubr.f32.gmra.mrb[0].mxu0 %v3877
        %v4086 = vpop.f32.mrb[0].mxu0
        %v4087 = vadd.f32 %v3638, %v4086
        %v4088 = vpop.f32.mrb[0].mxu0
        %4089 = vmatprep.mubr.f32.mxu0 0.0
        %4090 = vmatmul.mubr.f32.gmra.mrb[0].mxu0 %v3880
        %v4091 = vpop.f32.mrb[0].mxu0
        %v4092 = vadd.f32 %v3643, %v4091
        %v4093 = vpop.f32.mrb[0].mxu0
        %4094 = vmatprep.mubr.f32.mxu0 0.0
        %4095 = vmatmul.mubr.f32.gmra.mrb[0].mxu0 %v3883
        %v4096 = vpop.f32.mrb[0].mxu0
        %v4097 = vadd.f32 %v3648, %v4096
        %v4098 = vpop.f32.mrb[0].mxu0
        %4099 = vmatprep.mubr.f32.mxu0 0.0
        %4100 = vmatmul.mubr.f32.gmra.mrb[0].mxu0 %v3886
        %v4101 = vpop.f32.mrb[0].mxu0
        %v4102 = vadd.f32 %v3653, %v4101
        %v4103 = vpop.f32.mrb[0].mxu0
        %4104 = vmatprep.mubr.f32.mxu0 0.0
        %4105 = vmatmul.mubr.f32.gmra.mrb[0].mxu0 %v3889
        %v4106 = vpop.f32.mrb[0].mxu0
        %v4107 = vadd.f32 %v3658, %v4106
        %v4108 = vpop.f32.mrb[0].mxu0
        %4109 = vmatprep.mubr.f32.mxu0 0.0
        %4110 = vmatmul.mubr.f32.gmra.mrb[0].mxu0 %v3892
        %v4111 = vpop.f32.mrb[0].mxu0
        %v4112 = vadd.f32 %v3663, %v4111
        %v4113 = vpop.f32.mrb[0].mxu0
        %4114 = vmatprep.mubr.f32.mxu0 0.0
        %4115 = vmatmul.mubr.f32.gmra.mrb[0].mxu0 %v3895
        %v4116 = vpop.f32.mrb[0].mxu0
        %v4117 = vadd.f32 %v3668, %v4116
        %v4118 = vpop.f32.mrb[0].mxu0
        %4119 = vmatprep.mubr.f32.mxu0 0.0
        %4120 = vmatmul.mubr.f32.gmra.mrb[0].mxu0 %v3898
        %v4121 = vpop.f32.mrb[0].mxu0
        %v4122 = vadd.f32 %v3673, %v4121
        %v4123 = vpop.f32.mrb[0].mxu0
        %4124 = vmatprep.mubr.f32.mxu0 0.0
        %4125 = vmatmul.mubr.f32.gmra.mrb[0].mxu0 %v3901
        %v4126 = vpop.f32.mrb[0].mxu0
        %v4127 = vadd.f32 %v3678, %v4126
        %v4128 = vpop.f32.mrb[0].mxu0
        %4129 = vmatprep.mubr.f32.mxu0 0.0
        %4130 = vmatmul.mubr.f32.gmra.mrb[0].mxu0 %v3904
        %v4131 = vpop.f32.mrb[0].mxu0
        %v4132 = vadd.f32 %v3683, %v4131
        %v4133 = vpop.f32.mrb[0].mxu0
        %4134 = vmatprep.mubr.f32.mxu0 0.0
        %4135 = vmatmul.mubr.f32.gmra.mrb[0].mxu0 %v3907
        %v4136 = vpop.f32.mrb[0].mxu0
        %v4137 = vadd.f32 %v3688, %v4136
        %v4138 = vpop.f32.mrb[0].mxu0
        %4139 = vmatprep.mubr.f32.mxu0 0.0
        %4140 = vmatmul.mubr.f32.gmra.mrb[0].mxu0 %v3910
        %v4141 = vpop.f32.mrb[0].mxu0
        %v4142 = vadd.f32 %v3693, %v4141
        %v4143 = vpop.f32.mrb[0].mxu0
        %4144 = vmatprep.mubr.f32.mxu0 0.0
        %4145 = vmatmul.mubr.f32.gmra.mrb[0].mxu0 %v3913
        %v4146 = vpop.f32.mrb[0].mxu0
        %v4147 = vadd.f32 %v3698, %v4146
        %v4148 = vpop.f32.mrb[0].mxu0
        %4149 = vmatprep.mubr.f32.mxu0 0.0
        %4150 = vmatmul.mubr.f32.gmra.mrb[0].mxu0 %v3916
        %v4151 = vpop.f32.mrb[0].mxu0
        %v4152 = vadd.f32 %v3703, %v4151
        %v4153 = vpop.f32.mrb[0].mxu0
        %4154 = vmatprep.mubr.f32.mxu0 0.0
        %4155 = vmatmul.mubr.f32.gmra.mrb[0].mxu0 %v3919
        %v4156 = vpop.f32.mrb[0].mxu0
        %v4157 = vadd.f32 %v3708, %v4156
        %v4158 = vpop.f32.mrb[0].mxu0
        %4159 = vmatprep.mubr.f32.mxu0 0.0
        %4160 = vmatmul.mubr.f32.gmra.mrb[0].mxu0 %v3922
        %v4161 = vpop.f32.mrb[0].mxu0
        %v4162 = vadd.f32 %v3713, %v4161
        %v4163 = vpop.f32.mrb[0].mxu0
        %4164 = vmatprep.mubr.f32.mxu0 0.0
        %4165 = vmatmul.mubr.f32.gmra.mrb[0].mxu0 %v3925
        %v4166 = vpop.f32.mrb[0].mxu0
        %v4167 = vadd.f32 %v3718, %v4166
        %v4168 = vpop.f32.mrb[0].mxu0
        %4169 = vmatprep.mubr.f32.mxu0 0.0
        %4170 = vmatmul.mubr.f32.gmra.mrb[0].mxu0 %v3928
        %v4171 = vpop.f32.mrb[0].mxu0
        %v4172 = vadd.f32 %v3723, %v4171
        %v4173 = vpop.f32.mrb[0].mxu0
        %4174 = vmatprep.mubr.f32.mxu0 0.0
        %4175 = vmatmul.mubr.f32.gmra.mrb[0].mxu0 %v3931
        %v4176 = vpop.f32.mrb[0].mxu0
        %v4177 = vadd.f32 %v3728, %v4176
        %v4178 = vpop.f32.mrb[0].mxu0
        %4179 = vmatprep.mubr.f32.mxu0 0.0
        %4180 = vmatmul.mubr.f32.gmra.mrb[0].mxu0 %v3934
        %v4181 = vpop.f32.mrb[0].mxu0
        %v4182 = vadd.f32 %v3733, %v4181
        %v4183 = vpop.f32.mrb[0].mxu0
        %4184 = vmatprep.mubr.f32.mxu0 0.0
        %4185 = vmatmul.mubr.f32.gmra.mrb[0].mxu0 %v3937
        %v4186 = vpop.f32.mrb[0].mxu0
        %v4187 = vadd.f32 %v3738, %v4186
        %v4188 = vpop.f32.mrb[0].mxu0
        %4189 = vmatprep.mubr.f32.mxu0 0.0
        %4190 = vmatmul.mubr.f32.gmra.mrb[0].mxu0 %v3940
        %v4191 = vpop.f32.mrb[0].mxu0
        %v4192 = vadd.f32 %v3743, %v4191
        %v4193 = vpop.f32.mrb[0].mxu0
        %4194 = vmatprep.mubr.f32.mxu0 0.0
        %4195 = vmatmul.mubr.f32.gmra.mrb[0].mxu0 %v3943
        %v4196 = vpop.f32.mrb[0].mxu0
        %v4197 = vadd.f32 %v3748, %v4196
        %v4198 = vpop.f32.mrb[0].mxu0
        %4199 = vmatprep.mubr.f32.mxu0 0.0
        %4200 = vmatmul.mubr.f32.gmra.mrb[0].mxu0 %v3946
        %v4201 = vpop.f32.mrb[0].mxu0
        %v4202 = vadd.f32 %v3753, %v4201
        %v4203 = vpop.f32.mrb[0].mxu0
        %4204 = vmatprep.mubr.f32.mxu0 0.0
        %4205 = vmatmul.mubr.f32.gmra.mrb[0].mxu0 %v3949
        %v4206 = vpop.f32.mrb[0].mxu0
        %v4207 = vadd.f32 %v3758, %v4206
        %v4208 = vpop.f32.mrb[0].mxu0
        %4209 = vmatprep.mubr.f32.mxu0 0.0
        %4210 = vmatmul.mubr.f32.gmra.mrb[0].mxu0 %v3952
        %v4211 = vpop.f32.mrb[0].mxu0
        %v4212 = vadd.f32 %v3763, %v4211
        %v4213 = vpop.f32.mrb[0].mxu0
        %4214 = vmatprep.mubr.f32.mxu0 0.0
        %4215 = vmatmul.mubr.f32.gmra.mrb[0].mxu0 %v3955
        %v4216 = vpop.f32.mrb[0].mxu0
        %v4217 = vadd.f32 %v3768, %v4216
        %v4218 = vpop.f32.mrb[0].mxu0
        %4219 = vmatprep.mubr.f32.mxu0 0.0
        %4220 = vmatmul.mubr.f32.gmra.mrb[0].mxu0 %v3958
        %v4221 = vpop.f32.mrb[0].mxu0
        %v4222 = vadd.f32 %v3773, %v4221
        %v4223 = vpop.f32.mrb[0].mxu0
        %4224 = vmatprep.mubr.f32.mxu0 0.0
        %4225 = vmatmul.mubr.f32.gmra.mrb[0].mxu0 %v3961
        %v4226 = vpop.f32.mrb[0].mxu0
        %v4227 = vadd.f32 %v3778, %v4226
        %v4228 = vpop.f32.mrb[0].mxu0
        %4229 = vmatprep.mubr.f32.mxu0 0.0
        %4230 = vmatmul.mubr.f32.gmra.mrb[0].mxu0 %v3964
        %v4231 = vpop.f32.mrb[0].mxu0
        %v4232 = vadd.f32 %v3783, %v4231
        %v4233 = vpop.f32.mrb[0].mxu0
        %4234 = vmatprep.mubr.f32.mxu0 0.0
        %4235 = vmatmul.mubr.f32.gmra.mrb[0].mxu0 %v3967
        %v4236 = vpop.f32.mrb[0].mxu0
        %v4237 = vadd.f32 %v3788, %v4236
        %v4238 = vpop.f32.mrb[0].mxu0
        %4239 = vmatprep.mubr.f32.mxu0 0.0
        %4240 = vmatmul.mubr.f32.gmra.mrb[0].mxu0 %v3970
        %v4241 = vpop.f32.mrb[0].mxu0
        %v4242 = vadd.f32 %v3793, %v4241
        %v4243 = vpop.f32.mrb[0].mxu0
        %4244 = vmatprep.mubr.f32.mxu0 0.0
        %4245 = vmatmul.mubr.f32.gmra.mrb[0].mxu0 %v3973
        %v4246 = vpop.f32.mrb[0].mxu0
        %v4247 = vadd.f32 %v3798, %v4246
        %v4248 = vpop.f32.mrb[0].mxu0
        %4249 = vmatprep.mubr.f32.mxu0 0.0
        %4250 = vmatmul.mubr.f32.gmra.mrb[0].mxu0 %v3976
        %v4251 = vpop.f32.mrb[0].mxu0
        %v4252 = vadd.f32 %v3803, %v4251
        %v4253 = vpop.f32.mrb[0].mxu0
        %4254 = vmatprep.mubr.f32.mxu0 0.0
        %4255 = vmatmul.mubr.f32.gmra.mrb[0].mxu0 %v3979
        %v4256 = vpop.f32.mrb[0].mxu0
        %v4257 = vadd.f32 %v3808, %v4256
        %v4258 = vpop.f32.mrb[0].mxu0
        %4259 = vmatprep.mubr.f32.mxu0 0.0
        %4260 = vmatmul.mubr.f32.gmra.mrb[0].mxu0 %v3982
        %v4261 = vpop.f32.mrb[0].mxu0
        %v4262 = vadd.f32 %v3813, %v4261
        %v4263 = vpop.f32.mrb[0].mxu0
        %4264 = vmatprep.mubr.f32.mxu0 0.0
        %4265 = vmatmul.mubr.f32.gmra.mrb[0].mxu0 %v3985
        %v4266 = vpop.f32.mrb[0].mxu0
        %v4267 = vadd.f32 %v3818, %v4266
        %v4268 = vpop.f32.mrb[0].mxu0
        %4269 = vmatprep.mubr.f32.mxu0 0.0
        %4270 = vmatmul.mubr.f32.gmra.mrb[0].mxu0 %v3988
        %v4271 = vpop.f32.mrb[0].mxu0
        %v4272 = vadd.f32 %v3823, %v4271
        %v4273 = vpop.f32.mrb[0].mxu0
        %4274 = vmatprep.mubr.f32.mxu0 0.0
        %4275 = vmatmul.mubr.f32.gmra.mrb[0].mxu0 %v3991
        %v4276 = vpop.f32.mrb[0].mxu0
        %v4277 = vadd.f32 %v3828, %v4276
        %v4278 = vpop.f32.mrb[0].mxu0
        %4279 = vmatprep.mubr.f32.mxu0 0.0
        %4280 = vmatmul.mubr.f32.gmra.mrb[0].mxu0 %v3994
        %v4281 = vpop.f32.mrb[0].mxu0
        %v4282 = vadd.f32 %v3833, %v4281
        %v4283 = vpop.f32.mrb[0].mxu0
        %4284 = vmatprep.mubr.f32.mxu0 0.0
        %4285 = vmatmul.mubr.f32.gmra.mrb[0].mxu0 %v3997
        %v4286 = vpop.f32.mrb[0].mxu0
        %v4287 = vadd.f32 %v3838, %v4286
        %v4288 = vpop.f32.mrb[0].mxu0
        %4289 = vmatprep.mubr.f32.mxu0 0.0
        %4290 = vmatmul.mubr.f32.gmra.mrb[0].mxu0 %v4000
        %v4291 = vpop.f32.mrb[0].mxu0
        %v4292 = vadd.f32 %v3843, %v4291
        %v4293 = vpop.f32.mrb[0].mxu0
        %4294 = vmatprep.mubr.f32.mxu0 0.0
        %4295 = vmatmul.mubr.f32.gmra.mrb[0].mxu0 %v4003
        %v4296 = vpop.f32.mrb[0].mxu0
        %v4297 = vadd.f32 %v3848, %v4296
        %v4298 = vpop.f32.mrb[0].mxu0
        %4299 = vmatprep.mubr.f32.mxu0 0.0
        %4300 = vmatmul.mubr.f32.gmra.mrb[0].mxu0 %v4006
        %v4301 = vpop.f32.mrb[0].mxu0
        %v4302 = vadd.f32 %v3853, %v4301
        %v4303 = vpop.f32.mrb[0].mxu0
        %4304 = vmatprep.mubr.f32.mxu0 0.0
        %4305 = vmatmul.mubr.f32.gmra.mrb[0].mxu0 %v4009
        %v4306 = vpop.f32.mrb[0].mxu0
        %v4307 = vadd.f32 %v3858, %v4306
        %v4308 = vpop.f32.mrb[0].mxu0
        %4309 = vmatprep.mubr.f32.mxu0 0.0
        %4310 = vmatmul.mubr.f32.gmra.mrb[0].mxu0 %v4012
        %v4311 = vpop.f32.mrb[0].mxu0
        %v4312 = vadd.f32 %v3863, %v4311
        %v4313 = vpop.f32.mrb[0].mxu0
        %4314 = vmatprep.mubr.f32.mxu0 0.0
        %4315 = vmatmul.mubr.f32.gmra.mrb[0].mxu0 %v4015
        %v4316 = vpop.f32.mrb[0].mxu0
        %v4317 = vadd.f32 %v3868, %v4316
        %v4318 = vpop.f32.mrb[0].mxu0
        %4319 = vmatprep.mubr.f32.mxu0 0.0
        %4320 = vmatmul.mubr.f32.gmra.mrb[0].mxu0 %v4018
        %v4321 = vpop.f32.mrb[0].mxu0
        %v4322 = vadd.f32 %v3873, %v4321
        %v4323 = vpop.f32.mrb[0].mxu0
        %4324 = vdwg.mxu0
        %v4326 = vsel %vm3426, %v3378, 0
        %v4329 = vsel %vm3426, %v3379, 0
        %v4332 = vsel %vm3426, %v3380, 0
        %v4335 = vsel %vm3426, %v3381, 0
        %v4338 = vsel %vm3426, %v3382, 0
        %v4341 = vsel %vm3426, %v3383, 0
        %v4344 = vsel %vm3426, %v3384, 0
        %v4347 = vsel %vm3426, %v3385, 0
        %v4350 = vsel %vm3426, %v3386, 0
        %v4353 = vsel %vm3426, %v3387, 0
        %v4356 = vsel %vm3426, %v3388, 0
        %v4359 = vsel %vm3426, %v3389, 0
        %v4362 = vsel %vm3426, %v3390, 0
        %v4365 = vsel %vm3426, %v3391, 0
        %v4368 = vsel %vm3426, %v3392, 0
        %v4371 = vsel %vm3426, %v3393, 0
        %v4374 = vsel %vm3426, %v3394, 0
        %v4377 = vsel %vm3426, %v3395, 0
        %v4380 = vsel %vm3426, %v3396, 0
        %v4383 = vsel %vm3426, %v3397, 0
        %v4386 = vsel %vm3426, %v3398, 0
        %v4389 = vsel %vm3426, %v3399, 0
        %v4392 = vsel %vm3426, %v3400, 0
        %v4395 = vsel %vm3426, %v3401, 0
        %v4398 = vsel %vm3426, %v3402, 0
        %v4401 = vsel %vm3426, %v3403, 0
        %v4404 = vsel %vm3426, %v3404, 0
        %v4407 = vsel %vm3426, %v3405, 0
        %v4410 = vsel %vm3426, %v3406, 0
        %v4413 = vsel %vm3426, %v3407, 0
        %v4416 = vsel %vm3426, %v3408, 0
        %v4419 = vsel %vm3426, %v3409, 0
        %v4422 = vsel %vm3426, %v3410, 0
        %v4425 = vsel %vm3426, %v3411, 0
        %v4428 = vsel %vm3426, %v3412, 0
        %v4431 = vsel %vm3426, %v3413, 0
        %v4434 = vsel %vm3426, %v3414, 0
        %v4437 = vsel %vm3426, %v3415, 0
        %v4440 = vsel %vm3426, %v3416, 0
        %v4443 = vsel %vm3426, %v3417, 0
        %v4446 = vsel %vm3426, %v3418, 0
        %v4449 = vsel %vm3426, %v3419, 0
        %v4452 = vsel %vm3426, %v3420, 0
        %v4455 = vsel %vm3426, %v3421, 0
        %v4458 = vsel %vm3426, %v3422, 0
        %v4461 = vsel %vm3426, %v3423, 0
        %v4464 = vsel %vm3426, %v3424, 0
        %v4467 = vsel %vm3426, %v3425, 0
        %4469 = vmatprep.subr.mxu0 0.0
        %4470 = vmatpush1.msra.mxu0 %v782
        %4471 = vmatprep.subr.mxu0 0.0
        %4472 = vmatpush1.msra.mxu0 0.0
        %4473 = vmatprep.subr.mxu0 0.0
        %4474 = vmatpush1.msra.mxu0 0.0
        %4475 = vmatprep.subr.mxu0 0.0
        %4476 = vmatpush1.msra.mxu0 0.0
        %4477 = vmatprep.subr.mxu0 0.0
        %4478 = vmatpush1.msra.mxu0 0.0
        %4479 = vmatprep.subr.mxu0 0.0
        %4480 = vmatpush1.msra.mxu0 0.0
        %4481 = vmatprep.subr.mxu0 0.0
        %4482 = vmatpush1.msra.mxu0 0.0
        %4483 = vmatprep.subr.mxu0 0.0
        %4484 = vmatpush1.msra.mxu0 0.0
        %4485 = vmatprep.subr.mxu0 0.0
        %4486 = vmatpush1.msra.mxu0 0.0
        %4487 = vmatprep.subr.mxu0 0.0
        %4488 = vmatpush1.msra.mxu0 0.0
        %4489 = vmatprep.subr.mxu0 0.0
        %4490 = vmatpush1.msra.mxu0 0.0
        %4491 = vmatprep.subr.mxu0 0.0
        %4492 = vmatpush1.msra.mxu0 0.0
        %4493 = vmatprep.subr.mxu0 0.0
        %4494 = vmatpush1.msra.mxu0 0.0
        %4495 = vmatprep.subr.mxu0 0.0
        %4496 = vmatpush1.msra.mxu0 0.0
        %4497 = vmatprep.subr.mxu0 0.0
        %4498 = vmatpush1.msra.mxu0 0.0
        %4499 = vmatprep.subr.mxu0 0.0
        %4500 = vmatpush1.msra.mxu0 0.0
        %4501 = vmatprep.subr.mxu0 0.0
        %4502 = vmatpush1.msra.mxu0 0.0
        %4503 = vmatprep.subr.mxu0 0.0
        %4504 = vmatpush1.msra.mxu0 0.0
        %4505 = vmatprep.subr.mxu0 0.0
        %4506 = vmatpush1.msra.mxu0 0.0
        %4507 = vmatprep.subr.mxu0 0.0
        %4508 = vmatpush1.msra.mxu0 0.0
        %4509 = vmatprep.subr.mxu0 0.0
        %4510 = vmatpush1.msra.mxu0 0.0
        %4511 = vmatprep.subr.mxu0 0.0
        %4512 = vmatpush1.msra.mxu0 0.0
        %4513 = vmatprep.subr.mxu0 0.0
        %4514 = vmatpush1.msra.mxu0 0.0
        %4515 = vmatprep.subr.mxu0 0.0
        %4516 = vmatpush1.msra.mxu0 0.0
        %4517 = vmatprep.subr.mxu0 0.0
        %4518 = vmatpush1.msra.mxu0 0.0
        %4519 = vmatprep.subr.mxu0 0.0
        %4520 = vmatpush1.msra.mxu0 0.0
        %4521 = vmatprep.subr.mxu0 0.0
        %4522 = vmatpush1.msra.mxu0 0.0
        %4523 = vmatprep.subr.mxu0 0.0
        %4524 = vmatpush1.msra.mxu0 0.0
        %4525 = vmatprep.subr.mxu0 0.0
        %4526 = vmatpush1.msra.mxu0 0.0
        %4527 = vmatprep.subr.mxu0 0.0
        %4528 = vmatpush1.msra.mxu0 0.0
        %4529 = vmatprep.subr.mxu0 0.0
        %4530 = vmatpush1.msra.mxu0 0.0
        %4531 = vmatprep.subr.mxu0 0.0
        %4532 = vmatpush1.msra.mxu0 0.0
        %4533 = vmatprep.mubr.f32.mxu0 0.0
        %4534 = vmatmul.mubr.f32.gmra.mrb[0].mxu0 %v4326
        %v4535 = vpop.f32.mrb[0].mxu0
        %v4536 = vadd.f32 0.0, %v4535
        %v4537 = vpop.f32.mrb[0].mxu0
        %4538 = vmatprep.mubr.f32.mxu0 0.0
        %4539 = vmatmul.mubr.f32.gmra.mrb[0].mxu0 %v4329
        %v4540 = vpop.f32.mrb[0].mxu0
        %v4541 = vadd.f32 0.0, %v4540
        %v4542 = vpop.f32.mrb[0].mxu0
        %4543 = vmatprep.mubr.f32.mxu0 0.0
        %4544 = vmatmul.mubr.f32.gmra.mrb[0].mxu0 %v4332
        %v4545 = vpop.f32.mrb[0].mxu0
        %v4546 = vadd.f32 0.0, %v4545
        %v4547 = vpop.f32.mrb[0].mxu0
        %4548 = vmatprep.mubr.f32.mxu0 0.0
        %4549 = vmatmul.mubr.f32.gmra.mrb[0].mxu0 %v4335
        %v4550 = vpop.f32.mrb[0].mxu0
        %v4551 = vadd.f32 0.0, %v4550
        %v4552 = vpop.f32.mrb[0].mxu0
        %4553 = vmatprep.mubr.f32.mxu0 0.0
        %4554 = vmatmul.mubr.f32.gmra.mrb[0].mxu0 %v4338
        %v4555 = vpop.f32.mrb[0].mxu0
        %v4556 = vadd.f32 0.0, %v4555
        %v4557 = vpop.f32.mrb[0].mxu0
        %4558 = vmatprep.mubr.f32.mxu0 0.0
        %4559 = vmatmul.mubr.f32.gmra.mrb[0].mxu0 %v4341
        %v4560 = vpop.f32.mrb[0].mxu0
        %v4561 = vadd.f32 0.0, %v4560
        %v4562 = vpop.f32.mrb[0].mxu0
        %4563 = vmatprep.mubr.f32.mxu0 0.0
        %4564 = vmatmul.mubr.f32.gmra.mrb[0].mxu0 %v4344
        %v4565 = vpop.f32.mrb[0].mxu0
        %v4566 = vadd.f32 0.0, %v4565
        %v4567 = vpop.f32.mrb[0].mxu0
        %4568 = vmatprep.mubr.f32.mxu0 0.0
        %4569 = vmatmul.mubr.f32.gmra.mrb[0].mxu0 %v4347
        %v4570 = vpop.f32.mrb[0].mxu0
        %v4571 = vadd.f32 0.0, %v4570
        %v4572 = vpop.f32.mrb[0].mxu0
        %4573 = vmatprep.mubr.f32.mxu0 0.0
        %4574 = vmatmul.mubr.f32.gmra.mrb[0].mxu0 %v4350
        %v4575 = vpop.f32.mrb[0].mxu0
        %v4576 = vadd.f32 0.0, %v4575
        %v4577 = vpop.f32.mrb[0].mxu0
        %4578 = vmatprep.mubr.f32.mxu0 0.0
        %4579 = vmatmul.mubr.f32.gmra.mrb[0].mxu0 %v4353
        %v4580 = vpop.f32.mrb[0].mxu0
        %v4581 = vadd.f32 0.0, %v4580
        %v4582 = vpop.f32.mrb[0].mxu0
        %4583 = vmatprep.mubr.f32.mxu0 0.0
        %4584 = vmatmul.mubr.f32.gmra.mrb[0].mxu0 %v4356
        %v4585 = vpop.f32.mrb[0].mxu0
        %v4586 = vadd.f32 0.0, %v4585
        %v4587 = vpop.f32.mrb[0].mxu0
        %4588 = vmatprep.mubr.f32.mxu0 0.0
        %4589 = vmatmul.mubr.f32.gmra.mrb[0].mxu0 %v4359
        %v4590 = vpop.f32.mrb[0].mxu0
        %v4591 = vadd.f32 0.0, %v4590
        %v4592 = vpop.f32.mrb[0].mxu0
        %4593 = vmatprep.mubr.f32.mxu0 0.0
        %4594 = vmatmul.mubr.f32.gmra.mrb[0].mxu0 %v4362
        %v4595 = vpop.f32.mrb[0].mxu0
        %v4596 = vadd.f32 0.0, %v4595
        %v4597 = vpop.f32.mrb[0].mxu0
        %4598 = vmatprep.mubr.f32.mxu0 0.0
        %4599 = vmatmul.mubr.f32.gmra.mrb[0].mxu0 %v4365
        %v4600 = vpop.f32.mrb[0].mxu0
        %v4601 = vadd.f32 0.0, %v4600
        %v4602 = vpop.f32.mrb[0].mxu0
        %4603 = vmatprep.mubr.f32.mxu0 0.0
        %4604 = vmatmul.mubr.f32.gmra.mrb[0].mxu0 %v4368
        %v4605 = vpop.f32.mrb[0].mxu0
        %v4606 = vadd.f32 0.0, %v4605
        %v4607 = vpop.f32.mrb[0].mxu0
        %4608 = vmatprep.mubr.f32.mxu0 0.0
        %4609 = vmatmul.mubr.f32.gmra.mrb[0].mxu0 %v4371
        %v4610 = vpop.f32.mrb[0].mxu0
        %v4611 = vadd.f32 0.0, %v4610
        %v4612 = vpop.f32.mrb[0].mxu0
        %4613 = vmatprep.mubr.f32.mxu0 0.0
        %4614 = vmatmul.mubr.f32.gmra.mrb[0].mxu0 %v4374
        %v4615 = vpop.f32.mrb[0].mxu0
        %v4616 = vadd.f32 0.0, %v4615
        %v4617 = vpop.f32.mrb[0].mxu0
        %4618 = vmatprep.mubr.f32.mxu0 0.0
        %4619 = vmatmul.mubr.f32.gmra.mrb[0].mxu0 %v4377
        %v4620 = vpop.f32.mrb[0].mxu0
        %v4621 = vadd.f32 0.0, %v4620
        %v4622 = vpop.f32.mrb[0].mxu0
        %4623 = vmatprep.mubr.f32.mxu0 0.0
        %4624 = vmatmul.mubr.f32.gmra.mrb[0].mxu0 %v4380
        %v4625 = vpop.f32.mrb[0].mxu0
        %v4626 = vadd.f32 0.0, %v4625
        %v4627 = vpop.f32.mrb[0].mxu0
        %4628 = vmatprep.mubr.f32.mxu0 0.0
        %4629 = vmatmul.mubr.f32.gmra.mrb[0].mxu0 %v4383
        %v4630 = vpop.f32.mrb[0].mxu0
        %v4631 = vadd.f32 0.0, %v4630
        %v4632 = vpop.f32.mrb[0].mxu0
        %4633 = vmatprep.mubr.f32.mxu0 0.0
        %4634 = vmatmul.mubr.f32.gmra.mrb[0].mxu0 %v4386
        %v4635 = vpop.f32.mrb[0].mxu0
        %v4636 = vadd.f32 0.0, %v4635
        %v4637 = vpop.f32.mrb[0].mxu0
        %4638 = vmatprep.mubr.f32.mxu0 0.0
        %4639 = vmatmul.mubr.f32.gmra.mrb[0].mxu0 %v4389
        %v4640 = vpop.f32.mrb[0].mxu0
        %v4641 = vadd.f32 0.0, %v4640
        %v4642 = vpop.f32.mrb[0].mxu0
        %4643 = vmatprep.mubr.f32.mxu0 0.0
        %4644 = vmatmul.mubr.f32.gmra.mrb[0].mxu0 %v4392
        %v4645 = vpop.f32.mrb[0].mxu0
        %v4646 = vadd.f32 0.0, %v4645
        %v4647 = vpop.f32.mrb[0].mxu0
        %4648 = vmatprep.mubr.f32.mxu0 0.0
        %4649 = vmatmul.mubr.f32.gmra.mrb[0].mxu0 %v4395
        %v4650 = vpop.f32.mrb[0].mxu0
        %v4651 = vadd.f32 0.0, %v4650
        %v4652 = vpop.f32.mrb[0].mxu0
        %4653 = vmatprep.mubr.f32.mxu0 0.0
        %4654 = vmatmul.mubr.f32.gmra.mrb[0].mxu0 %v4398
        %v4655 = vpop.f32.mrb[0].mxu0
        %v4656 = vadd.f32 0.0, %v4655
        %v4657 = vpop.f32.mrb[0].mxu0
        %4658 = vmatprep.mubr.f32.mxu0 0.0
        %4659 = vmatmul.mubr.f32.gmra.mrb[0].mxu0 %v4401
        %v4660 = vpop.f32.mrb[0].mxu0
        %v4661 = vadd.f32 0.0, %v4660
        %v4662 = vpop.f32.mrb[0].mxu0
        %4663 = vmatprep.mubr.f32.mxu0 0.0
        %4664 = vmatmul.mubr.f32.gmra.mrb[0].mxu0 %v4404
        %v4665 = vpop.f32.mrb[0].mxu0
        %v4666 = vadd.f32 0.0, %v4665
        %v4667 = vpop.f32.mrb[0].mxu0
        %4668 = vmatprep.mubr.f32.mxu0 0.0
        %4669 = vmatmul.mubr.f32.gmra.mrb[0].mxu0 %v4407
        %v4670 = vpop.f32.mrb[0].mxu0
        %v4671 = vadd.f32 0.0, %v4670
        %v4672 = vpop.f32.mrb[0].mxu0
        %4673 = vmatprep.mubr.f32.mxu0 0.0
        %4674 = vmatmul.mubr.f32.gmra.mrb[0].mxu0 %v4410
        %v4675 = vpop.f32.mrb[0].mxu0
        %v4676 = vadd.f32 0.0, %v4675
        %v4677 = vpop.f32.mrb[0].mxu0
        %4678 = vmatprep.mubr.f32.mxu0 0.0
        %4679 = vmatmul.mubr.f32.gmra.mrb[0].mxu0 %v4413
        %v4680 = vpop.f32.mrb[0].mxu0
        %v4681 = vadd.f32 0.0, %v4680
        %v4682 = vpop.f32.mrb[0].mxu0
        %4683 = vmatprep.mubr.f32.mxu0 0.0
        %4684 = vmatmul.mubr.f32.gmra.mrb[0].mxu0 %v4416
        %v4685 = vpop.f32.mrb[0].mxu0
        %v4686 = vadd.f32 0.0, %v4685
        %v4687 = vpop.f32.mrb[0].mxu0
        %4688 = vmatprep.mubr.f32.mxu0 0.0
        %4689 = vmatmul.mubr.f32.gmra.mrb[0].mxu0 %v4419
        %v4690 = vpop.f32.mrb[0].mxu0
        %v4691 = vadd.f32 0.0, %v4690
        %v4692 = vpop.f32.mrb[0].mxu0
        %4693 = vmatprep.mubr.f32.mxu0 0.0
        %4694 = vmatmul.mubr.f32.gmra.mrb[0].mxu0 %v4422
        %v4695 = vpop.f32.mrb[0].mxu0
        %v4696 = vadd.f32 0.0, %v4695
        %v4697 = vpop.f32.mrb[0].mxu0
        %4698 = vmatprep.mubr.f32.mxu0 0.0
        %4699 = vmatmul.mubr.f32.gmra.mrb[0].mxu0 %v4425
        %v4700 = vpop.f32.mrb[0].mxu0
        %v4701 = vadd.f32 0.0, %v4700
        %v4702 = vpop.f32.mrb[0].mxu0
        %4703 = vmatprep.mubr.f32.mxu0 0.0
        %4704 = vmatmul.mubr.f32.gmra.mrb[0].mxu0 %v4428
        %v4705 = vpop.f32.mrb[0].mxu0
        %v4706 = vadd.f32 0.0, %v4705
        %v4707 = vpop.f32.mrb[0].mxu0
        %4708 = vmatprep.mubr.f32.mxu0 0.0
        %4709 = vmatmul.mubr.f32.gmra.mrb[0].mxu0 %v4431
        %v4710 = vpop.f32.mrb[0].mxu0
        %v4711 = vadd.f32 0.0, %v4710
        %v4712 = vpop.f32.mrb[0].mxu0
        %4713 = vmatprep.mubr.f32.mxu0 0.0
        %4714 = vmatmul.mubr.f32.gmra.mrb[0].mxu0 %v4434
        %v4715 = vpop.f32.mrb[0].mxu0
        %v4716 = vadd.f32 0.0, %v4715
        %v4717 = vpop.f32.mrb[0].mxu0
        %4718 = vmatprep.mubr.f32.mxu0 0.0
        %4719 = vmatmul.mubr.f32.gmra.mrb[0].mxu0 %v4437
        %v4720 = vpop.f32.mrb[0].mxu0
        %v4721 = vadd.f32 0.0, %v4720
        %v4722 = vpop.f32.mrb[0].mxu0
        %4723 = vmatprep.mubr.f32.mxu0 0.0
        %4724 = vmatmul.mubr.f32.gmra.mrb[0].mxu0 %v4440
        %v4725 = vpop.f32.mrb[0].mxu0
        %v4726 = vadd.f32 0.0, %v4725
        %v4727 = vpop.f32.mrb[0].mxu0
        %4728 = vmatprep.mubr.f32.mxu0 0.0
        %4729 = vmatmul.mubr.f32.gmra.mrb[0].mxu0 %v4443
        %v4730 = vpop.f32.mrb[0].mxu0
        %v4731 = vadd.f32 0.0, %v4730
        %v4732 = vpop.f32.mrb[0].mxu0
        %4733 = vmatprep.mubr.f32.mxu0 0.0
        %4734 = vmatmul.mubr.f32.gmra.mrb[0].mxu0 %v4446
        %v4735 = vpop.f32.mrb[0].mxu0
        %v4736 = vadd.f32 0.0, %v4735
        %v4737 = vpop.f32.mrb[0].mxu0
        %4738 = vmatprep.mubr.f32.mxu0 0.0
        %4739 = vmatmul.mubr.f32.gmra.mrb[0].mxu0 %v4449
        %v4740 = vpop.f32.mrb[0].mxu0
        %v4741 = vadd.f32 0.0, %v4740
        %v4742 = vpop.f32.mrb[0].mxu0
        %4743 = vmatprep.mubr.f32.mxu0 0.0
        %4744 = vmatmul.mubr.f32.gmra.mrb[0].mxu0 %v4452
        %v4745 = vpop.f32.mrb[0].mxu0
        %v4746 = vadd.f32 0.0, %v4745
        %v4747 = vpop.f32.mrb[0].mxu0
        %4748 = vmatprep.mubr.f32.mxu0 0.0
        %4749 = vmatmul.mubr.f32.gmra.mrb[0].mxu0 %v4455
        %v4750 = vpop.f32.mrb[0].mxu0
        %v4751 = vadd.f32 0.0, %v4750
        %v4752 = vpop.f32.mrb[0].mxu0
        %4753 = vmatprep.mubr.f32.mxu0 0.0
        %4754 = vmatmul.mubr.f32.gmra.mrb[0].mxu0 %v4458
        %v4755 = vpop.f32.mrb[0].mxu0
        %v4756 = vadd.f32 0.0, %v4755
        %v4757 = vpop.f32.mrb[0].mxu0
        %4758 = vmatprep.mubr.f32.mxu0 0.0
        %4759 = vmatmul.mubr.f32.gmra.mrb[0].mxu0 %v4461
        %v4760 = vpop.f32.mrb[0].mxu0
        %v4761 = vadd.f32 0.0, %v4760
        %v4762 = vpop.f32.mrb[0].mxu0
        %4763 = vmatprep.mubr.f32.mxu0 0.0
        %4764 = vmatmul.mubr.f32.gmra.mrb[0].mxu0 %v4464
        %v4765 = vpop.f32.mrb[0].mxu0
        %v4766 = vadd.f32 0.0, %v4765
        %v4767 = vpop.f32.mrb[0].mxu0
        %4768 = vmatprep.mubr.f32.mxu0 0.0
        %4769 = vmatmul.mubr.f32.gmra.mrb[0].mxu0 %v4467
        %v4770 = vpop.f32.mrb[0].mxu0
        %v4771 = vadd.f32 0.0, %v4770
        %v4772 = vpop.f32.mrb[0].mxu0
        %4773 = vdwg.mxu0
        %v4774 = vadd.f32 %v4087, %v4536
        %v4775 = vadd.f32 %v4092, %v4541
        %v4776 = vadd.f32 %v4097, %v4546
        %v4777 = vadd.f32 %v4102, %v4551
        %v4778 = vadd.f32 %v4107, %v4556
        %v4779 = vadd.f32 %v4112, %v4561
        %v4780 = vadd.f32 %v4117, %v4566
        %v4781 = vadd.f32 %v4122, %v4571
        %v4782 = vadd.f32 %v4127, %v4576
        %v4783 = vadd.f32 %v4132, %v4581
        %v4784 = vadd.f32 %v4137, %v4586
        %v4785 = vadd.f32 %v4142, %v4591
        %v4786 = vadd.f32 %v4147, %v4596
        %v4787 = vadd.f32 %v4152, %v4601
        %v4788 = vadd.f32 %v4157, %v4606
        %v4789 = vadd.f32 %v4162, %v4611
        %v4790 = vadd.f32 %v4167, %v4616
        %v4791 = vadd.f32 %v4172, %v4621
        %v4792 = vadd.f32 %v4177, %v4626
        %v4793 = vadd.f32 %v4182, %v4631
        %v4794 = vadd.f32 %v4187, %v4636
        %v4795 = vadd.f32 %v4192, %v4641
        %v4796 = vadd.f32 %v4197, %v4646
        %v4797 = vadd.f32 %v4202, %v4651
        %v4798 = vadd.f32 %v4207, %v4656
        %v4799 = vadd.f32 %v4212, %v4661
        %v4800 = vadd.f32 %v4217, %v4666
        %v4801 = vadd.f32 %v4222, %v4671
        %v4802 = vadd.f32 %v4227, %v4676
        %v4803 = vadd.f32 %v4232, %v4681
        %v4804 = vadd.f32 %v4237, %v4686
        %v4805 = vadd.f32 %v4242, %v4691
        %v4806 = vadd.f32 %v4247, %v4696
        %v4807 = vadd.f32 %v4252, %v4701
        %v4808 = vadd.f32 %v4257, %v4706
        %v4809 = vadd.f32 %v4262, %v4711
        %v4810 = vadd.f32 %v4267, %v4716
        %v4811 = vadd.f32 %v4272, %v4721
        %v4812 = vadd.f32 %v4277, %v4726
        %v4813 = vadd.f32 %v4282, %v4731
        %v4814 = vadd.f32 %v4287, %v4736
        %v4815 = vadd.f32 %v4292, %v4741
        %v4816 = vadd.f32 %v4297, %v4746
        %v4817 = vadd.f32 %v4302, %v4751
        %v4818 = vadd.f32 %v4307, %v4756
        %v4819 = vadd.f32 %v4312, %v4761
        %v4820 = vadd.f32 %v4317, %v4766
        %v4821 = vadd.f32 %v4322, %v4771
        %v4822 = vld [vmem:[%s10] sm:$0x1]
        %v4824 = vlaneseq
        %v4825 = vshrl.u32 %v4824, 7
        %v4826 = vsub.s32 0, %v4825
        %v4827 = vrot.slane %v4822, %v4826
        %v4829 = vadd.f32 %v4774, %v4827
        %v4830 = vadd.f32 %v4775, %v4827
        %v4831 = vadd.f32 %v4776, %v4827
        %v4832 = vadd.f32 %v4777, %v4827
        %v4833 = vadd.f32 %v4778, %v4827
        %v4834 = vadd.f32 %v4779, %v4827
        %v4835 = vadd.f32 %v4780, %v4827
        %v4836 = vadd.f32 %v4781, %v4827
        %v4837 = vadd.f32 %v4782, %v4827
        %v4838 = vadd.f32 %v4783, %v4827
        %v4839 = vadd.f32 %v4784, %v4827
        %v4840 = vadd.f32 %v4785, %v4827
        %v4841 = vadd.f32 %v4786, %v4827
        %v4842 = vadd.f32 %v4787, %v4827
        %v4843 = vadd.f32 %v4788, %v4827
        %v4844 = vadd.f32 %v4789, %v4827
        %v4845 = vadd.f32 %v4790, %v4827
        %v4846 = vadd.f32 %v4791, %v4827
        %v4847 = vadd.f32 %v4792, %v4827
        %v4848 = vadd.f32 %v4793, %v4827
        %v4849 = vadd.f32 %v4794, %v4827
        %v4850 = vadd.f32 %v4795, %v4827
        %v4851 = vadd.f32 %v4796, %v4827
        %v4852 = vadd.f32 %v4797, %v4827
        %v4853 = vadd.f32 %v4798, %v4827
        %v4854 = vadd.f32 %v4799, %v4827
        %v4855 = vadd.f32 %v4800, %v4827
        %v4856 = vadd.f32 %v4801, %v4827
        %v4857 = vadd.f32 %v4802, %v4827
        %v4858 = vadd.f32 %v4803, %v4827
        %v4859 = vadd.f32 %v4804, %v4827
        %v4860 = vadd.f32 %v4805, %v4827
        %v4861 = vadd.f32 %v4806, %v4827
        %v4862 = vadd.f32 %v4807, %v4827
        %v4863 = vadd.f32 %v4808, %v4827
        %v4864 = vadd.f32 %v4809, %v4827
        %v4865 = vadd.f32 %v4810, %v4827
        %v4866 = vadd.f32 %v4811, %v4827
        %v4867 = vadd.f32 %v4812, %v4827
        %v4868 = vadd.f32 %v4813, %v4827
        %v4869 = vadd.f32 %v4814, %v4827
        %v4870 = vadd.f32 %v4815, %v4827
        %v4871 = vadd.f32 %v4816, %v4827
        %v4872 = vadd.f32 %v4817, %v4827
        %v4873 = vadd.f32 %v4818, %v4827
        %v4874 = vadd.f32 %v4819, %v4827
        %v4875 = vadd.f32 %v4820, %v4827
        %v4876 = vadd.f32 %v4821, %v4827
        %vm4877 = vcmask 23552
        %v4878 = vsel %vm4877, %v4829, -inf
        %4879 = vmax.xlane.f32.xlu0 %v4878
        %v4880 = vpop.xlane.xlu0 %4879
        %v4881 = vsel %vm4877, %v4830, -inf
        %4882 = vmax.xlane.f32.xlu0 %v4881
        %v4883 = vpop.xlane.xlu0 %4882
        %v4884 = vsel %vm4877, %v4831, -inf
        %4885 = vmax.xlane.f32.xlu0 %v4884
        %v4886 = vpop.xlane.xlu0 %4885
        %v4887 = vsel %vm4877, %v4832, -inf
        %4888 = vmax.xlane.f32.xlu0 %v4887
        %v4889 = vpop.xlane.xlu0 %4888
        %v4890 = vsel %vm4877, %v4833, -inf
        %4891 = vmax.xlane.f32.xlu0 %v4890
        %v4892 = vpop.xlane.xlu0 %4891
        %v4893 = vsel %vm4877, %v4834, -inf
        %4894 = vmax.xlane.f32.xlu0 %v4893
        %v4895 = vpop.xlane.xlu0 %4894
        %v4896 = vsel %vm4877, %v4835, -inf
        %4897 = vmax.xlane.f32.xlu0 %v4896
        %v4898 = vpop.xlane.xlu0 %4897
        %v4899 = vsel %vm4877, %v4836, -inf
        %4900 = vmax.xlane.f32.xlu0 %v4899
        %v4901 = vpop.xlane.xlu0 %4900
        %v4902 = vsel %vm4877, %v4837, -inf
        %4903 = vmax.xlane.f32.xlu0 %v4902
        %v4904 = vpop.xlane.xlu0 %4903
        %v4905 = vsel %vm4877, %v4838, -inf
        %4906 = vmax.xlane.f32.xlu0 %v4905
        %v4907 = vpop.xlane.xlu0 %4906
        %v4908 = vsel %vm4877, %v4839, -inf
        %4909 = vmax.xlane.f32.xlu0 %v4908
        %v4910 = vpop.xlane.xlu0 %4909
        %v4911 = vsel %vm4877, %v4840, -inf
        %4912 = vmax.xlane.f32.xlu0 %v4911
        %v4913 = vpop.xlane.xlu0 %4912
        %v4914 = vsel %vm4877, %v4841, -inf
        %4915 = vmax.xlane.f32.xlu0 %v4914
        %v4916 = vpop.xlane.xlu0 %4915
        %v4917 = vsel %vm4877, %v4842, -inf
        %4918 = vmax.xlane.f32.xlu0 %v4917
        %v4919 = vpop.xlane.xlu0 %4918
        %v4920 = vsel %vm4877, %v4843, -inf
        %4921 = vmax.xlane.f32.xlu0 %v4920
        %v4922 = vpop.xlane.xlu0 %4921
        %v4923 = vsel %vm4877, %v4844, -inf
        %4924 = vmax.xlane.f32.xlu0 %v4923
        %v4925 = vpop.xlane.xlu0 %4924
        %v4926 = vsel %vm4877, %v4845, -inf
        %4927 = vmax.xlane.f32.xlu0 %v4926
        %v4928 = vpop.xlane.xlu0 %4927
        %v4929 = vsel %vm4877, %v4846, -inf
        %4930 = vmax.xlane.f32.xlu0 %v4929
        %v4931 = vpop.xlane.xlu0 %4930
        %v4932 = vsel %vm4877, %v4847, -inf
        %4933 = vmax.xlane.f32.xlu0 %v4932
        %v4934 = vpop.xlane.xlu0 %4933
        %v4935 = vsel %vm4877, %v4848, -inf
        %4936 = vmax.xlane.f32.xlu0 %v4935
        %v4937 = vpop.xlane.xlu0 %4936
        %v4938 = vsel %vm4877, %v4849, -inf
        %4939 = vmax.xlane.f32.xlu0 %v4938
        %v4940 = vpop.xlane.xlu0 %4939
        %v4941 = vsel %vm4877, %v4850, -inf
        %4942 = vmax.xlane.f32.xlu0 %v4941
        %v4943 = vpop.xlane.xlu0 %4942
        %v4944 = vsel %vm4877, %v4851, -inf
        %4945 = vmax.xlane.f32.xlu0 %v4944
        %v4946 = vpop.xlane.xlu0 %4945
        %v4947 = vsel %vm4877, %v4852, -inf
        %4948 = vmax.xlane.f32.xlu0 %v4947
        %v4949 = vpop.xlane.xlu0 %4948
        %v4950 = vsel %vm4877, %v4853, -inf
        %4951 = vmax.xlane.f32.xlu0 %v4950
        %v4952 = vpop.xlane.xlu0 %4951
        %v4953 = vsel %vm4877, %v4854, -inf
        %4954 = vmax.xlane.f32.xlu0 %v4953
        %v4955 = vpop.xlane.xlu0 %4954
        %v4956 = vsel %vm4877, %v4855, -inf
        %4957 = vmax.xlane.f32.xlu0 %v4956
        %v4958 = vpop.xlane.xlu0 %4957
        %v4959 = vsel %vm4877, %v4856, -inf
        %4960 = vmax.xlane.f32.xlu0 %v4959
        %v4961 = vpop.xlane.xlu0 %4960
        %v4962 = vsel %vm4877, %v4857, -inf
        %4963 = vmax.xlane.f32.xlu0 %v4962
        %v4964 = vpop.xlane.xlu0 %4963
        %v4965 = vsel %vm4877, %v4858, -inf
        %4966 = vmax.xlane.f32.xlu0 %v4965
        %v4967 = vpop.xlane.xlu0 %4966
        %v4968 = vsel %vm4877, %v4859, -inf
        %4969 = vmax.xlane.f32.xlu0 %v4968
        %v4970 = vpop.xlane.xlu0 %4969
        %v4971 = vsel %vm4877, %v4860, -inf
        %4972 = vmax.xlane.f32.xlu0 %v4971
        %v4973 = vpop.xlane.xlu0 %4972
        %v4974 = vsel %vm4877, %v4861, -inf
        %4975 = vmax.xlane.f32.xlu0 %v4974
        %v4976 = vpop.xlane.xlu0 %4975
        %v4977 = vsel %vm4877, %v4862, -inf
        %4978 = vmax.xlane.f32.xlu0 %v4977
        %v4979 = vpop.xlane.xlu0 %4978
        %v4980 = vsel %vm4877, %v4863, -inf
        %4981 = vmax.xlane.f32.xlu0 %v4980
        %v4982 = vpop.xlane.xlu0 %4981
        %v4983 = vsel %vm4877, %v4864, -inf
        %4984 = vmax.xlane.f32.xlu0 %v4983
        %v4985 = vpop.xlane.xlu0 %4984
        %v4986 = vsel %vm4877, %v4865, -inf
        %4987 = vmax.xlane.f32.xlu0 %v4986
        %v4988 = vpop.xlane.xlu0 %4987
        %v4989 = vsel %vm4877, %v4866, -inf
        %4990 = vmax.xlane.f32.xlu0 %v4989
        %v4991 = vpop.xlane.xlu0 %4990
        %v4992 = vsel %vm4877, %v4867, -inf
        %4993 = vmax.xlane.f32.xlu0 %v4992
        %v4994 = vpop.xlane.xlu0 %4993
        %v4995 = vsel %vm4877, %v4868, -inf
        %4996 = vmax.xlane.f32.xlu0 %v4995
        %v4997 = vpop.xlane.xlu0 %4996
        %v4998 = vsel %vm4877, %v4869, -inf
        %4999 = vmax.xlane.f32.xlu0 %v4998
        %v5000 = vpop.xlane.xlu0 %4999
        %v5001 = vsel %vm4877, %v4870, -inf
        %5002 = vmax.xlane.f32.xlu0 %v5001
        %v5003 = vpop.xlane.xlu0 %5002
        %v5004 = vsel %vm4877, %v4871, -inf
        %5005 = vmax.xlane.f32.xlu0 %v5004
        %v5006 = vpop.xlane.xlu0 %5005
        %v5007 = vsel %vm4877, %v4872, -inf
        %5008 = vmax.xlane.f32.xlu0 %v5007
        %v5009 = vpop.xlane.xlu0 %5008
        %v5010 = vsel %vm4877, %v4873, -inf
        %5011 = vmax.xlane.f32.xlu0 %v5010
        %v5012 = vpop.xlane.xlu0 %5011
        %v5013 = vsel %vm4877, %v4874, -inf
        %5014 = vmax.xlane.f32.xlu0 %v5013
        %v5015 = vpop.xlane.xlu0 %5014
        %v5016 = vsel %vm4877, %v4875, -inf
        %5017 = vmax.xlane.f32.xlu0 %v5016
        %v5018 = vpop.xlane.xlu0 %5017
        %v5019 = vsel %vm4877, %v4876, -inf
        %5020 = vmax.xlane.f32.xlu0 %v5019
        %v5021 = vpop.xlane.xlu0 %5020
        %v5022 = vsub.f32 %v4829, %v4880
        %v5023 = vsub.f32 %v4830, %v4883
        %v5024 = vsub.f32 %v4831, %v4886
        %v5025 = vsub.f32 %v4832, %v4889
        %v5026 = vsub.f32 %v4833, %v4892
        %v5027 = vsub.f32 %v4834, %v4895
        %v5028 = vsub.f32 %v4835, %v4898
        %v5029 = vsub.f32 %v4836, %v4901
        %v5030 = vsub.f32 %v4837, %v4904
        %v5031 = vsub.f32 %v4838, %v4907
        %v5032 = vsub.f32 %v4839, %v4910
        %v5033 = vsub.f32 %v4840, %v4913
        %v5034 = vsub.f32 %v4841, %v4916
        %v5035 = vsub.f32 %v4842, %v4919
        %v5036 = vsub.f32 %v4843, %v4922
        %v5037 = vsub.f32 %v4844, %v4925
        %v5038 = vsub.f32 %v4845, %v4928
        %v5039 = vsub.f32 %v4846, %v4931
        %v5040 = vsub.f32 %v4847, %v4934
        %v5041 = vsub.f32 %v4848, %v4937
        %v5042 = vsub.f32 %v4849, %v4940
        %v5043 = vsub.f32 %v4850, %v4943
        %v5044 = vsub.f32 %v4851, %v4946
        %v5045 = vsub.f32 %v4852, %v4949
        %v5046 = vsub.f32 %v4853, %v4952
        %v5047 = vsub.f32 %v4854, %v4955
        %v5048 = vsub.f32 %v4855, %v4958
        %v5049 = vsub.f32 %v4856, %v4961
        %v5050 = vsub.f32 %v4857, %v4964
        %v5051 = vsub.f32 %v4858, %v4967
        %v5052 = vsub.f32 %v4859, %v4970
        %v5053 = vsub.f32 %v4860, %v4973
        %v5054 = vsub.f32 %v4861, %v4976
        %v5055 = vsub.f32 %v4862, %v4979
        %v5056 = vsub.f32 %v4863, %v4982
        %v5057 = vsub.f32 %v4864, %v4985
        %v5058 = vsub.f32 %v4865, %v4988
        %v5059 = vsub.f32 %v4866, %v4991
        %v5060 = vsub.f32 %v4867, %v4994
        %v5061 = vsub.f32 %v4868, %v4997
        %v5062 = vsub.f32 %v4869, %v5000
        %v5063 = vsub.f32 %v4870, %v5003
        %v5064 = vsub.f32 %v4871, %v5006
        %v5065 = vsub.f32 %v4872, %v5009
        %v5066 = vsub.f32 %v4873, %v5012
        %v5067 = vsub.f32 %v4874, %v5015
        %v5068 = vsub.f32 %v4875, %v5018
        %v5069 = vsub.f32 %v4876, %v5021
        %v5070 = vmul.f32 %v5022, 1.442695
        %v5071 = vpow.pop %v5070
        %v5072 = vmul.f32 %v5023, 1.442695
        %v5073 = vpow.pop %v5072
        %v5074 = vmul.f32 %v5024, 1.442695
        %v5075 = vpow.pop %v5074
        %v5076 = vmul.f32 %v5025, 1.442695
        %v5077 = vpow.pop %v5076
        %v5078 = vmul.f32 %v5026, 1.442695
        %v5079 = vpow.pop %v5078
        %v5080 = vmul.f32 %v5027, 1.442695
        %v5081 = vpow.pop %v5080
        %v5082 = vmul.f32 %v5028, 1.442695
        %v5083 = vpow.pop %v5082
        %v5084 = vmul.f32 %v5029, 1.442695
        %v5085 = vpow.pop %v5084
        %v5086 = vmul.f32 %v5030, 1.442695
        %v5087 = vpow.pop %v5086
        %v5088 = vmul.f32 %v5031, 1.442695
        %v5089 = vpow.pop %v5088
        %v5090 = vmul.f32 %v5032, 1.442695
        %v5091 = vpow.pop %v5090
        %v5092 = vmul.f32 %v5033, 1.442695
        %v5093 = vpow.pop %v5092
        %v5094 = vmul.f32 %v5034, 1.442695
        %v5095 = vpow.pop %v5094
        %v5096 = vmul.f32 %v5035, 1.442695
        %v5097 = vpow.pop %v5096
        %v5098 = vmul.f32 %v5036, 1.442695
        %v5099 = vpow.pop %v5098
        %v5100 = vmul.f32 %v5037, 1.442695
        %v5101 = vpow.pop %v5100
        %v5102 = vmul.f32 %v5038, 1.442695
        %v5103 = vpow.pop %v5102
        %v5104 = vmul.f32 %v5039, 1.442695
        %v5105 = vpow.pop %v5104
        %v5106 = vmul.f32 %v5040, 1.442695
        %v5107 = vpow.pop %v5106
        %v5108 = vmul.f32 %v5041, 1.442695
        %v5109 = vpow.pop %v5108
        %v5110 = vmul.f32 %v5042, 1.442695
        %v5111 = vpow.pop %v5110
        %v5112 = vmul.f32 %v5043, 1.442695
        %v5113 = vpow.pop %v5112
        %v5114 = vmul.f32 %v5044, 1.442695
        %v5115 = vpow.pop %v5114
        %v5116 = vmul.f32 %v5045, 1.442695
        %v5117 = vpow.pop %v5116
        %v5118 = vmul.f32 %v5046, 1.442695
        %v5119 = vpow.pop %v5118
        %v5120 = vmul.f32 %v5047, 1.442695
        %v5121 = vpow.pop %v5120
        %v5122 = vmul.f32 %v5048, 1.442695
        %v5123 = vpow.pop %v5122
        %v5124 = vmul.f32 %v5049, 1.442695
        %v5125 = vpow.pop %v5124
        %v5126 = vmul.f32 %v5050, 1.442695
        %v5127 = vpow.pop %v5126
        %v5128 = vmul.f32 %v5051, 1.442695
        %v5129 = vpow.pop %v5128
        %v5130 = vmul.f32 %v5052, 1.442695
        %v5131 = vpow.pop %v5130
        %v5132 = vmul.f32 %v5053, 1.442695
        %v5133 = vpow.pop %v5132
        %v5134 = vmul.f32 %v5054, 1.442695
        %v5135 = vpow.pop %v5134
        %v5136 = vmul.f32 %v5055, 1.442695
        %v5137 = vpow.pop %v5136
        %v5138 = vmul.f32 %v5056, 1.442695
        %v5139 = vpow.pop %v5138
        %v5140 = vmul.f32 %v5057, 1.442695
        %v5141 = vpow.pop %v5140
        %v5142 = vmul.f32 %v5058, 1.442695
        %v5143 = vpow.pop %v5142
        %v5144 = vmul.f32 %v5059, 1.442695
        %v5145 = vpow.pop %v5144
        %v5146 = vmul.f32 %v5060, 1.442695
        %v5147 = vpow.pop %v5146
        %v5148 = vmul.f32 %v5061, 1.442695
        %v5149 = vpow.pop %v5148
        %v5150 = vmul.f32 %v5062, 1.442695
        %v5151 = vpow.pop %v5150
        %v5152 = vmul.f32 %v5063, 1.442695
        %v5153 = vpow.pop %v5152
        %v5154 = vmul.f32 %v5064, 1.442695
        %v5155 = vpow.pop %v5154
        %v5156 = vmul.f32 %v5065, 1.442695
        %v5157 = vpow.pop %v5156
        %v5158 = vmul.f32 %v5066, 1.442695
        %v5159 = vpow.pop %v5158
        %v5160 = vmul.f32 %v5067, 1.442695
        %v5161 = vpow.pop %v5160
        %v5162 = vmul.f32 %v5068, 1.442695
        %v5163 = vpow.pop %v5162
        %v5164 = vmul.f32 %v5069, 1.442695
        %v5165 = vpow.pop %v5164
        %v5166 = vsel %vm4877, %v5071, 0.0
        %5167 = vadd.xlane.f32.xlu0 %v5166
        %v5168 = vpop.xlane.xlu0 %5167
        %v5169 = vsel %vm4877, %v5073, 0.0
        %5170 = vadd.xlane.f32.xlu0 %v5169
        %v5171 = vpop.xlane.xlu0 %5170
        %v5172 = vsel %vm4877, %v5075, 0.0
        %5173 = vadd.xlane.f32.xlu0 %v5172
        %v5174 = vpop.xlane.xlu0 %5173
        %v5175 = vsel %vm4877, %v5077, 0.0
        %5176 = vadd.xlane.f32.xlu0 %v5175
        %v5177 = vpop.xlane.xlu0 %5176
        %v5178 = vsel %vm4877, %v5079, 0.0
        %5179 = vadd.xlane.f32.xlu0 %v5178
        %v5180 = vpop.xlane.xlu0 %5179
        %v5181 = vsel %vm4877, %v5081, 0.0
        %5182 = vadd.xlane.f32.xlu0 %v5181
        %v5183 = vpop.xlane.xlu0 %5182
        %v5184 = vsel %vm4877, %v5083, 0.0
        %5185 = vadd.xlane.f32.xlu0 %v5184
        %v5186 = vpop.xlane.xlu0 %5185
        %v5187 = vsel %vm4877, %v5085, 0.0
        %5188 = vadd.xlane.f32.xlu0 %v5187
        %v5189 = vpop.xlane.xlu0 %5188
        %v5190 = vsel %vm4877, %v5087, 0.0
        %5191 = vadd.xlane.f32.xlu0 %v5190
        %v5192 = vpop.xlane.xlu0 %5191
        %v5193 = vsel %vm4877, %v5089, 0.0
        %5194 = vadd.xlane.f32.xlu0 %v5193
        %v5195 = vpop.xlane.xlu0 %5194
        %v5196 = vsel %vm4877, %v5091, 0.0
        %5197 = vadd.xlane.f32.xlu0 %v5196
        %v5198 = vpop.xlane.xlu0 %5197
        %v5199 = vsel %vm4877, %v5093, 0.0
        %5200 = vadd.xlane.f32.xlu0 %v5199
        %v5201 = vpop.xlane.xlu0 %5200
        %v5202 = vsel %vm4877, %v5095, 0.0
        %5203 = vadd.xlane.f32.xlu0 %v5202
        %v5204 = vpop.xlane.xlu0 %5203
        %v5205 = vsel %vm4877, %v5097, 0.0
        %5206 = vadd.xlane.f32.xlu0 %v5205
        %v5207 = vpop.xlane.xlu0 %5206
        %v5208 = vsel %vm4877, %v5099, 0.0
        %5209 = vadd.xlane.f32.xlu0 %v5208
        %v5210 = vpop.xlane.xlu0 %5209
        %v5211 = vsel %vm4877, %v5101, 0.0
        %5212 = vadd.xlane.f32.xlu0 %v5211
        %v5213 = vpop.xlane.xlu0 %5212
        %v5214 = vsel %vm4877, %v5103, 0.0
        %5215 = vadd.xlane.f32.xlu0 %v5214
        %v5216 = vpop.xlane.xlu0 %5215
        %v5217 = vsel %vm4877, %v5105, 0.0
        %5218 = vadd.xlane.f32.xlu0 %v5217
        %v5219 = vpop.xlane.xlu0 %5218
        %v5220 = vsel %vm4877, %v5107, 0.0
        %5221 = vadd.xlane.f32.xlu0 %v5220
        %v5222 = vpop.xlane.xlu0 %5221
        %v5223 = vsel %vm4877, %v5109, 0.0
        %5224 = vadd.xlane.f32.xlu0 %v5223
        %v5225 = vpop.xlane.xlu0 %5224
        %v5226 = vsel %vm4877, %v5111, 0.0
        %5227 = vadd.xlane.f32.xlu0 %v5226
        %v5228 = vpop.xlane.xlu0 %5227
        %v5229 = vsel %vm4877, %v5113, 0.0
        %5230 = vadd.xlane.f32.xlu0 %v5229
        %v5231 = vpop.xlane.xlu0 %5230
        %v5232 = vsel %vm4877, %v5115, 0.0
        %5233 = vadd.xlane.f32.xlu0 %v5232
        %v5234 = vpop.xlane.xlu0 %5233
        %v5235 = vsel %vm4877, %v5117, 0.0
        %5236 = vadd.xlane.f32.xlu0 %v5235
        %v5237 = vpop.xlane.xlu0 %5236
        %v5238 = vsel %vm4877, %v5119, 0.0
        %5239 = vadd.xlane.f32.xlu0 %v5238
        %v5240 = vpop.xlane.xlu0 %5239
        %v5241 = vsel %vm4877, %v5121, 0.0
        %5242 = vadd.xlane.f32.xlu0 %v5241
        %v5243 = vpop.xlane.xlu0 %5242
        %v5244 = vsel %vm4877, %v5123, 0.0
        %5245 = vadd.xlane.f32.xlu0 %v5244
        %v5246 = vpop.xlane.xlu0 %5245
        %v5247 = vsel %vm4877, %v5125, 0.0
        %5248 = vadd.xlane.f32.xlu0 %v5247
        %v5249 = vpop.xlane.xlu0 %5248
        %v5250 = vsel %vm4877, %v5127, 0.0
        %5251 = vadd.xlane.f32.xlu0 %v5250
        %v5252 = vpop.xlane.xlu0 %5251
        %v5253 = vsel %vm4877, %v5129, 0.0
        %5254 = vadd.xlane.f32.xlu0 %v5253
        %v5255 = vpop.xlane.xlu0 %5254
        %v5256 = vsel %vm4877, %v5131, 0.0
        %5257 = vadd.xlane.f32.xlu0 %v5256
        %v5258 = vpop.xlane.xlu0 %5257
        %v5259 = vsel %vm4877, %v5133, 0.0
        %5260 = vadd.xlane.f32.xlu0 %v5259
        %v5261 = vpop.xlane.xlu0 %5260
        %v5262 = vsel %vm4877, %v5135, 0.0
        %5263 = vadd.xlane.f32.xlu0 %v5262
        %v5264 = vpop.xlane.xlu0 %5263
        %v5265 = vsel %vm4877, %v5137, 0.0
        %5266 = vadd.xlane.f32.xlu0 %v5265
        %v5267 = vpop.xlane.xlu0 %5266
        %v5268 = vsel %vm4877, %v5139, 0.0
        %5269 = vadd.xlane.f32.xlu0 %v5268
        %v5270 = vpop.xlane.xlu0 %5269
        %v5271 = vsel %vm4877, %v5141, 0.0
        %5272 = vadd.xlane.f32.xlu0 %v5271
        %v5273 = vpop.xlane.xlu0 %5272
        %v5274 = vsel %vm4877, %v5143, 0.0
        %5275 = vadd.xlane.f32.xlu0 %v5274
        %v5276 = vpop.xlane.xlu0 %5275
        %v5277 = vsel %vm4877, %v5145, 0.0
        %5278 = vadd.xlane.f32.xlu0 %v5277
        %v5279 = vpop.xlane.xlu0 %5278
        %v5280 = vsel %vm4877, %v5147, 0.0
        %5281 = vadd.xlane.f32.xlu0 %v5280
        %v5282 = vpop.xlane.xlu0 %5281
        %v5283 = vsel %vm4877, %v5149, 0.0
        %5284 = vadd.xlane.f32.xlu0 %v5283
        %v5285 = vpop.xlane.xlu0 %5284
        %v5286 = vsel %vm4877, %v5151, 0.0
        %5287 = vadd.xlane.f32.xlu0 %v5286
        %v5288 = vpop.xlane.xlu0 %5287
        %v5289 = vsel %vm4877, %v5153, 0.0
        %5290 = vadd.xlane.f32.xlu0 %v5289
        %v5291 = vpop.xlane.xlu0 %5290
        %v5292 = vsel %vm4877, %v5155, 0.0
        %5293 = vadd.xlane.f32.xlu0 %v5292
        %v5294 = vpop.xlane.xlu0 %5293
        %v5295 = vsel %vm4877, %v5157, 0.0
        %5296 = vadd.xlane.f32.xlu0 %v5295
        %v5297 = vpop.xlane.xlu0 %5296
        %v5298 = vsel %vm4877, %v5159, 0.0
        %5299 = vadd.xlane.f32.xlu0 %v5298
        %v5300 = vpop.xlane.xlu0 %5299
        %v5301 = vsel %vm4877, %v5161, 0.0
        %5302 = vadd.xlane.f32.xlu0 %v5301
        %v5303 = vpop.xlane.xlu0 %5302
        %v5304 = vsel %vm4877, %v5163, 0.0
        %5305 = vadd.xlane.f32.xlu0 %v5304
        %v5306 = vpop.xlane.xlu0 %5305
        %v5307 = vsel %vm4877, %v5165, 0.0
        %5308 = vadd.xlane.f32.xlu0 %v5307
        %v5309 = vpop.xlane.xlu0 %5308
        %v5310 = vrcp.pop %v5168
        %v5311 = vrcp.pop %v5171
        %v5312 = vrcp.pop %v5174
        %v5313 = vrcp.pop %v5177
        %v5314 = vrcp.pop %v5180
        %v5315 = vrcp.pop %v5183
        %v5316 = vrcp.pop %v5186
        %v5317 = vrcp.pop %v5189
        %v5318 = vrcp.pop %v5192
        %v5319 = vrcp.pop %v5195
        %v5320 = vrcp.pop %v5198
        %v5321 = vrcp.pop %v5201
        %v5322 = vrcp.pop %v5204
        %v5323 = vrcp.pop %v5207
        %v5324 = vrcp.pop %v5210
        %v5325 = vrcp.pop %v5213
        %v5326 = vrcp.pop %v5216
        %v5327 = vrcp.pop %v5219
        %v5328 = vrcp.pop %v5222
        %v5329 = vrcp.pop %v5225
        %v5330 = vrcp.pop %v5228
        %v5331 = vrcp.pop %v5231
        %v5332 = vrcp.pop %v5234
        %v5333 = vrcp.pop %v5237
        %v5334 = vrcp.pop %v5240
        %v5335 = vrcp.pop %v5243
        %v5336 = vrcp.pop %v5246
        %v5337 = vrcp.pop %v5249
        %v5338 = vrcp.pop %v5252
        %v5339 = vrcp.pop %v5255
        %v5340 = vrcp.pop %v5258
        %v5341 = vrcp.pop %v5261
        %v5342 = vrcp.pop %v5264
        %v5343 = vrcp.pop %v5267
        %v5344 = vrcp.pop %v5270
        %v5345 = vrcp.pop %v5273
        %v5346 = vrcp.pop %v5276
        %v5347 = vrcp.pop %v5279
        %v5348 = vrcp.pop %v5282
        %v5349 = vrcp.pop %v5285
        %v5350 = vrcp.pop %v5288
        %v5351 = vrcp.pop %v5291
        %v5352 = vrcp.pop %v5294
        %v5353 = vrcp.pop %v5297
        %v5354 = vrcp.pop %v5300
        %v5355 = vrcp.pop %v5303
        %v5356 = vrcp.pop %v5306
        %v5357 = vrcp.pop %v5309
        %v5358 = vmul.f32 %v5071, %v5310
        %v5359 = vmul.f32 %v5073, %v5311
        %v5360 = vmul.f32 %v5075, %v5312
        %v5361 = vmul.f32 %v5077, %v5313
        %v5362 = vmul.f32 %v5079, %v5314
        %v5363 = vmul.f32 %v5081, %v5315
        %v5364 = vmul.f32 %v5083, %v5316
        %v5365 = vmul.f32 %v5085, %v5317
        %v5366 = vmul.f32 %v5087, %v5318
        %v5367 = vmul.f32 %v5089, %v5319
        %v5368 = vmul.f32 %v5091, %v5320
        %v5369 = vmul.f32 %v5093, %v5321
        %v5370 = vmul.f32 %v5095, %v5322
        %v5371 = vmul.f32 %v5097, %v5323
        %v5372 = vmul.f32 %v5099, %v5324
        %v5373 = vmul.f32 %v5101, %v5325
        %v5374 = vmul.f32 %v5103, %v5326
        %v5375 = vmul.f32 %v5105, %v5327
        %v5376 = vmul.f32 %v5107, %v5328
        %v5377 = vmul.f32 %v5109, %v5329
        %v5378 = vmul.f32 %v5111, %v5330
        %v5379 = vmul.f32 %v5113, %v5331
        %v5380 = vmul.f32 %v5115, %v5332
        %v5381 = vmul.f32 %v5117, %v5333
        %v5382 = vmul.f32 %v5119, %v5334
        %v5383 = vmul.f32 %v5121, %v5335
        %v5384 = vmul.f32 %v5123, %v5336
        %v5385 = vmul.f32 %v5125, %v5337
        %v5386 = vmul.f32 %v5127, %v5338
        %v5387 = vmul.f32 %v5129, %v5339
        %v5388 = vmul.f32 %v5131, %v5340
        %v5389 = vmul.f32 %v5133, %v5341
        %v5390 = vmul.f32 %v5135, %v5342
        %v5391 = vmul.f32 %v5137, %v5343
        %v5392 = vmul.f32 %v5139, %v5344
        %v5393 = vmul.f32 %v5141, %v5345
        %v5394 = vmul.f32 %v5143, %v5346
        %v5395 = vmul.f32 %v5145, %v5347
        %v5396 = vmul.f32 %v5147, %v5348
        %v5397 = vmul.f32 %v5149, %v5349
        %v5398 = vmul.f32 %v5151, %v5350
        %v5399 = vmul.f32 %v5153, %v5351
        %v5400 = vmul.f32 %v5155, %v5352
        %v5401 = vmul.f32 %v5157, %v5353
        %v5402 = vmul.f32 %v5159, %v5354
        %v5403 = vmul.f32 %v5161, %v5355
        %v5404 = vmul.f32 %v5163, %v5356
        %v5405 = vmul.f32 %v5165, %v5357
        %v5406 = vunpack.c.l.bf16 %v783
        %v5407 = vunpack.c.l.bf16 %v784
        %v5408 = vunpack.c.l.bf16 %v785
        %v5409 = vunpack.c.l.bf16 %v786
        %v5410 = vunpack.c.l.bf16 %v787
        %v5411 = vunpack.c.l.bf16 %v788
        %v5412 = vunpack.c.l.bf16 %v789
        %v5413 = vunpack.c.l.bf16 %v790
        %v5414 = vunpack.c.l.bf16 %v791
        %v5415 = vunpack.c.l.bf16 %v792
        %v5416 = vunpack.c.l.bf16 %v793
        %v5417 = vunpack.c.l.bf16 %v794
        %v5418 = vunpack.c.l.bf16 %v795
        %v5419 = vunpack.c.l.bf16 %v796
        %v5420 = vunpack.c.l.bf16 %v797
        %v5421 = vunpack.c.l.bf16 %v798
        %v5422 = vunpack.c.l.bf16 %v799
        %v5423 = vunpack.c.l.bf16 %v800
        %v5424 = vunpack.c.l.bf16 %v801
        %v5425 = vunpack.c.l.bf16 %v802
        %v5426 = vunpack.c.l.bf16 %v803
        %v5427 = vunpack.c.l.bf16 %v804
        %v5428 = vunpack.c.l.bf16 %v805
        %v5429 = vunpack.c.l.bf16 %v806
        %v5430 = vunpack.c.l.bf16 %v807
        %v5431 = vunpack.c.l.bf16 %v808
        %v5432 = vunpack.c.l.bf16 %v809
        %v5433 = vunpack.c.l.bf16 %v810
        %v5434 = vunpack.c.l.bf16 %v811
        %v5435 = vunpack.c.l.bf16 %v812
        %v5436 = vunpack.c.l.bf16 %v813
        %v5437 = vunpack.c.l.bf16 %v814
        %v5438 = vunpack.c.l.bf16 %v815
        %v5439 = vunpack.c.l.bf16 %v816
        %v5440 = vunpack.c.l.bf16 %v817
        %v5441 = vunpack.c.l.bf16 %v818
        %v5442 = vunpack.c.l.bf16 %v819
        %v5443 = vunpack.c.l.bf16 %v820
        %v5444 = vunpack.c.l.bf16 %v821
        %v5445 = vunpack.c.l.bf16 %v822
        %v5446 = vunpack.c.l.bf16 %v823
        %v5447 = vunpack.c.l.bf16 %v824
        %v5448 = vunpack.c.l.bf16 %v825
        %v5449 = vunpack.c.l.bf16 %v826
        %v5450 = vunpack.c.l.bf16 %v827
        %v5451 = vunpack.c.l.bf16 %v828
        %v5452 = vunpack.c.l.bf16 %v829
        %v5453 = vunpack.c.l.bf16 %v830
        %5455 = vset.pattern.permute.xlu0 0
        %5456 = vperm.xlu0 %5455, %v5358
        %v5457 = vpop.permute.xlu0 %5456
        %5460 = vset.pattern.permute.xlu0 0
        %5461 = vperm.xlu0 %5460, %v5359
        %v5462 = vpop.permute.xlu0 %5461
        %5465 = vset.pattern.permute.xlu0 0
        %5466 = vperm.xlu0 %5465, %v5360
        %v5467 = vpop.permute.xlu0 %5466
        %5470 = vset.pattern.permute.xlu0 0
        %5471 = vperm.xlu0 %5470, %v5361
        %v5472 = vpop.permute.xlu0 %5471
        %5475 = vset.pattern.permute.xlu0 0
        %5476 = vperm.xlu0 %5475, %v5362
        %v5477 = vpop.permute.xlu0 %5476
        %5480 = vset.pattern.permute.xlu0 0
        %5481 = vperm.xlu0 %5480, %v5363
        %v5482 = vpop.permute.xlu0 %5481
        %5485 = vset.pattern.permute.xlu0 0
        %5486 = vperm.xlu0 %5485, %v5364
        %v5487 = vpop.permute.xlu0 %5486
        %5490 = vset.pattern.permute.xlu0 0
        %5491 = vperm.xlu0 %5490, %v5365
        %v5492 = vpop.permute.xlu0 %5491
        %5495 = vset.pattern.permute.xlu0 0
        %5496 = vperm.xlu0 %5495, %v5366
        %v5497 = vpop.permute.xlu0 %5496
        %5500 = vset.pattern.permute.xlu0 0
        %5501 = vperm.xlu0 %5500, %v5367
        %v5502 = vpop.permute.xlu0 %5501
        %5505 = vset.pattern.permute.xlu0 0
        %5506 = vperm.xlu0 %5505, %v5368
        %v5507 = vpop.permute.xlu0 %5506
        %5510 = vset.pattern.permute.xlu0 0
        %5511 = vperm.xlu0 %5510, %v5369
        %v5512 = vpop.permute.xlu0 %5511
        %5515 = vset.pattern.permute.xlu0 0
        %5516 = vperm.xlu0 %5515, %v5370
        %v5517 = vpop.permute.xlu0 %5516
        %5520 = vset.pattern.permute.xlu0 0
        %5521 = vperm.xlu0 %5520, %v5371
        %v5522 = vpop.permute.xlu0 %5521
        %5525 = vset.pattern.permute.xlu0 0
        %5526 = vperm.xlu0 %5525, %v5372
        %v5527 = vpop.permute.xlu0 %5526
        %5530 = vset.pattern.permute.xlu0 0
        %5531 = vperm.xlu0 %5530, %v5373
        %v5532 = vpop.permute.xlu0 %5531
        %5535 = vset.pattern.permute.xlu0 0
        %5536 = vperm.xlu0 %5535, %v5374
        %v5537 = vpop.permute.xlu0 %5536
        %5540 = vset.pattern.permute.xlu0 0
        %5541 = vperm.xlu0 %5540, %v5375
        %v5542 = vpop.permute.xlu0 %5541
        %5545 = vset.pattern.permute.xlu0 0
        %5546 = vperm.xlu0 %5545, %v5376
        %v5547 = vpop.permute.xlu0 %5546
        %5550 = vset.pattern.permute.xlu0 0
        %5551 = vperm.xlu0 %5550, %v5377
        %v5552 = vpop.permute.xlu0 %5551
        %5555 = vset.pattern.permute.xlu0 0
        %5556 = vperm.xlu0 %5555, %v5378
        %v5557 = vpop.permute.xlu0 %5556
        %5560 = vset.pattern.permute.xlu0 0
        %5561 = vperm.xlu0 %5560, %v5379
        %v5562 = vpop.permute.xlu0 %5561
        %5565 = vset.pattern.permute.xlu0 0
        %5566 = vperm.xlu0 %5565, %v5380
        %v5567 = vpop.permute.xlu0 %5566
        %5570 = vset.pattern.permute.xlu0 0
        %5571 = vperm.xlu0 %5570, %v5381
        %v5572 = vpop.permute.xlu0 %5571
        %5575 = vset.pattern.permute.xlu0 0
        %5576 = vperm.xlu0 %5575, %v5382
        %v5577 = vpop.permute.xlu0 %5576
        %5580 = vset.pattern.permute.xlu0 0
        %5581 = vperm.xlu0 %5580, %v5383
        %v5582 = vpop.permute.xlu0 %5581
        %5585 = vset.pattern.permute.xlu0 0
        %5586 = vperm.xlu0 %5585, %v5384
        %v5587 = vpop.permute.xlu0 %5586
        %5590 = vset.pattern.permute.xlu0 0
        %5591 = vperm.xlu0 %5590, %v5385
        %v5592 = vpop.permute.xlu0 %5591
        %5595 = vset.pattern.permute.xlu0 0
        %5596 = vperm.xlu0 %5595, %v5386
        %v5597 = vpop.permute.xlu0 %5596
        %5600 = vset.pattern.permute.xlu0 0
        %5601 = vperm.xlu0 %5600, %v5387
        %v5602 = vpop.permute.xlu0 %5601
        %5605 = vset.pattern.permute.xlu0 0
        %5606 = vperm.xlu0 %5605, %v5388
        %v5607 = vpop.permute.xlu0 %5606
        %5610 = vset.pattern.permute.xlu0 0
        %5611 = vperm.xlu0 %5610, %v5389
        %v5612 = vpop.permute.xlu0 %5611
        %5615 = vset.pattern.permute.xlu0 0
        %5616 = vperm.xlu0 %5615, %v5390
        %v5617 = vpop.permute.xlu0 %5616
        %5620 = vset.pattern.permute.xlu0 0
        %5621 = vperm.xlu0 %5620, %v5391
        %v5622 = vpop.permute.xlu0 %5621
        %5625 = vset.pattern.permute.xlu0 0
        %5626 = vperm.xlu0 %5625, %v5392
        %v5627 = vpop.permute.xlu0 %5626
        %5630 = vset.pattern.permute.xlu0 0
        %5631 = vperm.xlu0 %5630, %v5393
        %v5632 = vpop.permute.xlu0 %5631
        %5635 = vset.pattern.permute.xlu0 0
        %5636 = vperm.xlu0 %5635, %v5394
        %v5637 = vpop.permute.xlu0 %5636
        %5640 = vset.pattern.permute.xlu0 0
        %5641 = vperm.xlu0 %5640, %v5395
        %v5642 = vpop.permute.xlu0 %5641
        %5645 = vset.pattern.permute.xlu0 0
        %5646 = vperm.xlu0 %5645, %v5396
        %v5647 = vpop.permute.xlu0 %5646
        %5650 = vset.pattern.permute.xlu0 0
        %5651 = vperm.xlu0 %5650, %v5397
        %v5652 = vpop.permute.xlu0 %5651
        %5655 = vset.pattern.permute.xlu0 0
        %5656 = vperm.xlu0 %5655, %v5398
        %v5657 = vpop.permute.xlu0 %5656
        %5660 = vset.pattern.permute.xlu0 0
        %5661 = vperm.xlu0 %5660, %v5399
        %v5662 = vpop.permute.xlu0 %5661
        %5665 = vset.pattern.permute.xlu0 0
        %5666 = vperm.xlu0 %5665, %v5400
        %v5667 = vpop.permute.xlu0 %5666
        %5670 = vset.pattern.permute.xlu0 0
        %5671 = vperm.xlu0 %5670, %v5401
        %v5672 = vpop.permute.xlu0 %5671
        %5675 = vset.pattern.permute.xlu0 0
        %5676 = vperm.xlu0 %5675, %v5402
        %v5677 = vpop.permute.xlu0 %5676
        %5680 = vset.pattern.permute.xlu0 0
        %5681 = vperm.xlu0 %5680, %v5403
        %v5682 = vpop.permute.xlu0 %5681
        %5685 = vset.pattern.permute.xlu0 0
        %5686 = vperm.xlu0 %5685, %v5404
        %v5687 = vpop.permute.xlu0 %5686
        %5690 = vset.pattern.permute.xlu0 0
        %5691 = vperm.xlu0 %5690, %v5405
        %v5692 = vpop.permute.xlu0 %5691
        %v5694 = vmul.f32 %v5457, %v5406
        %v5695 = vmul.f32 %v5462, %v5407
        %v5696 = vmul.f32 %v5467, %v5408
        %v5697 = vmul.f32 %v5472, %v5409
        %v5698 = vmul.f32 %v5477, %v5410
        %v5699 = vmul.f32 %v5482, %v5411
        %v5700 = vmul.f32 %v5487, %v5412
        %v5701 = vmul.f32 %v5492, %v5413
        %v5702 = vmul.f32 %v5497, %v5414
        %v5703 = vmul.f32 %v5502, %v5415
        %v5704 = vmul.f32 %v5507, %v5416
        %v5705 = vmul.f32 %v5512, %v5417
        %v5706 = vmul.f32 %v5517, %v5418
        %v5707 = vmul.f32 %v5522, %v5419
        %v5708 = vmul.f32 %v5527, %v5420
        %v5709 = vmul.f32 %v5532, %v5421
        %v5710 = vmul.f32 %v5537, %v5422
        %v5711 = vmul.f32 %v5542, %v5423
        %v5712 = vmul.f32 %v5547, %v5424
        %v5713 = vmul.f32 %v5552, %v5425
        %v5714 = vmul.f32 %v5557, %v5426
        %v5715 = vmul.f32 %v5562, %v5427
        %v5716 = vmul.f32 %v5567, %v5428
        %v5717 = vmul.f32 %v5572, %v5429
        %v5718 = vmul.f32 %v5577, %v5430
        %v5719 = vmul.f32 %v5582, %v5431
        %v5720 = vmul.f32 %v5587, %v5432
        %v5721 = vmul.f32 %v5592, %v5433
        %v5722 = vmul.f32 %v5597, %v5434
        %v5723 = vmul.f32 %v5602, %v5435
        %v5724 = vmul.f32 %v5607, %v5436
        %v5725 = vmul.f32 %v5612, %v5437
        %v5726 = vmul.f32 %v5617, %v5438
        %v5727 = vmul.f32 %v5622, %v5439
        %v5728 = vmul.f32 %v5627, %v5440
        %v5729 = vmul.f32 %v5632, %v5441
        %v5730 = vmul.f32 %v5637, %v5442
        %v5731 = vmul.f32 %v5642, %v5443
        %v5732 = vmul.f32 %v5647, %v5444
        %v5733 = vmul.f32 %v5652, %v5445
        %v5734 = vmul.f32 %v5657, %v5446
        %v5735 = vmul.f32 %v5662, %v5447
        %v5736 = vmul.f32 %v5667, %v5448
        %v5737 = vmul.f32 %v5672, %v5449
        %v5738 = vmul.f32 %v5677, %v5450
        %v5739 = vmul.f32 %v5682, %v5451
        %v5740 = vmul.f32 %v5687, %v5452
        %v5741 = vmul.f32 %v5692, %v5453
        %v5742 = vunpack.c.l.bf16 %v831
        %v5743 = vunpack.c.l.bf16 %v832
        %v5744 = vunpack.c.l.bf16 %v833
        %v5745 = vunpack.c.l.bf16 %v834
        %v5746 = vunpack.c.l.bf16 %v835
        %v5747 = vunpack.c.l.bf16 %v836
        %v5748 = vunpack.c.l.bf16 %v837
        %v5749 = vunpack.c.l.bf16 %v838
        %v5750 = vunpack.c.l.bf16 %v839
        %v5751 = vunpack.c.l.bf16 %v840
        %v5752 = vunpack.c.l.bf16 %v841
        %v5753 = vunpack.c.l.bf16 %v842
        %v5754 = vunpack.c.l.bf16 %v843
        %v5755 = vunpack.c.l.bf16 %v844
        %v5756 = vunpack.c.l.bf16 %v845
        %v5757 = vunpack.c.l.bf16 %v846
        %v5758 = vunpack.c.l.bf16 %v847
        %v5759 = vunpack.c.l.bf16 %v848
        %v5760 = vunpack.c.l.bf16 %v849
        %v5761 = vunpack.c.l.bf16 %v850
        %v5762 = vunpack.c.l.bf16 %v851
        %v5763 = vunpack.c.l.bf16 %v852
        %v5764 = vunpack.c.l.bf16 %v853
        %v5765 = vunpack.c.l.bf16 %v854
        %v5766 = vunpack.c.l.bf16 %v855
        %v5767 = vunpack.c.l.bf16 %v856
        %v5768 = vunpack.c.l.bf16 %v857
        %v5769 = vunpack.c.l.bf16 %v858
        %v5770 = vunpack.c.l.bf16 %v859
        %v5771 = vunpack.c.l.bf16 %v860
        %v5772 = vunpack.c.l.bf16 %v861
        %v5773 = vunpack.c.l.bf16 %v862
        %v5774 = vunpack.c.l.bf16 %v863
        %v5775 = vunpack.c.l.bf16 %v864
        %v5776 = vunpack.c.l.bf16 %v865
        %v5777 = vunpack.c.l.bf16 %v866
        %v5778 = vunpack.c.l.bf16 %v867
        %v5779 = vunpack.c.l.bf16 %v868
        %v5780 = vunpack.c.l.bf16 %v869
        %v5781 = vunpack.c.l.bf16 %v870
        %v5782 = vunpack.c.l.bf16 %v871
        %v5783 = vunpack.c.l.bf16 %v872
        %v5784 = vunpack.c.l.bf16 %v873
        %v5785 = vunpack.c.l.bf16 %v874
        %v5786 = vunpack.c.l.bf16 %v875
        %v5787 = vunpack.c.l.bf16 %v876
        %v5788 = vunpack.c.l.bf16 %v877
        %v5789 = vunpack.c.l.bf16 %v878
        %5790 = vset.pattern.permute.xlu0 1
        %5791 = vperm.xlu0 %5790, %v5358
        %v5792 = vpop.permute.xlu0 %5791
        %5794 = vset.pattern.permute.xlu0 1
        %5795 = vperm.xlu0 %5794, %v5359
        %v5796 = vpop.permute.xlu0 %5795
        %5798 = vset.pattern.permute.xlu0 1
        %5799 = vperm.xlu0 %5798, %v5360
        %v5800 = vpop.permute.xlu0 %5799
        %5802 = vset.pattern.permute.xlu0 1
        %5803 = vperm.xlu0 %5802, %v5361
        %v5804 = vpop.permute.xlu0 %5803
        %5806 = vset.pattern.permute.xlu0 1
        %5807 = vperm.xlu0 %5806, %v5362
        %v5808 = vpop.permute.xlu0 %5807
        %5810 = vset.pattern.permute.xlu0 1
        %5811 = vperm.xlu0 %5810, %v5363
        %v5812 = vpop.permute.xlu0 %5811
        %5814 = vset.pattern.permute.xlu0 1
        %5815 = vperm.xlu0 %5814, %v5364
        %v5816 = vpop.permute.xlu0 %5815
        %5818 = vset.pattern.permute.xlu0 1
        %5819 = vperm.xlu0 %5818, %v5365
        %v5820 = vpop.permute.xlu0 %5819
        %5822 = vset.pattern.permute.xlu0 1
        %5823 = vperm.xlu0 %5822, %v5366
        %v5824 = vpop.permute.xlu0 %5823
        %5826 = vset.pattern.permute.xlu0 1
        %5827 = vperm.xlu0 %5826, %v5367
        %v5828 = vpop.permute.xlu0 %5827
        %5830 = vset.pattern.permute.xlu0 1
        %5831 = vperm.xlu0 %5830, %v5368
        %v5832 = vpop.permute.xlu0 %5831
        %5834 = vset.pattern.permute.xlu0 1
        %5835 = vperm.xlu0 %5834, %v5369
        %v5836 = vpop.permute.xlu0 %5835
        %5838 = vset.pattern.permute.xlu0 1
        %5839 = vperm.xlu0 %5838, %v5370
        %v5840 = vpop.permute.xlu0 %5839
        %5842 = vset.pattern.permute.xlu0 1
        %5843 = vperm.xlu0 %5842, %v5371
        %v5844 = vpop.permute.xlu0 %5843
        %5846 = vset.pattern.permute.xlu0 1
        %5847 = vperm.xlu0 %5846, %v5372
        %v5848 = vpop.permute.xlu0 %5847
        %5850 = vset.pattern.permute.xlu0 1
        %5851 = vperm.xlu0 %5850, %v5373
        %v5852 = vpop.permute.xlu0 %5851
        %5854 = vset.pattern.permute.xlu0 1
        %5855 = vperm.xlu0 %5854, %v5374
        %v5856 = vpop.permute.xlu0 %5855
        %5858 = vset.pattern.permute.xlu0 1
        %5859 = vperm.xlu0 %5858, %v5375
        %v5860 = vpop.permute.xlu0 %5859
        %5862 = vset.pattern.permute.xlu0 1
        %5863 = vperm.xlu0 %5862, %v5376
        %v5864 = vpop.permute.xlu0 %5863
        %5866 = vset.pattern.permute.xlu0 1
        %5867 = vperm.xlu0 %5866, %v5377
        %v5868 = vpop.permute.xlu0 %5867
        %5870 = vset.pattern.permute.xlu0 1
        %5871 = vperm.xlu0 %5870, %v5378
        %v5872 = vpop.permute.xlu0 %5871
        %5874 = vset.pattern.permute.xlu0 1
        %5875 = vperm.xlu0 %5874, %v5379
        %v5876 = vpop.permute.xlu0 %5875
        %5878 = vset.pattern.permute.xlu0 1
        %5879 = vperm.xlu0 %5878, %v5380
        %v5880 = vpop.permute.xlu0 %5879
        %5882 = vset.pattern.permute.xlu0 1
        %5883 = vperm.xlu0 %5882, %v5381
        %v5884 = vpop.permute.xlu0 %5883
        %5886 = vset.pattern.permute.xlu0 1
        %5887 = vperm.xlu0 %5886, %v5382
        %v5888 = vpop.permute.xlu0 %5887
        %5890 = vset.pattern.permute.xlu0 1
        %5891 = vperm.xlu0 %5890, %v5383
        %v5892 = vpop.permute.xlu0 %5891
        %5894 = vset.pattern.permute.xlu0 1
        %5895 = vperm.xlu0 %5894, %v5384
        %v5896 = vpop.permute.xlu0 %5895
        %5898 = vset.pattern.permute.xlu0 1
        %5899 = vperm.xlu0 %5898, %v5385
        %v5900 = vpop.permute.xlu0 %5899
        %5902 = vset.pattern.permute.xlu0 1
        %5903 = vperm.xlu0 %5902, %v5386
        %v5904 = vpop.permute.xlu0 %5903
        %5906 = vset.pattern.permute.xlu0 1
        %5907 = vperm.xlu0 %5906, %v5387
        %v5908 = vpop.permute.xlu0 %5907
        %5910 = vset.pattern.permute.xlu0 1
        %5911 = vperm.xlu0 %5910, %v5388
        %v5912 = vpop.permute.xlu0 %5911
        %5914 = vset.pattern.permute.xlu0 1
        %5915 = vperm.xlu0 %5914, %v5389
        %v5916 = vpop.permute.xlu0 %5915
        %5918 = vset.pattern.permute.xlu0 1
        %5919 = vperm.xlu0 %5918, %v5390
        %v5920 = vpop.permute.xlu0 %5919
        %5922 = vset.pattern.permute.xlu0 1
        %5923 = vperm.xlu0 %5922, %v5391
        %v5924 = vpop.permute.xlu0 %5923
        %5926 = vset.pattern.permute.xlu0 1
        %5927 = vperm.xlu0 %5926, %v5392
        %v5928 = vpop.permute.xlu0 %5927
        %5930 = vset.pattern.permute.xlu0 1
        %5931 = vperm.xlu0 %5930, %v5393
        %v5932 = vpop.permute.xlu0 %5931
        %5934 = vset.pattern.permute.xlu0 1
        %5935 = vperm.xlu0 %5934, %v5394
        %v5936 = vpop.permute.xlu0 %5935
        %5938 = vset.pattern.permute.xlu0 1
        %5939 = vperm.xlu0 %5938, %v5395
        %v5940 = vpop.permute.xlu0 %5939
        %5942 = vset.pattern.permute.xlu0 1
        %5943 = vperm.xlu0 %5942, %v5396
        %v5944 = vpop.permute.xlu0 %5943
        %5946 = vset.pattern.permute.xlu0 1
        %5947 = vperm.xlu0 %5946, %v5397
        %v5948 = vpop.permute.xlu0 %5947
        %5950 = vset.pattern.permute.xlu0 1
        %5951 = vperm.xlu0 %5950, %v5398
        %v5952 = vpop.permute.xlu0 %5951
        %5954 = vset.pattern.permute.xlu0 1
        %5955 = vperm.xlu0 %5954, %v5399
        %v5956 = vpop.permute.xlu0 %5955
        %5958 = vset.pattern.permute.xlu0 1
        %5959 = vperm.xlu0 %5958, %v5400
        %v5960 = vpop.permute.xlu0 %5959
        %5962 = vset.pattern.permute.xlu0 1
        %5963 = vperm.xlu0 %5962, %v5401
        %v5964 = vpop.permute.xlu0 %5963
        %5966 = vset.pattern.permute.xlu0 1
        %5967 = vperm.xlu0 %5966, %v5402
        %v5968 = vpop.permute.xlu0 %5967
        %5970 = vset.pattern.permute.xlu0 1
        %5971 = vperm.xlu0 %5970, %v5403
        %v5972 = vpop.permute.xlu0 %5971
        %5974 = vset.pattern.permute.xlu0 1
        %5975 = vperm.xlu0 %5974, %v5404
        %v5976 = vpop.permute.xlu0 %5975
        %5978 = vset.pattern.permute.xlu0 1
        %5979 = vperm.xlu0 %5978, %v5405
        %v5980 = vpop.permute.xlu0 %5979
        %v5982 = vmul.f32 %v5792, %v5742
        %v5983 = vmul.f32 %v5796, %v5743
        %v5984 = vmul.f32 %v5800, %v5744
        %v5985 = vmul.f32 %v5804, %v5745
        %v5986 = vmul.f32 %v5808, %v5746
        %v5987 = vmul.f32 %v5812, %v5747
        %v5988 = vmul.f32 %v5816, %v5748
        %v5989 = vmul.f32 %v5820, %v5749
        %v5990 = vmul.f32 %v5824, %v5750
        %v5991 = vmul.f32 %v5828, %v5751
        %v5992 = vmul.f32 %v5832, %v5752
        %v5993 = vmul.f32 %v5836, %v5753
        %v5994 = vmul.f32 %v5840, %v5754
        %v5995 = vmul.f32 %v5844, %v5755
        %v5996 = vmul.f32 %v5848, %v5756
        %v5997 = vmul.f32 %v5852, %v5757
        %v5998 = vmul.f32 %v5856, %v5758
        %v5999 = vmul.f32 %v5860, %v5759
        %v6000 = vmul.f32 %v5864, %v5760
        %v6001 = vmul.f32 %v5868, %v5761
        %v6002 = vmul.f32 %v5872, %v5762
        %v6003 = vmul.f32 %v5876, %v5763
        %v6004 = vmul.f32 %v5880, %v5764
        %v6005 = vmul.f32 %v5884, %v5765
        %v6006 = vmul.f32 %v5888, %v5766
        %v6007 = vmul.f32 %v5892, %v5767
        %v6008 = vmul.f32 %v5896, %v5768
        %v6009 = vmul.f32 %v5900, %v5769
        %v6010 = vmul.f32 %v5904, %v5770
        %v6011 = vmul.f32 %v5908, %v5771
        %v6012 = vmul.f32 %v5912, %v5772
        %v6013 = vmul.f32 %v5916, %v5773
        %v6014 = vmul.f32 %v5920, %v5774
        %v6015 = vmul.f32 %v5924, %v5775
        %v6016 = vmul.f32 %v5928, %v5776
        %v6017 = vmul.f32 %v5932, %v5777
        %v6018 = vmul.f32 %v5936, %v5778
        %v6019 = vmul.f32 %v5940, %v5779
        %v6020 = vmul.f32 %v5944, %v5780
        %v6021 = vmul.f32 %v5948, %v5781
        %v6022 = vmul.f32 %v5952, %v5782
        %v6023 = vmul.f32 %v5956, %v5783
        %v6024 = vmul.f32 %v5960, %v5784
        %v6025 = vmul.f32 %v5964, %v5785
        %v6026 = vmul.f32 %v5968, %v5786
        %v6027 = vmul.f32 %v5972, %v5787
        %v6028 = vmul.f32 %v5976, %v5788
        %v6029 = vmul.f32 %v5980, %v5789
        %v6030 = vadd.f32 %v5694, %v5982
        %v6031 = vadd.f32 %v5695, %v5983
        %v6032 = vadd.f32 %v5696, %v5984
        %v6033 = vadd.f32 %v5697, %v5985
        %v6034 = vadd.f32 %v5698, %v5986
        %v6035 = vadd.f32 %v5699, %v5987
        %v6036 = vadd.f32 %v5700, %v5988
        %v6037 = vadd.f32 %v5701, %v5989
        %v6038 = vadd.f32 %v5702, %v5990
        %v6039 = vadd.f32 %v5703, %v5991
        %v6040 = vadd.f32 %v5704, %v5992
        %v6041 = vadd.f32 %v5705, %v5993
        %v6042 = vadd.f32 %v5706, %v5994
        %v6043 = vadd.f32 %v5707, %v5995
        %v6044 = vadd.f32 %v5708, %v5996
        %v6045 = vadd.f32 %v5709, %v5997
        %v6046 = vadd.f32 %v5710, %v5998
        %v6047 = vadd.f32 %v5711, %v5999
        %v6048 = vadd.f32 %v5712, %v6000
        %v6049 = vadd.f32 %v5713, %v6001
        %v6050 = vadd.f32 %v5714, %v6002
        %v6051 = vadd.f32 %v5715, %v6003
        %v6052 = vadd.f32 %v5716, %v6004
        %v6053 = vadd.f32 %v5717, %v6005
        %v6054 = vadd.f32 %v5718, %v6006
        %v6055 = vadd.f32 %v5719, %v6007
        %v6056 = vadd.f32 %v5720, %v6008
        %v6057 = vadd.f32 %v5721, %v6009
        %v6058 = vadd.f32 %v5722, %v6010
        %v6059 = vadd.f32 %v5723, %v6011
        %v6060 = vadd.f32 %v5724, %v6012
        %v6061 = vadd.f32 %v5725, %v6013
        %v6062 = vadd.f32 %v5726, %v6014
        %v6063 = vadd.f32 %v5727, %v6015
        %v6064 = vadd.f32 %v5728, %v6016
        %v6065 = vadd.f32 %v5729, %v6017
        %v6066 = vadd.f32 %v5730, %v6018
        %v6067 = vadd.f32 %v5731, %v6019
        %v6068 = vadd.f32 %v5732, %v6020
        %v6069 = vadd.f32 %v5733, %v6021
        %v6070 = vadd.f32 %v5734, %v6022
        %v6071 = vadd.f32 %v5735, %v6023
        %v6072 = vadd.f32 %v5736, %v6024
        %v6073 = vadd.f32 %v5737, %v6025
        %v6074 = vadd.f32 %v5738, %v6026
        %v6075 = vadd.f32 %v5739, %v6027
        %v6076 = vadd.f32 %v5740, %v6028
        %v6077 = vadd.f32 %v5741, %v6029
        %v6078 = vunpack.c.l.bf16 %v879
        %v6079 = vunpack.c.l.bf16 %v880
        %v6080 = vunpack.c.l.bf16 %v881
        %v6081 = vunpack.c.l.bf16 %v882
        %v6082 = vunpack.c.l.bf16 %v883
        %v6083 = vunpack.c.l.bf16 %v884
        %v6084 = vunpack.c.l.bf16 %v885
        %v6085 = vunpack.c.l.bf16 %v886
        %v6086 = vunpack.c.l.bf16 %v887
        %v6087 = vunpack.c.l.bf16 %v888
        %v6088 = vunpack.c.l.bf16 %v889
        %v6089 = vunpack.c.l.bf16 %v890
        %v6090 = vunpack.c.l.bf16 %v891
        %v6091 = vunpack.c.l.bf16 %v892
        %v6092 = vunpack.c.l.bf16 %v893
        %v6093 = vunpack.c.l.bf16 %v894
        %v6094 = vunpack.c.l.bf16 %v895
        %v6095 = vunpack.c.l.bf16 %v896
        %v6096 = vunpack.c.l.bf16 %v897
        %v6097 = vunpack.c.l.bf16 %v898
        %v6098 = vunpack.c.l.bf16 %v899
        %v6099 = vunpack.c.l.bf16 %v900
        %v6100 = vunpack.c.l.bf16 %v901
        %v6101 = vunpack.c.l.bf16 %v902
        %v6102 = vunpack.c.l.bf16 %v903
        %v6103 = vunpack.c.l.bf16 %v904
        %v6104 = vunpack.c.l.bf16 %v905
        %v6105 = vunpack.c.l.bf16 %v906
        %v6106 = vunpack.c.l.bf16 %v907
        %v6107 = vunpack.c.l.bf16 %v908
        %v6108 = vunpack.c.l.bf16 %v909
        %v6109 = vunpack.c.l.bf16 %v910
        %v6110 = vunpack.c.l.bf16 %v911
        %v6111 = vunpack.c.l.bf16 %v912
        %v6112 = vunpack.c.l.bf16 %v913
        %v6113 = vunpack.c.l.bf16 %v914
        %v6114 = vunpack.c.l.bf16 %v915
        %v6115 = vunpack.c.l.bf16 %v916
        %v6116 = vunpack.c.l.bf16 %v917
        %v6117 = vunpack.c.l.bf16 %v918
        %v6118 = vunpack.c.l.bf16 %v919
        %v6119 = vunpack.c.l.bf16 %v920
        %v6120 = vunpack.c.l.bf16 %v921
        %v6121 = vunpack.c.l.bf16 %v922
        %v6122 = vunpack.c.l.bf16 %v923
        %v6123 = vunpack.c.l.bf16 %v924
        %v6124 = vunpack.c.l.bf16 %v925
        %v6125 = vunpack.c.l.bf16 %v926
        %6126 = vset.pattern.permute.xlu0 2
        %6127 = vperm.xlu0 %6126, %v5358
        %v6128 = vpop.permute.xlu0 %6127
        %6130 = vset.pattern.permute.xlu0 2
        %6131 = vperm.xlu0 %6130, %v5359
        %v6132 = vpop.permute.xlu0 %6131
        %6134 = vset.pattern.permute.xlu0 2
        %6135 = vperm.xlu0 %6134, %v5360
        %v6136 = vpop.permute.xlu0 %6135
        %6138 = vset.pattern.permute.xlu0 2
        %6139 = vperm.xlu0 %6138, %v5361
        %v6140 = vpop.permute.xlu0 %6139
        %6142 = vset.pattern.permute.xlu0 2
        %6143 = vperm.xlu0 %6142, %v5362
        %v6144 = vpop.permute.xlu0 %6143
        %6146 = vset.pattern.permute.xlu0 2
        %6147 = vperm.xlu0 %6146, %v5363
        %v6148 = vpop.permute.xlu0 %6147
        %6150 = vset.pattern.permute.xlu0 2
        %6151 = vperm.xlu0 %6150, %v5364
        %v6152 = vpop.permute.xlu0 %6151
        %6154 = vset.pattern.permute.xlu0 2
        %6155 = vperm.xlu0 %6154, %v5365
        %v6156 = vpop.permute.xlu0 %6155
        %6158 = vset.pattern.permute.xlu0 2
        %6159 = vperm.xlu0 %6158, %v5366
        %v6160 = vpop.permute.xlu0 %6159
        %6162 = vset.pattern.permute.xlu0 2
        %6163 = vperm.xlu0 %6162, %v5367
        %v6164 = vpop.permute.xlu0 %6163
        %6166 = vset.pattern.permute.xlu0 2
        %6167 = vperm.xlu0 %6166, %v5368
        %v6168 = vpop.permute.xlu0 %6167
        %6170 = vset.pattern.permute.xlu0 2
        %6171 = vperm.xlu0 %6170, %v5369
        %v6172 = vpop.permute.xlu0 %6171
        %6174 = vset.pattern.permute.xlu0 2
        %6175 = vperm.xlu0 %6174, %v5370
        %v6176 = vpop.permute.xlu0 %6175
        %6178 = vset.pattern.permute.xlu0 2
        %6179 = vperm.xlu0 %6178, %v5371
        %v6180 = vpop.permute.xlu0 %6179
        %6182 = vset.pattern.permute.xlu0 2
        %6183 = vperm.xlu0 %6182, %v5372
        %v6184 = vpop.permute.xlu0 %6183
        %6186 = vset.pattern.permute.xlu0 2
        %6187 = vperm.xlu0 %6186, %v5373
        %v6188 = vpop.permute.xlu0 %6187
        %6190 = vset.pattern.permute.xlu0 2
        %6191 = vperm.xlu0 %6190, %v5374
        %v6192 = vpop.permute.xlu0 %6191
        %6194 = vset.pattern.permute.xlu0 2
        %6195 = vperm.xlu0 %6194, %v5375
        %v6196 = vpop.permute.xlu0 %6195
        %6198 = vset.pattern.permute.xlu0 2
        %6199 = vperm.xlu0 %6198, %v5376
        %v6200 = vpop.permute.xlu0 %6199
        %6202 = vset.pattern.permute.xlu0 2
        %6203 = vperm.xlu0 %6202, %v5377
        %v6204 = vpop.permute.xlu0 %6203
        %6206 = vset.pattern.permute.xlu0 2
        %6207 = vperm.xlu0 %6206, %v5378
        %v6208 = vpop.permute.xlu0 %6207
        %6210 = vset.pattern.permute.xlu0 2
        %6211 = vperm.xlu0 %6210, %v5379
        %v6212 = vpop.permute.xlu0 %6211
        %6214 = vset.pattern.permute.xlu0 2
        %6215 = vperm.xlu0 %6214, %v5380
        %v6216 = vpop.permute.xlu0 %6215
        %6218 = vset.pattern.permute.xlu0 2
        %6219 = vperm.xlu0 %6218, %v5381
        %v6220 = vpop.permute.xlu0 %6219
        %6222 = vset.pattern.permute.xlu0 2
        %6223 = vperm.xlu0 %6222, %v5382
        %v6224 = vpop.permute.xlu0 %6223
        %6226 = vset.pattern.permute.xlu0 2
        %6227 = vperm.xlu0 %6226, %v5383
        %v6228 = vpop.permute.xlu0 %6227
        %6230 = vset.pattern.permute.xlu0 2
        %6231 = vperm.xlu0 %6230, %v5384
        %v6232 = vpop.permute.xlu0 %6231
        %6234 = vset.pattern.permute.xlu0 2
        %6235 = vperm.xlu0 %6234, %v5385
        %v6236 = vpop.permute.xlu0 %6235
        %6238 = vset.pattern.permute.xlu0 2
        %6239 = vperm.xlu0 %6238, %v5386
        %v6240 = vpop.permute.xlu0 %6239
        %6242 = vset.pattern.permute.xlu0 2
        %6243 = vperm.xlu0 %6242, %v5387
        %v6244 = vpop.permute.xlu0 %6243
        %6246 = vset.pattern.permute.xlu0 2
        %6247 = vperm.xlu0 %6246, %v5388
        %v6248 = vpop.permute.xlu0 %6247
        %6250 = vset.pattern.permute.xlu0 2
        %6251 = vperm.xlu0 %6250, %v5389
        %v6252 = vpop.permute.xlu0 %6251
        %6254 = vset.pattern.permute.xlu0 2
        %6255 = vperm.xlu0 %6254, %v5390
        %v6256 = vpop.permute.xlu0 %6255
        %6258 = vset.pattern.permute.xlu0 2
        %6259 = vperm.xlu0 %6258, %v5391
        %v6260 = vpop.permute.xlu0 %6259
        %6262 = vset.pattern.permute.xlu0 2
        %6263 = vperm.xlu0 %6262, %v5392
        %v6264 = vpop.permute.xlu0 %6263
        %6266 = vset.pattern.permute.xlu0 2
        %6267 = vperm.xlu0 %6266, %v5393
        %v6268 = vpop.permute.xlu0 %6267
        %6270 = vset.pattern.permute.xlu0 2
        %6271 = vperm.xlu0 %6270, %v5394
        %v6272 = vpop.permute.xlu0 %6271
        %6274 = vset.pattern.permute.xlu0 2
        %6275 = vperm.xlu0 %6274, %v5395
        %v6276 = vpop.permute.xlu0 %6275
        %6278 = vset.pattern.permute.xlu0 2
        %6279 = vperm.xlu0 %6278, %v5396
        %v6280 = vpop.permute.xlu0 %6279
        %6282 = vset.pattern.permute.xlu0 2
        %6283 = vperm.xlu0 %6282, %v5397
        %v6284 = vpop.permute.xlu0 %6283
        %6286 = vset.pattern.permute.xlu0 2
        %6287 = vperm.xlu0 %6286, %v5398
        %v6288 = vpop.permute.xlu0 %6287
        %6290 = vset.pattern.permute.xlu0 2
        %6291 = vperm.xlu0 %6290, %v5399
        %v6292 = vpop.permute.xlu0 %6291
        %6294 = vset.pattern.permute.xlu0 2
        %6295 = vperm.xlu0 %6294, %v5400
        %v6296 = vpop.permute.xlu0 %6295
        %6298 = vset.pattern.permute.xlu0 2
        %6299 = vperm.xlu0 %6298, %v5401
        %v6300 = vpop.permute.xlu0 %6299
        %6302 = vset.pattern.permute.xlu0 2
        %6303 = vperm.xlu0 %6302, %v5402
        %v6304 = vpop.permute.xlu0 %6303
        %6306 = vset.pattern.permute.xlu0 2
        %6307 = vperm.xlu0 %6306, %v5403
        %v6308 = vpop.permute.xlu0 %6307
        %6310 = vset.pattern.permute.xlu0 2
        %6311 = vperm.xlu0 %6310, %v5404
        %v6312 = vpop.permute.xlu0 %6311
        %6314 = vset.pattern.permute.xlu0 2
        %6315 = vperm.xlu0 %6314, %v5405
        %v6316 = vpop.permute.xlu0 %6315
        %v6318 = vmul.f32 %v6128, %v6078
        %v6319 = vmul.f32 %v6132, %v6079
        %v6320 = vmul.f32 %v6136, %v6080
        %v6321 = vmul.f32 %v6140, %v6081
        %v6322 = vmul.f32 %v6144, %v6082
        %v6323 = vmul.f32 %v6148, %v6083
        %v6324 = vmul.f32 %v6152, %v6084
        %v6325 = vmul.f32 %v6156, %v6085
        %v6326 = vmul.f32 %v6160, %v6086
        %v6327 = vmul.f32 %v6164, %v6087
        %v6328 = vmul.f32 %v6168, %v6088
        %v6329 = vmul.f32 %v6172, %v6089
        %v6330 = vmul.f32 %v6176, %v6090
        %v6331 = vmul.f32 %v6180, %v6091
        %v6332 = vmul.f32 %v6184, %v6092
        %v6333 = vmul.f32 %v6188, %v6093
        %v6334 = vmul.f32 %v6192, %v6094
        %v6335 = vmul.f32 %v6196, %v6095
        %v6336 = vmul.f32 %v6200, %v6096
        %v6337 = vmul.f32 %v6204, %v6097
        %v6338 = vmul.f32 %v6208, %v6098
        %v6339 = vmul.f32 %v6212, %v6099
        %v6340 = vmul.f32 %v6216, %v6100
        %v6341 = vmul.f32 %v6220, %v6101
        %v6342 = vmul.f32 %v6224, %v6102
        %v6343 = vmul.f32 %v6228, %v6103
        %v6344 = vmul.f32 %v6232, %v6104
        %v6345 = vmul.f32 %v6236, %v6105
        %v6346 = vmul.f32 %v6240, %v6106
        %v6347 = vmul.f32 %v6244, %v6107
        %v6348 = vmul.f32 %v6248, %v6108
        %v6349 = vmul.f32 %v6252, %v6109
        %v6350 = vmul.f32 %v6256, %v6110
        %v6351 = vmul.f32 %v6260, %v6111
        %v6352 = vmul.f32 %v6264, %v6112
        %v6353 = vmul.f32 %v6268, %v6113
        %v6354 = vmul.f32 %v6272, %v6114
        %v6355 = vmul.f32 %v6276, %v6115
        %v6356 = vmul.f32 %v6280, %v6116
        %v6357 = vmul.f32 %v6284, %v6117
        %v6358 = vmul.f32 %v6288, %v6118
        %v6359 = vmul.f32 %v6292, %v6119
        %v6360 = vmul.f32 %v6296, %v6120
        %v6361 = vmul.f32 %v6300, %v6121
        %v6362 = vmul.f32 %v6304, %v6122
        %v6363 = vmul.f32 %v6308, %v6123
        %v6364 = vmul.f32 %v6312, %v6124
        %v6365 = vmul.f32 %v6316, %v6125
        %v6366 = vadd.f32 %v6030, %v6318
        %v6367 = vadd.f32 %v6031, %v6319
        %v6368 = vadd.f32 %v6032, %v6320
        %v6369 = vadd.f32 %v6033, %v6321
        %v6370 = vadd.f32 %v6034, %v6322
        %v6371 = vadd.f32 %v6035, %v6323
        %v6372 = vadd.f32 %v6036, %v6324
        %v6373 = vadd.f32 %v6037, %v6325
        %v6374 = vadd.f32 %v6038, %v6326
        %v6375 = vadd.f32 %v6039, %v6327
        %v6376 = vadd.f32 %v6040, %v6328
        %v6377 = vadd.f32 %v6041, %v6329
        %v6378 = vadd.f32 %v6042, %v6330
        %v6379 = vadd.f32 %v6043, %v6331
        %v6380 = vadd.f32 %v6044, %v6332
        %v6381 = vadd.f32 %v6045, %v6333
        %v6382 = vadd.f32 %v6046, %v6334
        %v6383 = vadd.f32 %v6047, %v6335
        %v6384 = vadd.f32 %v6048, %v6336
        %v6385 = vadd.f32 %v6049, %v6337
        %v6386 = vadd.f32 %v6050, %v6338
        %v6387 = vadd.f32 %v6051, %v6339
        %v6388 = vadd.f32 %v6052, %v6340
        %v6389 = vadd.f32 %v6053, %v6341
        %v6390 = vadd.f32 %v6054, %v6342
        %v6391 = vadd.f32 %v6055, %v6343
        %v6392 = vadd.f32 %v6056, %v6344
        %v6393 = vadd.f32 %v6057, %v6345
        %v6394 = vadd.f32 %v6058, %v6346
        %v6395 = vadd.f32 %v6059, %v6347
        %v6396 = vadd.f32 %v6060, %v6348
        %v6397 = vadd.f32 %v6061, %v6349
        %v6398 = vadd.f32 %v6062, %v6350
        %v6399 = vadd.f32 %v6063, %v6351
        %v6400 = vadd.f32 %v6064, %v6352
        %v6401 = vadd.f32 %v6065, %v6353
        %v6402 = vadd.f32 %v6066, %v6354
        %v6403 = vadd.f32 %v6067, %v6355
        %v6404 = vadd.f32 %v6068, %v6356
        %v6405 = vadd.f32 %v6069, %v6357
        %v6406 = vadd.f32 %v6070, %v6358
        %v6407 = vadd.f32 %v6071, %v6359
        %v6408 = vadd.f32 %v6072, %v6360
        %v6409 = vadd.f32 %v6073, %v6361
        %v6410 = vadd.f32 %v6074, %v6362
        %v6411 = vadd.f32 %v6075, %v6363
        %v6412 = vadd.f32 %v6076, %v6364
        %v6413 = vadd.f32 %v6077, %v6365
        %v6414 = vpack.c.bf16 %v6367, %v6366
        %v6415 = vpack.c.bf16 %v6369, %v6368
        %v6416 = vpack.c.bf16 %v6371, %v6370
        %v6417 = vpack.c.bf16 %v6373, %v6372
        %v6418 = vpack.c.bf16 %v6375, %v6374
        %v6419 = vpack.c.bf16 %v6377, %v6376
        %v6420 = vpack.c.bf16 %v6379, %v6378
        %v6421 = vpack.c.bf16 %v6381, %v6380
        %v6422 = vpack.c.bf16 %v6383, %v6382
        %v6423 = vpack.c.bf16 %v6385, %v6384
        %v6424 = vpack.c.bf16 %v6387, %v6386
        %v6425 = vpack.c.bf16 %v6389, %v6388
        %v6426 = vpack.c.bf16 %v6391, %v6390
        %v6427 = vpack.c.bf16 %v6393, %v6392
        %v6428 = vpack.c.bf16 %v6395, %v6394
        %v6429 = vpack.c.bf16 %v6397, %v6396
        %v6430 = vpack.c.bf16 %v6399, %v6398
        %v6431 = vpack.c.bf16 %v6401, %v6400
        %v6432 = vpack.c.bf16 %v6403, %v6402
        %v6433 = vpack.c.bf16 %v6405, %v6404
        %v6434 = vpack.c.bf16 %v6407, %v6406
        %v6435 = vpack.c.bf16 %v6409, %v6408
        %v6436 = vpack.c.bf16 %v6411, %v6410
        %v6437 = vpack.c.bf16 %v6413, %v6412
        %v6438 = vld [vmem:[%s710] sm:$0xf]
        %v6439 = vld [vmem:[%s710 + $0x4] sm:$0xf]
        %v6440 = vld [vmem:[%s710 + $0x8] sm:$0xf]
        %v6441 = vld [vmem:[%s710 + $0xc] sm:$0xf]
        %v6442 = vld [vmem:[%s710 + $0x10] sm:$0xf]
        %v6443 = vld [vmem:[%s710 + $0x14] sm:$0xf]
        %v6444 = vld [vmem:[%s742] sm:$0xf]
        %v6445 = vld [vmem:[%s742 + $0x4] sm:$0xf]
        %v6446 = vld [vmem:[%s742 + $0x8] sm:$0xf]
        %v6447 = vld [vmem:[%s742 + $0xc] sm:$0xf]
        %v6448 = vld [vmem:[%s742 + $0x10] sm:$0xf]
        %v6449 = vld [vmem:[%s742 + $0x14] sm:$0xf]
        %v6450 = vld [vmem:[%s774] sm:$0xf]
        %v6451 = vld [vmem:[%s774 + $0x4] sm:$0xf]
        %v6452 = vld [vmem:[%s774 + $0x8] sm:$0xf]
        %v6453 = vld [vmem:[%s774 + $0xc] sm:$0xf]
        %v6454 = vld [vmem:[%s774 + $0x10] sm:$0xf]
        %v6455 = vld [vmem:[%s774 + $0x14] sm:$0xf]
        %v6462 = vunpack.c.l.b16 %v6438
        %v6463 = vunpack.c.l.b16 %v6439
        %v6464 = vunpack.c.l.b16 %v6440
        %v6465 = vunpack.c.l.b16 %v6441
        %v6466 = vunpack.c.l.b16 %v6442
        %v6467 = vunpack.c.l.b16 %v6443
        %v6468 = vpack.c.b16 %v6463, %v6462
        %v6469 = vpack.c.b16 %v6465, %v6464
        %v6470 = vpack.c.b16 %v6467, %v6466
        %6474 = vmatprep.subr.bf16.mxu0 0
        %6475 = vmatpush1.bf16.msra.mxu0 %v1119
        %6476 = vmatprep.subr.bf16.mxu0 0
        %6477 = vmatpush1.bf16.msra.mxu0 %v1120
        %6478 = vmatprep.subr.bf16.mxu0 0
        %6479 = vmatpush1.bf16.msra.mxu0 %v1121
        %6480 = vmatprep.subr.bf16.mxu0 0
        %6481 = vmatpush1.bf16.msra.mxu0 %v1122
        %6482 = vmatprep.subr.bf16.mxu0 0
        %6483 = vmatpush1.bf16.msra.mxu0 %v1123
        %6484 = vmatprep.subr.bf16.mxu0 0
        %6485 = vmatpush1.bf16.msra.mxu0 %v1124
        %6486 = vmatprep.subr.bf16.mxu0 0
        %6487 = vmatpush1.bf16.msra.mxu0 %v1125
        %6488 = vmatprep.subr.bf16.mxu0 0
        %6489 = vmatpush1.bf16.msra.mxu0 %v1126
        %6490 = vmatprep.subr.bf16.mxu0 0
        %6491 = vmatpush1.bf16.msra.mxu0 0
        %6492 = vmatprep.subr.bf16.mxu0 0
        %6493 = vmatpush1.bf16.msra.mxu0 0
        %6494 = vmatprep.subr.bf16.mxu0 0
        %6495 = vmatpush1.bf16.msra.mxu0 0
        %6496 = vmatprep.subr.bf16.mxu0 0
        %6497 = vmatpush1.bf16.msra.mxu0 0
        %6498 = vmatprep.subr.bf16.mxu0 0
        %6499 = vmatpush1.bf16.msra.mxu0 0
        %6500 = vmatprep.subr.bf16.mxu0 0
        %6501 = vmatpush1.bf16.msra.mxu0 0
        %6502 = vmatprep.subr.bf16.mxu0 0
        %6503 = vmatpush1.bf16.msra.mxu0 0
        %6504 = vmatprep.subr.bf16.mxu0 0
        %6505 = vmatpush1.bf16.msra.mxu0 0
        %6506 = vmatprep.mubr.bf16.mxu0 0
        %6507 = vmatmul.mubr.bf16.gmra.mrb[0].mxu0 %v6468
        %v6508 = vpop.f32.mrb[0].mxu0
        %v6509 = vadd.f32 0.0, %v6508
        %v6510 = vpop.f32.mrb[0].mxu0
        %v6511 = vpop.f32.mrb[0].mxu0
        %v6512 = vadd.f32 0.0, %v6511
        %v6513 = vpop.f32.mrb[0].mxu0
        %6514 = vmatprep.mubr.bf16.mxu0 0
        %6515 = vmatmul.mubr.bf16.gmra.mrb[0].mxu0 %v6469
        %v6516 = vpop.f32.mrb[0].mxu0
        %v6517 = vadd.f32 0.0, %v6516
        %v6518 = vpop.f32.mrb[0].mxu0
        %v6519 = vpop.f32.mrb[0].mxu0
        %v6520 = vadd.f32 0.0, %v6519
        %v6521 = vpop.f32.mrb[0].mxu0
        %6522 = vmatprep.mubr.bf16.mxu0 0
        %6523 = vmatmul.mubr.bf16.gmra.mrb[0].mxu0 %v6470
        %v6524 = vpop.f32.mrb[0].mxu0
        %v6525 = vadd.f32 0.0, %v6524
        %v6526 = vpop.f32.mrb[0].mxu0
        %v6527 = vpop.f32.mrb[0].mxu0
        %v6528 = vadd.f32 0.0, %v6527
        %v6529 = vpop.f32.mrb[0].mxu0
        %6530 = vdwg.mxu0
        %v6531 = vmul.f32 %v6509, %v1365
        %v6532 = vmul.f32 %v6512, %v1365
        %v6533 = vmul.f32 %v6517, %v1365
        %v6534 = vmul.f32 %v6520, %v1365
        %v6535 = vmul.f32 %v6525, %v1365
        %v6536 = vmul.f32 %v6528, %v1365
        %v6537 = vadd.f32 %v6531, %v1420
        %v6538 = vadd.f32 %v6532, %v1420
        %v6539 = vadd.f32 %v6533, %v1420
        %v6540 = vadd.f32 %v6534, %v1420
        %v6541 = vadd.f32 %v6535, %v1420
        %v6542 = vadd.f32 %v6536, %v1420
        %v6543 = vsub.f32 0.0, %v6537
        %v6544 = vsub.f32 0.0, %v6538
        %v6545 = vsub.f32 0.0, %v6539
        %v6546 = vsub.f32 0.0, %v6540
        %v6547 = vsub.f32 0.0, %v6541
        %v6548 = vsub.f32 0.0, %v6542
        %v6549 = vmul.f32 %v6543, 1.442695
        %v6550 = vpow.pop %v6549
        %v6551 = vmul.f32 %v6544, 1.442695
        %v6552 = vpow.pop %v6551
        %v6553 = vmul.f32 %v6545, 1.442695
        %v6554 = vpow.pop %v6553
        %v6555 = vmul.f32 %v6546, 1.442695
        %v6556 = vpow.pop %v6555
        %v6557 = vmul.f32 %v6547, 1.442695
        %v6558 = vpow.pop %v6557
        %v6559 = vmul.f32 %v6548, 1.442695
        %v6560 = vpow.pop %v6559
        %v6561 = vadd.f32 %v6550, 1.0
        %v6562 = vadd.f32 %v6552, 1.0
        %v6563 = vadd.f32 %v6554, 1.0
        %v6564 = vadd.f32 %v6556, 1.0
        %v6565 = vadd.f32 %v6558, 1.0
        %v6566 = vadd.f32 %v6560, 1.0
        %v6567 = vrcp.pop %v6561
        %v6568 = vrcp.pop %v6562
        %v6569 = vrcp.pop %v6563
        %v6570 = vrcp.pop %v6564
        %v6571 = vrcp.pop %v6565
        %v6572 = vrcp.pop %v6566
        %v6573 = vmul.f32 %v6537, %v6567
        %v6574 = vmul.f32 %v6538, %v6568
        %v6575 = vmul.f32 %v6539, %v6569
        %v6576 = vmul.f32 %v6540, %v6570
        %v6577 = vmul.f32 %v6541, %v6571
        %v6578 = vmul.f32 %v6542, %v6572
        %v6585 = vunpack.c.l.b16 %v6444
        %v6586 = vunpack.c.l.b16 %v6445
        %v6587 = vunpack.c.l.b16 %v6446
        %v6588 = vunpack.c.l.b16 %v6447
        %v6589 = vunpack.c.l.b16 %v6448
        %v6590 = vunpack.c.l.b16 %v6449
        %v6591 = vpack.c.b16 %v6586, %v6585
        %v6592 = vpack.c.b16 %v6588, %v6587
        %v6593 = vpack.c.b16 %v6590, %v6589
        %6597 = vmatprep.subr.bf16.mxu0 0
        %6598 = vmatpush1.bf16.msra.mxu0 %v1951
        %6599 = vmatprep.subr.bf16.mxu0 0
        %6600 = vmatpush1.bf16.msra.mxu0 %v1952
        %6601 = vmatprep.subr.bf16.mxu0 0
        %6602 = vmatpush1.bf16.msra.mxu0 %v1953
        %6603 = vmatprep.subr.bf16.mxu0 0
        %6604 = vmatpush1.bf16.msra.mxu0 %v1954
        %6605 = vmatprep.subr.bf16.mxu0 0
        %6606 = vmatpush1.bf16.msra.mxu0 %v1955
        %6607 = vmatprep.subr.bf16.mxu0 0
        %6608 = vmatpush1.bf16.msra.mxu0 %v1956
        %6609 = vmatprep.subr.bf16.mxu0 0
        %6610 = vmatpush1.bf16.msra.mxu0 %v1957
        %6611 = vmatprep.subr.bf16.mxu0 0
        %6612 = vmatpush1.bf16.msra.mxu0 %v1958
        %6613 = vmatprep.subr.bf16.mxu0 0
        %6614 = vmatpush1.bf16.msra.mxu0 0
        %6615 = vmatprep.subr.bf16.mxu0 0
        %6616 = vmatpush1.bf16.msra.mxu0 0
        %6617 = vmatprep.subr.bf16.mxu0 0
        %6618 = vmatpush1.bf16.msra.mxu0 0
        %6619 = vmatprep.subr.bf16.mxu0 0
        %6620 = vmatpush1.bf16.msra.mxu0 0
        %6621 = vmatprep.subr.bf16.mxu0 0
        %6622 = vmatpush1.bf16.msra.mxu0 0
        %6623 = vmatprep.subr.bf16.mxu0 0
        %6624 = vmatpush1.bf16.msra.mxu0 0
        %6625 = vmatprep.subr.bf16.mxu0 0
        %6626 = vmatpush1.bf16.msra.mxu0 0
        %6627 = vmatprep.subr.bf16.mxu0 0
        %6628 = vmatpush1.bf16.msra.mxu0 0
        %6629 = vmatprep.mubr.bf16.mxu0 0
        %6630 = vmatmul.mubr.bf16.gmra.mrb[0].mxu0 %v6591
        %v6631 = vpop.f32.mrb[0].mxu0
        %v6632 = vadd.f32 0.0, %v6631
        %v6633 = vpop.f32.mrb[0].mxu0
        %v6634 = vpop.f32.mrb[0].mxu0
        %v6635 = vadd.f32 0.0, %v6634
        %v6636 = vpop.f32.mrb[0].mxu0
        %6637 = vmatprep.mubr.bf16.mxu0 0
        %6638 = vmatmul.mubr.bf16.gmra.mrb[0].mxu0 %v6592
        %v6639 = vpop.f32.mrb[0].mxu0
        %v6640 = vadd.f32 0.0, %v6639
        %v6641 = vpop.f32.mrb[0].mxu0
        %v6642 = vpop.f32.mrb[0].mxu0
        %v6643 = vadd.f32 0.0, %v6642
        %v6644 = vpop.f32.mrb[0].mxu0
        %6645 = vmatprep.mubr.bf16.mxu0 0
        %6646 = vmatmul.mubr.bf16.gmra.mrb[0].mxu0 %v6593
        %v6647 = vpop.f32.mrb[0].mxu0
        %v6648 = vadd.f32 0.0, %v6647
        %v6649 = vpop.f32.mrb[0].mxu0
        %v6650 = vpop.f32.mrb[0].mxu0
        %v6651 = vadd.f32 0.0, %v6650
        %v6652 = vpop.f32.mrb[0].mxu0
        %6653 = vdwg.mxu0
        %v6654 = vmul.f32 %v6632, %v2198
        %v6655 = vmul.f32 %v6635, %v2198
        %v6656 = vmul.f32 %v6640, %v2198
        %v6657 = vmul.f32 %v6643, %v2198
        %v6658 = vmul.f32 %v6648, %v2198
        %v6659 = vmul.f32 %v6651, %v2198
        %v6660 = vadd.f32 %v6654, %v2254
        %v6661 = vadd.f32 %v6655, %v2254
        %v6662 = vadd.f32 %v6656, %v2254
        %v6663 = vadd.f32 %v6657, %v2254
        %v6664 = vadd.f32 %v6658, %v2254
        %v6665 = vadd.f32 %v6659, %v2254
        %v6666 = vsub.f32 0.0, %v6660
        %v6667 = vsub.f32 0.0, %v6661
        %v6668 = vsub.f32 0.0, %v6662
        %v6669 = vsub.f32 0.0, %v6663
        %v6670 = vsub.f32 0.0, %v6664
        %v6671 = vsub.f32 0.0, %v6665
        %v6672 = vmul.f32 %v6666, 1.442695
        %v6673 = vpow.pop %v6672
        %v6674 = vmul.f32 %v6667, 1.442695
        %v6675 = vpow.pop %v6674
        %v6676 = vmul.f32 %v6668, 1.442695
        %v6677 = vpow.pop %v6676
        %v6678 = vmul.f32 %v6669, 1.442695
        %v6679 = vpow.pop %v6678
        %v6680 = vmul.f32 %v6670, 1.442695
        %v6681 = vpow.pop %v6680
        %v6682 = vmul.f32 %v6671, 1.442695
        %v6683 = vpow.pop %v6682
        %v6684 = vadd.f32 %v6673, 1.0
        %v6685 = vadd.f32 %v6675, 1.0
        %v6686 = vadd.f32 %v6677, 1.0
        %v6687 = vadd.f32 %v6679, 1.0
        %v6688 = vadd.f32 %v6681, 1.0
        %v6689 = vadd.f32 %v6683, 1.0
        %v6690 = vrcp.pop %v6684
        %v6691 = vrcp.pop %v6685
        %v6692 = vrcp.pop %v6686
        %v6693 = vrcp.pop %v6687
        %v6694 = vrcp.pop %v6688
        %v6695 = vrcp.pop %v6689
        %v6696 = vmul.f32 %v6660, %v6690
        %v6697 = vmul.f32 %v6661, %v6691
        %v6698 = vmul.f32 %v6662, %v6692
        %v6699 = vmul.f32 %v6663, %v6693
        %v6700 = vmul.f32 %v6664, %v6694
        %v6701 = vmul.f32 %v6665, %v6695
        %v6708 = vunpack.c.l.b16 %v6450
        %v6709 = vunpack.c.l.b16 %v6451
        %v6710 = vunpack.c.l.b16 %v6452
        %v6711 = vunpack.c.l.b16 %v6453
        %v6712 = vunpack.c.l.b16 %v6454
        %v6713 = vunpack.c.l.b16 %v6455
        %v6714 = vpack.c.b16 %v6709, %v6708
        %v6715 = vpack.c.b16 %v6711, %v6710
        %v6716 = vpack.c.b16 %v6713, %v6712
        %6720 = vmatprep.subr.bf16.mxu0 0
        %6721 = vmatpush1.bf16.msra.mxu0 %v2785
        %6722 = vmatprep.subr.bf16.mxu0 0
        %6723 = vmatpush1.bf16.msra.mxu0 %v2786
        %6724 = vmatprep.subr.bf16.mxu0 0
        %6725 = vmatpush1.bf16.msra.mxu0 %v2787
        %6726 = vmatprep.subr.bf16.mxu0 0
        %6727 = vmatpush1.bf16.msra.mxu0 %v2788
        %6728 = vmatprep.subr.bf16.mxu0 0
        %6729 = vmatpush1.bf16.msra.mxu0 %v2789
        %6730 = vmatprep.subr.bf16.mxu0 0
        %6731 = vmatpush1.bf16.msra.mxu0 %v2790
        %6732 = vmatprep.subr.bf16.mxu0 0
        %6733 = vmatpush1.bf16.msra.mxu0 %v2791
        %6734 = vmatprep.subr.bf16.mxu0 0
        %6735 = vmatpush1.bf16.msra.mxu0 %v2792
        %6736 = vmatprep.subr.bf16.mxu0 0
        %6737 = vmatpush1.bf16.msra.mxu0 0
        %6738 = vmatprep.subr.bf16.mxu0 0
        %6739 = vmatpush1.bf16.msra.mxu0 0
        %6740 = vmatprep.subr.bf16.mxu0 0
        %6741 = vmatpush1.bf16.msra.mxu0 0
        %6742 = vmatprep.subr.bf16.mxu0 0
        %6743 = vmatpush1.bf16.msra.mxu0 0
        %6744 = vmatprep.subr.bf16.mxu0 0
        %6745 = vmatpush1.bf16.msra.mxu0 0
        %6746 = vmatprep.subr.bf16.mxu0 0
        %6747 = vmatpush1.bf16.msra.mxu0 0
        %6748 = vmatprep.subr.bf16.mxu0 0
        %6749 = vmatpush1.bf16.msra.mxu0 0
        %6750 = vmatprep.subr.bf16.mxu0 0
        %6751 = vmatpush1.bf16.msra.mxu0 0
        %6752 = vmatprep.mubr.bf16.mxu0 0
        %6753 = vmatmul.mubr.bf16.gmra.mrb[0].mxu0 %v6714
        %v6754 = vpop.f32.mrb[0].mxu0
        %v6755 = vadd.f32 0.0, %v6754
        %v6756 = vpop.f32.mrb[0].mxu0
        %v6757 = vpop.f32.mrb[0].mxu0
        %v6758 = vadd.f32 0.0, %v6757
        %v6759 = vpop.f32.mrb[0].mxu0
        %6760 = vmatprep.mubr.bf16.mxu0 0
        %6761 = vmatmul.mubr.bf16.gmra.mrb[0].mxu0 %v6715
        %v6762 = vpop.f32.mrb[0].mxu0
        %v6763 = vadd.f32 0.0, %v6762
        %v6764 = vpop.f32.mrb[0].mxu0
        %v6765 = vpop.f32.mrb[0].mxu0
        %v6766 = vadd.f32 0.0, %v6765
        %v6767 = vpop.f32.mrb[0].mxu0
        %6768 = vmatprep.mubr.bf16.mxu0 0
        %6769 = vmatmul.mubr.bf16.gmra.mrb[0].mxu0 %v6716
        %v6770 = vpop.f32.mrb[0].mxu0
        %v6771 = vadd.f32 0.0, %v6770
        %v6772 = vpop.f32.mrb[0].mxu0
        %v6773 = vpop.f32.mrb[0].mxu0
        %v6774 = vadd.f32 0.0, %v6773
        %v6775 = vpop.f32.mrb[0].mxu0
        %6776 = vdwg.mxu0
        %v6777 = vmul.f32 %v6755, %v3032
        %v6778 = vmul.f32 %v6758, %v3032
        %v6779 = vmul.f32 %v6763, %v3032
        %v6780 = vmul.f32 %v6766, %v3032
        %v6781 = vmul.f32 %v6771, %v3032
        %v6782 = vmul.f32 %v6774, %v3032
        %v6783 = vadd.f32 %v6777, %v3088
        %v6784 = vadd.f32 %v6778, %v3088
        %v6785 = vadd.f32 %v6779, %v3088
        %v6786 = vadd.f32 %v6780, %v3088
        %v6787 = vadd.f32 %v6781, %v3088
        %v6788 = vadd.f32 %v6782, %v3088
        %v6789 = vsub.f32 0.0, %v6783
        %v6790 = vsub.f32 0.0, %v6784
        %v6791 = vsub.f32 0.0, %v6785
        %v6792 = vsub.f32 0.0, %v6786
        %v6793 = vsub.f32 0.0, %v6787
        %v6794 = vsub.f32 0.0, %v6788
        %v6795 = vmul.f32 %v6789, 1.442695
        %v6796 = vpow.pop %v6795
        %v6797 = vmul.f32 %v6790, 1.442695
        %v6798 = vpow.pop %v6797
        %v6799 = vmul.f32 %v6791, 1.442695
        %v6800 = vpow.pop %v6799
        %v6801 = vmul.f32 %v6792, 1.442695
        %v6802 = vpow.pop %v6801
        %v6803 = vmul.f32 %v6793, 1.442695
        %v6804 = vpow.pop %v6803
        %v6805 = vmul.f32 %v6794, 1.442695
        %v6806 = vpow.pop %v6805
        %v6807 = vadd.f32 %v6796, 1.0
        %v6808 = vadd.f32 %v6798, 1.0
        %v6809 = vadd.f32 %v6800, 1.0
        %v6810 = vadd.f32 %v6802, 1.0
        %v6811 = vadd.f32 %v6804, 1.0
        %v6812 = vadd.f32 %v6806, 1.0
        %v6813 = vrcp.pop %v6807
        %v6814 = vrcp.pop %v6808
        %v6815 = vrcp.pop %v6809
        %v6816 = vrcp.pop %v6810
        %v6817 = vrcp.pop %v6811
        %v6818 = vrcp.pop %v6812
        %v6819 = vmul.f32 %v6783, %v6813
        %v6820 = vmul.f32 %v6784, %v6814
        %v6821 = vmul.f32 %v6785, %v6815
        %v6822 = vmul.f32 %v6786, %v6816
        %v6823 = vmul.f32 %v6787, %v6817
        %v6824 = vmul.f32 %v6788, %v6818
        %v6826 = vsel %vm3426, %v6696, 0
        %v6829 = vsel %vm3426, %v6697, 0
        %v6832 = vsel %vm3426, %v6698, 0
        %v6835 = vsel %vm3426, %v6699, 0
        %v6838 = vsel %vm3426, %v6700, 0
        %v6841 = vsel %vm3426, %v6701, 0
        %6843 = vmatprep.subr.mxu0 0.0
        %6844 = vmatpush1.msra.mxu0 %v781
        %6845 = vmatprep.subr.mxu0 0.0
        %6846 = vmatpush1.msra.mxu0 0.0
        %6847 = vmatprep.subr.mxu0 0.0
        %6848 = vmatpush1.msra.mxu0 0.0
        %6849 = vmatprep.subr.mxu0 0.0
        %6850 = vmatpush1.msra.mxu0 0.0
        %6851 = vmatprep.subr.mxu0 0.0
        %6852 = vmatpush1.msra.mxu0 0.0
        %6853 = vmatprep.subr.mxu0 0.0
        %6854 = vmatpush1.msra.mxu0 0.0
        %6855 = vmatprep.subr.mxu0 0.0
        %6856 = vmatpush1.msra.mxu0 0.0
        %6857 = vmatprep.subr.mxu0 0.0
        %6858 = vmatpush1.msra.mxu0 0.0
        %6859 = vmatprep.subr.mxu0 0.0
        %6860 = vmatpush1.msra.mxu0 0.0
        %6861 = vmatprep.subr.mxu0 0.0
        %6862 = vmatpush1.msra.mxu0 0.0
        %6863 = vmatprep.subr.mxu0 0.0
        %6864 = vmatpush1.msra.mxu0 0.0
        %6865 = vmatprep.subr.mxu0 0.0
        %6866 = vmatpush1.msra.mxu0 0.0
        %6867 = vmatprep.subr.mxu0 0.0
        %6868 = vmatpush1.msra.mxu0 0.0
        %6869 = vmatprep.subr.mxu0 0.0
        %6870 = vmatpush1.msra.mxu0 0.0
        %6871 = vmatprep.subr.mxu0 0.0
        %6872 = vmatpush1.msra.mxu0 0.0
        %6873 = vmatprep.subr.mxu0 0.0
        %6874 = vmatpush1.msra.mxu0 0.0
        %6875 = vmatprep.subr.mxu0 0.0
        %6876 = vmatpush1.msra.mxu0 0.0
        %6877 = vmatprep.subr.mxu0 0.0
        %6878 = vmatpush1.msra.mxu0 0.0
        %6879 = vmatprep.subr.mxu0 0.0
        %6880 = vmatpush1.msra.mxu0 0.0
        %6881 = vmatprep.subr.mxu0 0.0
        %6882 = vmatpush1.msra.mxu0 0.0
        %6883 = vmatprep.subr.mxu0 0.0
        %6884 = vmatpush1.msra.mxu0 0.0
        %6885 = vmatprep.subr.mxu0 0.0
        %6886 = vmatpush1.msra.mxu0 0.0
        %6887 = vmatprep.subr.mxu0 0.0
        %6888 = vmatpush1.msra.mxu0 0.0
        %6889 = vmatprep.subr.mxu0 0.0
        %6890 = vmatpush1.msra.mxu0 0.0
        %6891 = vmatprep.subr.mxu0 0.0
        %6892 = vmatpush1.msra.mxu0 0.0
        %6893 = vmatprep.subr.mxu0 0.0
        %6894 = vmatpush1.msra.mxu0 0.0
        %6895 = vmatprep.subr.mxu0 0.0
        %6896 = vmatpush1.msra.mxu0 0.0
        %6897 = vmatprep.subr.mxu0 0.0
        %6898 = vmatpush1.msra.mxu0 0.0
        %6899 = vmatprep.subr.mxu0 0.0
        %6900 = vmatpush1.msra.mxu0 0.0
        %6901 = vmatprep.subr.mxu0 0.0
        %6902 = vmatpush1.msra.mxu0 0.0
        %6903 = vmatprep.subr.mxu0 0.0
        %6904 = vmatpush1.msra.mxu0 0.0
        %6905 = vmatprep.subr.mxu0 0.0
        %6906 = vmatpush1.msra.mxu0 0.0
        %6907 = vmatprep.mubr.f32.mxu0 0.0
        %6908 = vmatmul.mubr.f32.gmra.mrb[0].mxu0 %v6826
        %v6909 = vpop.f32.mrb[0].mxu0
        %v6910 = vadd.f32 0.0, %v6909
        %v6911 = vpop.f32.mrb[0].mxu0
        %6912 = vmatprep.mubr.f32.mxu0 0.0
        %6913 = vmatmul.mubr.f32.gmra.mrb[0].mxu0 %v6829
        %v6914 = vpop.f32.mrb[0].mxu0
        %v6915 = vadd.f32 0.0, %v6914
        %v6916 = vpop.f32.mrb[0].mxu0
        %6917 = vmatprep.mubr.f32.mxu0 0.0
        %6918 = vmatmul.mubr.f32.gmra.mrb[0].mxu0 %v6832
        %v6919 = vpop.f32.mrb[0].mxu0
        %v6920 = vadd.f32 0.0, %v6919
        %v6921 = vpop.f32.mrb[0].mxu0
        %6922 = vmatprep.mubr.f32.mxu0 0.0
        %6923 = vmatmul.mubr.f32.gmra.mrb[0].mxu0 %v6835
        %v6924 = vpop.f32.mrb[0].mxu0
        %v6925 = vadd.f32 0.0, %v6924
        %v6926 = vpop.f32.mrb[0].mxu0
        %6927 = vmatprep.mubr.f32.mxu0 0.0
        %6928 = vmatmul.mubr.f32.gmra.mrb[0].mxu0 %v6838
        %v6929 = vpop.f32.mrb[0].mxu0
        %v6930 = vadd.f32 0.0, %v6929
        %v6931 = vpop.f32.mrb[0].mxu0
        %6932 = vmatprep.mubr.f32.mxu0 0.0
        %6933 = vmatmul.mubr.f32.gmra.mrb[0].mxu0 %v6841
        %v6934 = vpop.f32.mrb[0].mxu0
        %v6935 = vadd.f32 0.0, %v6934
        %v6936 = vpop.f32.mrb[0].mxu0
        %6937 = vdwg.mxu0
        %v6939 = vsel %vm3426, %v6573, 0
        %v6942 = vsel %vm3426, %v6574, 0
        %v6945 = vsel %vm3426, %v6575, 0
        %v6948 = vsel %vm3426, %v6576, 0
        %v6951 = vsel %vm3426, %v6577, 0
        %v6954 = vsel %vm3426, %v6578, 0
        %6956 = vmatprep.subr.mxu0 0.0
        %6957 = vmatpush1.msra.mxu0 %v780
        %6958 = vmatprep.subr.mxu0 0.0
        %6959 = vmatpush1.msra.mxu0 0.0
        %6960 = vmatprep.subr.mxu0 0.0
        %6961 = vmatpush1.msra.mxu0 0.0
        %6962 = vmatprep.subr.mxu0 0.0
        %6963 = vmatpush1.msra.mxu0 0.0
        %6964 = vmatprep.subr.mxu0 0.0
        %6965 = vmatpush1.msra.mxu0 0.0
        %6966 = vmatprep.subr.mxu0 0.0
        %6967 = vmatpush1.msra.mxu0 0.0
        %6968 = vmatprep.subr.mxu0 0.0
        %6969 = vmatpush1.msra.mxu0 0.0
        %6970 = vmatprep.subr.mxu0 0.0
        %6971 = vmatpush1.msra.mxu0 0.0
        %6972 = vmatprep.subr.mxu0 0.0
        %6973 = vmatpush1.msra.mxu0 0.0
        %6974 = vmatprep.subr.mxu0 0.0
        %6975 = vmatpush1.msra.mxu0 0.0
        %6976 = vmatprep.subr.mxu0 0.0
        %6977 = vmatpush1.msra.mxu0 0.0
        %6978 = vmatprep.subr.mxu0 0.0
        %6979 = vmatpush1.msra.mxu0 0.0
        %6980 = vmatprep.subr.mxu0 0.0
        %6981 = vmatpush1.msra.mxu0 0.0
        %6982 = vmatprep.subr.mxu0 0.0
        %6983 = vmatpush1.msra.mxu0 0.0
        %6984 = vmatprep.subr.mxu0 0.0
        %6985 = vmatpush1.msra.mxu0 0.0
        %6986 = vmatprep.subr.mxu0 0.0
        %6987 = vmatpush1.msra.mxu0 0.0
        %6988 = vmatprep.subr.mxu0 0.0
        %6989 = vmatpush1.msra.mxu0 0.0
        %6990 = vmatprep.subr.mxu0 0.0
        %6991 = vmatpush1.msra.mxu0 0.0
        %6992 = vmatprep.subr.mxu0 0.0
        %6993 = vmatpush1.msra.mxu0 0.0
        %6994 = vmatprep.subr.mxu0 0.0
        %6995 = vmatpush1.msra.mxu0 0.0
        %6996 = vmatprep.subr.mxu0 0.0
        %6997 = vmatpush1.msra.mxu0 0.0
        %6998 = vmatprep.subr.mxu0 0.0
        %6999 = vmatpush1.msra.mxu0 0.0
        %7000 = vmatprep.subr.mxu0 0.0
        %7001 = vmatpush1.msra.mxu0 0.0
        %7002 = vmatprep.subr.mxu0 0.0
        %7003 = vmatpush1.msra.mxu0 0.0
        %7004 = vmatprep.subr.mxu0 0.0
        %7005 = vmatpush1.msra.mxu0 0.0
        %7006 = vmatprep.subr.mxu0 0.0
        %7007 = vmatpush1.msra.mxu0 0.0
        %7008 = vmatprep.subr.mxu0 0.0
        %7009 = vmatpush1.msra.mxu0 0.0
        %7010 = vmatprep.subr.mxu0 0.0
        %7011 = vmatpush1.msra.mxu0 0.0
        %7012 = vmatprep.subr.mxu0 0.0
        %7013 = vmatpush1.msra.mxu0 0.0
        %7014 = vmatprep.subr.mxu0 0.0
        %7015 = vmatpush1.msra.mxu0 0.0
        %7016 = vmatprep.subr.mxu0 0.0
        %7017 = vmatpush1.msra.mxu0 0.0
        %7018 = vmatprep.subr.mxu0 0.0
        %7019 = vmatpush1.msra.mxu0 0.0
        %7020 = vmatprep.mubr.f32.mxu0 0.0
        %7021 = vmatmul.mubr.f32.gmra.mrb[0].mxu0 %v6939
        %v7022 = vpop.f32.mrb[0].mxu0
        %v7023 = vadd.f32 %v6910, %v7022
        %v7024 = vpop.f32.mrb[0].mxu0
        %7025 = vmatprep.mubr.f32.mxu0 0.0
        %7026 = vmatmul.mubr.f32.gmra.mrb[0].mxu0 %v6942
        %v7027 = vpop.f32.mrb[0].mxu0
        %v7028 = vadd.f32 %v6915, %v7027
        %v7029 = vpop.f32.mrb[0].mxu0
        %7030 = vmatprep.mubr.f32.mxu0 0.0
        %7031 = vmatmul.mubr.f32.gmra.mrb[0].mxu0 %v6945
        %v7032 = vpop.f32.mrb[0].mxu0
        %v7033 = vadd.f32 %v6920, %v7032
        %v7034 = vpop.f32.mrb[0].mxu0
        %7035 = vmatprep.mubr.f32.mxu0 0.0
        %7036 = vmatmul.mubr.f32.gmra.mrb[0].mxu0 %v6948
        %v7037 = vpop.f32.mrb[0].mxu0
        %v7038 = vadd.f32 %v6925, %v7037
        %v7039 = vpop.f32.mrb[0].mxu0
        %7040 = vmatprep.mubr.f32.mxu0 0.0
        %7041 = vmatmul.mubr.f32.gmra.mrb[0].mxu0 %v6951
        %v7042 = vpop.f32.mrb[0].mxu0
        %v7043 = vadd.f32 %v6930, %v7042
        %v7044 = vpop.f32.mrb[0].mxu0
        %7045 = vmatprep.mubr.f32.mxu0 0.0
        %7046 = vmatmul.mubr.f32.gmra.mrb[0].mxu0 %v6954
        %v7047 = vpop.f32.mrb[0].mxu0
        %v7048 = vadd.f32 %v6935, %v7047
        %v7049 = vpop.f32.mrb[0].mxu0
        %7050 = vdwg.mxu0
        %v7052 = vsel %vm3426, %v6819, 0
        %v7055 = vsel %vm3426, %v6820, 0
        %v7058 = vsel %vm3426, %v6821, 0
        %v7061 = vsel %vm3426, %v6822, 0
        %v7064 = vsel %vm3426, %v6823, 0
        %v7067 = vsel %vm3426, %v6824, 0
        %7069 = vmatprep.subr.mxu0 0.0
        %7070 = vmatpush1.msra.mxu0 %v782
        %7071 = vmatprep.subr.mxu0 0.0
        %7072 = vmatpush1.msra.mxu0 0.0
        %7073 = vmatprep.subr.mxu0 0.0
        %7074 = vmatpush1.msra.mxu0 0.0
        %7075 = vmatprep.subr.mxu0 0.0
        %7076 = vmatpush1.msra.mxu0 0.0
        %7077 = vmatprep.subr.mxu0 0.0
        %7078 = vmatpush1.msra.mxu0 0.0
        %7079 = vmatprep.subr.mxu0 0.0
        %7080 = vmatpush1.msra.mxu0 0.0
        %7081 = vmatprep.subr.mxu0 0.0
        %7082 = vmatpush1.msra.mxu0 0.0
        %7083 = vmatprep.subr.mxu0 0.0
        %7084 = vmatpush1.msra.mxu0 0.0
        %7085 = vmatprep.subr.mxu0 0.0
        %7086 = vmatpush1.msra.mxu0 0.0
        %7087 = vmatprep.subr.mxu0 0.0
        %7088 = vmatpush1.msra.mxu0 0.0
        %7089 = vmatprep.subr.mxu0 0.0
        %7090 = vmatpush1.msra.mxu0 0.0
        %7091 = vmatprep.subr.mxu0 0.0
        %7092 = vmatpush1.msra.mxu0 0.0
        %7093 = vmatprep.subr.mxu0 0.0
        %7094 = vmatpush1.msra.mxu0 0.0
        %7095 = vmatprep.subr.mxu0 0.0
        %7096 = vmatpush1.msra.mxu0 0.0
        %7097 = vmatprep.subr.mxu0 0.0
        %7098 = vmatpush1.msra.mxu0 0.0
        %7099 = vmatprep.subr.mxu0 0.0
        %7100 = vmatpush1.msra.mxu0 0.0
        %7101 = vmatprep.subr.mxu0 0.0
        %7102 = vmatpush1.msra.mxu0 0.0
        %7103 = vmatprep.subr.mxu0 0.0
        %7104 = vmatpush1.msra.mxu0 0.0
        %7105 = vmatprep.subr.mxu0 0.0
        %7106 = vmatpush1.msra.mxu0 0.0
        %7107 = vmatprep.subr.mxu0 0.0
        %7108 = vmatpush1.msra.mxu0 0.0
        %7109 = vmatprep.subr.mxu0 0.0
        %7110 = vmatpush1.msra.mxu0 0.0
        %7111 = vmatprep.subr.mxu0 0.0
        %7112 = vmatpush1.msra.mxu0 0.0
        %7113 = vmatprep.subr.mxu0 0.0
        %7114 = vmatpush1.msra.mxu0 0.0
        %7115 = vmatprep.subr.mxu0 0.0
        %7116 = vmatpush1.msra.mxu0 0.0
        %7117 = vmatprep.subr.mxu0 0.0
        %7118 = vmatpush1.msra.mxu0 0.0
        %7119 = vmatprep.subr.mxu0 0.0
        %7120 = vmatpush1.msra.mxu0 0.0
        %7121 = vmatprep.subr.mxu0 0.0
        %7122 = vmatpush1.msra.mxu0 0.0
        %7123 = vmatprep.subr.mxu0 0.0
        %7124 = vmatpush1.msra.mxu0 0.0
        %7125 = vmatprep.subr.mxu0 0.0
        %7126 = vmatpush1.msra.mxu0 0.0
        %7127 = vmatprep.subr.mxu0 0.0
        %7128 = vmatpush1.msra.mxu0 0.0
        %7129 = vmatprep.subr.mxu0 0.0
        %7130 = vmatpush1.msra.mxu0 0.0
        %7131 = vmatprep.subr.mxu0 0.0
        %7132 = vmatpush1.msra.mxu0 0.0
        %7133 = vmatprep.mubr.f32.mxu0 0.0
        %7134 = vmatmul.mubr.f32.gmra.mrb[0].mxu0 %v7052
        %v7135 = vpop.f32.mrb[0].mxu0
        %v7136 = vadd.f32 0.0, %v7135
        %v7137 = vpop.f32.mrb[0].mxu0
        %7138 = vmatprep.mubr.f32.mxu0 0.0
        %7139 = vmatmul.mubr.f32.gmra.mrb[0].mxu0 %v7055
        %v7140 = vpop.f32.mrb[0].mxu0
        %v7141 = vadd.f32 0.0, %v7140
        %v7142 = vpop.f32.mrb[0].mxu0
        %7143 = vmatprep.mubr.f32.mxu0 0.0
        %7144 = vmatmul.mubr.f32.gmra.mrb[0].mxu0 %v7058
        %v7145 = vpop.f32.mrb[0].mxu0
        %v7146 = vadd.f32 0.0, %v7145
        %v7147 = vpop.f32.mrb[0].mxu0
        %7148 = vmatprep.mubr.f32.mxu0 0.0
        %7149 = vmatmul.mubr.f32.gmra.mrb[0].mxu0 %v7061
        %v7150 = vpop.f32.mrb[0].mxu0
        %v7151 = vadd.f32 0.0, %v7150
        %v7152 = vpop.f32.mrb[0].mxu0
        %7153 = vmatprep.mubr.f32.mxu0 0.0
        %7154 = vmatmul.mubr.f32.gmra.mrb[0].mxu0 %v7064
        %v7155 = vpop.f32.mrb[0].mxu0
        %v7156 = vadd.f32 0.0, %v7155
        %v7157 = vpop.f32.mrb[0].mxu0
        %7158 = vmatprep.mubr.f32.mxu0 0.0
        %7159 = vmatmul.mubr.f32.gmra.mrb[0].mxu0 %v7067
        %v7160 = vpop.f32.mrb[0].mxu0
        %v7161 = vadd.f32 0.0, %v7160
        %v7162 = vpop.f32.mrb[0].mxu0
        %7163 = vdwg.mxu0
        %v7164 = vadd.f32 %v7023, %v7136
        %v7165 = vadd.f32 %v7028, %v7141
        %v7166 = vadd.f32 %v7033, %v7146
        %v7167 = vadd.f32 %v7038, %v7151
        %v7168 = vadd.f32 %v7043, %v7156
        %v7169 = vadd.f32 %v7048, %v7161
        %v7170 = vadd.f32 %v7164, %v4827
        %v7171 = vadd.f32 %v7165, %v4827
        %v7172 = vadd.f32 %v7166, %v4827
        %v7173 = vadd.f32 %v7167, %v4827
        %v7174 = vadd.f32 %v7168, %v4827
        %v7175 = vadd.f32 %v7169, %v4827
        %v7176 = vsel %vm4877, %v7170, -inf
        %7177 = vmax.xlane.f32.xlu0 %v7176
        %v7178 = vpop.xlane.xlu0 %7177
        %v7179 = vsel %vm4877, %v7171, -inf
        %7180 = vmax.xlane.f32.xlu0 %v7179
        %v7181 = vpop.xlane.xlu0 %7180
        %v7182 = vsel %vm4877, %v7172, -inf
        %7183 = vmax.xlane.f32.xlu0 %v7182
        %v7184 = vpop.xlane.xlu0 %7183
        %v7185 = vsel %vm4877, %v7173, -inf
        %7186 = vmax.xlane.f32.xlu0 %v7185
        %v7187 = vpop.xlane.xlu0 %7186
        %v7188 = vsel %vm4877, %v7174, -inf
        %7189 = vmax.xlane.f32.xlu0 %v7188
        %v7190 = vpop.xlane.xlu0 %7189
        %v7191 = vsel %vm4877, %v7175, -inf
        %7192 = vmax.xlane.f32.xlu0 %v7191
        %v7193 = vpop.xlane.xlu0 %7192
        %v7194 = vsub.f32 %v7170, %v7178
        %v7195 = vsub.f32 %v7171, %v7181
        %v7196 = vsub.f32 %v7172, %v7184
        %v7197 = vsub.f32 %v7173, %v7187
        %v7198 = vsub.f32 %v7174, %v7190
        %v7199 = vsub.f32 %v7175, %v7193
        %v7200 = vmul.f32 %v7194, 1.442695
        %v7201 = vpow.pop %v7200
        %v7202 = vmul.f32 %v7195, 1.442695
        %v7203 = vpow.pop %v7202
        %v7204 = vmul.f32 %v7196, 1.442695
        %v7205 = vpow.pop %v7204
        %v7206 = vmul.f32 %v7197, 1.442695
        %v7207 = vpow.pop %v7206
        %v7208 = vmul.f32 %v7198, 1.442695
        %v7209 = vpow.pop %v7208
        %v7210 = vmul.f32 %v7199, 1.442695
        %v7211 = vpow.pop %v7210
        %v7212 = vsel %vm4877, %v7201, 0.0
        %7213 = vadd.xlane.f32.xlu0 %v7212
        %v7214 = vpop.xlane.xlu0 %7213
        %v7215 = vsel %vm4877, %v7203, 0.0
        %7216 = vadd.xlane.f32.xlu0 %v7215
        %v7217 = vpop.xlane.xlu0 %7216
        %v7218 = vsel %vm4877, %v7205, 0.0
        %7219 = vadd.xlane.f32.xlu0 %v7218
        %v7220 = vpop.xlane.xlu0 %7219
        %v7221 = vsel %vm4877, %v7207, 0.0
        %7222 = vadd.xlane.f32.xlu0 %v7221
        %v7223 = vpop.xlane.xlu0 %7222
        %v7224 = vsel %vm4877, %v7209, 0.0
        %7225 = vadd.xlane.f32.xlu0 %v7224
        %v7226 = vpop.xlane.xlu0 %7225
        %v7227 = vsel %vm4877, %v7211, 0.0
        %7228 = vadd.xlane.f32.xlu0 %v7227
        %v7229 = vpop.xlane.xlu0 %7228
        %v7230 = vrcp.pop %v7214
        %v7231 = vrcp.pop %v7217
        %v7232 = vrcp.pop %v7220
        %v7233 = vrcp.pop %v7223
        %v7234 = vrcp.pop %v7226
        %v7235 = vrcp.pop %v7229
        %v7236 = vmul.f32 %v7201, %v7230
        %v7237 = vmul.f32 %v7203, %v7231
        %v7238 = vmul.f32 %v7205, %v7232
        %v7239 = vmul.f32 %v7207, %v7233
        %v7240 = vmul.f32 %v7209, %v7234
        %v7241 = vmul.f32 %v7211, %v7235
        %v7242 = vunpack.c.l.bf16 %v6438
        %v7243 = vunpack.c.l.bf16 %v6439
        %v7244 = vunpack.c.l.bf16 %v6440
        %v7245 = vunpack.c.l.bf16 %v6441
        %v7246 = vunpack.c.l.bf16 %v6442
        %v7247 = vunpack.c.l.bf16 %v6443
        %7249 = vset.pattern.permute.xlu0 0
        %7250 = vperm.xlu0 %7249, %v7236
        %v7251 = vpop.permute.xlu0 %7250
        %7254 = vset.pattern.permute.xlu0 0
        %7255 = vperm.xlu0 %7254, %v7237
        %v7256 = vpop.permute.xlu0 %7255
        %7259 = vset.pattern.permute.xlu0 0
        %7260 = vperm.xlu0 %7259, %v7238
        %v7261 = vpop.permute.xlu0 %7260
        %7264 = vset.pattern.permute.xlu0 0
        %7265 = vperm.xlu0 %7264, %v7239
        %v7266 = vpop.permute.xlu0 %7265
        %7269 = vset.pattern.permute.xlu0 0
        %7270 = vperm.xlu0 %7269, %v7240
        %v7271 = vpop.permute.xlu0 %7270
        %7274 = vset.pattern.permute.xlu0 0
        %7275 = vperm.xlu0 %7274, %v7241
        %v7276 = vpop.permute.xlu0 %7275
        %v7278 = vmul.f32 %v7251, %v7242
        %v7279 = vmul.f32 %v7256, %v7243
        %v7280 = vmul.f32 %v7261, %v7244
        %v7281 = vmul.f32 %v7266, %v7245
        %v7282 = vmul.f32 %v7271, %v7246
        %v7283 = vmul.f32 %v7276, %v7247
        %v7284 = vunpack.c.l.bf16 %v6444
        %v7285 = vunpack.c.l.bf16 %v6445
        %v7286 = vunpack.c.l.bf16 %v6446
        %v7287 = vunpack.c.l.bf16 %v6447
        %v7288 = vunpack.c.l.bf16 %v6448
        %v7289 = vunpack.c.l.bf16 %v6449
        %7290 = vset.pattern.permute.xlu0 1
        %7291 = vperm.xlu0 %7290, %v7236
        %v7292 = vpop.permute.xlu0 %7291
        %7294 = vset.pattern.permute.xlu0 1
        %7295 = vperm.xlu0 %7294, %v7237
        %v7296 = vpop.permute.xlu0 %7295
        %7298 = vset.pattern.permute.xlu0 1
        %7299 = vperm.xlu0 %7298, %v7238
        %v7300 = vpop.permute.xlu0 %7299
        %7302 = vset.pattern.permute.xlu0 1
        %7303 = vperm.xlu0 %7302, %v7239
        %v7304 = vpop.permute.xlu0 %7303
        %7306 = vset.pattern.permute.xlu0 1
        %7307 = vperm.xlu0 %7306, %v7240
        %v7308 = vpop.permute.xlu0 %7307
        %7310 = vset.pattern.permute.xlu0 1
        %7311 = vperm.xlu0 %7310, %v7241
        %v7312 = vpop.permute.xlu0 %7311
        %v7314 = vmul.f32 %v7292, %v7284
        %v7315 = vmul.f32 %v7296, %v7285
        %v7316 = vmul.f32 %v7300, %v7286
        %v7317 = vmul.f32 %v7304, %v7287
        %v7318 = vmul.f32 %v7308, %v7288
        %v7319 = vmul.f32 %v7312, %v7289
        %v7320 = vadd.f32 %v7278, %v7314
        %v7321 = vadd.f32 %v7279, %v7315
        %v7322 = vadd.f32 %v7280, %v7316
        %v7323 = vadd.f32 %v7281, %v7317
        %v7324 = vadd.f32 %v7282, %v7318
        %v7325 = vadd.f32 %v7283, %v7319
        %v7326 = vunpack.c.l.bf16 %v6450
        %v7327 = vunpack.c.l.bf16 %v6451
        %v7328 = vunpack.c.l.bf16 %v6452
        %v7329 = vunpack.c.l.bf16 %v6453
        %v7330 = vunpack.c.l.bf16 %v6454
        %v7331 = vunpack.c.l.bf16 %v6455
        %7332 = vset.pattern.permute.xlu0 2
        %7333 = vperm.xlu0 %7332, %v7236
        %v7334 = vpop.permute.xlu0 %7333
        %7336 = vset.pattern.permute.xlu0 2
        %7337 = vperm.xlu0 %7336, %v7237
        %v7338 = vpop.permute.xlu0 %7337
        %7340 = vset.pattern.permute.xlu0 2
        %7341 = vperm.xlu0 %7340, %v7238
        %v7342 = vpop.permute.xlu0 %7341
        %7344 = vset.pattern.permute.xlu0 2
        %7345 = vperm.xlu0 %7344, %v7239
        %v7346 = vpop.permute.xlu0 %7345
        %7348 = vset.pattern.permute.xlu0 2
        %7349 = vperm.xlu0 %7348, %v7240
        %v7350 = vpop.permute.xlu0 %7349
        %7352 = vset.pattern.permute.xlu0 2
        %7353 = vperm.xlu0 %7352, %v7241
        %v7354 = vpop.permute.xlu0 %7353
        %v7356 = vmul.f32 %v7334, %v7326
        %v7357 = vmul.f32 %v7338, %v7327
        %v7358 = vmul.f32 %v7342, %v7328
        %v7359 = vmul.f32 %v7346, %v7329
        %v7360 = vmul.f32 %v7350, %v7330
        %v7361 = vmul.f32 %v7354, %v7331
        %v7362 = vadd.f32 %v7320, %v7356
        %v7363 = vadd.f32 %v7321, %v7357
        %v7364 = vadd.f32 %v7322, %v7358
        %v7365 = vadd.f32 %v7323, %v7359
        %v7366 = vadd.f32 %v7324, %v7360
        %v7367 = vadd.f32 %v7325, %v7361
        %v7368 = vpack.c.bf16 %v7363, %v7362
        %v7369 = vpack.c.bf16 %v7365, %v7364
        %v7370 = vpack.c.bf16 %v7367, %v7366
        %vm7371 = vsmask.f32 7424
        %v7373 = vshrl.u32 %v6414, 16
        %v7375 = vshll.u32 %v6414, 16
        %v7377 = vrot.slane %v7375, 1
        %v7378 = vor.u32 %v7373, %v7377
        %v7380 = vshll.u32 %v6415, 16
        %v7382 = vrot.slane %v7380, 1
        %v7383 = vsel %vm7371, %v7378, %v7382
        %v7384 = vshrl.u32 %v6415, 16
        %v7386 = vor.u32 %v7384, %v7382
        %v7388 = vshll.u32 %v6416, 16
        %v7390 = vrot.slane %v7388, 1
        %v7391 = vsel %vm7371, %v7386, %v7390
        %v7392 = vshrl.u32 %v6416, 16
        %v7394 = vor.u32 %v7392, %v7390
        %v7396 = vshll.u32 %v6417, 16
        %v7398 = vrot.slane %v7396, 1
        %v7399 = vsel %vm7371, %v7394, %v7398
        %v7400 = vshrl.u32 %v6417, 16
        %v7402 = vor.u32 %v7400, %v7398
        %v7404 = vshll.u32 %v6418, 16
        %v7406 = vrot.slane %v7404, 1
        %v7407 = vsel %vm7371, %v7402, %v7406
        %v7408 = vshrl.u32 %v6418, 16
        %v7410 = vor.u32 %v7408, %v7406
        %v7412 = vshll.u32 %v6419, 16
        %v7414 = vrot.slane %v7412, 1
        %v7415 = vsel %vm7371, %v7410, %v7414
        %v7416 = vshrl.u32 %v6419, 16
        %v7418 = vor.u32 %v7416, %v7414
        %v7420 = vshll.u32 %v6420, 16
        %v7422 = vrot.slane %v7420, 1
        %v7423 = vsel %vm7371, %v7418, %v7422
        %v7424 = vshrl.u32 %v6420, 16
        %v7426 = vor.u32 %v7424, %v7422
        %v7428 = vshll.u32 %v6421, 16
        %v7430 = vrot.slane %v7428, 1
        %v7431 = vsel %vm7371, %v7426, %v7430
        %v7432 = vshrl.u32 %v6421, 16
        %v7434 = vor.u32 %v7432, %v7430
        %v7436 = vshll.u32 %v6422, 16
        %v7438 = vrot.slane %v7436, 1
        %v7439 = vsel %vm7371, %v7434, %v7438
        %v7440 = vshrl.u32 %v6422, 16
        %v7442 = vor.u32 %v7440, %v7438
        %v7444 = vshll.u32 %v6423, 16
        %v7446 = vrot.slane %v7444, 1
        %v7447 = vsel %vm7371, %v7442, %v7446
        %v7448 = vshrl.u32 %v6423, 16
        %v7450 = vor.u32 %v7448, %v7446
        %v7452 = vshll.u32 %v6424, 16
        %v7454 = vrot.slane %v7452, 1
        %v7455 = vsel %vm7371, %v7450, %v7454
        %v7456 = vshrl.u32 %v6424, 16
        %v7458 = vor.u32 %v7456, %v7454
        %v7460 = vshll.u32 %v6425, 16
        %v7462 = vrot.slane %v7460, 1
        %v7463 = vsel %vm7371, %v7458, %v7462
        %v7464 = vshrl.u32 %v6425, 16
        %v7466 = vor.u32 %v7464, %v7462
        %v7468 = vshll.u32 %v6426, 16
        %v7470 = vrot.slane %v7468, 1
        %v7471 = vsel %vm7371, %v7466, %v7470
        %v7472 = vshrl.u32 %v6426, 16
        %v7474 = vor.u32 %v7472, %v7470
        %v7476 = vshll.u32 %v6427, 16
        %v7478 = vrot.slane %v7476, 1
        %v7479 = vsel %vm7371, %v7474, %v7478
        %v7480 = vshrl.u32 %v6427, 16
        %v7482 = vor.u32 %v7480, %v7478
        %v7484 = vshll.u32 %v6428, 16
        %v7486 = vrot.slane %v7484, 1
        %v7487 = vsel %vm7371, %v7482, %v7486
        %v7488 = vshrl.u32 %v6428, 16
        %v7490 = vor.u32 %v7488, %v7486
        %v7492 = vshll.u32 %v6429, 16
        %v7494 = vrot.slane %v7492, 1
        %v7495 = vsel %vm7371, %v7490, %v7494
        %v7496 = vshrl.u32 %v6429, 16
        %v7498 = vor.u32 %v7496, %v7494
        %v7500 = vshll.u32 %v6430, 16
        %v7502 = vrot.slane %v7500, 1
        %v7503 = vsel %vm7371, %v7498, %v7502
        %v7504 = vshrl.u32 %v6430, 16
        %v7506 = vor.u32 %v7504, %v7502
        %v7508 = vshll.u32 %v6431, 16
        %v7510 = vrot.slane %v7508, 1
        %v7511 = vsel %vm7371, %v7506, %v7510
        %v7512 = vshrl.u32 %v6431, 16
        %v7514 = vor.u32 %v7512, %v7510
        %v7516 = vshll.u32 %v6432, 16
        %v7518 = vrot.slane %v7516, 1
        %v7519 = vsel %vm7371, %v7514, %v7518
        %v7520 = vshrl.u32 %v6432, 16
        %v7522 = vor.u32 %v7520, %v7518
        %v7524 = vshll.u32 %v6433, 16
        %v7526 = vrot.slane %v7524, 1
        %v7527 = vsel %vm7371, %v7522, %v7526
        %v7528 = vshrl.u32 %v6433, 16
        %v7530 = vor.u32 %v7528, %v7526
        %v7532 = vshll.u32 %v6434, 16
        %v7534 = vrot.slane %v7532, 1
        %v7535 = vsel %vm7371, %v7530, %v7534
        %v7536 = vshrl.u32 %v6434, 16
        %v7538 = vor.u32 %v7536, %v7534
        %v7540 = vshll.u32 %v6435, 16
        %v7542 = vrot.slane %v7540, 1
        %v7543 = vsel %vm7371, %v7538, %v7542
        %v7544 = vshrl.u32 %v6435, 16
        %v7546 = vor.u32 %v7544, %v7542
        %v7548 = vshll.u32 %v6436, 16
        %v7550 = vrot.slane %v7548, 1
        %v7551 = vsel %vm7371, %v7546, %v7550
        %v7552 = vshrl.u32 %v6436, 16
        %v7554 = vor.u32 %v7552, %v7550
        %v7556 = vshll.u32 %v6437, 16
        %v7558 = vrot.slane %v7556, 1
        %v7559 = vsel %vm7371, %v7554, %v7558
        %v7560 = vshrl.u32 %v6437, 16
        %v7562 = vor.u32 %v7560, %v7558
        %v7564 = vshll.u32 %v7368, 16
        %v7566 = vrot.slane %v7564, 1
        %v7567 = vsel %vm7371, %v7562, %v7566
        %vm7617 = vcmask 1046528
        %v7618 = vrot.slane %v6414, 1
        %v7619 = vrot.slane %v6415, 1
        %v7620 = vsel %vm7617, %v7618, %v7619
        %v7621 = vrot.slane %v6416, 1
        %v7622 = vsel %vm7617, %v7619, %v7621
        %v7623 = vrot.slane %v6417, 1
        %v7624 = vsel %vm7617, %v7621, %v7623
        %v7625 = vrot.slane %v6418, 1
        %v7626 = vsel %vm7617, %v7623, %v7625
        %v7627 = vrot.slane %v6419, 1
        %v7628 = vsel %vm7617, %v7625, %v7627
        %v7629 = vrot.slane %v6420, 1
        %v7630 = vsel %vm7617, %v7627, %v7629
        %v7631 = vrot.slane %v6421, 1
        %v7632 = vsel %vm7617, %v7629, %v7631
        %v7633 = vrot.slane %v6422, 1
        %v7634 = vsel %vm7617, %v7631, %v7633
        %v7635 = vrot.slane %v6423, 1
        %v7636 = vsel %vm7617, %v7633, %v7635
        %v7637 = vrot.slane %v6424, 1
        %v7638 = vsel %vm7617, %v7635, %v7637
        %v7639 = vrot.slane %v6425, 1
        %v7640 = vsel %vm7617, %v7637, %v7639
        %v7641 = vrot.slane %v6426, 1
        %v7642 = vsel %vm7617, %v7639, %v7641
        %v7643 = vrot.slane %v6427, 1
        %v7644 = vsel %vm7617, %v7641, %v7643
        %v7645 = vrot.slane %v6428, 1
        %v7646 = vsel %vm7617, %v7643, %v7645
        %v7647 = vrot.slane %v6429, 1
        %v7648 = vsel %vm7617, %v7645, %v7647
        %v7649 = vrot.slane %v6430, 1
        %v7650 = vsel %vm7617, %v7647, %v7649
        %v7651 = vrot.slane %v6431, 1
        %v7652 = vsel %vm7617, %v7649, %v7651
        %v7653 = vrot.slane %v6432, 1
        %v7654 = vsel %vm7617, %v7651, %v7653
        %v7655 = vrot.slane %v6433, 1
        %v7656 = vsel %vm7617, %v7653, %v7655
        %v7657 = vrot.slane %v6434, 1
        %v7658 = vsel %vm7617, %v7655, %v7657
        %v7659 = vrot.slane %v6435, 1
        %v7660 = vsel %vm7617, %v7657, %v7659
        %v7661 = vrot.slane %v6436, 1
        %v7662 = vsel %vm7617, %v7659, %v7661
        %v7663 = vrot.slane %v6437, 1
        %v7664 = vsel %vm7617, %v7661, %v7663
        %v7665 = vrot.slane %v7368, 1
        %v7666 = vsel %vm7617, %v7663, %v7665
        %vm7692 = vcmask 1043456
        %v7693 = vrot.slane %v6415, 4
        %v7694 = vrot.slane %v6416, 4
        %v7695 = vsel %vm7692, %v7693, %v7694
        %v7696 = vrot.slane %v6417, 4
        %v7697 = vsel %vm7692, %v7694, %v7696
        %v7698 = vrot.slane %v6418, 4
        %v7699 = vsel %vm7692, %v7696, %v7698
        %v7700 = vrot.slane %v6419, 4
        %v7701 = vsel %vm7692, %v7698, %v7700
        %v7702 = vrot.slane %v6420, 4
        %v7703 = vsel %vm7692, %v7700, %v7702
        %v7704 = vrot.slane %v6421, 4
        %v7705 = vsel %vm7692, %v7702, %v7704
        %v7706 = vrot.slane %v6422, 4
        %v7707 = vsel %vm7692, %v7704, %v7706
        %v7708 = vrot.slane %v6423, 4
        %v7709 = vsel %vm7692, %v7706, %v7708
        %v7710 = vrot.slane %v6424, 4
        %v7711 = vsel %vm7692, %v7708, %v7710
        %v7712 = vrot.slane %v6425, 4
        %v7713 = vsel %vm7692, %v7710, %v7712
        %v7714 = vrot.slane %v6426, 4
        %v7715 = vsel %vm7692, %v7712, %v7714
        %v7716 = vrot.slane %v6427, 4
        %v7717 = vsel %vm7692, %v7714, %v7716
        %v7718 = vrot.slane %v6428, 4
        %v7719 = vsel %vm7692, %v7716, %v7718
        %v7720 = vrot.slane %v6429, 4
        %v7721 = vsel %vm7692, %v7718, %v7720
        %v7722 = vrot.slane %v6430, 4
        %v7723 = vsel %vm7692, %v7720, %v7722
        %v7724 = vrot.slane %v6431, 4
        %v7725 = vsel %vm7692, %v7722, %v7724
        %v7726 = vrot.slane %v6432, 4
        %v7727 = vsel %vm7692, %v7724, %v7726
        %v7728 = vrot.slane %v6433, 4
        %v7729 = vsel %vm7692, %v7726, %v7728
        %v7730 = vrot.slane %v6434, 4
        %v7731 = vsel %vm7692, %v7728, %v7730
        %v7732 = vrot.slane %v6435, 4
        %v7733 = vsel %vm7692, %v7730, %v7732
        %v7734 = vrot.slane %v6436, 4
        %v7735 = vsel %vm7692, %v7732, %v7734
        %v7736 = vrot.slane %v6437, 4
        %v7737 = vsel %vm7692, %v7734, %v7736
        %v7738 = vrot.slane %v7368, 4
        %v7739 = vsel %vm7692, %v7736, %v7738
        %v7740 = vrot.slane %v7369, 4
        %v7741 = vsel %vm7692, %v7738, %v7740
        %vm7766 = vsmask.f32 3328
        %v7767 = vrot.slane %v7384, 4
        %v7768 = vrot.slane %v7380, 5
        %v7769 = vor.u32 %v7767, %v7768
        %v7770 = vrot.slane %v7392, 4
        %v7771 = vrot.slane %v7388, 5
        %v7772 = vor.u32 %v7770, %v7771
        %v7773 = vsel %vm7766, %v7769, %v7772
        %v7774 = vrot.slane %v7400, 4
        %v7775 = vrot.slane %v7396, 5
        %v7776 = vor.u32 %v7774, %v7775
        %v7777 = vsel %vm7766, %v7772, %v7776
        %v7778 = vrot.slane %v7408, 4
        %v7779 = vrot.slane %v7404, 5
        %v7780 = vor.u32 %v7778, %v7779
        %v7781 = vsel %vm7766, %v7776, %v7780
        %v7782 = vrot.slane %v7416, 4
        %v7783 = vrot.slane %v7412, 5
        %v7784 = vor.u32 %v7782, %v7783
        %v7785 = vsel %vm7766, %v7780, %v7784
        %v7786 = vrot.slane %v7424, 4
        %v7787 = vrot.slane %v7420, 5
        %v7788 = vor.u32 %v7786, %v7787
        %v7789 = vsel %vm7766, %v7784, %v7788
        %v7790 = vrot.slane %v7432, 4
        %v7791 = vrot.slane %v7428, 5
        %v7792 = vor.u32 %v7790, %v7791
        %v7793 = vsel %vm7766, %v7788, %v7792
        %v7794 = vrot.slane %v7440, 4
        %v7795 = vrot.slane %v7436, 5
        %v7796 = vor.u32 %v7794, %v7795
        %v7797 = vsel %vm7766, %v7792, %v7796
        %v7798 = vrot.slane %v7448, 4
        %v7799 = vrot.slane %v7444, 5
        %v7800 = vor.u32 %v7798, %v7799
        %v7801 = vsel %vm7766, %v7796, %v7800
        %v7802 = vrot.slane %v7456, 4
        %v7803 = vrot.slane %v7452, 5
        %v7804 = vor.u32 %v7802, %v7803
        %v7805 = vsel %vm7766, %v7800, %v7804
        %v7806 = vrot.slane %v7464, 4
        %v7807 = vrot.slane %v7460, 5
        %v7808 = vor.u32 %v7806, %v7807
        %v7809 = vsel %vm7766, %v7804, %v7808
        %v7810 = vrot.slane %v7472, 4
        %v7811 = vrot.slane %v7468, 5
        %v7812 = vor.u32 %v7810, %v7811
        %v7813 = vsel %vm7766, %v7808, %v7812
        %v7814 = vrot.slane %v7480, 4
        %v7815 = vrot.slane %v7476, 5
        %v7816 = vor.u32 %v7814, %v7815
        %v7817 = vsel %vm7766, %v7812, %v7816
        %v7818 = vrot.slane %v7488, 4
        %v7819 = vrot.slane %v7484, 5
        %v7820 = vor.u32 %v7818, %v7819
        %v7821 = vsel %vm7766, %v7816, %v7820
        %v7822 = vrot.slane %v7496, 4
        %v7823 = vrot.slane %v7492, 5
        %v7824 = vor.u32 %v7822, %v7823
        %v7825 = vsel %vm7766, %v7820, %v7824
        %v7826 = vrot.slane %v7504, 4
        %v7827 = vrot.slane %v7500, 5
        %v7828 = vor.u32 %v7826, %v7827
        %v7829 = vsel %vm7766, %v7824, %v7828
        %v7830 = vrot.slane %v7512, 4
        %v7831 = vrot.slane %v7508, 5
        %v7832 = vor.u32 %v7830, %v7831
        %v7833 = vsel %vm7766, %v7828, %v7832
        %v7834 = vrot.slane %v7520, 4
        %v7835 = vrot.slane %v7516, 5
        %v7836 = vor.u32 %v7834, %v7835
        %v7837 = vsel %vm7766, %v7832, %v7836
        %v7838 = vrot.slane %v7528, 4
        %v7839 = vrot.slane %v7524, 5
        %v7840 = vor.u32 %v7838, %v7839
        %v7841 = vsel %vm7766, %v7836, %v7840
        %v7842 = vrot.slane %v7536, 4
        %v7843 = vrot.slane %v7532, 5
        %v7844 = vor.u32 %v7842, %v7843
        %v7845 = vsel %vm7766, %v7840, %v7844
        %v7846 = vrot.slane %v7544, 4
        %v7847 = vrot.slane %v7540, 5
        %v7848 = vor.u32 %v7846, %v7847
        %v7849 = vsel %vm7766, %v7844, %v7848
        %v7850 = vrot.slane %v7552, 4
        %v7851 = vrot.slane %v7548, 5
        %v7852 = vor.u32 %v7850, %v7851
        %v7853 = vsel %vm7766, %v7848, %v7852
        %v7854 = vrot.slane %v7560, 4
        %v7855 = vrot.slane %v7556, 5
        %v7856 = vor.u32 %v7854, %v7855
        %v7857 = vsel %vm7766, %v7852, %v7856
        %v7858 = vshrl.u32 %v7368, 16
        %v7860 = vrot.slane %v7858, 4
        %v7861 = vrot.slane %v7564, 5
        %v7862 = vor.u32 %v7860, %v7861
        %v7863 = vsel %vm7766, %v7856, %v7862
        %v7865 = vshrl.u32 %v7369, 16
        %v7867 = vrot.slane %v7865, 4
        %v7868 = vshll.u32 %v7369, 16
        %v7870 = vrot.slane %v7868, 5
        %v7871 = vor.u32 %v7867, %v7870
        %v7872 = vsel %vm7766, %v7862, %v7871
        %vm7897 = vcmask 1042432
        %v7898 = vrot.slane %v6415, 5
        %v7899 = vrot.slane %v6416, 5
        %v7900 = vsel %vm7897, %v7898, %v7899
        %v7901 = vrot.slane %v6417, 5
        %v7902 = vsel %vm7897, %v7899, %v7901
        %v7903 = vrot.slane %v6418, 5
        %v7904 = vsel %vm7897, %v7901, %v7903
        %v7905 = vrot.slane %v6419, 5
        %v7906 = vsel %vm7897, %v7903, %v7905
        %v7907 = vrot.slane %v6420, 5
        %v7908 = vsel %vm7897, %v7905, %v7907
        %v7909 = vrot.slane %v6421, 5
        %v7910 = vsel %vm7897, %v7907, %v7909
        %v7911 = vrot.slane %v6422, 5
        %v7912 = vsel %vm7897, %v7909, %v7911
        %v7913 = vrot.slane %v6423, 5
        %v7914 = vsel %vm7897, %v7911, %v7913
        %v7915 = vrot.slane %v6424, 5
        %v7916 = vsel %vm7897, %v7913, %v7915
        %v7917 = vrot.slane %v6425, 5
        %v7918 = vsel %vm7897, %v7915, %v7917
        %v7919 = vrot.slane %v6426, 5
        %v7920 = vsel %vm7897, %v7917, %v7919
        %v7921 = vrot.slane %v6427, 5
        %v7922 = vsel %vm7897, %v7919, %v7921
        %v7923 = vrot.slane %v6428, 5
        %v7924 = vsel %vm7897, %v7921, %v7923
        %v7925 = vrot.slane %v6429, 5
        %v7926 = vsel %vm7897, %v7923, %v7925
        %v7927 = vrot.slane %v6430, 5
        %v7928 = vsel %vm7897, %v7925, %v7927
        %v7929 = vrot.slane %v6431, 5
        %v7930 = vsel %vm7897, %v7927, %v7929
        %v7931 = vrot.slane %v6432, 5
        %v7932 = vsel %vm7897, %v7929, %v7931
        %v7933 = vrot.slane %v6433, 5
        %v7934 = vsel %vm7897, %v7931, %v7933
        %v7935 = vrot.slane %v6434, 5
        %v7936 = vsel %vm7897, %v7933, %v7935
        %v7937 = vrot.slane %v6435, 5
        %v7938 = vsel %vm7897, %v7935, %v7937
        %v7939 = vrot.slane %v6436, 5
        %v7940 = vsel %vm7897, %v7937, %v7939
        %v7941 = vrot.slane %v6437, 5
        %v7942 = vsel %vm7897, %v7939, %v7941
        %v7943 = vrot.slane %v7368, 5
        %v7944 = vsel %vm7897, %v7941, %v7943
        %v7945 = vrot.slane %v7369, 5
        %v7946 = vsel %vm7897, %v7943, %v7945
        %v7971 = vor.u32 %v7858, %v7566
        %v7972 = vrot.slane %v7868, 1
        %v7973 = vsel %vm7371, %v7971, %v7972
        %v7974 = vor.u32 %v7865, %v7972
        %v7976 = vshll.u32 %v7370, 16
        %v7978 = vrot.slane %v7976, 1
        %v7979 = vsel %vm7371, %v7974, %v7978
        %v7980 = vshrl.u32 %v7370, 16
        %v7982 = vor.u32 %v7980, %v7978
        %v7984 = vshll.u32 0, 16
        %v7986 = vrot.slane %v7984, 1
        %v7987 = vsel %vm7371, %v7982, %v7986
        %v7993 = vrot.slane %v7369, 1
        %v7994 = vsel %vm7617, %v7665, %v7993
        %v7995 = vrot.slane %v7370, 1
        %v7996 = vsel %vm7617, %v7993, %v7995
        %v7997 = vrot.slane 0, 1
        %v7998 = vsel %vm7617, %v7995, %v7997
        %v8002 = vld [vmem:[%s11] sm:$0xf]
        %v8003 = vld [vmem:[%s11 + $0x4] sm:$0xf]
        %v8004 = vld [vmem:[%s11 + $0x8] sm:$0xf]
        %v8005 = vld [vmem:[%s11 + $0xc] sm:$0xf]
        %v8006 = vld [vmem:[%s11 + $0x10] sm:$0xf]
        %v8007 = vld [vmem:[%s11 + $0x14] sm:$0xf]
        %v8008 = vld [vmem:[%s11 + $0x18] sm:$0xf]
        %v8009 = vld [vmem:[%s11 + $0x1c] sm:$0xf]
        %v8010 = vld [vmem:[%s11 + $0x20] sm:$0xf]
        %v8011 = vld [vmem:[%s11 + $0x24] sm:$0xf]
        %v8012 = vld [vmem:[%s11 + $0x28] sm:$0xf]
        %v8013 = vld [vmem:[%s11 + $0x2c] sm:$0xf]
        %v8014 = vld [vmem:[%s11 + $0x30] sm:$0xf]
        %v8015 = vld [vmem:[%s11 + $0x34] sm:$0xf]
        %v8016 = vld [vmem:[%s11 + $0x38] sm:$0xf]
        %v8017 = vld [vmem:[%s11 + $0x3c] sm:$0xf]
        %v8018 = vld [vmem:[%s11 + $0x40] sm:$0xf]
        %v8019 = vld [vmem:[%s11 + $0x44] sm:$0xf]
        %v8020 = vld [vmem:[%s11 + $0x48] sm:$0xf]
        %v8021 = vld [vmem:[%s11 + $0x4c] sm:$0xf]
        %v8022 = vld [vmem:[%s11 + $0x50] sm:$0xf]
        %v8023 = vld [vmem:[%s11 + $0x54] sm:$0xf]
        %v8024 = vld [vmem:[%s11 + $0x58] sm:$0xf]
        %v8025 = vld [vmem:[%s11 + $0x5c] sm:$0xf]
        %v8026 = vld [vmem:[%s11 + $0x60] sm:$0xf]
        %v8027 = vld [vmem:[%s11 + $0x64] sm:$0xf]
        %v8028 = vld [vmem:[%s11 + $0x68] sm:$0xf]
        %v8029 = vld [vmem:[%s11 + $0x6c] sm:$0xf]
        %v8030 = vld [vmem:[%s11 + $0x70] sm:$0xf]
        %v8031 = vld [vmem:[%s11 + $0x74] sm:$0xf]
        %v8032 = vld [vmem:[%s11 + $0x78] sm:$0xf]
        %v8033 = vld [vmem:[%s11 + $0x7c] sm:$0xf]
        %v8034 = vld [vmem:[%s11 + $0x80] sm:$0xf]
        %v8035 = vld [vmem:[%s11 + $0x84] sm:$0xf]
        %v8036 = vld [vmem:[%s11 + $0x88] sm:$0xf]
        %v8037 = vld [vmem:[%s11 + $0x8c] sm:$0xf]
        %v8038 = vld [vmem:[%s11 + $0x90] sm:$0xf]
        %v8039 = vld [vmem:[%s11 + $0x94] sm:$0xf]
        %v8040 = vld [vmem:[%s11 + $0x98] sm:$0xf]
        %v8041 = vld [vmem:[%s11 + $0x9c] sm:$0xf]
        %v8042 = vld [vmem:[%s11 + $0xa0] sm:$0xf]
        %v8043 = vld [vmem:[%s11 + $0xa4] sm:$0xf]
        %v8044 = vld [vmem:[%s11 + $0xa8] sm:$0xf]
        %v8045 = vld [vmem:[%s11 + $0xac] sm:$0xf]
        %v8046 = vld [vmem:[%s11 + $0xb0] sm:$0xf]
        %v8047 = vld [vmem:[%s11 + $0xb4] sm:$0xf]
        %v8048 = vld [vmem:[%s11 + $0xb8] sm:$0xf]
        %v8049 = vld [vmem:[%s11 + $0xbc] sm:$0xf]
        %v8050 = vld [vmem:[%s11 + $0xc0] sm:$0xf]
        %v8051 = vld [vmem:[%s11 + $0xc4] sm:$0xf]
        %v8052 = vld [vmem:[%s11 + $0xc8] sm:$0xf]
        %v8053 = vld [vmem:[%s11 + $0xcc] sm:$0xf]
        %v8054 = vld [vmem:[%s11 + $0xd0] sm:$0xf]
        %v8055 = vld [vmem:[%s11 + $0xd4] sm:$0xf]
        %v8056 = vld [vmem:[%s11 + $0xd8] sm:$0xf]
        %v8057 = vld [vmem:[%s11 + $0xdc] sm:$0xf]
        %v8058 = vld [vmem:[%s11 + $0xe0] sm:$0xf]
        %v8059 = vld [vmem:[%s11 + $0xe4] sm:$0xf]
        %v8060 = vld [vmem:[%s11 + $0xe8] sm:$0xf]
        %v8061 = vld [vmem:[%s11 + $0xec] sm:$0xf]
        %v8062 = vld [vmem:[%s11 + $0xf0] sm:$0xf]
        %v8063 = vld [vmem:[%s11 + $0xf4] sm:$0xf]
        %v8064 = vld [vmem:[%s11 + $0xf8] sm:$0xf]
        %v8065 = vld [vmem:[%s11 + $0xfc] sm:$0xf]
        %v8066 = vld [vmem:[%s11 + $0x100] sm:$0xf]
        %v8067 = vld [vmem:[%s11 + $0x104] sm:$0xf]
        %v8068 = vld [vmem:[%s11 + $0x108] sm:$0xf]
        %v8069 = vld [vmem:[%s11 + $0x10c] sm:$0xf]
        %v8070 = vld [vmem:[%s11 + $0x110] sm:$0xf]
        %v8071 = vld [vmem:[%s11 + $0x114] sm:$0xf]
        %v8072 = vld [vmem:[%s11 + $0x118] sm:$0xf]
        %v8073 = vld [vmem:[%s11 + $0x11c] sm:$0xf]
        %v8074 = vld [vmem:[%s11 + $0x120] sm:$0xf]
        %v8075 = vld [vmem:[%s11 + $0x124] sm:$0xf]
        %v8076 = vld [vmem:[%s11 + $0x128] sm:$0xf]
        %v8077 = vld [vmem:[%s11 + $0x12c] sm:$0xf]
        %v8078 = vld [vmem:[%s11 + $0x130] sm:$0xf]
        %v8079 = vld [vmem:[%s11 + $0x134] sm:$0xf]
        %v8080 = vld [vmem:[%s11 + $0x138] sm:$0xf]
        %v8081 = vld [vmem:[%s11 + $0x13c] sm:$0xf]
        %v8082 = vld [vmem:[%s11 + $0x140] sm:$0xf]
        %v8083 = vld [vmem:[%s11 + $0x144] sm:$0xf]
        %v8084 = vld [vmem:[%s11 + $0x148] sm:$0xf]
        %v8085 = vld [vmem:[%s11 + $0x14c] sm:$0xf]
        %v8086 = vld [vmem:[%s11 + $0x150] sm:$0xf]
        %v8087 = vld [vmem:[%s11 + $0x154] sm:$0xf]
        %v8088 = vld [vmem:[%s11 + $0x158] sm:$0xf]
        %v8089 = vld [vmem:[%s11 + $0x15c] sm:$0xf]
        %v8090 = vld [vmem:[%s11 + $0x160] sm:$0xf]
        %v8091 = vld [vmem:[%s11 + $0x164] sm:$0xf]
        %v8092 = vld [vmem:[%s11 + $0x168] sm:$0xf]
        %v8093 = vld [vmem:[%s11 + $0x16c] sm:$0xf]
        %v8094 = vld [vmem:[%s11 + $0x170] sm:$0xf]
        %v8095 = vld [vmem:[%s11 + $0x174] sm:$0xf]
        %v8096 = vld [vmem:[%s11 + $0x178] sm:$0xf]
        %v8097 = vld [vmem:[%s11 + $0x17c] sm:$0xf]
        %v8098 = vld [vmem:[%s11 + $0x180] sm:$0xf]
        %v8099 = vld [vmem:[%s11 + $0x184] sm:$0xf]
        %v8100 = vld [vmem:[%s11 + $0x188] sm:$0xf]
        %v8101 = vld [vmem:[%s11 + $0x18c] sm:$0xf]
        %v8102 = vld [vmem:[%s11 + $0x190] sm:$0xf]
        %v8103 = vld [vmem:[%s11 + $0x194] sm:$0xf]
        %v8104 = vld [vmem:[%s11 + $0x198] sm:$0xf]
        %v8105 = vld [vmem:[%s11 + $0x19c] sm:$0xf]
        %v8106 = vld [vmem:[%s11 + $0x1a0] sm:$0xf]
        %v8107 = vld [vmem:[%s11 + $0x1a4] sm:$0xf]
        %v8108 = vld [vmem:[%s11 + $0x1a8] sm:$0xf]
        %v8109 = vld [vmem:[%s11 + $0x1ac] sm:$0xf]
        %v8110 = vld [vmem:[%s11 + $0x1b0] sm:$0xf]
        %v8111 = vld [vmem:[%s11 + $0x1b4] sm:$0xf]
        %v8112 = vld [vmem:[%s11 + $0x1b8] sm:$0xf]
        %v8113 = vld [vmem:[%s11 + $0x1bc] sm:$0xf]
        %v8114 = vld [vmem:[%s11 + $0x1c0] sm:$0xf]
        %v8115 = vld [vmem:[%s11 + $0x1c4] sm:$0xf]
        %v8116 = vld [vmem:[%s11 + $0x1c8] sm:$0xf]
        %v8117 = vld [vmem:[%s11 + $0x1cc] sm:$0xf]
        %v8118 = vld [vmem:[%s11 + $0x1d0] sm:$0xf]
        %v8119 = vld [vmem:[%s11 + $0x1d4] sm:$0xf]
        %v8120 = vld [vmem:[%s11 + $0x1d8] sm:$0xf]
        %v8121 = vld [vmem:[%s11 + $0x1dc] sm:$0xf]
        %v8122 = vld [vmem:[%s11 + $0x1e0] sm:$0xf]
        %v8123 = vld [vmem:[%s11 + $0x1e4] sm:$0xf]
        %v8124 = vld [vmem:[%s11 + $0x1e8] sm:$0xf]
        %v8125 = vld [vmem:[%s11 + $0x1ec] sm:$0xf]
        %v8126 = vld [vmem:[%s11 + $0x1f0] sm:$0xf]
        %v8127 = vld [vmem:[%s11 + $0x1f4] sm:$0xf]
        %v8128 = vld [vmem:[%s11 + $0x1f8] sm:$0xf]
        %v8129 = vld [vmem:[%s11 + $0x1fc] sm:$0xf]
        %v8130 = vld [vmem:[%s11 + $0x200] sm:$0xf]
        %v8131 = vld [vmem:[%s11 + $0x204] sm:$0xf]
        %v8132 = vld [vmem:[%s11 + $0x208] sm:$0xf]
        %v8133 = vld [vmem:[%s11 + $0x20c] sm:$0xf]
        %v8134 = vld [vmem:[%s11 + $0x210] sm:$0xf]
        %v8135 = vld [vmem:[%s11 + $0x214] sm:$0xf]
        %v8136 = vld [vmem:[%s11 + $0x218] sm:$0xf]
        %v8137 = vld [vmem:[%s11 + $0x21c] sm:$0xf]
        %v8138 = vld [vmem:[%s11 + $0x220] sm:$0xf]
        %v8139 = vld [vmem:[%s11 + $0x224] sm:$0xf]
        %v8140 = vld [vmem:[%s11 + $0x228] sm:$0xf]
        %v8141 = vld [vmem:[%s11 + $0x22c] sm:$0xf]
        %v8142 = vld [vmem:[%s11 + $0x230] sm:$0xf]
        %v8143 = vld [vmem:[%s11 + $0x234] sm:$0xf]
        %v8144 = vld [vmem:[%s11 + $0x238] sm:$0xf]
        %v8145 = vld [vmem:[%s11 + $0x23c] sm:$0xf]
        %v8290 = vunpack.c.l.b16 %v8002
        %v8291 = vunpack.c.l.b16 %v8003
        %v8292 = vunpack.c.l.b16 %v8004
        %v8293 = vunpack.c.l.b16 %v8005
        %v8294 = vunpack.c.l.b16 %v8006
        %v8295 = vunpack.c.l.b16 %v8007
        %v8296 = vunpack.c.l.b16 %v8008
        %v8297 = vunpack.c.l.b16 %v8009
        %v8298 = vunpack.c.l.b16 %v8010
        %v8299 = vunpack.c.l.b16 %v8011
        %v8300 = vunpack.c.l.b16 %v8012
        %v8301 = vunpack.c.l.b16 %v8013
        %v8302 = vunpack.c.l.b16 %v8014
        %v8303 = vunpack.c.l.b16 %v8015
        %v8304 = vunpack.c.l.b16 %v8016
        %v8305 = vunpack.c.l.b16 %v8017
        %v8306 = vunpack.c.l.b16 %v8018
        %v8307 = vunpack.c.l.b16 %v8019
        %v8308 = vunpack.c.l.b16 %v8020
        %v8309 = vunpack.c.l.b16 %v8021
        %v8310 = vunpack.c.l.b16 %v8022
        %v8311 = vunpack.c.l.b16 %v8023
        %v8312 = vunpack.c.l.b16 %v8024
        %v8313 = vunpack.c.l.b16 %v8025
        %v8314 = vunpack.c.l.b16 %v8026
        %v8315 = vunpack.c.l.b16 %v8027
        %v8316 = vunpack.c.l.b16 %v8028
        %v8317 = vunpack.c.l.b16 %v8029
        %v8318 = vunpack.c.l.b16 %v8030
        %v8319 = vunpack.c.l.b16 %v8031
        %v8320 = vunpack.c.l.b16 %v8032
        %v8321 = vunpack.c.l.b16 %v8033
        %v8322 = vunpack.c.l.b16 %v8034
        %v8323 = vunpack.c.l.b16 %v8035
        %v8324 = vunpack.c.l.b16 %v8036
        %v8325 = vunpack.c.l.b16 %v8037
        %v8326 = vunpack.c.l.b16 %v8038
        %v8327 = vunpack.c.l.b16 %v8039
        %v8328 = vunpack.c.l.b16 %v8040
        %v8329 = vunpack.c.l.b16 %v8041
        %v8330 = vunpack.c.l.b16 %v8042
        %v8331 = vunpack.c.l.b16 %v8043
        %v8332 = vunpack.c.l.b16 %v8044
        %v8333 = vunpack.c.l.b16 %v8045
        %v8334 = vunpack.c.l.b16 %v8046
        %v8335 = vunpack.c.l.b16 %v8047
        %v8336 = vunpack.c.l.b16 %v8048
        %v8337 = vunpack.c.l.b16 %v8049
        %v8338 = vunpack.c.l.b16 %v8050
        %v8339 = vunpack.c.l.b16 %v8051
        %v8340 = vunpack.c.l.b16 %v8052
        %v8341 = vunpack.c.l.b16 %v8053
        %v8342 = vunpack.c.l.b16 %v8054
        %v8343 = vunpack.c.l.b16 %v8055
        %v8344 = vunpack.c.l.b16 %v8056
        %v8345 = vunpack.c.l.b16 %v8057
        %v8346 = vunpack.c.l.b16 %v8058
        %v8347 = vunpack.c.l.b16 %v8059
        %v8348 = vunpack.c.l.b16 %v8060
        %v8349 = vunpack.c.l.b16 %v8061
        %v8350 = vunpack.c.l.b16 %v8062
        %v8351 = vunpack.c.l.b16 %v8063
        %v8352 = vunpack.c.l.b16 %v8064
        %v8353 = vunpack.c.l.b16 %v8065
        %v8354 = vunpack.c.l.b16 %v8066
        %v8355 = vunpack.c.l.b16 %v8067
        %v8356 = vunpack.c.l.b16 %v8068
        %v8357 = vunpack.c.l.b16 %v8069
        %v8358 = vunpack.c.l.b16 %v8070
        %v8359 = vunpack.c.l.b16 %v8071
        %v8360 = vunpack.c.l.b16 %v8072
        %v8361 = vunpack.c.l.b16 %v8073
        %v8362 = vunpack.c.l.b16 %v8074
        %v8363 = vunpack.c.l.b16 %v8075
        %v8364 = vunpack.c.l.b16 %v8076
        %v8365 = vunpack.c.l.b16 %v8077
        %v8366 = vunpack.c.l.b16 %v8078
        %v8367 = vunpack.c.l.b16 %v8079
        %v8368 = vunpack.c.l.b16 %v8080
        %v8369 = vunpack.c.l.b16 %v8081
        %v8370 = vunpack.c.l.b16 %v8082
        %v8371 = vunpack.c.l.b16 %v8083
        %v8372 = vunpack.c.l.b16 %v8084
        %v8373 = vunpack.c.l.b16 %v8085
        %v8374 = vunpack.c.l.b16 %v8086
        %v8375 = vunpack.c.l.b16 %v8087
        %v8376 = vunpack.c.l.b16 %v8088
        %v8377 = vunpack.c.l.b16 %v8089
        %v8378 = vunpack.c.l.b16 %v8090
        %v8379 = vunpack.c.l.b16 %v8091
        %v8380 = vunpack.c.l.b16 %v8092
        %v8381 = vunpack.c.l.b16 %v8093
        %v8382 = vunpack.c.l.b16 %v8094
        %v8383 = vunpack.c.l.b16 %v8095
        %v8384 = vunpack.c.l.b16 %v8096
        %v8385 = vunpack.c.l.b16 %v8097
        %v8386 = vunpack.c.l.b16 %v8098
        %v8387 = vunpack.c.l.b16 %v8099
        %v8388 = vunpack.c.l.b16 %v8100
        %v8389 = vunpack.c.l.b16 %v8101
        %v8390 = vunpack.c.l.b16 %v8102
        %v8391 = vunpack.c.l.b16 %v8103
        %v8392 = vunpack.c.l.b16 %v8104
        %v8393 = vunpack.c.l.b16 %v8105
        %v8394 = vunpack.c.l.b16 %v8106
        %v8395 = vunpack.c.l.b16 %v8107
        %v8396 = vunpack.c.l.b16 %v8108
        %v8397 = vunpack.c.l.b16 %v8109
        %v8398 = vunpack.c.l.b16 %v8110
        %v8399 = vunpack.c.l.b16 %v8111
        %v8400 = vunpack.c.l.b16 %v8112
        %v8401 = vunpack.c.l.b16 %v8113
        %v8402 = vunpack.c.l.b16 %v8114
        %v8403 = vunpack.c.l.b16 %v8115
        %v8404 = vunpack.c.l.b16 %v8116
        %v8405 = vunpack.c.l.b16 %v8117
        %v8406 = vunpack.c.l.b16 %v8118
        %v8407 = vunpack.c.l.b16 %v8119
        %v8408 = vunpack.c.l.b16 %v8120
        %v8409 = vunpack.c.l.b16 %v8121
        %v8410 = vunpack.c.l.b16 %v8122
        %v8411 = vunpack.c.l.b16 %v8123
        %v8412 = vunpack.c.l.b16 %v8124
        %v8413 = vunpack.c.l.b16 %v8125
        %v8414 = vunpack.c.l.b16 %v8126
        %v8415 = vunpack.c.l.b16 %v8127
        %v8416 = vunpack.c.l.b16 %v8128
        %v8417 = vunpack.c.l.b16 %v8129
        %v8418 = vunpack.c.l.b16 %v8130
        %v8419 = vunpack.c.l.b16 %v8131
        %v8420 = vunpack.c.l.b16 %v8132
        %v8421 = vunpack.c.l.b16 %v8133
        %v8422 = vunpack.c.l.b16 %v8134
        %v8423 = vunpack.c.l.b16 %v8135
        %v8424 = vunpack.c.l.b16 %v8136
        %v8425 = vunpack.c.l.b16 %v8137
        %v8426 = vunpack.c.l.b16 %v8138
        %v8427 = vunpack.c.l.b16 %v8139
        %v8428 = vunpack.c.l.b16 %v8140
        %v8429 = vunpack.c.l.b16 %v8141
        %v8430 = vunpack.c.l.b16 %v8142
        %v8431 = vunpack.c.l.b16 %v8143
        %v8432 = vunpack.c.l.b16 %v8144
        %v8433 = vunpack.c.l.b16 %v8145
        %v8434 = vpack.c.b16 %v8291, %v8290
        %v8435 = vpack.c.b16 %v8293, %v8292
        %v8436 = vpack.c.b16 %v8295, %v8294
        %v8437 = vpack.c.b16 %v8297, %v8296
        %v8438 = vpack.c.b16 %v8299, %v8298
        %v8439 = vpack.c.b16 %v8301, %v8300
        %v8440 = vpack.c.b16 %v8303, %v8302
        %v8441 = vpack.c.b16 %v8305, %v8304
        %v8442 = vpack.c.b16 %v8307, %v8306
        %v8443 = vpack.c.b16 %v8309, %v8308
        %v8444 = vpack.c.b16 %v8311, %v8310
        %v8445 = vpack.c.b16 %v8313, %v8312
        %v8446 = vpack.c.b16 %v8315, %v8314
        %v8447 = vpack.c.b16 %v8317, %v8316
        %v8448 = vpack.c.b16 %v8319, %v8318
        %v8449 = vpack.c.b16 %v8321, %v8320
        %v8450 = vpack.c.b16 %v8323, %v8322
        %v8451 = vpack.c.b16 %v8325, %v8324
        %v8452 = vpack.c.b16 %v8327, %v8326
        %v8453 = vpack.c.b16 %v8329, %v8328
        %v8454 = vpack.c.b16 %v8331, %v8330
        %v8455 = vpack.c.b16 %v8333, %v8332
        %v8456 = vpack.c.b16 %v8335, %v8334
        %v8457 = vpack.c.b16 %v8337, %v8336
        %v8458 = vpack.c.b16 %v8339, %v8338
        %v8459 = vpack.c.b16 %v8341, %v8340
        %v8460 = vpack.c.b16 %v8343, %v8342
        %v8461 = vpack.c.b16 %v8345, %v8344
        %v8462 = vpack.c.b16 %v8347, %v8346
        %v8463 = vpack.c.b16 %v8349, %v8348
        %v8464 = vpack.c.b16 %v8351, %v8350
        %v8465 = vpack.c.b16 %v8353, %v8352
        %v8466 = vpack.c.b16 %v8355, %v8354
        %v8467 = vpack.c.b16 %v8357, %v8356
        %v8468 = vpack.c.b16 %v8359, %v8358
        %v8469 = vpack.c.b16 %v8361, %v8360
        %v8470 = vpack.c.b16 %v8363, %v8362
        %v8471 = vpack.c.b16 %v8365, %v8364
        %v8472 = vpack.c.b16 %v8367, %v8366
        %v8473 = vpack.c.b16 %v8369, %v8368
        %v8474 = vpack.c.b16 %v8371, %v8370
        %v8475 = vpack.c.b16 %v8373, %v8372
        %v8476 = vpack.c.b16 %v8375, %v8374
        %v8477 = vpack.c.b16 %v8377, %v8376
        %v8478 = vpack.c.b16 %v8379, %v8378
        %v8479 = vpack.c.b16 %v8381, %v8380
        %v8480 = vpack.c.b16 %v8383, %v8382
        %v8481 = vpack.c.b16 %v8385, %v8384
        %v8482 = vpack.c.b16 %v8387, %v8386
        %v8483 = vpack.c.b16 %v8389, %v8388
        %v8484 = vpack.c.b16 %v8391, %v8390
        %v8485 = vpack.c.b16 %v8393, %v8392
        %v8486 = vpack.c.b16 %v8395, %v8394
        %v8487 = vpack.c.b16 %v8397, %v8396
        %v8488 = vpack.c.b16 %v8399, %v8398
        %v8489 = vpack.c.b16 %v8401, %v8400
        %v8490 = vpack.c.b16 %v8403, %v8402
        %v8491 = vpack.c.b16 %v8405, %v8404
        %v8492 = vpack.c.b16 %v8407, %v8406
        %v8493 = vpack.c.b16 %v8409, %v8408
        %v8494 = vpack.c.b16 %v8411, %v8410
        %v8495 = vpack.c.b16 %v8413, %v8412
        %v8496 = vpack.c.b16 %v8415, %v8414
        %v8497 = vpack.c.b16 %v8417, %v8416
        %v8498 = vpack.c.b16 %v8419, %v8418
        %v8499 = vpack.c.b16 %v8421, %v8420
        %v8500 = vpack.c.b16 %v8423, %v8422
        %v8501 = vpack.c.b16 %v8425, %v8424
        %v8502 = vpack.c.b16 %v8427, %v8426
        %v8503 = vpack.c.b16 %v8429, %v8428
        %v8504 = vpack.c.b16 %v8431, %v8430
        %v8505 = vpack.c.b16 %v8433, %v8432
        %8578 = vmatprep.subr.bf16.mxu0 0
        %8579 = vmatpush1.bf16.msra.mxu0 %v8434
        %8580 = vmatprep.subr.bf16.mxu0 0
        %8581 = vmatpush1.bf16.msra.mxu0 %v8435
        %8582 = vmatprep.subr.bf16.mxu0 0
        %8583 = vmatpush1.bf16.msra.mxu0 %v8436
        %8584 = vmatprep.subr.bf16.mxu0 0
        %8585 = vmatpush1.bf16.msra.mxu0 %v8437
        %8586 = vmatprep.subr.bf16.mxu0 0
        %8587 = vmatpush1.bf16.msra.mxu0 %v8438
        %8588 = vmatprep.subr.bf16.mxu0 0
        %8589 = vmatpush1.bf16.msra.mxu0 %v8439
        %8590 = vmatprep.subr.bf16.mxu0 0
        %8591 = vmatpush1.bf16.msra.mxu0 %v8440
        %8592 = vmatprep.subr.bf16.mxu0 0
        %8593 = vmatpush1.bf16.msra.mxu0 %v8441
        %8594 = vmatprep.subr.bf16.mxu0 0
        %8595 = vmatpush1.bf16.msra.mxu0 %v8442
        %8596 = vmatprep.subr.bf16.mxu0 0
        %8597 = vmatpush1.bf16.msra.mxu0 %v8443
        %8598 = vmatprep.subr.bf16.mxu0 0
        %8599 = vmatpush1.bf16.msra.mxu0 %v8444
        %8600 = vmatprep.subr.bf16.mxu0 0
        %8601 = vmatpush1.bf16.msra.mxu0 %v8445
        %8602 = vmatprep.subr.bf16.mxu0 0
        %8603 = vmatpush1.bf16.msra.mxu0 %v8446
        %8604 = vmatprep.subr.bf16.mxu0 0
        %8605 = vmatpush1.bf16.msra.mxu0 %v8447
        %8606 = vmatprep.subr.bf16.mxu0 0
        %8607 = vmatpush1.bf16.msra.mxu0 %v8448
        %8608 = vmatprep.subr.bf16.mxu0 0
        %8609 = vmatpush1.bf16.msra.mxu0 %v8449
        %8610 = vmatprep.mubr.bf16.mxu0 %v7383
        %8611 = vmatmul.mubr.bf16.gmra.mrb[0].mxu0 %v6414
        %v8612 = vpop.f32.mrb[0].mxu0
        %v8613 = vadd.f32 0.0, %v8612
        %v8614 = vpop.f32.mrb[0].mxu0
        %v8615 = vpop.f32.mrb[0].mxu0
        %v8616 = vadd.f32 0.0, %v8615
        %v8617 = vpop.f32.mrb[0].mxu0
        %8618 = vmatprep.mubr.bf16.mxu0 %v7391
        %8619 = vmatmul.mubr.bf16.gmra.mrb[0].mxu0 %v6415
        %v8620 = vpop.f32.mrb[0].mxu0
        %v8621 = vpop.f32.mrb[0].mxu0
        %v8622 = vpop.f32.mrb[0].mxu0
        %v8623 = vadd.f32 0.0, %v8622
        %v8624 = vpop.f32.mrb[0].mxu0
        %8625 = vmatprep.mubr.bf16.mxu0 %v7399
        %8626 = vmatmul.mubr.bf16.gmra.mrb[0].mxu0 %v6416
        %v8627 = vpop.f32.mrb[0].mxu0
        %v8628 = vadd.f32 0.0, %v8627
        %v8629 = vpop.f32.mrb[0].mxu0
        %v8630 = vpop.f32.mrb[0].mxu0
        %v8631 = vpop.f32.mrb[0].mxu0
        %8632 = vmatprep.mubr.bf16.mxu0 %v7407
        %8633 = vmatmul.mubr.bf16.gmra.mrb[0].mxu0 %v6417
        %v8634 = vpop.f32.mrb[0].mxu0
        %v8635 = vadd.f32 0.0, %v8634
        %v8636 = vpop.f32.mrb[0].mxu0
        %v8637 = vpop.f32.mrb[0].mxu0
        %v8638 = vadd.f32 0.0, %v8637
        %v8639 = vpop.f32.mrb[0].mxu0
        %8640 = vmatprep.mubr.bf16.mxu0 %v7415
        %8641 = vmatmul.mubr.bf16.gmra.mrb[0].mxu0 %v6418
        %v8642 = vpop.f32.mrb[0].mxu0
        %v8643 = vpop.f32.mrb[0].mxu0
        %v8644 = vpop.f32.mrb[0].mxu0
        %v8645 = vadd.f32 0.0, %v8644
        %v8646 = vpop.f32.mrb[0].mxu0
        %8647 = vmatprep.mubr.bf16.mxu0 %v7423
        %8648 = vmatmul.mubr.bf16.gmra.mrb[0].mxu0 %v6419
        %v8649 = vpop.f32.mrb[0].mxu0
        %v8650 = vadd.f32 0.0, %v8649
        %v8651 = vpop.f32.mrb[0].mxu0
        %v8652 = vpop.f32.mrb[0].mxu0
        %v8653 = vpop.f32.mrb[0].mxu0
        %8654 = vmatprep.mubr.bf16.mxu0 %v7431
        %8655 = vmatmul.mubr.bf16.gmra.mrb[0].mxu0 %v6420
        %v8656 = vpop.f32.mrb[0].mxu0
        %v8657 = vadd.f32 0.0, %v8656
        %v8658 = vpop.f32.mrb[0].mxu0
        %v8659 = vpop.f32.mrb[0].mxu0
        %v8660 = vadd.f32 0.0, %v8659
        %v8661 = vpop.f32.mrb[0].mxu0
        %8662 = vmatprep.mubr.bf16.mxu0 %v7439
        %8663 = vmatmul.mubr.bf16.gmra.mrb[0].mxu0 %v6421
        %v8664 = vpop.f32.mrb[0].mxu0
        %v8665 = vpop.f32.mrb[0].mxu0
        %v8666 = vpop.f32.mrb[0].mxu0
        %v8667 = vadd.f32 0.0, %v8666
        %v8668 = vpop.f32.mrb[0].mxu0
        %8669 = vmatprep.mubr.bf16.mxu0 %v7447
        %8670 = vmatmul.mubr.bf16.gmra.mrb[0].mxu0 %v6422
        %v8671 = vpop.f32.mrb[0].mxu0
        %v8672 = vadd.f32 0.0, %v8671
        %v8673 = vpop.f32.mrb[0].mxu0
        %v8674 = vpop.f32.mrb[0].mxu0
        %v8675 = vpop.f32.mrb[0].mxu0
        %8676 = vmatprep.mubr.bf16.mxu0 %v7455
        %8677 = vmatmul.mubr.bf16.gmra.mrb[0].mxu0 %v6423
        %v8678 = vpop.f32.mrb[0].mxu0
        %v8679 = vadd.f32 0.0, %v8678
        %v8680 = vpop.f32.mrb[0].mxu0
        %v8681 = vpop.f32.mrb[0].mxu0
        %v8682 = vadd.f32 0.0, %v8681
        %v8683 = vpop.f32.mrb[0].mxu0
        %8684 = vmatprep.mubr.bf16.mxu0 %v7463
        %8685 = vmatmul.mubr.bf16.gmra.mrb[0].mxu0 %v6424
        %v8686 = vpop.f32.mrb[0].mxu0
        %v8687 = vpop.f32.mrb[0].mxu0
        %v8688 = vpop.f32.mrb[0].mxu0
        %v8689 = vadd.f32 0.0, %v8688
        %v8690 = vpop.f32.mrb[0].mxu0
        %8691 = vmatprep.mubr.bf16.mxu0 %v7471
        %8692 = vmatmul.mubr.bf16.gmra.mrb[0].mxu0 %v6425
        %v8693 = vpop.f32.mrb[0].mxu0
        %v8694 = vadd.f32 0.0, %v8693
        %v8695 = vpop.f32.mrb[0].mxu0
        %v8696 = vpop.f32.mrb[0].mxu0
        %v8697 = vpop.f32.mrb[0].mxu0
        %8698 = vmatprep.mubr.bf16.mxu0 %v7479
        %8699 = vmatmul.mubr.bf16.gmra.mrb[0].mxu0 %v6426
        %v8700 = vpop.f32.mrb[0].mxu0
        %v8701 = vadd.f32 0.0, %v8700
        %v8702 = vpop.f32.mrb[0].mxu0
        %v8703 = vpop.f32.mrb[0].mxu0
        %v8704 = vadd.f32 0.0, %v8703
        %v8705 = vpop.f32.mrb[0].mxu0
        %8706 = vmatprep.mubr.bf16.mxu0 %v7487
        %8707 = vmatmul.mubr.bf16.gmra.mrb[0].mxu0 %v6427
        %v8708 = vpop.f32.mrb[0].mxu0
        %v8709 = vpop.f32.mrb[0].mxu0
        %v8710 = vpop.f32.mrb[0].mxu0
        %v8711 = vadd.f32 0.0, %v8710
        %v8712 = vpop.f32.mrb[0].mxu0
        %8713 = vmatprep.mubr.bf16.mxu0 %v7495
        %8714 = vmatmul.mubr.bf16.gmra.mrb[0].mxu0 %v6428
        %v8715 = vpop.f32.mrb[0].mxu0
        %v8716 = vadd.f32 0.0, %v8715
        %v8717 = vpop.f32.mrb[0].mxu0
        %v8718 = vpop.f32.mrb[0].mxu0
        %v8719 = vpop.f32.mrb[0].mxu0
        %8720 = vmatprep.mubr.bf16.mxu0 %v7503
        %8721 = vmatmul.mubr.bf16.gmra.mrb[0].mxu0 %v6429
        %v8722 = vpop.f32.mrb[0].mxu0
        %v8723 = vadd.f32 0.0, %v8722
        %v8724 = vpop.f32.mrb[0].mxu0
        %v8725 = vpop.f32.mrb[0].mxu0
        %v8726 = vadd.f32 0.0, %v8725
        %v8727 = vpop.f32.mrb[0].mxu0
        %8728 = vmatprep.mubr.bf16.mxu0 %v7511
        %8729 = vmatmul.mubr.bf16.gmra.mrb[0].mxu0 %v6430
        %v8730 = vpop.f32.mrb[0].mxu0
        %v8731 = vpop.f32.mrb[0].mxu0
        %v8732 = vpop.f32.mrb[0].mxu0
        %v8733 = vadd.f32 0.0, %v8732
        %v8734 = vpop.f32.mrb[0].mxu0
        %8735 = vmatprep.mubr.bf16.mxu0 %v7519
        %8736 = vmatmul.mubr.bf16.gmra.mrb[0].mxu0 %v6431
        %v8737 = vpop.f32.mrb[0].mxu0
        %v8738 = vadd.f32 0.0, %v8737
        %v8739 = vpop.f32.mrb[0].mxu0
        %v8740 = vpop.f32.mrb[0].mxu0
        %v8741 = vpop.f32.mrb[0].mxu0
        %8742 = vmatprep.mubr.bf16.mxu0 %v7527
        %8743 = vmatmul.mubr.bf16.gmra.mrb[0].mxu0 %v6432
        %v8744 = vpop.f32.mrb[0].mxu0
        %v8745 = vadd.f32 0.0, %v8744
        %v8746 = vpop.f32.mrb[0].mxu0
        %v8747 = vpop.f32.mrb[0].mxu0
        %v8748 = vadd.f32 0.0, %v8747
        %v8749 = vpop.f32.mrb[0].mxu0
        %8750 = vmatprep.mubr.bf16.mxu0 %v7535
        %8751 = vmatmul.mubr.bf16.gmra.mrb[0].mxu0 %v6433
        %v8752 = vpop.f32.mrb[0].mxu0
        %v8753 = vpop.f32.mrb[0].mxu0
        %v8754 = vpop.f32.mrb[0].mxu0
        %v8755 = vadd.f32 0.0, %v8754
        %v8756 = vpop.f32.mrb[0].mxu0
        %8757 = vmatprep.mubr.bf16.mxu0 %v7543
        %8758 = vmatmul.mubr.bf16.gmra.mrb[0].mxu0 %v6434
        %v8759 = vpop.f32.mrb[0].mxu0
        %v8760 = vadd.f32 0.0, %v8759
        %v8761 = vpop.f32.mrb[0].mxu0
        %v8762 = vpop.f32.mrb[0].mxu0
        %v8763 = vpop.f32.mrb[0].mxu0
        %8764 = vmatprep.mubr.bf16.mxu0 %v7551
        %8765 = vmatmul.mubr.bf16.gmra.mrb[0].mxu0 %v6435
        %v8766 = vpop.f32.mrb[0].mxu0
        %v8767 = vadd.f32 0.0, %v8766
        %v8768 = vpop.f32.mrb[0].mxu0
        %v8769 = vpop.f32.mrb[0].mxu0
        %v8770 = vadd.f32 0.0, %v8769
        %v8771 = vpop.f32.mrb[0].mxu0
        %8772 = vmatprep.mubr.bf16.mxu0 %v7559
        %8773 = vmatmul.mubr.bf16.gmra.mrb[0].mxu0 %v6436
        %v8774 = vpop.f32.mrb[0].mxu0
        %v8775 = vpop.f32.mrb[0].mxu0
        %v8776 = vpop.f32.mrb[0].mxu0
        %v8777 = vadd.f32 0.0, %v8776
        %v8778 = vpop.f32.mrb[0].mxu0
        %8779 = vmatprep.mubr.bf16.mxu0 %v7567
        %8780 = vmatmul.mubr.bf16.gmra.mrb[0].mxu0 %v6437
        %v8781 = vpop.f32.mrb[0].mxu0
        %v8782 = vadd.f32 0.0, %v8781
        %v8783 = vpop.f32.mrb[0].mxu0
        %v8784 = vpop.f32.mrb[0].mxu0
        %v8785 = vpop.f32.mrb[0].mxu0
        %8786 = vdwg.mxu0
        %8787 = vmatprep.subr.bf16.mxu0 0
        %8788 = vmatpush1.bf16.msra.mxu0 %v8450
        %8789 = vmatprep.subr.bf16.mxu0 0
        %8790 = vmatpush1.bf16.msra.mxu0 %v8451
        %8791 = vmatprep.subr.bf16.mxu0 0
        %8792 = vmatpush1.bf16.msra.mxu0 %v8452
        %8793 = vmatprep.subr.bf16.mxu0 0
        %8794 = vmatpush1.bf16.msra.mxu0 %v8453
        %8795 = vmatprep.subr.bf16.mxu0 0
        %8796 = vmatpush1.bf16.msra.mxu0 %v8454
        %8797 = vmatprep.subr.bf16.mxu0 0
        %8798 = vmatpush1.bf16.msra.mxu0 %v8455
        %8799 = vmatprep.subr.bf16.mxu0 0
        %8800 = vmatpush1.bf16.msra.mxu0 %v8456
        %8801 = vmatprep.subr.bf16.mxu0 0
        %8802 = vmatpush1.bf16.msra.mxu0 %v8457
        %8803 = vmatprep.subr.bf16.mxu0 0
        %8804 = vmatpush1.bf16.msra.mxu0 %v8458
        %8805 = vmatprep.subr.bf16.mxu0 0
        %8806 = vmatpush1.bf16.msra.mxu0 %v8459
        %8807 = vmatprep.subr.bf16.mxu0 0
        %8808 = vmatpush1.bf16.msra.mxu0 %v8460
        %8809 = vmatprep.subr.bf16.mxu0 0
        %8810 = vmatpush1.bf16.msra.mxu0 %v8461
        %8811 = vmatprep.subr.bf16.mxu0 0
        %8812 = vmatpush1.bf16.msra.mxu0 %v8462
        %8813 = vmatprep.subr.bf16.mxu0 0
        %8814 = vmatpush1.bf16.msra.mxu0 %v8463
        %8815 = vmatprep.subr.bf16.mxu0 0
        %8816 = vmatpush1.bf16.msra.mxu0 %v8464
        %8817 = vmatprep.subr.bf16.mxu0 0
        %8818 = vmatpush1.bf16.msra.mxu0 %v8465
        %8819 = vmatprep.mubr.bf16.mxu0 %v7695
        %8820 = vmatmul.mubr.bf16.gmra.mrb[0].mxu0 %v7620
        %v8821 = vpop.f32.mrb[0].mxu0
        %v8822 = vadd.f32 %v8613, %v8821
        %v8823 = vpop.f32.mrb[0].mxu0
        %v8824 = vpop.f32.mrb[0].mxu0
        %v8825 = vadd.f32 %v8616, %v8824
        %v8826 = vpop.f32.mrb[0].mxu0
        %8827 = vmatprep.mubr.bf16.mxu0 %v7697
        %8828 = vmatmul.mubr.bf16.gmra.mrb[0].mxu0 %v7622
        %v8829 = vpop.f32.mrb[0].mxu0
        %v8830 = vpop.f32.mrb[0].mxu0
        %v8831 = vpop.f32.mrb[0].mxu0
        %v8832 = vadd.f32 %v8623, %v8831
        %v8833 = vpop.f32.mrb[0].mxu0
        %8834 = vmatprep.mubr.bf16.mxu0 %v7699
        %8835 = vmatmul.mubr.bf16.gmra.mrb[0].mxu0 %v7624
        %v8836 = vpop.f32.mrb[0].mxu0
        %v8837 = vadd.f32 %v8628, %v8836
        %v8838 = vpop.f32.mrb[0].mxu0
        %v8839 = vpop.f32.mrb[0].mxu0
        %v8840 = vpop.f32.mrb[0].mxu0
        %8841 = vmatprep.mubr.bf16.mxu0 %v7701
        %8842 = vmatmul.mubr.bf16.gmra.mrb[0].mxu0 %v7626
        %v8843 = vpop.f32.mrb[0].mxu0
        %v8844 = vadd.f32 %v8635, %v8843
        %v8845 = vpop.f32.mrb[0].mxu0
        %v8846 = vpop.f32.mrb[0].mxu0
        %v8847 = vadd.f32 %v8638, %v8846
        %v8848 = vpop.f32.mrb[0].mxu0
        %8849 = vmatprep.mubr.bf16.mxu0 %v7703
        %8850 = vmatmul.mubr.bf16.gmra.mrb[0].mxu0 %v7628
        %v8851 = vpop.f32.mrb[0].mxu0
        %v8852 = vpop.f32.mrb[0].mxu0
        %v8853 = vpop.f32.mrb[0].mxu0
        %v8854 = vadd.f32 %v8645, %v8853
        %v8855 = vpop.f32.mrb[0].mxu0
        %8856 = vmatprep.mubr.bf16.mxu0 %v7705
        %8857 = vmatmul.mubr.bf16.gmra.mrb[0].mxu0 %v7630
        %v8858 = vpop.f32.mrb[0].mxu0
        %v8859 = vadd.f32 %v8650, %v8858
        %v8860 = vpop.f32.mrb[0].mxu0
        %v8861 = vpop.f32.mrb[0].mxu0
        %v8862 = vpop.f32.mrb[0].mxu0
        %8863 = vmatprep.mubr.bf16.mxu0 %v7707
        %8864 = vmatmul.mubr.bf16.gmra.mrb[0].mxu0 %v7632
        %v8865 = vpop.f32.mrb[0].mxu0
        %v8866 = vadd.f32 %v8657, %v8865
        %v8867 = vpop.f32.mrb[0].mxu0
        %v8868 = vpop.f32.mrb[0].mxu0
        %v8869 = vadd.f32 %v8660, %v8868
        %v8870 = vpop.f32.mrb[0].mxu0
        %8871 = vmatprep.mubr.bf16.mxu0 %v7709
        %8872 = vmatmul.mubr.bf16.gmra.mrb[0].mxu0 %v7634
        %v8873 = vpop.f32.mrb[0].mxu0
        %v8874 = vpop.f32.mrb[0].mxu0
        %v8875 = vpop.f32.mrb[0].mxu0
        %v8876 = vadd.f32 %v8667, %v8875
        %v8877 = vpop.f32.mrb[0].mxu0
        %8878 = vmatprep.mubr.bf16.mxu0 %v7711
        %8879 = vmatmul.mubr.bf16.gmra.mrb[0].mxu0 %v7636
        %v8880 = vpop.f32.mrb[0].mxu0
        %v8881 = vadd.f32 %v8672, %v8880
        %v8882 = vpop.f32.mrb[0].mxu0
        %v8883 = vpop.f32.mrb[0].mxu0
        %v8884 = vpop.f32.mrb[0].mxu0
        %8885 = vmatprep.mubr.bf16.mxu0 %v7713
        %8886 = vmatmul.mubr.bf16.gmra.mrb[0].mxu0 %v7638
        %v8887 = vpop.f32.mrb[0].mxu0
        %v8888 = vadd.f32 %v8679, %v8887
        %v8889 = vpop.f32.mrb[0].mxu0
        %v8890 = vpop.f32.mrb[0].mxu0
        %v8891 = vadd.f32 %v8682, %v8890
        %v8892 = vpop.f32.mrb[0].mxu0
        %8893 = vmatprep.mubr.bf16.mxu0 %v7715
        %8894 = vmatmul.mubr.bf16.gmra.mrb[0].mxu0 %v7640
        %v8895 = vpop.f32.mrb[0].mxu0
        %v8896 = vpop.f32.mrb[0].mxu0
        %v8897 = vpop.f32.mrb[0].mxu0
        %v8898 = vadd.f32 %v8689, %v8897
        %v8899 = vpop.f32.mrb[0].mxu0
        %8900 = vmatprep.mubr.bf16.mxu0 %v7717
        %8901 = vmatmul.mubr.bf16.gmra.mrb[0].mxu0 %v7642
        %v8902 = vpop.f32.mrb[0].mxu0
        %v8903 = vadd.f32 %v8694, %v8902
        %v8904 = vpop.f32.mrb[0].mxu0
        %v8905 = vpop.f32.mrb[0].mxu0
        %v8906 = vpop.f32.mrb[0].mxu0
        %8907 = vmatprep.mubr.bf16.mxu0 %v7719
        %8908 = vmatmul.mubr.bf16.gmra.mrb[0].mxu0 %v7644
        %v8909 = vpop.f32.mrb[0].mxu0
        %v8910 = vadd.f32 %v8701, %v8909
        %v8911 = vpop.f32.mrb[0].mxu0
        %v8912 = vpop.f32.mrb[0].mxu0
        %v8913 = vadd.f32 %v8704, %v8912
        %v8914 = vpop.f32.mrb[0].mxu0
        %8915 = vmatprep.mubr.bf16.mxu0 %v7721
        %8916 = vmatmul.mubr.bf16.gmra.mrb[0].mxu0 %v7646
        %v8917 = vpop.f32.mrb[0].mxu0
        %v8918 = vpop.f32.mrb[0].mxu0
        %v8919 = vpop.f32.mrb[0].mxu0
        %v8920 = vadd.f32 %v8711, %v8919
        %v8921 = vpop.f32.mrb[0].mxu0
        %8922 = vmatprep.mubr.bf16.mxu0 %v7723
        %8923 = vmatmul.mubr.bf16.gmra.mrb[0].mxu0 %v7648
        %v8924 = vpop.f32.mrb[0].mxu0
        %v8925 = vadd.f32 %v8716, %v8924
        %v8926 = vpop.f32.mrb[0].mxu0
        %v8927 = vpop.f32.mrb[0].mxu0
        %v8928 = vpop.f32.mrb[0].mxu0
        %8929 = vmatprep.mubr.bf16.mxu0 %v7725
        %8930 = vmatmul.mubr.bf16.gmra.mrb[0].mxu0 %v7650
        %v8931 = vpop.f32.mrb[0].mxu0
        %v8932 = vadd.f32 %v8723, %v8931
        %v8933 = vpop.f32.mrb[0].mxu0
        %v8934 = vpop.f32.mrb[0].mxu0
        %v8935 = vadd.f32 %v8726, %v8934
        %v8936 = vpop.f32.mrb[0].mxu0
        %8937 = vmatprep.mubr.bf16.mxu0 %v7727
        %8938 = vmatmul.mubr.bf16.gmra.mrb[0].mxu0 %v7652
        %v8939 = vpop.f32.mrb[0].mxu0
        %v8940 = vpop.f32.mrb[0].mxu0
        %v8941 = vpop.f32.mrb[0].mxu0
        %v8942 = vadd.f32 %v8733, %v8941
        %v8943 = vpop.f32.mrb[0].mxu0
        %8944 = vmatprep.mubr.bf16.mxu0 %v7729
        %8945 = vmatmul.mubr.bf16.gmra.mrb[0].mxu0 %v7654
        %v8946 = vpop.f32.mrb[0].mxu0
        %v8947 = vadd.f32 %v8738, %v8946
        %v8948 = vpop.f32.mrb[0].mxu0
        %v8949 = vpop.f32.mrb[0].mxu0
        %v8950 = vpop.f32.mrb[0].mxu0
        %8951 = vmatprep.mubr.bf16.mxu0 %v7731
        %8952 = vmatmul.mubr.bf16.gmra.mrb[0].mxu0 %v7656
        %v8953 = vpop.f32.mrb[0].mxu0
        %v8954 = vadd.f32 %v8745, %v8953
        %v8955 = vpop.f32.mrb[0].mxu0
        %v8956 = vpop.f32.mrb[0].mxu0
        %v8957 = vadd.f32 %v8748, %v8956
        %v8958 = vpop.f32.mrb[0].mxu0
        %8959 = vmatprep.mubr.bf16.mxu0 %v7733
        %8960 = vmatmul.mubr.bf16.gmra.mrb[0].mxu0 %v7658
        %v8961 = vpop.f32.mrb[0].mxu0
        %v8962 = vpop.f32.mrb[0].mxu0
        %v8963 = vpop.f32.mrb[0].mxu0
        %v8964 = vadd.f32 %v8755, %v8963
        %v8965 = vpop.f32.mrb[0].mxu0
        %8966 = vmatprep.mubr.bf16.mxu0 %v7735
        %8967 = vmatmul.mubr.bf16.gmra.mrb[0].mxu0 %v7660
        %v8968 = vpop.f32.mrb[0].mxu0
        %v8969 = vadd.f32 %v8760, %v8968
        %v8970 = vpop.f32.mrb[0].mxu0
        %v8971 = vpop.f32.mrb[0].mxu0
        %v8972 = vpop.f32.mrb[0].mxu0
        %8973 = vmatprep.mubr.bf16.mxu0 %v7737
        %8974 = vmatmul.mubr.bf16.gmra.mrb[0].mxu0 %v7662
        %v8975 = vpop.f32.mrb[0].mxu0
        %v8976 = vadd.f32 %v8767, %v8975
        %v8977 = vpop.f32.mrb[0].mxu0
        %v8978 = vpop.f32.mrb[0].mxu0
        %v8979 = vadd.f32 %v8770, %v8978
        %v8980 = vpop.f32.mrb[0].mxu0
        %8981 = vmatprep.mubr.bf16.mxu0 %v7739
        %8982 = vmatmul.mubr.bf16.gmra.mrb[0].mxu0 %v7664
        %v8983 = vpop.f32.mrb[0].mxu0
        %v8984 = vpop.f32.mrb[0].mxu0
        %v8985 = vpop.f32.mrb[0].mxu0
        %v8986 = vadd.f32 %v8777, %v8985
        %v8987 = vpop.f32.mrb[0].mxu0
        %8988 = vmatprep.mubr.bf16.mxu0 %v7741
        %8989 = vmatmul.mubr.bf16.gmra.mrb[0].mxu0 %v7666
        %v8990 = vpop.f32.mrb[0].mxu0
        %v8991 = vadd.f32 %v8782, %v8990
        %v8992 = vpop.f32.mrb[0].mxu0
        %v8993 = vpop.f32.mrb[0].mxu0
        %v8994 = vpop.f32.mrb[0].mxu0
        %8995 = vdwg.mxu0
        %8996 = vmatprep.subr.bf16.mxu0 0
        %8997 = vmatpush1.bf16.msra.mxu0 %v8466
        %8998 = vmatprep.subr.bf16.mxu0 0
        %8999 = vmatpush1.bf16.msra.mxu0 %v8467
        %9000 = vmatprep.subr.bf16.mxu0 0
        %9001 = vmatpush1.bf16.msra.mxu0 %v8468
        %9002 = vmatprep.subr.bf16.mxu0 0
        %9003 = vmatpush1.bf16.msra.mxu0 %v8469
        %9004 = vmatprep.subr.bf16.mxu0 0
        %9005 = vmatpush1.bf16.msra.mxu0 %v8470
        %9006 = vmatprep.subr.bf16.mxu0 0
        %9007 = vmatpush1.bf16.msra.mxu0 %v8471
        %9008 = vmatprep.subr.bf16.mxu0 0
        %9009 = vmatpush1.bf16.msra.mxu0 %v8472
        %9010 = vmatprep.subr.bf16.mxu0 0
        %9011 = vmatpush1.bf16.msra.mxu0 %v8473
        %9012 = vmatprep.subr.bf16.mxu0 0
        %9013 = vmatpush1.bf16.msra.mxu0 %v8474
        %9014 = vmatprep.subr.bf16.mxu0 0
        %9015 = vmatpush1.bf16.msra.mxu0 %v8475
        %9016 = vmatprep.subr.bf16.mxu0 0
        %9017 = vmatpush1.bf16.msra.mxu0 %v8476
        %9018 = vmatprep.subr.bf16.mxu0 0
        %9019 = vmatpush1.bf16.msra.mxu0 %v8477
        %9020 = vmatprep.subr.bf16.mxu0 0
        %9021 = vmatpush1.bf16.msra.mxu0 %v8478
        %9022 = vmatprep.subr.bf16.mxu0 0
        %9023 = vmatpush1.bf16.msra.mxu0 %v8479
        %9024 = vmatprep.subr.bf16.mxu0 0
        %9025 = vmatpush1.bf16.msra.mxu0 %v8480
        %9026 = vmatprep.subr.bf16.mxu0 0
        %9027 = vmatpush1.bf16.msra.mxu0 %v8481
        %9028 = vmatprep.mubr.bf16.mxu0 %v7900
        %9029 = vmatmul.mubr.bf16.gmra.mrb[0].mxu0 %v7773
        %v9030 = vpop.f32.mrb[0].mxu0
        %v9031 = vadd.f32 %v8822, %v9030
        %v9032 = vpop.f32.mrb[0].mxu0
        %v9033 = vpop.f32.mrb[0].mxu0
        %v9034 = vadd.f32 %v8825, %v9033
        %v9035 = vpop.f32.mrb[0].mxu0
        %9036 = vmatprep.mubr.bf16.mxu0 %v7902
        %9037 = vmatmul.mubr.bf16.gmra.mrb[0].mxu0 %v7777
        %v9038 = vpop.f32.mrb[0].mxu0
        %v9039 = vpop.f32.mrb[0].mxu0
        %v9040 = vpop.f32.mrb[0].mxu0
        %v9041 = vadd.f32 %v8832, %v9040
        %v9042 = vpop.f32.mrb[0].mxu0
        %9043 = vmatprep.mubr.bf16.mxu0 %v7904
        %9044 = vmatmul.mubr.bf16.gmra.mrb[0].mxu0 %v7781
        %v9045 = vpop.f32.mrb[0].mxu0
        %v9046 = vadd.f32 %v8837, %v9045
        %v9047 = vpop.f32.mrb[0].mxu0
        %v9048 = vpop.f32.mrb[0].mxu0
        %v9049 = vpop.f32.mrb[0].mxu0
        %9050 = vmatprep.mubr.bf16.mxu0 %v7906
        %9051 = vmatmul.mubr.bf16.gmra.mrb[0].mxu0 %v7785
        %v9052 = vpop.f32.mrb[0].mxu0
        %v9053 = vadd.f32 %v8844, %v9052
        %v9054 = vpop.f32.mrb[0].mxu0
        %v9055 = vpop.f32.mrb[0].mxu0
        %v9056 = vadd.f32 %v8847, %v9055
        %v9057 = vpop.f32.mrb[0].mxu0
        %9058 = vmatprep.mubr.bf16.mxu0 %v7908
        %9059 = vmatmul.mubr.bf16.gmra.mrb[0].mxu0 %v7789
        %v9060 = vpop.f32.mrb[0].mxu0
        %v9061 = vpop.f32.mrb[0].mxu0
        %v9062 = vpop.f32.mrb[0].mxu0
        %v9063 = vadd.f32 %v8854, %v9062
        %v9064 = vpop.f32.mrb[0].mxu0
        %9065 = vmatprep.mubr.bf16.mxu0 %v7910
        %9066 = vmatmul.mubr.bf16.gmra.mrb[0].mxu0 %v7793
        %v9067 = vpop.f32.mrb[0].mxu0
        %v9068 = vadd.f32 %v8859, %v9067
        %v9069 = vpop.f32.mrb[0].mxu0
        %v9070 = vpop.f32.mrb[0].mxu0
        %v9071 = vpop.f32.mrb[0].mxu0
        %9072 = vmatprep.mubr.bf16.mxu0 %v7912
        %9073 = vmatmul.mubr.bf16.gmra.mrb[0].mxu0 %v7797
        %v9074 = vpop.f32.mrb[0].mxu0
        %v9075 = vadd.f32 %v8866, %v9074
        %v9076 = vpop.f32.mrb[0].mxu0
        %v9077 = vpop.f32.mrb[0].mxu0
        %v9078 = vadd.f32 %v8869, %v9077
        %v9079 = vpop.f32.mrb[0].mxu0
        %9080 = vmatprep.mubr.bf16.mxu0 %v7914
        %9081 = vmatmul.mubr.bf16.gmra.mrb[0].mxu0 %v7801
        %v9082 = vpop.f32.mrb[0].mxu0
        %v9083 = vpop.f32.mrb[0].mxu0
        %v9084 = vpop.f32.mrb[0].mxu0
        %v9085 = vadd.f32 %v8876, %v9084
        %v9086 = vpop.f32.mrb[0].mxu0
        %9087 = vmatprep.mubr.bf16.mxu0 %v7916
        %9088 = vmatmul.mubr.bf16.gmra.mrb[0].mxu0 %v7805
        %v9089 = vpop.f32.mrb[0].mxu0
        %v9090 = vadd.f32 %v8881, %v9089
        %v9091 = vpop.f32.mrb[0].mxu0
        %v9092 = vpop.f32.mrb[0].mxu0
        %v9093 = vpop.f32.mrb[0].mxu0
        %9094 = vmatprep.mubr.bf16.mxu0 %v7918
        %9095 = vmatmul.mubr.bf16.gmra.mrb[0].mxu0 %v7809
        %v9096 = vpop.f32.mrb[0].mxu0
        %v9097 = vadd.f32 %v8888, %v9096
        %v9098 = vpop.f32.mrb[0].mxu0
        %v9099 = vpop.f32.mrb[0].mxu0
        %v9100 = vadd.f32 %v8891, %v9099
        %v9101 = vpop.f32.mrb[0].mxu0
        %9102 = vmatprep.mubr.bf16.mxu0 %v7920
        %9103 = vmatmul.mubr.bf16.gmra.mrb[0].mxu0 %v7813
        %v9104 = vpop.f32.mrb[0].mxu0
        %v9105 = vpop.f32.mrb[0].mxu0
        %v9106 = vpop.f32.mrb[0].mxu0
        %v9107 = vadd.f32 %v8898, %v9106
        %v9108 = vpop.f32.mrb[0].mxu0
        %9109 = vmatprep.mubr.bf16.mxu0 %v7922
        %9110 = vmatmul.mubr.bf16.gmra.mrb[0].mxu0 %v7817
        %v9111 = vpop.f32.mrb[0].mxu0
        %v9112 = vadd.f32 %v8903, %v9111
        %v9113 = vpop.f32.mrb[0].mxu0
        %v9114 = vpop.f32.mrb[0].mxu0
        %v9115 = vpop.f32.mrb[0].mxu0
        %9116 = vmatprep.mubr.bf16.mxu0 %v7924
        %9117 = vmatmul.mubr.bf16.gmra.mrb[0].mxu0 %v7821
        %v9118 = vpop.f32.mrb[0].mxu0
        %v9119 = vadd.f32 %v8910, %v9118
        %v9120 = vpop.f32.mrb[0].mxu0
        %v9121 = vpop.f32.mrb[0].mxu0
        %v9122 = vadd.f32 %v8913, %v9121
        %v9123 = vpop.f32.mrb[0].mxu0
        %9124 = vmatprep.mubr.bf16.mxu0 %v7926
        %9125 = vmatmul.mubr.bf16.gmra.mrb[0].mxu0 %v7825
        %v9126 = vpop.f32.mrb[0].mxu0
        %v9127 = vpop.f32.mrb[0].mxu0
        %v9128 = vpop.f32.mrb[0].mxu0
        %v9129 = vadd.f32 %v8920, %v9128
        %v9130 = vpop.f32.mrb[0].mxu0
        %9131 = vmatprep.mubr.bf16.mxu0 %v7928
        %9132 = vmatmul.mubr.bf16.gmra.mrb[0].mxu0 %v7829
        %v9133 = vpop.f32.mrb[0].mxu0
        %v9134 = vadd.f32 %v8925, %v9133
        %v9135 = vpop.f32.mrb[0].mxu0
        %v9136 = vpop.f32.mrb[0].mxu0
        %v9137 = vpop.f32.mrb[0].mxu0
        %9138 = vmatprep.mubr.bf16.mxu0 %v7930
        %9139 = vmatmul.mubr.bf16.gmra.mrb[0].mxu0 %v7833
        %v9140 = vpop.f32.mrb[0].mxu0
        %v9141 = vadd.f32 %v8932, %v9140
        %v9142 = vpop.f32.mrb[0].mxu0
        %v9143 = vpop.f32.mrb[0].mxu0
        %v9144 = vadd.f32 %v8935, %v9143
        %v9145 = vpop.f32.mrb[0].mxu0
        %9146 = vmatprep.mubr.bf16.mxu0 %v7932
        %9147 = vmatmul.mubr.bf16.gmra.mrb[0].mxu0 %v7837
        %v9148 = vpop.f32.mrb[0].mxu0
        %v9149 = vpop.f32.mrb[0].mxu0
        %v9150 = vpop.f32.mrb[0].mxu0
        %v9151 = vadd.f32 %v8942, %v9150
        %v9152 = vpop.f32.mrb[0].mxu0
        %9153 = vmatprep.mubr.bf16.mxu0 %v7934
        %9154 = vmatmul.mubr.bf16.gmra.mrb[0].mxu0 %v7841
        %v9155 = vpop.f32.mrb[0].mxu0
        %v9156 = vadd.f32 %v8947, %v9155
        %v9157 = vpop.f32.mrb[0].mxu0
        %v9158 = vpop.f32.mrb[0].mxu0
        %v9159 = vpop.f32.mrb[0].mxu0
        %9160 = vmatprep.mubr.bf16.mxu0 %v7936
        %9161 = vmatmul.mubr.bf16.gmra.mrb[0].mxu0 %v7845
        %v9162 = vpop.f32.mrb[0].mxu0
        %v9163 = vadd.f32 %v8954, %v9162
        %v9164 = vpop.f32.mrb[0].mxu0
        %v9165 = vpop.f32.mrb[0].mxu0
        %v9166 = vadd.f32 %v8957, %v9165
        %v9167 = vpop.f32.mrb[0].mxu0
        %9168 = vmatprep.mubr.bf16.mxu0 %v7938
        %9169 = vmatmul.mubr.bf16.gmra.mrb[0].mxu0 %v7849
        %v9170 = vpop.f32.mrb[0].mxu0
        %v9171 = vpop.f32.mrb[0].mxu0
        %v9172 = vpop.f32.mrb[0].mxu0
        %v9173 = vadd.f32 %v8964, %v9172
        %v9174 = vpop.f32.mrb[0].mxu0
        %9175 = vmatprep.mubr.bf16.mxu0 %v7940
        %9176 = vmatmul.mubr.bf16.gmra.mrb[0].mxu0 %v7853
        %v9177 = vpop.f32.mrb[0].mxu0
        %v9178 = vadd.f32 %v8969, %v9177
        %v9179 = vpop.f32.mrb[0].mxu0
        %v9180 = vpop.f32.mrb[0].mxu0
        %v9181 = vpop.f32.mrb[0].mxu0
        %9182 = vmatprep.mubr.bf16.mxu0 %v7942
        %9183 = vmatmul.mubr.bf16.gmra.mrb[0].mxu0 %v7857
        %v9184 = vpop.f32.mrb[0].mxu0
        %v9185 = vadd.f32 %v8976, %v9184
        %v9186 = vpop.f32.mrb[0].mxu0
        %v9187 = vpop.f32.mrb[0].mxu0
        %v9188 = vadd.f32 %v8979, %v9187
        %v9189 = vpop.f32.mrb[0].mxu0
        %9190 = vmatprep.mubr.bf16.mxu0 %v7944
        %9191 = vmatmul.mubr.bf16.gmra.mrb[0].mxu0 %v7863
        %v9192 = vpop.f32.mrb[0].mxu0
        %v9193 = vpop.f32.mrb[0].mxu0
        %v9194 = vpop.f32.mrb[0].mxu0
        %v9195 = vadd.f32 %v8986, %v9194
        %v9196 = vpop.f32.mrb[0].mxu0
        %9197 = vmatprep.mubr.bf16.mxu0 %v7946
        %9198 = vmatmul.mubr.bf16.gmra.mrb[0].mxu0 %v7872
        %v9199 = vpop.f32.mrb[0].mxu0
        %v9200 = vadd.f32 %v8991, %v9199
        %v9201 = vpop.f32.mrb[0].mxu0
        %v9202 = vpop.f32.mrb[0].mxu0
        %v9203 = vpop.f32.mrb[0].mxu0
        %9204 = vdwg.mxu0
        %9205 = vmatprep.subr.bf16.mxu0 0
        %9206 = vmatpush1.bf16.msra.mxu0 %v8482
        %9207 = vmatprep.subr.bf16.mxu0 0
        %9208 = vmatpush1.bf16.msra.mxu0 %v8483
        %9209 = vmatprep.subr.bf16.mxu0 0
        %9210 = vmatpush1.bf16.msra.mxu0 %v8484
        %9211 = vmatprep.subr.bf16.mxu0 0
        %9212 = vmatpush1.bf16.msra.mxu0 %v8485
        %9213 = vmatprep.subr.bf16.mxu0 0
        %9214 = vmatpush1.bf16.msra.mxu0 %v8486
        %9215 = vmatprep.subr.bf16.mxu0 0
        %9216 = vmatpush1.bf16.msra.mxu0 %v8487
        %9217 = vmatprep.subr.bf16.mxu0 0
        %9218 = vmatpush1.bf16.msra.mxu0 %v8488
        %9219 = vmatprep.subr.bf16.mxu0 0
        %9220 = vmatpush1.bf16.msra.mxu0 %v8489
        %9221 = vmatprep.subr.bf16.mxu0 0
        %9222 = vmatpush1.bf16.msra.mxu0 %v8490
        %9223 = vmatprep.subr.bf16.mxu0 0
        %9224 = vmatpush1.bf16.msra.mxu0 %v8491
        %9225 = vmatprep.subr.bf16.mxu0 0
        %9226 = vmatpush1.bf16.msra.mxu0 %v8492
        %9227 = vmatprep.subr.bf16.mxu0 0
        %9228 = vmatpush1.bf16.msra.mxu0 %v8493
        %9229 = vmatprep.subr.bf16.mxu0 0
        %9230 = vmatpush1.bf16.msra.mxu0 %v8494
        %9231 = vmatprep.subr.bf16.mxu0 0
        %9232 = vmatpush1.bf16.msra.mxu0 %v8495
        %9233 = vmatprep.subr.bf16.mxu0 0
        %9234 = vmatpush1.bf16.msra.mxu0 %v8496
        %9235 = vmatprep.subr.bf16.mxu0 0
        %9236 = vmatpush1.bf16.msra.mxu0 %v8497
        %9237 = vmatprep.mubr.bf16.mxu0 %v7407
        %9238 = vmatmul.mubr.bf16.gmra.mrb[0].mxu0 %v6417
        %v9239 = vpop.f32.mrb[0].mxu0
        %v9240 = vadd.f32 %v9031, %v9239
        %v9241 = vpop.f32.mrb[0].mxu0
        %v9242 = vpop.f32.mrb[0].mxu0
        %v9243 = vadd.f32 %v9034, %v9242
        %v9244 = vpop.f32.mrb[0].mxu0
        %9245 = vmatprep.mubr.bf16.mxu0 %v7415
        %9246 = vmatmul.mubr.bf16.gmra.mrb[0].mxu0 %v6418
        %v9247 = vpop.f32.mrb[0].mxu0
        %v9248 = vpop.f32.mrb[0].mxu0
        %v9249 = vpop.f32.mrb[0].mxu0
        %v9250 = vadd.f32 %v9041, %v9249
        %v9251 = vpop.f32.mrb[0].mxu0
        %9252 = vmatprep.mubr.bf16.mxu0 %v7423
        %9253 = vmatmul.mubr.bf16.gmra.mrb[0].mxu0 %v6419
        %v9254 = vpop.f32.mrb[0].mxu0
        %v9255 = vadd.f32 %v9046, %v9254
        %v9256 = vpop.f32.mrb[0].mxu0
        %v9257 = vpop.f32.mrb[0].mxu0
        %v9258 = vpop.f32.mrb[0].mxu0
        %9259 = vmatprep.mubr.bf16.mxu0 %v7431
        %9260 = vmatmul.mubr.bf16.gmra.mrb[0].mxu0 %v6420
        %v9261 = vpop.f32.mrb[0].mxu0
        %v9262 = vadd.f32 %v9053, %v9261
        %v9263 = vpop.f32.mrb[0].mxu0
        %v9264 = vpop.f32.mrb[0].mxu0
        %v9265 = vadd.f32 %v9056, %v9264
        %v9266 = vpop.f32.mrb[0].mxu0
        %9267 = vmatprep.mubr.bf16.mxu0 %v7439
        %9268 = vmatmul.mubr.bf16.gmra.mrb[0].mxu0 %v6421
        %v9269 = vpop.f32.mrb[0].mxu0
        %v9270 = vpop.f32.mrb[0].mxu0
        %v9271 = vpop.f32.mrb[0].mxu0
        %v9272 = vadd.f32 %v9063, %v9271
        %v9273 = vpop.f32.mrb[0].mxu0
        %9274 = vmatprep.mubr.bf16.mxu0 %v7447
        %9275 = vmatmul.mubr.bf16.gmra.mrb[0].mxu0 %v6422
        %v9276 = vpop.f32.mrb[0].mxu0
        %v9277 = vadd.f32 %v9068, %v9276
        %v9278 = vpop.f32.mrb[0].mxu0
        %v9279 = vpop.f32.mrb[0].mxu0
        %v9280 = vpop.f32.mrb[0].mxu0
        %9281 = vmatprep.mubr.bf16.mxu0 %v7455
        %9282 = vmatmul.mubr.bf16.gmra.mrb[0].mxu0 %v6423
        %v9283 = vpop.f32.mrb[0].mxu0
        %v9284 = vadd.f32 %v9075, %v9283
        %v9285 = vpop.f32.mrb[0].mxu0
        %v9286 = vpop.f32.mrb[0].mxu0
        %v9287 = vadd.f32 %v9078, %v9286
        %v9288 = vpop.f32.mrb[0].mxu0
        %9289 = vmatprep.mubr.bf16.mxu0 %v7463
        %9290 = vmatmul.mubr.bf16.gmra.mrb[0].mxu0 %v6424
        %v9291 = vpop.f32.mrb[0].mxu0
        %v9292 = vpop.f32.mrb[0].mxu0
        %v9293 = vpop.f32.mrb[0].mxu0
        %v9294 = vadd.f32 %v9085, %v9293
        %v9295 = vpop.f32.mrb[0].mxu0
        %9296 = vmatprep.mubr.bf16.mxu0 %v7471
        %9297 = vmatmul.mubr.bf16.gmra.mrb[0].mxu0 %v6425
        %v9298 = vpop.f32.mrb[0].mxu0
        %v9299 = vadd.f32 %v9090, %v9298
        %v9300 = vpop.f32.mrb[0].mxu0
        %v9301 = vpop.f32.mrb[0].mxu0
        %v9302 = vpop.f32.mrb[0].mxu0
        %9303 = vmatprep.mubr.bf16.mxu0 %v7479
        %9304 = vmatmul.mubr.bf16.gmra.mrb[0].mxu0 %v6426
        %v9305 = vpop.f32.mrb[0].mxu0
        %v9306 = vadd.f32 %v9097, %v9305
        %v9307 = vpop.f32.mrb[0].mxu0
        %v9308 = vpop.f32.mrb[0].mxu0
        %v9309 = vadd.f32 %v9100, %v9308
        %v9310 = vpop.f32.mrb[0].mxu0
        %9311 = vmatprep.mubr.bf16.mxu0 %v7487
        %9312 = vmatmul.mubr.bf16.gmra.mrb[0].mxu0 %v6427
        %v9313 = vpop.f32.mrb[0].mxu0
        %v9314 = vpop.f32.mrb[0].mxu0
        %v9315 = vpop.f32.mrb[0].mxu0
        %v9316 = vadd.f32 %v9107, %v9315
        %v9317 = vpop.f32.mrb[0].mxu0
        %9318 = vmatprep.mubr.bf16.mxu0 %v7495
        %9319 = vmatmul.mubr.bf16.gmra.mrb[0].mxu0 %v6428
        %v9320 = vpop.f32.mrb[0].mxu0
        %v9321 = vadd.f32 %v9112, %v9320
        %v9322 = vpop.f32.mrb[0].mxu0
        %v9323 = vpop.f32.mrb[0].mxu0
        %v9324 = vpop.f32.mrb[0].mxu0
        %9325 = vmatprep.mubr.bf16.mxu0 %v7503
        %9326 = vmatmul.mubr.bf16.gmra.mrb[0].mxu0 %v6429
        %v9327 = vpop.f32.mrb[0].mxu0
        %v9328 = vadd.f32 %v9119, %v9327
        %v9329 = vpop.f32.mrb[0].mxu0
        %v9330 = vpop.f32.mrb[0].mxu0
        %v9331 = vadd.f32 %v9122, %v9330
        %v9332 = vpop.f32.mrb[0].mxu0
        %9333 = vmatprep.mubr.bf16.mxu0 %v7511
        %9334 = vmatmul.mubr.bf16.gmra.mrb[0].mxu0 %v6430
        %v9335 = vpop.f32.mrb[0].mxu0
        %v9336 = vpop.f32.mrb[0].mxu0
        %v9337 = vpop.f32.mrb[0].mxu0
        %v9338 = vadd.f32 %v9129, %v9337
        %v9339 = vpop.f32.mrb[0].mxu0
        %9340 = vmatprep.mubr.bf16.mxu0 %v7519
        %9341 = vmatmul.mubr.bf16.gmra.mrb[0].mxu0 %v6431
        %v9342 = vpop.f32.mrb[0].mxu0
        %v9343 = vadd.f32 %v9134, %v9342
        %v9344 = vpop.f32.mrb[0].mxu0
        %v9345 = vpop.f32.mrb[0].mxu0
        %v9346 = vpop.f32.mrb[0].mxu0
        %9347 = vmatprep.mubr.bf16.mxu0 %v7527
        %9348 = vmatmul.mubr.bf16.gmra.mrb[0].mxu0 %v6432
        %v9349 = vpop.f32.mrb[0].mxu0
        %v9350 = vadd.f32 %v9141, %v9349
        %v9351 = vpop.f32.mrb[0].mxu0
        %v9352 = vpop.f32.mrb[0].mxu0
        %v9353 = vadd.f32 %v9144, %v9352
        %v9354 = vpop.f32.mrb[0].mxu0
        %9355 = vmatprep.mubr.bf16.mxu0 %v7535
        %9356 = vmatmul.mubr.bf16.gmra.mrb[0].mxu0 %v6433
        %v9357 = vpop.f32.mrb[0].mxu0
        %v9358 = vpop.f32.mrb[0].mxu0
        %v9359 = vpop.f32.mrb[0].mxu0
        %v9360 = vadd.f32 %v9151, %v9359
        %v9361 = vpop.f32.mrb[0].mxu0
        %9362 = vmatprep.mubr.bf16.mxu0 %v7543
        %9363 = vmatmul.mubr.bf16.gmra.mrb[0].mxu0 %v6434
        %v9364 = vpop.f32.mrb[0].mxu0
        %v9365 = vadd.f32 %v9156, %v9364
        %v9366 = vpop.f32.mrb[0].mxu0
        %v9367 = vpop.f32.mrb[0].mxu0
        %v9368 = vpop.f32.mrb[0].mxu0
        %9369 = vmatprep.mubr.bf16.mxu0 %v7551
        %9370 = vmatmul.mubr.bf16.gmra.mrb[0].mxu0 %v6435
        %v9371 = vpop.f32.mrb[0].mxu0
        %v9372 = vadd.f32 %v9163, %v9371
        %v9373 = vpop.f32.mrb[0].mxu0
        %v9374 = vpop.f32.mrb[0].mxu0
        %v9375 = vadd.f32 %v9166, %v9374
        %v9376 = vpop.f32.mrb[0].mxu0
        %9377 = vmatprep.mubr.bf16.mxu0 %v7559
        %9378 = vmatmul.mubr.bf16.gmra.mrb[0].mxu0 %v6436
        %v9379 = vpop.f32.mrb[0].mxu0
        %v9380 = vpop.f32.mrb[0].mxu0
        %v9381 = vpop.f32.mrb[0].mxu0
        %v9382 = vadd.f32 %v9173, %v9381
        %v9383 = vpop.f32.mrb[0].mxu0
        %9384 = vmatprep.mubr.bf16.mxu0 %v7567
        %9385 = vmatmul.mubr.bf16.gmra.mrb[0].mxu0 %v6437
        %v9386 = vpop.f32.mrb[0].mxu0
        %v9387 = vadd.f32 %v9178, %v9386
        %v9388 = vpop.f32.mrb[0].mxu0
        %v9389 = vpop.f32.mrb[0].mxu0
        %v9390 = vpop.f32.mrb[0].mxu0
        %9391 = vmatprep.mubr.bf16.mxu0 %v7973
        %9392 = vmatmul.mubr.bf16.gmra.mrb[0].mxu0 %v7368
        %v9393 = vpop.f32.mrb[0].mxu0
        %v9394 = vadd.f32 %v9185, %v9393
        %v9395 = vpop.f32.mrb[0].mxu0
        %v9396 = vpop.f32.mrb[0].mxu0
        %v9397 = vadd.f32 %v9188, %v9396
        %v9398 = vpop.f32.mrb[0].mxu0
        %9399 = vmatprep.mubr.bf16.mxu0 %v7979
        %9400 = vmatmul.mubr.bf16.gmra.mrb[0].mxu0 %v7369
        %v9401 = vpop.f32.mrb[0].mxu0
        %v9402 = vpop.f32.mrb[0].mxu0
        %v9403 = vpop.f32.mrb[0].mxu0
        %v9404 = vadd.f32 %v9195, %v9403
        %v9405 = vpop.f32.mrb[0].mxu0
        %9406 = vmatprep.mubr.bf16.mxu0 %v7987
        %9407 = vmatmul.mubr.bf16.gmra.mrb[0].mxu0 %v7370
        %v9408 = vpop.f32.mrb[0].mxu0
        %v9409 = vadd.f32 %v9200, %v9408
        %v9410 = vpop.f32.mrb[0].mxu0
        %v9411 = vpop.f32.mrb[0].mxu0
        %v9412 = vpop.f32.mrb[0].mxu0
        %9413 = vdwg.mxu0
        %9414 = vmatprep.subr.bf16.mxu0 0
        %9415 = vmatpush1.bf16.msra.mxu0 %v8498
        %9416 = vmatprep.subr.bf16.mxu0 0
        %9417 = vmatpush1.bf16.msra.mxu0 %v8499
        %9418 = vmatprep.subr.bf16.mxu0 0
        %9419 = vmatpush1.bf16.msra.mxu0 %v8500
        %9420 = vmatprep.subr.bf16.mxu0 0
        %9421 = vmatpush1.bf16.msra.mxu0 %v8501
        %9422 = vmatprep.subr.bf16.mxu0 0
        %9423 = vmatpush1.bf16.msra.mxu0 %v8502
        %9424 = vmatprep.subr.bf16.mxu0 0
        %9425 = vmatpush1.bf16.msra.mxu0 %v8503
        %9426 = vmatprep.subr.bf16.mxu0 0
        %9427 = vmatpush1.bf16.msra.mxu0 %v8504
        %9428 = vmatprep.subr.bf16.mxu0 0
        %9429 = vmatpush1.bf16.msra.mxu0 %v8505
        %9430 = vmatprep.subr.bf16.mxu0 0
        %9431 = vmatpush1.bf16.msra.mxu0 0
        %9432 = vmatprep.subr.bf16.mxu0 0
        %9433 = vmatpush1.bf16.msra.mxu0 0
        %9434 = vmatprep.subr.bf16.mxu0 0
        %9435 = vmatpush1.bf16.msra.mxu0 0
        %9436 = vmatprep.subr.bf16.mxu0 0
        %9437 = vmatpush1.bf16.msra.mxu0 0
        %9438 = vmatprep.subr.bf16.mxu0 0
        %9439 = vmatpush1.bf16.msra.mxu0 0
        %9440 = vmatprep.subr.bf16.mxu0 0
        %9441 = vmatpush1.bf16.msra.mxu0 0
        %9442 = vmatprep.subr.bf16.mxu0 0
        %9443 = vmatpush1.bf16.msra.mxu0 0
        %9444 = vmatprep.subr.bf16.mxu0 0
        %9445 = vmatpush1.bf16.msra.mxu0 0
        %9446 = vmatprep.mubr.bf16.mxu0 0
        %9447 = vmatmul.mubr.bf16.gmra.mrb[0].mxu0 %v7626
        %v9448 = vpop.f32.mrb[0].mxu0
        %v9449 = vadd.f32 %v9240, %v9448
        %v9450 = vpop.f32.mrb[0].mxu0
        %v9451 = vpop.f32.mrb[0].mxu0
        %v9452 = vadd.f32 %v9243, %v9451
        %v9453 = vpop.f32.mrb[0].mxu0
        %9454 = vmatprep.mubr.bf16.mxu0 0
        %9455 = vmatmul.mubr.bf16.gmra.mrb[0].mxu0 %v7628
        %v9456 = vpop.f32.mrb[0].mxu0
        %v9457 = vpop.f32.mrb[0].mxu0
        %v9458 = vpop.f32.mrb[0].mxu0
        %v9459 = vadd.f32 %v9250, %v9458
        %v9460 = vpop.f32.mrb[0].mxu0
        %9461 = vmatprep.mubr.bf16.mxu0 0
        %9462 = vmatmul.mubr.bf16.gmra.mrb[0].mxu0 %v7630
        %v9463 = vpop.f32.mrb[0].mxu0
        %v9464 = vadd.f32 %v9255, %v9463
        %v9465 = vpop.f32.mrb[0].mxu0
        %v9466 = vpop.f32.mrb[0].mxu0
        %v9467 = vpop.f32.mrb[0].mxu0
        %9468 = vmatprep.mubr.bf16.mxu0 0
        %9469 = vmatmul.mubr.bf16.gmra.mrb[0].mxu0 %v7632
        %v9470 = vpop.f32.mrb[0].mxu0
        %v9471 = vadd.f32 %v9262, %v9470
        %v9472 = vpop.f32.mrb[0].mxu0
        %v9473 = vpop.f32.mrb[0].mxu0
        %v9474 = vadd.f32 %v9265, %v9473
        %v9475 = vpop.f32.mrb[0].mxu0
        %9476 = vmatprep.mubr.bf16.mxu0 0
        %9477 = vmatmul.mubr.bf16.gmra.mrb[0].mxu0 %v7634
        %v9478 = vpop.f32.mrb[0].mxu0
        %v9479 = vpop.f32.mrb[0].mxu0
        %v9480 = vpop.f32.mrb[0].mxu0
        %v9481 = vadd.f32 %v9272, %v9480
        %v9482 = vpop.f32.mrb[0].mxu0
        %9483 = vmatprep.mubr.bf16.mxu0 0
        %9484 = vmatmul.mubr.bf16.gmra.mrb[0].mxu0 %v7636
        %v9485 = vpop.f32.mrb[0].mxu0
        %v9486 = vadd.f32 %v9277, %v9485
        %v9487 = vpop.f32.mrb[0].mxu0
        %v9488 = vpop.f32.mrb[0].mxu0
        %v9489 = vpop.f32.mrb[0].mxu0
        %9490 = vmatprep.mubr.bf16.mxu0 0
        %9491 = vmatmul.mubr.bf16.gmra.mrb[0].mxu0 %v7638
        %v9492 = vpop.f32.mrb[0].mxu0
        %v9493 = vadd.f32 %v9284, %v9492
        %v9494 = vpop.f32.mrb[0].mxu0
        %v9495 = vpop.f32.mrb[0].mxu0
        %v9496 = vadd.f32 %v9287, %v9495
        %v9497 = vpop.f32.mrb[0].mxu0
        %9498 = vmatprep.mubr.bf16.mxu0 0
        %9499 = vmatmul.mubr.bf16.gmra.mrb[0].mxu0 %v7640
        %v9500 = vpop.f32.mrb[0].mxu0
        %v9501 = vpop.f32.mrb[0].mxu0
        %v9502 = vpop.f32.mrb[0].mxu0
        %v9503 = vadd.f32 %v9294, %v9502
        %v9504 = vpop.f32.mrb[0].mxu0
        %9505 = vmatprep.mubr.bf16.mxu0 0
        %9506 = vmatmul.mubr.bf16.gmra.mrb[0].mxu0 %v7642
        %v9507 = vpop.f32.mrb[0].mxu0
        %v9508 = vadd.f32 %v9299, %v9507
        %v9509 = vpop.f32.mrb[0].mxu0
        %v9510 = vpop.f32.mrb[0].mxu0
        %v9511 = vpop.f32.mrb[0].mxu0
        %9512 = vmatprep.mubr.bf16.mxu0 0
        %9513 = vmatmul.mubr.bf16.gmra.mrb[0].mxu0 %v7644
        %v9514 = vpop.f32.mrb[0].mxu0
        %v9515 = vadd.f32 %v9306, %v9514
        %v9516 = vpop.f32.mrb[0].mxu0
        %v9517 = vpop.f32.mrb[0].mxu0
        %v9518 = vadd.f32 %v9309, %v9517
        %v9519 = vpop.f32.mrb[0].mxu0
        %9520 = vmatprep.mubr.bf16.mxu0 0
        %9521 = vmatmul.mubr.bf16.gmra.mrb[0].mxu0 %v7646
        %v9522 = vpop.f32.mrb[0].mxu0
        %v9523 = vpop.f32.mrb[0].mxu0
        %v9524 = vpop.f32.mrb[0].mxu0
        %v9525 = vadd.f32 %v9316, %v9524
        %v9526 = vpop.f32.mrb[0].mxu0
        %9527 = vmatprep.mubr.bf16.mxu0 0
        %9528 = vmatmul.mubr.bf16.gmra.mrb[0].mxu0 %v7648
        %v9529 = vpop.f32.mrb[0].mxu0
        %v9530 = vadd.f32 %v9321, %v9529
        %v9531 = vpop.f32.mrb[0].mxu0
        %v9532 = vpop.f32.mrb[0].mxu0
        %v9533 = vpop.f32.mrb[0].mxu0
        %9534 = vmatprep.mubr.bf16.mxu0 0
        %9535 = vmatmul.mubr.bf16.gmra.mrb[0].mxu0 %v7650
        %v9536 = vpop.f32.mrb[0].mxu0
        %v9537 = vadd.f32 %v9328, %v9536
        %v9538 = vpop.f32.mrb[0].mxu0
        %v9539 = vpop.f32.mrb[0].mxu0
        %v9540 = vadd.f32 %v9331, %v9539
        %v9541 = vpop.f32.mrb[0].mxu0
        %9542 = vmatprep.mubr.bf16.mxu0 0
        %9543 = vmatmul.mubr.bf16.gmra.mrb[0].mxu0 %v7652
        %v9544 = vpop.f32.mrb[0].mxu0
        %v9545 = vpop.f32.mrb[0].mxu0
        %v9546 = vpop.f32.mrb[0].mxu0
        %v9547 = vadd.f32 %v9338, %v9546
        %v9548 = vpop.f32.mrb[0].mxu0
        %9549 = vmatprep.mubr.bf16.mxu0 0
        %9550 = vmatmul.mubr.bf16.gmra.mrb[0].mxu0 %v7654
        %v9551 = vpop.f32.mrb[0].mxu0
        %v9552 = vadd.f32 %v9343, %v9551
        %v9553 = vpop.f32.mrb[0].mxu0
        %v9554 = vpop.f32.mrb[0].mxu0
        %v9555 = vpop.f32.mrb[0].mxu0
        %9556 = vmatprep.mubr.bf16.mxu0 0
        %9557 = vmatmul.mubr.bf16.gmra.mrb[0].mxu0 %v7656
        %v9558 = vpop.f32.mrb[0].mxu0
        %v9559 = vadd.f32 %v9350, %v9558
        %v9560 = vpop.f32.mrb[0].mxu0
        %v9561 = vpop.f32.mrb[0].mxu0
        %v9562 = vadd.f32 %v9353, %v9561
        %v9563 = vpop.f32.mrb[0].mxu0
        %9564 = vmatprep.mubr.bf16.mxu0 0
        %9565 = vmatmul.mubr.bf16.gmra.mrb[0].mxu0 %v7658
        %v9566 = vpop.f32.mrb[0].mxu0
        %v9567 = vpop.f32.mrb[0].mxu0
        %v9568 = vpop.f32.mrb[0].mxu0
        %v9569 = vadd.f32 %v9360, %v9568
        %v9570 = vpop.f32.mrb[0].mxu0
        %9571 = vmatprep.mubr.bf16.mxu0 0
        %9572 = vmatmul.mubr.bf16.gmra.mrb[0].mxu0 %v7660
        %v9573 = vpop.f32.mrb[0].mxu0
        %v9574 = vadd.f32 %v9365, %v9573
        %v9575 = vpop.f32.mrb[0].mxu0
        %v9576 = vpop.f32.mrb[0].mxu0
        %v9577 = vpop.f32.mrb[0].mxu0
        %9578 = vmatprep.mubr.bf16.mxu0 0
        %9579 = vmatmul.mubr.bf16.gmra.mrb[0].mxu0 %v7662
        %v9580 = vpop.f32.mrb[0].mxu0
        %v9581 = vadd.f32 %v9372, %v9580
        %v9582 = vpop.f32.mrb[0].mxu0
        %v9583 = vpop.f32.mrb[0].mxu0
        %v9584 = vadd.f32 %v9375, %v9583
        %v9585 = vpop.f32.mrb[0].mxu0
        %9586 = vmatprep.mubr.bf16.mxu0 0
        %9587 = vmatmul.mubr.bf16.gmra.mrb[0].mxu0 %v7664
        %v9588 = vpop.f32.mrb[0].mxu0
        %v9589 = vpop.f32.mrb[0].mxu0
        %v9590 = vpop.f32.mrb[0].mxu0
        %v9591 = vadd.f32 %v9382, %v9590
        %v9592 = vpop.f32.mrb[0].mxu0
        %9593 = vmatprep.mubr.bf16.mxu0 0
        %9594 = vmatmul.mubr.bf16.gmra.mrb[0].mxu0 %v7666
        %v9595 = vpop.f32.mrb[0].mxu0
        %v9596 = vadd.f32 %v9387, %v9595
        %v9597 = vpop.f32.mrb[0].mxu0
        %v9598 = vpop.f32.mrb[0].mxu0
        %v9599 = vpop.f32.mrb[0].mxu0
        %9600 = vmatprep.mubr.bf16.mxu0 0
        %9601 = vmatmul.mubr.bf16.gmra.mrb[0].mxu0 %v7994
        %v9602 = vpop.f32.mrb[0].mxu0
        %v9603 = vadd.f32 %v9394, %v9602
        %v9604 = vpop.f32.mrb[0].mxu0
        %v9605 = vpop.f32.mrb[0].mxu0
        %v9606 = vadd.f32 %v9397, %v9605
        %v9607 = vpop.f32.mrb[0].mxu0
        %9608 = vmatprep.mubr.bf16.mxu0 0
        %9609 = vmatmul.mubr.bf16.gmra.mrb[0].mxu0 %v7996
        %v9610 = vpop.f32.mrb[0].mxu0
        %v9611 = vpop.f32.mrb[0].mxu0
        %v9612 = vpop.f32.mrb[0].mxu0
        %v9613 = vadd.f32 %v9404, %v9612
        %v9614 = vpop.f32.mrb[0].mxu0
        %9615 = vmatprep.mubr.bf16.mxu0 0
        %9616 = vmatmul.mubr.bf16.gmra.mrb[0].mxu0 %v7998
        %v9617 = vpop.f32.mrb[0].mxu0
        %v9618 = vadd.f32 %v9409, %v9617
        %v9619 = vpop.f32.mrb[0].mxu0
        %v9620 = vpop.f32.mrb[0].mxu0
        %v9621 = vpop.f32.mrb[0].mxu0
        %9622 = vdwg.mxu0
        %v9623 = vld [vmem:[%s12] sm:$0x1]
        %v9625 = vlaneseq
        %v9626 = vshrl.u32 %v9625, 7
        %v9627 = vsub.s32 0, %v9626
        %v9628 = vrot.slane %v9623, %v9627
        %v9630 = vmul.f32 %v9449, %v9628
        %v9631 = vmul.f32 %v9452, %v9628
        %v9632 = vmul.f32 %v9459, %v9628
        %v9633 = vmul.f32 %v9464, %v9628
        %v9634 = vmul.f32 %v9471, %v9628
        %v9635 = vmul.f32 %v9474, %v9628
        %v9636 = vmul.f32 %v9481, %v9628
        %v9637 = vmul.f32 %v9486, %v9628
        %v9638 = vmul.f32 %v9493, %v9628
        %v9639 = vmul.f32 %v9496, %v9628
        %v9640 = vmul.f32 %v9503, %v9628
        %v9641 = vmul.f32 %v9508, %v9628
        %v9642 = vmul.f32 %v9515, %v9628
        %v9643 = vmul.f32 %v9518, %v9628
        %v9644 = vmul.f32 %v9525, %v9628
        %v9645 = vmul.f32 %v9530, %v9628
        %v9646 = vmul.f32 %v9537, %v9628
        %v9647 = vmul.f32 %v9540, %v9628
        %v9648 = vmul.f32 %v9547, %v9628
        %v9649 = vmul.f32 %v9552, %v9628
        %v9650 = vmul.f32 %v9559, %v9628
        %v9651 = vmul.f32 %v9562, %v9628
        %v9652 = vmul.f32 %v9569, %v9628
        %v9653 = vmul.f32 %v9574, %v9628
        %v9654 = vmul.f32 %v9581, %v9628
        %v9655 = vmul.f32 %v9584, %v9628
        %v9656 = vmul.f32 %v9591, %v9628
        %v9657 = vmul.f32 %v9596, %v9628
        %v9658 = vmul.f32 %v9603, %v9628
        %v9659 = vmul.f32 %v9606, %v9628
        %v9660 = vmul.f32 %v9613, %v9628
        %v9661 = vmul.f32 %v9618, %v9628
        %v9662 = vld [vmem:[%s13] sm:$0x1]
        %v9664 = vlaneseq
        %v9665 = vshrl.u32 %v9664, 7
        %v9666 = vsub.s32 0, %v9665
        %v9667 = vrot.slane %v9662, %v9666
        %v9669 = vadd.f32 %v9630, %v9667
        %v9670 = vadd.f32 %v9631, %v9667
        %v9671 = vadd.f32 %v9632, %v9667
        %v9672 = vadd.f32 %v9633, %v9667
        %v9673 = vadd.f32 %v9634, %v9667
        %v9674 = vadd.f32 %v9635, %v9667
        %v9675 = vadd.f32 %v9636, %v9667
        %v9676 = vadd.f32 %v9637, %v9667
        %v9677 = vadd.f32 %v9638, %v9667
        %v9678 = vadd.f32 %v9639, %v9667
        %v9679 = vadd.f32 %v9640, %v9667
        %v9680 = vadd.f32 %v9641, %v9667
        %v9681 = vadd.f32 %v9642, %v9667
        %v9682 = vadd.f32 %v9643, %v9667
        %v9683 = vadd.f32 %v9644, %v9667
        %v9684 = vadd.f32 %v9645, %v9667
        %v9685 = vadd.f32 %v9646, %v9667
        %v9686 = vadd.f32 %v9647, %v9667
        %v9687 = vadd.f32 %v9648, %v9667
        %v9688 = vadd.f32 %v9649, %v9667
        %v9689 = vadd.f32 %v9650, %v9667
        %v9690 = vadd.f32 %v9651, %v9667
        %v9691 = vadd.f32 %v9652, %v9667
        %v9692 = vadd.f32 %v9653, %v9667
        %v9693 = vadd.f32 %v9654, %v9667
        %v9694 = vadd.f32 %v9655, %v9667
        %v9695 = vadd.f32 %v9656, %v9667
        %v9696 = vadd.f32 %v9657, %v9667
        %v9697 = vadd.f32 %v9658, %v9667
        %v9698 = vadd.f32 %v9659, %v9667
        %v9699 = vadd.f32 %v9660, %v9667
        %v9700 = vadd.f32 %v9661, %v9667
        %v9701 = vsub.f32 0.0, %v9669
        %v9702 = vsub.f32 0.0, %v9670
        %v9703 = vsub.f32 0.0, %v9671
        %v9704 = vsub.f32 0.0, %v9672
        %v9705 = vsub.f32 0.0, %v9673
        %v9706 = vsub.f32 0.0, %v9674
        %v9707 = vsub.f32 0.0, %v9675
        %v9708 = vsub.f32 0.0, %v9676
        %v9709 = vsub.f32 0.0, %v9677
        %v9710 = vsub.f32 0.0, %v9678
        %v9711 = vsub.f32 0.0, %v9679
        %v9712 = vsub.f32 0.0, %v9680
        %v9713 = vsub.f32 0.0, %v9681
        %v9714 = vsub.f32 0.0, %v9682
        %v9715 = vsub.f32 0.0, %v9683
        %v9716 = vsub.f32 0.0, %v9684
        %v9717 = vsub.f32 0.0, %v9685
        %v9718 = vsub.f32 0.0, %v9686
        %v9719 = vsub.f32 0.0, %v9687
        %v9720 = vsub.f32 0.0, %v9688
        %v9721 = vsub.f32 0.0, %v9689
        %v9722 = vsub.f32 0.0, %v9690
        %v9723 = vsub.f32 0.0, %v9691
        %v9724 = vsub.f32 0.0, %v9692
        %v9725 = vsub.f32 0.0, %v9693
        %v9726 = vsub.f32 0.0, %v9694
        %v9727 = vsub.f32 0.0, %v9695
        %v9728 = vsub.f32 0.0, %v9696
        %v9729 = vsub.f32 0.0, %v9697
        %v9730 = vsub.f32 0.0, %v9698
        %v9731 = vsub.f32 0.0, %v9699
        %v9732 = vsub.f32 0.0, %v9700
        %v9733 = vmul.f32 %v9701, 1.442695
        %v9734 = vpow.pop %v9733
        %v9735 = vmul.f32 %v9702, 1.442695
        %v9736 = vpow.pop %v9735
        %v9737 = vmul.f32 %v9703, 1.442695
        %v9738 = vpow.pop %v9737
        %v9739 = vmul.f32 %v9704, 1.442695
        %v9740 = vpow.pop %v9739
        %v9741 = vmul.f32 %v9705, 1.442695
        %v9742 = vpow.pop %v9741
        %v9743 = vmul.f32 %v9706, 1.442695
        %v9744 = vpow.pop %v9743
        %v9745 = vmul.f32 %v9707, 1.442695
        %v9746 = vpow.pop %v9745
        %v9747 = vmul.f32 %v9708, 1.442695
        %v9748 = vpow.pop %v9747
        %v9749 = vmul.f32 %v9709, 1.442695
        %v9750 = vpow.pop %v9749
        %v9751 = vmul.f32 %v9710, 1.442695
        %v9752 = vpow.pop %v9751
        %v9753 = vmul.f32 %v9711, 1.442695
        %v9754 = vpow.pop %v9753
        %v9755 = vmul.f32 %v9712, 1.442695
        %v9756 = vpow.pop %v9755
        %v9757 = vmul.f32 %v9713, 1.442695
        %v9758 = vpow.pop %v9757
        %v9759 = vmul.f32 %v9714, 1.442695
        %v9760 = vpow.pop %v9759
        %v9761 = vmul.f32 %v9715, 1.442695
        %v9762 = vpow.pop %v9761
        %v9763 = vmul.f32 %v9716, 1.442695
        %v9764 = vpow.pop %v9763
        %v9765 = vmul.f32 %v9717, 1.442695
        %v9766 = vpow.pop %v9765
        %v9767 = vmul.f32 %v9718, 1.442695
        %v9768 = vpow.pop %v9767
        %v9769 = vmul.f32 %v9719, 1.442695
        %v9770 = vpow.pop %v9769
        %v9771 = vmul.f32 %v9720, 1.442695
        %v9772 = vpow.pop %v9771
        %v9773 = vmul.f32 %v9721, 1.442695
        %v9774 = vpow.pop %v9773
        %v9775 = vmul.f32 %v9722, 1.442695
        %v9776 = vpow.pop %v9775
        %v9777 = vmul.f32 %v9723, 1.442695
        %v9778 = vpow.pop %v9777
        %v9779 = vmul.f32 %v9724, 1.442695
        %v9780 = vpow.pop %v9779
        %v9781 = vmul.f32 %v9725, 1.442695
        %v9782 = vpow.pop %v9781
        %v9783 = vmul.f32 %v9726, 1.442695
        %v9784 = vpow.pop %v9783
        %v9785 = vmul.f32 %v9727, 1.442695
        %v9786 = vpow.pop %v9785
        %v9787 = vmul.f32 %v9728, 1.442695
        %v9788 = vpow.pop %v9787
        %v9789 = vmul.f32 %v9729, 1.442695
        %v9790 = vpow.pop %v9789
        %v9791 = vmul.f32 %v9730, 1.442695
        %v9792 = vpow.pop %v9791
        %v9793 = vmul.f32 %v9731, 1.442695
        %v9794 = vpow.pop %v9793
        %v9795 = vmul.f32 %v9732, 1.442695
        %v9796 = vpow.pop %v9795
        %v9797 = vadd.f32 %v9734, 1.0
        %v9798 = vadd.f32 %v9736, 1.0
        %v9799 = vadd.f32 %v9738, 1.0
        %v9800 = vadd.f32 %v9740, 1.0
        %v9801 = vadd.f32 %v9742, 1.0
        %v9802 = vadd.f32 %v9744, 1.0
        %v9803 = vadd.f32 %v9746, 1.0
        %v9804 = vadd.f32 %v9748, 1.0
        %v9805 = vadd.f32 %v9750, 1.0
        %v9806 = vadd.f32 %v9752, 1.0
        %v9807 = vadd.f32 %v9754, 1.0
        %v9808 = vadd.f32 %v9756, 1.0
        %v9809 = vadd.f32 %v9758, 1.0
        %v9810 = vadd.f32 %v9760, 1.0
        %v9811 = vadd.f32 %v9762, 1.0
        %v9812 = vadd.f32 %v9764, 1.0
        %v9813 = vadd.f32 %v9766, 1.0
        %v9814 = vadd.f32 %v9768, 1.0
        %v9815 = vadd.f32 %v9770, 1.0
        %v9816 = vadd.f32 %v9772, 1.0
        %v9817 = vadd.f32 %v9774, 1.0
        %v9818 = vadd.f32 %v9776, 1.0
        %v9819 = vadd.f32 %v9778, 1.0
        %v9820 = vadd.f32 %v9780, 1.0
        %v9821 = vadd.f32 %v9782, 1.0
        %v9822 = vadd.f32 %v9784, 1.0
        %v9823 = vadd.f32 %v9786, 1.0
        %v9824 = vadd.f32 %v9788, 1.0
        %v9825 = vadd.f32 %v9790, 1.0
        %v9826 = vadd.f32 %v9792, 1.0
        %v9827 = vadd.f32 %v9794, 1.0
        %v9828 = vadd.f32 %v9796, 1.0
        %v9829 = vrcp.pop %v9797
        %v9830 = vmul.f32 1.0, %v9829
        %v9831 = vrcp.pop %v9798
        %v9832 = vmul.f32 1.0, %v9831
        %v9833 = vrcp.pop %v9799
        %v9834 = vmul.f32 1.0, %v9833
        %v9835 = vrcp.pop %v9800
        %v9836 = vmul.f32 1.0, %v9835
        %v9837 = vrcp.pop %v9801
        %v9838 = vmul.f32 1.0, %v9837
        %v9839 = vrcp.pop %v9802
        %v9840 = vmul.f32 1.0, %v9839
        %v9841 = vrcp.pop %v9803
        %v9842 = vmul.f32 1.0, %v9841
        %v9843 = vrcp.pop %v9804
        %v9844 = vmul.f32 1.0, %v9843
        %v9845 = vrcp.pop %v9805
        %v9846 = vmul.f32 1.0, %v9845
        %v9847 = vrcp.pop %v9806
        %v9848 = vmul.f32 1.0, %v9847
        %v9849 = vrcp.pop %v9807
        %v9850 = vmul.f32 1.0, %v9849
        %v9851 = vrcp.pop %v9808
        %v9852 = vmul.f32 1.0, %v9851
        %v9853 = vrcp.pop %v9809
        %v9854 = vmul.f32 1.0, %v9853
        %v9855 = vrcp.pop %v9810
        %v9856 = vmul.f32 1.0, %v9855
        %v9857 = vrcp.pop %v9811
        %v9858 = vmul.f32 1.0, %v9857
        %v9859 = vrcp.pop %v9812
        %v9860 = vmul.f32 1.0, %v9859
        %v9861 = vrcp.pop %v9813
        %v9862 = vmul.f32 1.0, %v9861
        %v9863 = vrcp.pop %v9814
        %v9864 = vmul.f32 1.0, %v9863
        %v9865 = vrcp.pop %v9815
        %v9866 = vmul.f32 1.0, %v9865
        %v9867 = vrcp.pop %v9816
        %v9868 = vmul.f32 1.0, %v9867
        %v9869 = vrcp.pop %v9817
        %v9870 = vmul.f32 1.0, %v9869
        %v9871 = vrcp.pop %v9818
        %v9872 = vmul.f32 1.0, %v9871
        %v9873 = vrcp.pop %v9819
        %v9874 = vmul.f32 1.0, %v9873
        %v9875 = vrcp.pop %v9820
        %v9876 = vmul.f32 1.0, %v9875
        %v9877 = vrcp.pop %v9821
        %v9878 = vmul.f32 1.0, %v9877
        %v9879 = vrcp.pop %v9822
        %v9880 = vmul.f32 1.0, %v9879
        %v9881 = vrcp.pop %v9823
        %v9882 = vmul.f32 1.0, %v9881
        %v9883 = vrcp.pop %v9824
        %v9884 = vmul.f32 1.0, %v9883
        %v9885 = vrcp.pop %v9825
        %v9886 = vmul.f32 1.0, %v9885
        %v9887 = vrcp.pop %v9826
        %v9888 = vmul.f32 1.0, %v9887
        %v9889 = vrcp.pop %v9827
        %v9890 = vmul.f32 1.0, %v9889
        %v9891 = vrcp.pop %v9828
        %v9892 = vmul.f32 1.0, %v9891
        %v9893 = vmul.f32 %v9669, %v9830
        %v9894 = vmul.f32 %v9670, %v9832
        %v9895 = vmul.f32 %v9671, %v9834
        %v9896 = vmul.f32 %v9672, %v9836
        %v9897 = vmul.f32 %v9673, %v9838
        %v9898 = vmul.f32 %v9674, %v9840
        %v9899 = vmul.f32 %v9675, %v9842
        %v9900 = vmul.f32 %v9676, %v9844
        %v9901 = vmul.f32 %v9677, %v9846
        %v9902 = vmul.f32 %v9678, %v9848
        %v9903 = vmul.f32 %v9679, %v9850
        %v9904 = vmul.f32 %v9680, %v9852
        %v9905 = vmul.f32 %v9681, %v9854
        %v9906 = vmul.f32 %v9682, %v9856
        %v9907 = vmul.f32 %v9683, %v9858
        %v9908 = vmul.f32 %v9684, %v9860
        %v9909 = vmul.f32 %v9685, %v9862
        %v9910 = vmul.f32 %v9686, %v9864
        %v9911 = vmul.f32 %v9687, %v9866
        %v9912 = vmul.f32 %v9688, %v9868
        %v9913 = vmul.f32 %v9689, %v9870
        %v9914 = vmul.f32 %v9690, %v9872
        %v9915 = vmul.f32 %v9691, %v9874
        %v9916 = vmul.f32 %v9692, %v9876
        %v9917 = vmul.f32 %v9693, %v9878
        %v9918 = vmul.f32 %v9694, %v9880
        %v9919 = vmul.f32 %v9695, %v9882
        %v9920 = vmul.f32 %v9696, %v9884
        %v9921 = vmul.f32 %v9697, %v9886
        %v9922 = vmul.f32 %v9698, %v9888
        %v9923 = vmul.f32 %v9699, %v9890
        %v9924 = vmul.f32 %v9700, %v9892
        %9925 = vst [vmem:[%s681] sm:$0xff] %v9893
        %9926 = vst [vmem:[%s681 + $0x8] sm:$0xff] %v9894
        %9927 = vst [vmem:[%s681 + $0x10] sm:$0xff] %v9895
        %9928 = vst [vmem:[%s681 + $0x18] sm:$0xff] %v9896
        %9929 = vst [vmem:[%s681 + $0x20] sm:$0xff] %v9897
        %9930 = vst [vmem:[%s681 + $0x28] sm:$0xff] %v9898
        %9931 = vst [vmem:[%s681 + $0x30] sm:$0xff] %v9899
        %9932 = vst [vmem:[%s681 + $0x38] sm:$0xff] %v9900
        %9933 = vst [vmem:[%s681 + $0x40] sm:$0xff] %v9901
        %9934 = vst [vmem:[%s681 + $0x48] sm:$0xff] %v9902
        %9935 = vst [vmem:[%s681 + $0x50] sm:$0xff] %v9903
        %9936 = vst [vmem:[%s681 + $0x58] sm:$0xff] %v9904
        %9937 = vst [vmem:[%s681 + $0x60] sm:$0xff] %v9905
        %9938 = vst [vmem:[%s681 + $0x68] sm:$0xff] %v9906
        %9939 = vst [vmem:[%s681 + $0x70] sm:$0xff] %v9907
        %9940 = vst [vmem:[%s681 + $0x78] sm:$0xff] %v9908
        %9941 = vst [vmem:[%s681 + $0x80] sm:$0xff] %v9909
        %9942 = vst [vmem:[%s681 + $0x88] sm:$0xff] %v9910
        %9943 = vst [vmem:[%s681 + $0x90] sm:$0xff] %v9911
        %9944 = vst [vmem:[%s681 + $0x98] sm:$0xff] %v9912
        %9945 = vst [vmem:[%s681 + $0xa0] sm:$0xff] %v9913
        %9946 = vst [vmem:[%s681 + $0xa8] sm:$0xff] %v9914
        %9947 = vst [vmem:[%s681 + $0xb0] sm:$0xff] %v9915
        %9948 = vst [vmem:[%s681 + $0xb8] sm:$0xff] %v9916
        %9949 = vst [vmem:[%s681 + $0xc0] sm:$0xff] %v9917
        %9950 = vst [vmem:[%s681 + $0xc8] sm:$0xff] %v9918
        %9951 = vst [vmem:[%s681 + $0xd0] sm:$0xff] %v9919
        %9952 = vst [vmem:[%s681 + $0xd8] sm:$0xff] %v9920
        %9953 = vst [vmem:[%s681 + $0xe0] sm:$0xff] %v9921
        %9954 = vst [vmem:[%s681 + $0xe8] sm:$0xff] %v9922
        %9955 = vst [vmem:[%s681 + $0xf0] sm:$0xff] %v9923
        %9956 = vst [vmem:[%s681 + $0xf8] sm:$0xff] %v9924
        %s9957 = sand.u32 %s398, 1
        %s9958 = scalar_lea.sflag [#allocation3], %s9957
        %s9959 = sand.u32 %s398, 1
        %s9960 = smul.addr %s9959, 256
        %s9961 = scalar_lea.vmem [#allocation2], %s9960
        // Predicated region
        $region77: #{asff3_forward.1} parent=75 // pred_check
          %p9962 = pneg %p408
        $region78: #{asff3_forward.1} parent=75 // pred_check_branch
          %9964 = sbr.rel (%p9962) target = $region80
        $region79: #{asff3_forward.1} parent=75 // pred_region
          %s9965 = smul.u32 16, %s33
          %s9967 = ssub.s32 4096, 4096
          %9968 = vsyncadd %s9958, %s9967
          %s9969 = smul.addr %s9965, 2
          %s9970 = smul.addr %s32, 32
          %s9971 = sadd.s32 %s9969, %s9970
          %s9972 = smul.addr %s9971, 128
          %s9973 = scalar_lea.hbm %s14, %s9972
          %s9974 = sshll.u32 %s9961, 4
          %s9975 = int_to_ptr.vmem [resolvable:$true] %s9974
          %9980 = dma.vmem_to_hbm [thread:$0]  %s9975, 4096, %s9973, %s9958, 128, 128, 8
        $region80: #{asff3_forward.1} parent=75 // pred_fallthru
          _
      $region76: #{asff3_forward.1} parent=5 // pred_fallthru
        _
      %p9981 = scmp.le.s32.totalorder 2, %s23
      // Predicated region
      $region81: #{asff3_forward.1} parent=5 // pred_check
        %p9982 = pneg %p9981
      $region82: #{asff3_forward.1} parent=5 // pred_check_branch
        %9984 = sbr.rel (%p9982) target = $region84
      $region83: #{asff3_forward.1} parent=5 // pred_region
        %s9985 = ssub.s32 %s23, 2
        // Predicated region
        $region85: #{asff3_forward.1} parent=83 // pred_check
          %p9986 = pneg %p414
        $region86: #{asff3_forward.1} parent=83 // pred_check_branch
          %9988 = sbr.rel (%p9986) target = $region88
        $region87: #{asff3_forward.1} parent=83 // pred_region
          %s9989 = sand.u32 %s399, 1
          %s9990 = scalar_lea.sflag [#allocation3], %s9989
          %s9991 = sand.u32 %s399, 1
          %s9992 = smul.addr %s9991, 256
          %s9993 = scalar_lea.vmem [#allocation2], %s9992
          %9994 = dma.done %s9990, 4096
        $region88: #{asff3_forward.1} parent=83 // pred_fallthru
          _
      $region84: #{asff3_forward.1} parent=5 // pred_fallthru
        _
    $region6: #{asff3_forward.1} parent=1 // loop_footer
      %s27 = sadd.s32 1, %s23
    $region7: #{asff3_forward.1} parent=1 // loop_footer_branch
      %22 = sbr.rel target = $region3
    $region8: #{asff3_forward.1} parent=1 // loop_exit
      _
    %9995 = vsyncpa [#allocation3], 1
    %s9996 = scalar_lea.sflag [#allocation3], 1
    %9997 = vsyncpa %s9996, 1

</llo_original>
